<compile_context>
chip_gen: v7x
topology: tpu7x:2x2x1
jax: 0.10.0
libtpu: 0.0.40
codegen_flags: <defaults>
</compile_context>

<pallas_src>
import functools

import jax
import jax.numpy as jnp
from jax.experimental import pallas as pl
from jax.experimental.pallas import tpu as pltpu


# ----------------------------------------------------------------------------
# In-kernel helpers
# ----------------------------------------------------------------------------
def _fill_padded(dst_ref, val3d, Hv, Wv):
    """Zero a (Hv+2, Wv+2, C) VMEM scratch and write `val3d` into its interior."""
    dst_ref[...] = jnp.zeros(dst_ref.shape, dst_ref.dtype)
    dst_ref[pl.ds(1, Hv), pl.ds(1, Wv), :] = val3d


def _conv3x3_acc(xp_ref, w_ref, Ho, Wo, stride):
    """3x3 conv (pad=1) read from a zero-padded VMEM scratch ref.

    xp_ref : (H+2, W+2, Cin) padded input in VMEM scratch.
    w_ref  : (3, 3, Cin, Cout) weights.
    Returns a (Ho*Wo, Cout) float32 accumulator (pixels x out-channels).
    Each tap is one MXU matmul; the 9 taps accumulate on-chip.
    """
    Cin = xp_ref.shape[-1]
    xp = None
    if stride > 1:
        xp = xp_ref[...]  # strided taps: slice the (small) loaded value
    acc = None
    for kh in range(3):
        for kw in range(3):
            if stride == 1:
                patch = xp_ref[pl.ds(kh, Ho), pl.ds(kw, Wo), :]
            else:
                patch = jax.lax.slice(
                    xp,
                    (kh, kw, 0),
                    (kh + (Ho - 1) * stride + 1,
                     kw + (Wo - 1) * stride + 1,
                     Cin),
                    (stride, stride, 1))
            contrib = jnp.dot(
                patch.reshape(Ho * Wo, Cin).astype(jnp.float32),
                w_ref[kh, kw].astype(jnp.float32),
                preferred_element_type=jnp.float32)
            acc = contrib if acc is None else acc + contrib
    return acc


# ----------------------------------------------------------------------------
# Kernel 1: stem = conv3x3(pad=1) + folded BN + ReLU
# ----------------------------------------------------------------------------
def _stem_kernel(x_ref, w_ref, s_ref, b_ref, o_ref, xp_ref, *, H, W, Cout):
    _fill_padded(xp_ref, x_ref[0].astype(jnp.float32), H, W)
    y = _conv3x3_acc(xp_ref, w_ref, H, W, 1)
    y = jnp.maximum(y * s_ref[...] + b_ref[...], 0.0)
    o_ref[0] = y.reshape(H, W, Cout).astype(o_ref.dtype)


def stem_forward(x_nhwc, p):
    N, H, W, Cin = x_nhwc.shape
    Cout = p["w"].shape[-1]
    kernel = functools.partial(_stem_kernel, H=H, W=W, Cout=Cout)
    return pl.pallas_call(
        kernel,
        out_shape=jax.ShapeDtypeStruct((N, H, W, Cout), jnp.float32),
        grid=(N,),
        in_specs=[
            pl.BlockSpec((1, H, W, Cin), lambda n: (n, 0, 0, 0)),
            pl.BlockSpec((3, 3, Cin, Cout), lambda n: (0, 0, 0, 0)),
            pl.BlockSpec((1, Cout), lambda n: (0, 0)),
            pl.BlockSpec((1, Cout), lambda n: (0, 0)),
        ],
        out_specs=pl.BlockSpec((1, H, W, Cout), lambda n: (n, 0, 0, 0)),
        scratch_shapes=[pltpu.VMEM((H + 2, W + 2, Cin), jnp.float32)],
        compiler_params=pltpu.CompilerParams(
            dimension_semantics=("parallel",)),
    )(x_nhwc, p["w"], p["s"], p["b"])


# ----------------------------------------------------------------------------
# Kernel 2: fused ResidualBlock
#   t = relu(conv1(x)+bn) ; y = conv2(t)+bn ; out = relu(y + shortcut(x))
# ----------------------------------------------------------------------------
def _resblock_kernel(x_ref, w1_ref, s1_ref, b1_ref, w2_ref, s2_ref, b2_ref,
                     o_ref, xp_ref, tp_ref, *, H, W, C):
    x = x_ref[0].astype(jnp.float32)                       # (H, W, C)
    _fill_padded(xp_ref, x, H, W)
    t = _conv3x3_acc(xp_ref, w1_ref, H, W, 1)              # (H*W, C)
    t = jnp.maximum(t * s1_ref[...] + b1_ref[...], 0.0)
    _fill_padded(tp_ref, t.reshape(H, W, C), H, W)
    y = _conv3x3_acc(tp_ref, w2_ref, H, W, 1)
    y = y * s2_ref[...] + b2_ref[...]
    out = jnp.maximum(y + x.reshape(H * W, C), 0.0)        # identity shortcut
    o_ref[0] = out.reshape(H, W, C).astype(o_ref.dtype)


def _resblock_down_kernel(x_ref, w1_ref, s1_ref, b1_ref, w2_ref, s2_ref, b2_ref,
                          wd_ref, sd_ref, bd_ref, o_ref, xp_ref, tp_ref,
                          *, H, W, Ho, Wo, stride, Cin, Cout):
    x = x_ref[0].astype(jnp.float32)                       # (H, W, Cin)
    _fill_padded(xp_ref, x, H, W)
    t = _conv3x3_acc(xp_ref, w1_ref, Ho, Wo, stride)       # (Ho*Wo, Cout)
    t = jnp.maximum(t * s1_ref[...] + b1_ref[...], 0.0)
    _fill_padded(tp_ref, t.reshape(Ho, Wo, Cout), Ho, Wo)
    y = _conv3x3_acc(tp_ref, w2_ref, Ho, Wo, 1)
    y = y * s2_ref[...] + b2_ref[...]
    # projection shortcut: 1x1 conv (stride) + folded BN on the original input
    xp = xp_ref[...]
    xs = jax.lax.slice(
        xp, (1, 1, 0),
        (1 + (Ho - 1) * stride + 1, 1 + (Wo - 1) * stride + 1, Cin),
        (stride, stride, 1))                               # (Ho, Wo, Cin)
    sc = jnp.dot(xs.reshape(Ho * Wo, Cin), wd_ref[...],
                 preferred_element_type=jnp.float32)
    sc = sc * sd_ref[...] + bd_ref[...]
    out = jnp.maximum(y + sc, 0.0)
    o_ref[0] = out.reshape(Ho, Wo, Cout).astype(o_ref.dtype)


def resblock_forward(x_nhwc, p):
    N, H, W, Cin = x_nhwc.shape
    Cout = p["w1"].shape[-1]
    stride = p["stride"]
    Ho = (H - 1) // stride + 1
    Wo = (W - 1) // stride + 1
    down = (Cin != Cout) or (stride != 1)

    in_specs = [
        pl.BlockSpec((1, H, W, Cin), lambda n: (n, 0, 0, 0)),
        pl.BlockSpec((3, 3, Cin, Cout), lambda n: (0, 0, 0, 0)),
        pl.BlockSpec((1, Cout), lambda n: (0, 0)),
        pl.BlockSpec((1, Cout), lambda n: (0, 0)),
        pl.BlockSpec((3, 3, Cout, Cout), lambda n: (0, 0, 0, 0)),
        pl.BlockSpec((1, Cout), lambda n: (0, 0)),
        pl.BlockSpec((1, Cout), lambda n: (0, 0)),
    ]
    args = [x_nhwc, p["w1"], p["s1"], p["b1"], p["w2"], p["s2"], p["b2"]]

    if down:
        kernel = functools.partial(_resblock_down_kernel, H=H, W=W, Ho=Ho, Wo=Wo,
                                   stride=stride, Cin=Cin, Cout=Cout)
        in_specs += [
            pl.BlockSpec((Cin, Cout), lambda n: (0, 0)),
            pl.BlockSpec((1, Cout), lambda n: (0, 0)),
            pl.BlockSpec((1, Cout), lambda n: (0, 0)),
        ]
        args += [p["wd"], p["sd"], p["bd"]]
    else:
        kernel = functools.partial(_resblock_kernel, H=H, W=W, C=Cout)

    return pl.pallas_call(
        kernel,
        out_shape=jax.ShapeDtypeStruct((N, Ho, Wo, Cout), jnp.float32),
        grid=(N,),
        in_specs=in_specs,
        out_specs=pl.BlockSpec((1, Ho, Wo, Cout), lambda n: (n, 0, 0, 0)),
        scratch_shapes=[
            pltpu.VMEM((H + 2, W + 2, Cin), jnp.float32),
            pltpu.VMEM((Ho + 2, Wo + 2, Cout), jnp.float32),
        ],
        compiler_params=pltpu.CompilerParams(
            dimension_semantics=("parallel",)),
    )(*args)


# ----------------------------------------------------------------------------
# Kernel 3: head = global average pool + fully-connected
# ----------------------------------------------------------------------------
def _head_kernel(x_ref, w_ref, b_ref, o_ref, *, N, H, W, C):
    x = x_ref[...].astype(jnp.float32)                     # (N, H, W, C)
    pooled = jnp.sum(x.reshape(N, H * W, C), axis=1) * (1.0 / (H * W))
    logits = jnp.dot(pooled, w_ref[...].astype(jnp.float32),
                     preferred_element_type=jnp.float32) + b_ref[...]
    o_ref[...] = logits.astype(o_ref.dtype)


def head_forward(x_nhwc, w_fc, b_fc):
    N, H, W, C = x_nhwc.shape
    num_classes = w_fc.shape[-1]
    kernel = functools.partial(_head_kernel, N=N, H=H, W=W, C=C)
    return pl.pallas_call(
        kernel,
        out_shape=jax.ShapeDtypeStruct((N, num_classes), jnp.float32),
    )(x_nhwc, w_fc, b_fc)


# ----------------------------------------------------------------------------
# Full network forward (wrapper glue)
# ----------------------------------------------------------------------------
def net_forward(x_nchw, params):
    # One NCHW -> NHWC transpose at the boundary (channels on the lane axis).
    x = jnp.transpose(x_nchw, (0, 2, 3, 1))
    s = stem_forward(x, params["stem"])
    h = s
    for blk in params["layer1"] + params["layer2"] + params["layer3"]:
        h = resblock_forward(h, blk)
    logits = head_forward(h, params["fc_w"], params["fc_b"])
    s_nchw = jnp.transpose(s, (0, 3, 1, 2))                # stem output, NCHW
    return logits, s_nchw


# ----------------------------------------------------------------------------
# Deterministic parameter init (conv weights + eval-mode BN folded to scale/bias)
# ----------------------------------------------------------------------------
def _fold_bn(key, C, conv_bias, eps=1e-5):
    k1, k2, k3, k4 = jax.random.split(key, 4)
    gamma = 1.0 + 0.1 * jax.random.normal(k1, (C,), jnp.float32)
    beta = 0.1 * jax.random.normal(k2, (C,), jnp.float32)
    mean = 0.1 * jax.random.normal(k3, (C,), jnp.float32)
    var = jax.nn.softplus(jax.random.normal(k4, (C,), jnp.float32)) + 0.5
    scale = gamma / jnp.sqrt(var + eps)
    bias = beta + (conv_bias - mean) * scale
    return scale.reshape(1, C), bias.reshape(1, C)


def _conv_w(key, kh, kw, cin, cout):
    fan_out = kh * kw * cout                               # kaiming, fan_out
    return jax.random.normal(key, (kh, kw, cin, cout), jnp.float32) * jnp.sqrt(2.0 / fan_out)


def init_resblock(key, cin, cout, stride):
    ks = jax.random.split(key, 8)
    p = {"stride": stride}
    p["w1"] = _conv_w(ks[0], 3, 3, cin, cout)
    b1 = 0.01 * jax.random.normal(ks[1], (cout,), jnp.float32)
    p["s1"], p["b1"] = _fold_bn(ks[2], cout, b1)
    p["w2"] = _conv_w(ks[3], 3, 3, cout, cout)
    b2 = 0.01 * jax.random.normal(ks[4], (cout,), jnp.float32)
    p["s2"], p["b2"] = _fold_bn(ks[5], cout, b2)
    if cin != cout or stride != 1:
        p["wd"] = _conv_w(ks[6], 1, 1, cin, cout).reshape(cin, cout)
        bd = jnp.zeros((cout,), jnp.float32)
        p["sd"], p["bd"] = _fold_bn(ks[7], cout, bd)
    return p


def init_net(key, scale=1, num_classes=10):
    params = {}
    k_stem, k1, k2, k3, k_fc = jax.random.split(key, 5)

    w = _conv_w(k_stem, 3, 3, 3, 16)
    b = 0.01 * jax.random.normal(jax.random.fold_in(k_stem, 1), (16,), jnp.float32)
    s, bb = _fold_bn(jax.random.fold_in(k_stem, 2), 16, b)
    params["stem"] = {"w": w, "s": s, "b": bb}

    def layer(kk, cfgs):
        keys = jax.random.split(kk, len(cfgs))
        return [init_resblock(k, cin, cout, st) for k, (cin, cout, st) in zip(keys, cfgs)]

    cfg1 = [(16, 16, 1)] * (2 * scale)
    cfg2 = [((16 if i == 0 else 32), 32, (2 if i == 0 else 1)) for i in range(2 * scale)]
    cfg3 = [((32 if i == 0 else 64), 64, (2 if i == 0 else 1)) for i in range(2 * scale)]
    params["layer1"] = layer(k1, cfg1)
    params["layer2"] = layer(k2, cfg2)
    params["layer3"] = layer(k3, cfg3)

    kw, kb = jax.random.split(k_fc)
    params["fc_w"] = jax.random.normal(kw, (64, num_classes), jnp.float32) / jnp.sqrt(64.0)
    params["fc_b"] = 0.01 * jax.random.normal(kb, (1, num_classes), jnp.float32)
    return params


if __name__ == "__main__":
    # CIFAR-like input implied by the stem Conv2d(3, 16, 3): batch=2, 3x32x32.
    N, Cin, H, W = 2, 3, 32, 32
    scale = 1

    key = jax.random.PRNGKey(0)
    kx, kp = jax.random.split(key)
    x = jax.random.normal(kx, (N, Cin, H, W), jnp.float32)
    params = init_net(kp, scale=scale)

    logits, s = net_forward(x, params)
    jax.block_until_ready((logits, s))
    assert logits.shape == (N, 10), logits.shape
    assert s.shape == (N, 16, H, W), s.shape
    print("KERNEL_OK")
</pallas_src>

<mosaic_0001>
module attributes {stable_mosaic.version = 11 : i64} {
  func.func @_stem_kernel(%arg0: i32, %arg1: memref<1x32x32x3xf32, #tpu.memory_space<vmem>>, %arg2: memref<3x3x3x16xf32, #tpu.memory_space<vmem>>, %arg3: memref<1x16xf32, #tpu.memory_space<vmem>>, %arg4: memref<1x16xf32, #tpu.memory_space<vmem>>, %arg5: memref<1x32x32x16xf32, #tpu.memory_space<vmem>>, %arg6: memref<34x34x3xf32, #tpu.memory_space<vmem>>) attributes {dimension_semantics = [#tpu.dimension_semantics<parallel>], iteration_bounds = array<i64: 2>, scalar_prefetch = 0 : i64, scratch_operands = 1 : i64, tpu.core_type = #tpu.core_type<tc>, window_params = [{transform_indices = @transform_0, window_bounds = array<i64: 1, 32, 32, 3>}, {pipeline_mode = #tpu.pipeline_mode<synchronous>, transform_indices = @transform_1, window_bounds = array<i64: 3, 3, 3, 16>}, {pipeline_mode = #tpu.pipeline_mode<synchronous>, transform_indices = @transform_2, window_bounds = array<i64: 1, 16>}, {pipeline_mode = #tpu.pipeline_mode<synchronous>, transform_indices = @transform_3, window_bounds = array<i64: 1, 16>}, {transform_indices = @transform_4, window_bounds = array<i64: 1, 32, 32, 16>}]} {
    %c0 = arith.constant 0 : index
    %c0_0 = arith.constant 0 : index
    %c0_1 = arith.constant 0 : index
    %c0_2 = arith.constant 0 : index
    %0 = vector.load %arg1[%c0, %c0_0, %c0_1, %c0_2] : memref<1x32x32x3xf32, #tpu.memory_space<vmem>>, vector<1x32x32x3xf32>
    %1 = vector.shape_cast %0 : vector<1x32x32x3xf32> to vector<32x32x3xf32>
    %cst = arith.constant 0.000000e+00 : f32
    %2 = vector.broadcast %cst : f32 to vector<34x34x3xf32>
    %c0_3 = arith.constant 0 : index
    %c0_4 = arith.constant 0 : index
    %c0_5 = arith.constant 0 : index
    %3 = vector.load %arg6[%c0_3, %c0_4, %c0_5] : memref<34x34x3xf32, #tpu.memory_space<vmem>>, vector<34x34x3xf32>
    tpu.vector_store %arg6[%c0_3, %c0_4, %c0_5], %2 {strides = array<i32>} : memref<34x34x3xf32, #tpu.memory_space<vmem>>, vector<34x34x3xf32>,
    %c1 = arith.constant 1 : index
    %c1_6 = arith.constant 1 : index
    %c0_7 = arith.constant 0 : index
    %4 = vector.load %arg6[%c1, %c1_6, %c0_7] : memref<34x34x3xf32, #tpu.memory_space<vmem>>, vector<32x32x3xf32>
    tpu.vector_store %arg6[%c1, %c1_6, %c0_7], %1 {strides = array<i32>} : memref<34x34x3xf32, #tpu.memory_space<vmem>>, vector<32x32x3xf32>,
    %c0_8 = arith.constant 0 : index
    %c0_9 = arith.constant 0 : index
    %c0_10 = arith.constant 0 : index
    %5 = vector.load %arg6[%c0_8, %c0_9, %c0_10] : memref<34x34x3xf32, #tpu.memory_space<vmem>>, vector<32x32x3xf32>
    %6 = vector.shape_cast %5 : vector<32x32x3xf32> to vector<1024x3xf32>
    %c0_11 = arith.constant 0 : index
    %c0_12 = arith.constant 0 : index
    %c0_13 = arith.constant 0 : index
    %c0_14 = arith.constant 0 : index
    %7 = vector.load %arg2[%c0_11, %c0_12, %c0_13, %c0_14] : memref<3x3x3x16xf32, #tpu.memory_space<vmem>>, vector<1x1x3x16xf32>
    %8 = vector.shape_cast %7 : vector<1x1x3x16xf32> to vector<3x16xf32>
    %cst_15 = arith.constant dense<0.000000e+00> : vector<1024x16xf32>
    %9 = tpu.matmul %6, %8, %cst_15 {dimension_numbers = #tpu.dot_dimension_numbers<[1], [0], [0], [1], [0, 0, 1, 1], [], []>} : vector<1024x3xf32>, vector<3x16xf32>, vector<1024x16xf32> -> vector<1024x16xf32>
    %c0_16 = arith.constant 0 : index
    %c1_17 = arith.constant 1 : index
    %c0_18 = arith.constant 0 : index
    %10 = vector.load %arg6[%c0_16, %c1_17, %c0_18] : memref<34x34x3xf32, #tpu.memory_space<vmem>>, vector<32x32x3xf32>
    %11 = vector.shape_cast %10 : vector<32x32x3xf32> to vector<1024x3xf32>
    %c0_19 = arith.constant 0 : index
    %c1_20 = arith.constant 1 : index
    %c0_21 = arith.constant 0 : index
    %c0_22 = arith.constant 0 : index
    %12 = vector.load %arg2[%c0_19, %c1_20, %c0_21, %c0_22] : memref<3x3x3x16xf32, #tpu.memory_space<vmem>>, vector<1x1x3x16xf32>
    %13 = vector.shape_cast %12 : vector<1x1x3x16xf32> to vector<3x16xf32>
    %cst_23 = arith.constant dense<0.000000e+00> : vector<1024x16xf32>
    %14 = tpu.matmul %11, %13, %cst_23 {dimension_numbers = #tpu.dot_dimension_numbers<[1], [0], [0], [1], [0, 0, 1, 1], [], []>} : vector<1024x3xf32>, vector<3x16xf32>, vector<1024x16xf32> -> vector<1024x16xf32>
    %15 = arith.addf %9, %14 : vector<1024x16xf32>
    %c0_24 = arith.constant 0 : index
    %c2 = arith.constant 2 : index
    %c0_25 = arith.constant 0 : index
    %16 = vector.load %arg6[%c0_24, %c2, %c0_25] : memref<34x34x3xf32, #tpu.memory_space<vmem>>, vector<32x32x3xf32>
    %17 = vector.shape_cast %16 : vector<32x32x3xf32> to vector<1024x3xf32>
    %c0_26 = arith.constant 0 : index
    %c2_27 = arith.constant 2 : index
    %c0_28 = arith.constant 0 : index
    %c0_29 = arith.constant 0 : index
    %18 = vector.load %arg2[%c0_26, %c2_27, %c0_28, %c0_29] : memref<3x3x3x16xf32, #tpu.memory_space<vmem>>, vector<1x1x3x16xf32>
    %19 = vector.shape_cast %18 : vector<1x1x3x16xf32> to vector<3x16xf32>
    %cst_30 = arith.constant dense<0.000000e+00> : vector<1024x16xf32>
    %20 = tpu.matmul %17, %19, %cst_30 {dimension_numbers = #tpu.dot_dimension_numbers<[1], [0], [0], [1], [0, 0, 1, 1], [], []>} : vector<1024x3xf32>, vector<3x16xf32>, vector<1024x16xf32> -> vector<1024x16xf32>
    %21 = arith.addf %15, %20 : vector<1024x16xf32>
    %c1_31 = arith.constant 1 : index
    %c0_32 = arith.constant 0 : index
    %c0_33 = arith.constant 0 : index
    %22 = vector.load %arg6[%c1_31, %c0_32, %c0_33] : memref<34x34x3xf32, #tpu.memory_space<vmem>>, vector<32x32x3xf32>
    %23 = vector.shape_cast %22 : vector<32x32x3xf32> to vector<1024x3xf32>
    %c1_34 = arith.constant 1 : index
    %c0_35 = arith.constant 0 : index
    %c0_36 = arith.constant 0 : index
    %c0_37 = arith.constant 0 : index
    %24 = vector.load %arg2[%c1_34, %c0_35, %c0_36, %c0_37] : memref<3x3x3x16xf32, #tpu.memory_space<vmem>>, vector<1x1x3x16xf32>
    %25 = vector.shape_cast %24 : vector<1x1x3x16xf32> to vector<3x16xf32>
    %cst_38 = arith.constant dense<0.000000e+00> : vector<1024x16xf32>
    %26 = tpu.matmul %23, %25, %cst_38 {dimension_numbers = #tpu.dot_dimension_numbers<[1], [0], [0], [1], [0, 0, 1, 1], [], []>} : vector<1024x3xf32>, vector<3x16xf32>, vector<1024x16xf32> -> vector<1024x16xf32>
    %27 = arith.addf %21, %26 : vector<1024x16xf32>
    %c1_39 = arith.constant 1 : index
    %c1_40 = arith.constant 1 : index
    %c0_41 = arith.constant 0 : index
    %28 = vector.load %arg6[%c1_39, %c1_40, %c0_41] : memref<34x34x3xf32, #tpu.memory_space<vmem>>, vector<32x32x3xf32>
    %29 = vector.shape_cast %28 : vector<32x32x3xf32> to vector<1024x3xf32>
    %c1_42 = arith.constant 1 : index
    %c1_43 = arith.constant 1 : index
    %c0_44 = arith.constant 0 : index
    %c0_45 = arith.constant 0 : index
    %30 = vector.load %arg2[%c1_42, %c1_43, %c0_44, %c0_45] : memref<3x3x3x16xf32, #tpu.memory_space<vmem>>, vector<1x1x3x16xf32>
    %31 = vector.shape_cast %30 : vector<1x1x3x16xf32> to vector<3x16xf32>
    %cst_46 = arith.constant dense<0.000000e+00> : vector<1024x16xf32>
    %32 = tpu.matmul %29, %31, %cst_46 {dimension_numbers = #tpu.dot_dimension_numbers<[1], [0], [0], [1], [0, 0, 1, 1], [], []>} : vector<1024x3xf32>, vector<3x16xf32>, vector<1024x16xf32> -> vector<1024x16xf32>
    %33 = arith.addf %27, %32 : vector<1024x16xf32>
    %c1_47 = arith.constant 1 : index
    %c2_48 = arith.constant 2 : index
    %c0_49 = arith.constant 0 : index
    %34 = vector.load %arg6[%c1_47, %c2_48, %c0_49] : memref<34x34x3xf32, #tpu.memory_space<vmem>>, vector<32x32x3xf32>
    %35 = vector.shape_cast %34 : vector<32x32x3xf32> to vector<1024x3xf32>
    %c1_50 = arith.constant 1 : index
    %c2_51 = arith.constant 2 : index
    %c0_52 = arith.constant 0 : index
    %c0_53 = arith.constant 0 : index
    %36 = vector.load %arg2[%c1_50, %c2_51, %c0_52, %c0_53] : memref<3x3x3x16xf32, #tpu.memory_space<vmem>>, vector<1x1x3x16xf32>
    %37 = vector.shape_cast %36 : vector<1x1x3x16xf32> to vector<3x16xf32>
    %cst_54 = arith.constant dense<0.000000e+00> : vector<1024x16xf32>
    %38 = tpu.matmul %35, %37, %cst_54 {dimension_numbers = #tpu.dot_dimension_numbers<[1], [0], [0], [1], [0, 0, 1, 1], [], []>} : vector<1024x3xf32>, vector<3x16xf32>, vector<1024x16xf32> -> vector<1024x16xf32>
    %39 = arith.addf %33, %38 : vector<1024x16xf32>
    %c2_55 = arith.constant 2 : index
    %c0_56 = arith.constant 0 : index
    %c0_57 = arith.constant 0 : index
    %40 = vector.load %arg6[%c2_55, %c0_56, %c0_57] : memref<34x34x3xf32, #tpu.memory_space<vmem>>, vector<32x32x3xf32>
    %41 = vector.shape_cast %40 : vector<32x32x3xf32> to vector<1024x3xf32>
    %c2_58 = arith.constant 2 : index
    %c0_59 = arith.constant 0 : index
    %c0_60 = arith.constant 0 : index
    %c0_61 = arith.constant 0 : index
    %42 = vector.load %arg2[%c2_58, %c0_59, %c0_60, %c0_61] : memref<3x3x3x16xf32, #tpu.memory_space<vmem>>, vector<1x1x3x16xf32>
    %43 = vector.shape_cast %42 : vector<1x1x3x16xf32> to vector<3x16xf32>
    %cst_62 = arith.constant dense<0.000000e+00> : vector<1024x16xf32>
    %44 = tpu.matmul %41, %43, %cst_62 {dimension_numbers = #tpu.dot_dimension_numbers<[1], [0], [0], [1], [0, 0, 1, 1], [], []>} : vector<1024x3xf32>, vector<3x16xf32>, vector<1024x16xf32> -> vector<1024x16xf32>
    %45 = arith.addf %39, %44 : vector<1024x16xf32>
    %c2_63 = arith.constant 2 : index
    %c1_64 = arith.constant 1 : index
    %c0_65 = arith.constant 0 : index
    %46 = vector.load %arg6[%c2_63, %c1_64, %c0_65] : memref<34x34x3xf32, #tpu.memory_space<vmem>>, vector<32x32x3xf32>
    %47 = vector.shape_cast %46 : vector<32x32x3xf32> to vector<1024x3xf32>
    %c2_66 = arith.constant 2 : index
    %c1_67 = arith.constant 1 : index
    %c0_68 = arith.constant 0 : index
    %c0_69 = arith.constant 0 : index
    %48 = vector.load %arg2[%c2_66, %c1_67, %c0_68, %c0_69] : memref<3x3x3x16xf32, #tpu.memory_space<vmem>>, vector<1x1x3x16xf32>
    %49 = vector.shape_cast %48 : vector<1x1x3x16xf32> to vector<3x16xf32>
    %cst_70 = arith.constant dense<0.000000e+00> : vector<1024x16xf32>
    %50 = tpu.matmul %47, %49, %cst_70 {dimension_numbers = #tpu.dot_dimension_numbers<[1], [0], [0], [1], [0, 0, 1, 1], [], []>} : vector<1024x3xf32>, vector<3x16xf32>, vector<1024x16xf32> -> vector<1024x16xf32>
    %51 = arith.addf %45, %50 : vector<1024x16xf32>
    %c2_71 = arith.constant 2 : index
    %c2_72 = arith.constant 2 : index
    %c0_73 = arith.constant 0 : index
    %52 = vector.load %arg6[%c2_71, %c2_72, %c0_73] : memref<34x34x3xf32, #tpu.memory_space<vmem>>, vector<32x32x3xf32>
    %53 = vector.shape_cast %52 : vector<32x32x3xf32> to vector<1024x3xf32>
    %c2_74 = arith.constant 2 : index
    %c2_75 = arith.constant 2 : index
    %c0_76 = arith.constant 0 : index
    %c0_77 = arith.constant 0 : index
    %54 = vector.load %arg2[%c2_74, %c2_75, %c0_76, %c0_77] : memref<3x3x3x16xf32, #tpu.memory_space<vmem>>, vector<1x1x3x16xf32>
    %55 = vector.shape_cast %54 : vector<1x1x3x16xf32> to vector<3x16xf32>
    %cst_78 = arith.constant dense<0.000000e+00> : vector<1024x16xf32>
    %56 = tpu.matmul %53, %55, %cst_78 {dimension_numbers = #tpu.dot_dimension_numbers<[1], [0], [0], [1], [0, 0, 1, 1], [], []>} : vector<1024x3xf32>, vector<3x16xf32>, vector<1024x16xf32> -> vector<1024x16xf32>
    %57 = arith.addf %51, %56 : vector<1024x16xf32>
    %c0_79 = arith.constant 0 : index
    %c0_80 = arith.constant 0 : index
    %58 = vector.load %arg3[%c0_79, %c0_80] : memref<1x16xf32, #tpu.memory_space<vmem>>, vector<1x16xf32>
    %59 = vector.broadcast %58 : vector<1x16xf32> to vector<1024x16xf32>
    %60 = arith.mulf %57, %59 : vector<1024x16xf32>
    %c0_81 = arith.constant 0 : index
    %c0_82 = arith.constant 0 : index
    %61 = vector.load %arg4[%c0_81, %c0_82] : memref<1x16xf32, #tpu.memory_space<vmem>>, vector<1x16xf32>
    %62 = vector.broadcast %61 : vector<1x16xf32> to vector<1024x16xf32>
    %63 = arith.addf %60, %62 : vector<1024x16xf32>
    %cst_83 = arith.constant 0.000000e+00 : f32
    %64 = vector.broadcast %cst_83 : f32 to vector<1024x16xf32>
    %65 = arith.maximumf %63, %64 : vector<1024x16xf32>
    %66 = vector.shape_cast %65 : vector<1024x16xf32> to vector<32x32x16xf32>
    %c0_84 = arith.constant 0 : index
    %c0_85 = arith.constant 0 : index
    %c0_86 = arith.constant 0 : index
    %c0_87 = arith.constant 0 : index
    %67 = vector.load %arg5[%c0_84, %c0_85, %c0_86, %c0_87] : memref<1x32x32x16xf32, #tpu.memory_space<vmem>>, vector<1x32x32x16xf32>
    %68 = vector.shape_cast %67 : vector<1x32x32x16xf32> to vector<32x32x16xf32>
    %69 = vector.shape_cast %66 : vector<32x32x16xf32> to vector<1x32x32x16xf32>
    tpu.vector_store %arg5[%c0_84, %c0_85, %c0_86, %c0_87], %69 {strides = array<i32>} : memref<1x32x32x16xf32, #tpu.memory_space<vmem>>, vector<1x32x32x16xf32>,
    return
  }
  func.func @transform_0(%arg0: i32) -> (i32, i32, i32, i32) {
    %c0_i32 = arith.constant 0 : i32
    %c0_i32_0 = arith.constant 0 : i32
    %c0_i32_1 = arith.constant 0 : i32
    %c0_i32_2 = arith.constant 0 : i32
    return %arg0, %c0_i32, %c0_i32_0, %c0_i32_1 : i32, i32, i32, i32
  }
  func.func @transform_1(%arg0: i32) -> (i32, i32, i32, i32) {
    %c0_i32 = arith.constant 0 : i32
    %c0_i32_0 = arith.constant 0 : i32
    %c0_i32_1 = arith.constant 0 : i32
    %c0_i32_2 = arith.constant 0 : i32
    %c0_i32_3 = arith.constant 0 : i32
    return %c0_i32, %c0_i32_0, %c0_i32_1, %c0_i32_2 : i32, i32, i32, i32
  }
  func.func @transform_2(%arg0: i32) -> (i32, i32) {
    %c0_i32 = arith.constant 0 : i32
    %c0_i32_0 = arith.constant 0 : i32
    %c0_i32_1 = arith.constant 0 : i32
    return %c0_i32, %c0_i32_0 : i32, i32
  }
  func.func @transform_3(%arg0: i32) -> (i32, i32) {
    %c0_i32 = arith.constant 0 : i32
    %c0_i32_0 = arith.constant 0 : i32
    %c0_i32_1 = arith.constant 0 : i32
    return %c0_i32, %c0_i32_0 : i32, i32
  }
  func.func @transform_4(%arg0: i32) -> (i32, i32, i32, i32) {
    %c0_i32 = arith.constant 0 : i32
    %c0_i32_0 = arith.constant 0 : i32
    %c0_i32_1 = arith.constant 0 : i32
    %c0_i32_2 = arith.constant 0 : i32
    return %arg0, %c0_i32, %c0_i32_0, %c0_i32_1 : i32, i32, i32, i32
  }
}

</mosaic_0001>

<llo_original>
// kernel: tpu_custom_call.1
$region0: #{tpu_custom_call.1}
  #allocation0 [shape = 'u32[]', space=smem, size = 0x4, offset = 0x4, fixed_abs, tag = 'smem constant byte address 0x4 - core index']
  #allocation1 [shape = 'u32[144,128]{1,0:T(1,128)}', space=vmem, size = 0x12000, scoped, tag = 'internal scratch']
  #allocation2 [shape = 'f32[34,34,3]{2,1,0:T(8,128)}', space=vmem, size = 0xaa000, scoped, tag = 'scratch operand']
  %s0 = inlined_call_operand.vmem [shape: f32[2,32,32,3], index: 0, kind: input, shape index: {}]
  %s1 = inlined_call_operand.vmem [shape: f32[3,3,3,16], index: 1, kind: input, shape index: {}]
  %s2 = inlined_call_operand.vmem [shape: f32[1,16], index: 2, kind: input, shape index: {}]
  %s3 = inlined_call_operand.vmem [shape: f32[1,16], index: 3, kind: input, shape index: {}]
  %s4 = inlined_call_operand.vmem [shape: f32[2,32,32,16], index: 4, kind: output, shape index: {}]
  %s5 = sld [smem:[#allocation0]]
  $region49: #{tpu_custom_call.1} parent=0
    _
  %s7 = ssub.s32 1, %s5
  %s8 = scalar_select 0, %s7, %s5
  loop: start=0, step=1, limit=4
  $region2: #{tpu_custom_call.1} parent=0 // loop_pre_header
    _
  $region3: #{tpu_custom_call.1} parent=0 // loop_header
    %s10 = sphi 0, %s14
    %p11 = scmp.ge.s32.totalorder %s10, 4
    %s20 = sphi 0, %s22
    %s23 = sphi 0, %s20
    %s24 = sphi 0, %s23
    %s40 = sphi 0, %s24
    %s44 = sphi 0, %s44
    %s46 = sphi 0, %s44
    %s47 = sphi 0, %s46
    %s61 = sphi 0, %s47
    %s65 = sphi 0, %s65
    %s67 = sphi 0, %s65
    %s68 = sphi 0, %s67
    %s82 = sphi 0, %s68
    %s86 = sphi 0, %s86
    %s88 = sphi 0, %s86
    %s89 = sphi 0, %s88
    %s103 = sphi 0, %s89
    %s109 = sphi 0, %s111
    %s112 = sphi 0, %s109
    %s113 = sphi 0, %s112
    %s129 = sphi 0, %s113
  $region4: #{tpu_custom_call.1} parent=0 // loop_header_branch
    %13 = sbr.rel (%p11) target = $region8
  $region5: #{tpu_custom_call.1} parent=0 // loop_body
    %s15 = ssub.s32 %s10, 1
    %s16 = ssub.s32 %s10, 2
    %s17 = sadd.s32 %s10, 1
    %s18 = ssub.s32 %s10, %s17
    %p19 = scmp.eq.s32.totalorder %s18, 0
    %s21 = sadd.s32 %s20, 1
    %s22 = scalar_select %p19, %s20, %s21
    %p25 = pneg %p19
    %p26 = scmp.eq.s32.totalorder %s10, 1
    %p27 = por %p25, %p26
    %p28 = scmp.ne.s32.totalorder %s20, %s23
    %p29 = scmp.eq.s32.totalorder %s10, 0
    %p30 = por %p28, %p29
    %p31 = scmp.ne.s32.totalorder %s20, %s23
    %p32 = scmp.eq.s32.totalorder %s15, 1
    %p33 = por %p31, %p32
    %p34 = scmp.ne.s32.totalorder %s23, %s24
    %p35 = scmp.eq.s32.totalorder %s15, 0
    %p36 = por %p34, %p35
    %p37 = scmp.ne.s32.totalorder %s23, %s24
    %p38 = scmp.eq.s32.totalorder %s16, 1
    %p39 = por %p37, %p38
    %p41 = scmp.ne.s32.totalorder %s24, %s40
    %p42 = scmp.eq.s32.totalorder %s16, 0
    %p43 = por %p41, %p42
    %s45 = sadd.s32 %s44, 1
    %p48 = scmp.eq.s32.totalorder %s10, 1
    %p49 = scmp.ne.s32.totalorder %s44, %s46
    %p50 = scmp.eq.s32.totalorder %s10, 0
    %p51 = por %p49, %p50
    %p52 = scmp.ne.s32.totalorder %s44, %s46
    %p53 = scmp.eq.s32.totalorder %s15, 1
    %p54 = por %p52, %p53
    %p55 = scmp.ne.s32.totalorder %s46, %s47
    %p56 = scmp.eq.s32.totalorder %s15, 0
    %p57 = por %p55, %p56
    %p58 = scmp.ne.s32.totalorder %s46, %s47
    %p59 = scmp.eq.s32.totalorder %s16, 1
    %p60 = por %p58, %p59
    %p62 = scmp.ne.s32.totalorder %s47, %s61
    %p63 = scmp.eq.s32.totalorder %s16, 0
    %p64 = por %p62, %p63
    %s66 = sadd.s32 %s65, 1
    %p69 = scmp.eq.s32.totalorder %s10, 1
    %p70 = scmp.ne.s32.totalorder %s65, %s67
    %p71 = scmp.eq.s32.totalorder %s10, 0
    %p72 = por %p70, %p71
    %p73 = scmp.ne.s32.totalorder %s65, %s67
    %p74 = scmp.eq.s32.totalorder %s15, 1
    %p75 = por %p73, %p74
    %p76 = scmp.ne.s32.totalorder %s67, %s68
    %p77 = scmp.eq.s32.totalorder %s15, 0
    %p78 = por %p76, %p77
    %p79 = scmp.ne.s32.totalorder %s67, %s68
    %p80 = scmp.eq.s32.totalorder %s16, 1
    %p81 = por %p79, %p80
    %p83 = scmp.ne.s32.totalorder %s68, %s82
    %p84 = scmp.eq.s32.totalorder %s16, 0
    %p85 = por %p83, %p84
    %s87 = sadd.s32 %s86, 1
    %p90 = scmp.eq.s32.totalorder %s10, 1
    %p91 = scmp.ne.s32.totalorder %s86, %s88
    %p92 = scmp.eq.s32.totalorder %s10, 0
    %p93 = por %p91, %p92
    %p94 = scmp.ne.s32.totalorder %s86, %s88
    %p95 = scmp.eq.s32.totalorder %s15, 1
    %p96 = por %p94, %p95
    %p97 = scmp.ne.s32.totalorder %s88, %s89
    %p98 = scmp.eq.s32.totalorder %s15, 0
    %p99 = por %p97, %p98
    %p100 = scmp.ne.s32.totalorder %s88, %s89
    %p101 = scmp.eq.s32.totalorder %s16, 1
    %p102 = por %p100, %p101
    %p104 = scmp.ne.s32.totalorder %s89, %s103
    %p105 = scmp.eq.s32.totalorder %s16, 0
    %p106 = por %p104, %p105
    %s107 = ssub.s32 %s10, %s17
    %p108 = scmp.eq.s32.totalorder %s107, 0
    %s110 = sadd.s32 %s109, 1
    %s111 = scalar_select %p108, %s109, %s110
    %p114 = pneg %p108
    %p115 = scmp.eq.s32.totalorder %s10, 1
    %p116 = por %p114, %p115
    %p117 = scmp.ne.s32.totalorder %s109, %s112
    %p118 = scmp.eq.s32.totalorder %s10, 0
    %p119 = por %p117, %p118
    %p120 = scmp.ne.s32.totalorder %s109, %s112
    %p121 = scmp.eq.s32.totalorder %s15, 1
    %p122 = por %p120, %p121
    %p123 = scmp.ne.s32.totalorder %s112, %s113
    %p124 = scmp.eq.s32.totalorder %s15, 0
    %p125 = por %p123, %p124
    %p126 = scmp.ne.s32.totalorder %s112, %s113
    %p127 = scmp.eq.s32.totalorder %s16, 1
    %p128 = por %p126, %p127
    %p130 = scmp.ne.s32.totalorder %s113, %s129
    %p131 = scmp.eq.s32.totalorder %s16, 0
    %p132 = por %p130, %p131
    %p133 = scmp.le.s32.totalorder 1, %s10
    %p134 = scmp.lt.s32.totalorder %s10, 3
    %p135 = pnand %p133, %p134
    %p136 = pneg %p135
    // Predicated region
    $region9: #{tpu_custom_call.1} parent=5 // pred_check
      _
    $region10: #{tpu_custom_call.1} parent=5 // pred_check_branch
      %138 = sbr.rel (%p135) target = $region12
    $region11: #{tpu_custom_call.1} parent=5 // pred_region
      %s139 = ssub.s32 %s10, 1
      // Predicated region
      $region13: #{tpu_custom_call.1} parent=11 // pred_check
        %p140 = pneg %p57
      $region14: #{tpu_custom_call.1} parent=11 // pred_check_branch
        %142 = sbr.rel (%p140) target = $region16
      $region15: #{tpu_custom_call.1} parent=11 // pred_region
        _
      $region16: #{tpu_custom_call.1} parent=11 // pred_fallthru
        _
      // Predicated region
      $region17: #{tpu_custom_call.1} parent=11 // pred_check
        %p143 = pneg %p78
      $region18: #{tpu_custom_call.1} parent=11 // pred_check_branch
        %145 = sbr.rel (%p143) target = $region20
      $region19: #{tpu_custom_call.1} parent=11 // pred_region
        _
      $region20: #{tpu_custom_call.1} parent=11 // pred_fallthru
        _
      // Predicated region
      $region21: #{tpu_custom_call.1} parent=11 // pred_check
        %p146 = pneg %p99
      $region22: #{tpu_custom_call.1} parent=11 // pred_check_branch
        %148 = sbr.rel (%p146) target = $region24
      $region23: #{tpu_custom_call.1} parent=11 // pred_region
        _
      $region24: #{tpu_custom_call.1} parent=11 // pred_fallthru
        _
    $region12: #{tpu_custom_call.1} parent=5 // pred_fallthru
      _
    %p149 = scmp.lt.s32.totalorder %s10, 2
    // Predicated region
    $region25: #{tpu_custom_call.1} parent=5 // pred_check
      %p150 = pneg %p149
    $region26: #{tpu_custom_call.1} parent=5 // pred_check_branch
      %152 = sbr.rel (%p150) target = $region28
    $region27: #{tpu_custom_call.1} parent=5 // pred_region
      // Predicated region
      $region29: #{tpu_custom_call.1} parent=27 // pred_check
        %p153 = pneg %p30
      $region30: #{tpu_custom_call.1} parent=27 // pred_check_branch
        %155 = sbr.rel (%p153) target = $region32
      $region31: #{tpu_custom_call.1} parent=27 // pred_region
        %p156 = scmp.lt.s32.totalorder %s10, 1
        %s157 = scalar_select %p156, %s10, 1
        %s158 = smul.addr %s157, 128
        %s159 = smul.addr %s158, 8
        %s160 = scalar_lea.vmem %s0, %s159
      $region32: #{tpu_custom_call.1} parent=27 // pred_fallthru
        _
    $region28: #{tpu_custom_call.1} parent=5 // pred_fallthru
      _
    %p161 = scmp.le.s32.totalorder 1, %s10
    %p162 = scmp.lt.s32.totalorder %s10, 3
    %p163 = pnand %p161, %p162
    %p164 = pneg %p163
    // Predicated region
    $region33: #{tpu_custom_call.1} parent=5 // pred_check
      _
    $region34: #{tpu_custom_call.1} parent=5 // pred_check_branch
      %166 = sbr.rel (%p163) target = $region36
    $region35: #{tpu_custom_call.1} parent=5 // pred_region
      %s167 = ssub.s32 %s10, 1
      %p168 = scmp.lt.s32.totalorder %s15, 1
      %s169 = scalar_select %p168, %s15, 1
      %s170 = smul.addr %s169, 128
      %s171 = smul.addr %s170, 8
      %s172 = scalar_lea.vmem %s0, %s171
      %p173 = pneg %p36
      %p174 = pneg %p33
      %p175 = pneg %p57
      %p176 = pneg %p54
      %p177 = pneg %p78
      %p178 = pneg %p75
      %p179 = pneg %p99
      %p180 = pneg %p96
      %p181 = pneg %p125
      %p182 = pneg %p122
      %p183 = scmp.lt.s32.totalorder %s15, 1
      %s184 = scalar_select %p183, %s15, 1
      %s185 = smul.addr %s184, 128
      %s186 = smul.addr %s185, 8
      %s187 = scalar_lea.vmem %s4, %s186
      %p188 = scmp.lt.s32.totalorder %s15, 1
      %s189 = scalar_select %p188, %s15, 1
      %s190 = smul.addr %s189, 128
      %s191 = smul.addr %s190, 8
      %s192 = scalar_lea.vmem %s0, %s191
      %p193 = scmp.lt.s32.totalorder %s15, 1
      %s194 = scalar_select %p193, %s15, 1
      %s195 = smul.addr %s194, 128
      %s196 = smul.addr %s195, 8
      %s197 = scalar_lea.vmem %s4, %s196
      %v198 = vld [vmem:[%s192] sm:$0xff]
      %v199 = vld [vmem:[%s192 + $0x8] sm:$0xff]
      %v200 = vld [vmem:[%s192 + $0x10] sm:$0xff]
      %v201 = vld [vmem:[%s192 + $0x18] sm:$0xff]
      %v202 = vld [vmem:[%s192 + $0x20] sm:$0xff]
      %v203 = vld [vmem:[%s192 + $0x28] sm:$0xff]
      %v204 = vld [vmem:[%s192 + $0x30] sm:$0xff]
      %v205 = vld [vmem:[%s192 + $0x38] sm:$0xff]
      %v206 = vld [vmem:[%s192 + $0x40] sm:$0xff]
      %v207 = vld [vmem:[%s192 + $0x48] sm:$0xff]
      %v208 = vld [vmem:[%s192 + $0x50] sm:$0xff]
      %v209 = vld [vmem:[%s192 + $0x58] sm:$0xff]
      %v210 = vld [vmem:[%s192 + $0x60] sm:$0xff]
      %v211 = vld [vmem:[%s192 + $0x68] sm:$0xff]
      %v212 = vld [vmem:[%s192 + $0x70] sm:$0xff]
      %v213 = vld [vmem:[%s192 + $0x78] sm:$0xff]
      %v214 = vld [vmem:[%s192 + $0x80] sm:$0xff]
      %v215 = vld [vmem:[%s192 + $0x88] sm:$0xff]
      %v216 = vld [vmem:[%s192 + $0x90] sm:$0xff]
      %v217 = vld [vmem:[%s192 + $0x98] sm:$0xff]
      %v218 = vld [vmem:[%s192 + $0xa0] sm:$0xff]
      %v219 = vld [vmem:[%s192 + $0xa8] sm:$0xff]
      %v220 = vld [vmem:[%s192 + $0xb0] sm:$0xff]
      %v221 = vld [vmem:[%s192 + $0xb8] sm:$0xff]
      %v222 = vld [vmem:[%s192 + $0xc0] sm:$0xff]
      %v223 = vld [vmem:[%s192 + $0xc8] sm:$0xff]
      %v224 = vld [vmem:[%s192 + $0xd0] sm:$0xff]
      %v225 = vld [vmem:[%s192 + $0xd8] sm:$0xff]
      %v226 = vld [vmem:[%s192 + $0xe0] sm:$0xff]
      %v227 = vld [vmem:[%s192 + $0xe8] sm:$0xff]
      %v228 = vld [vmem:[%s192 + $0xf0] sm:$0xff]
      %v229 = vld [vmem:[%s192 + $0xf8] sm:$0xff]
      %v230 = vld [vmem:[%s192 + $0x100] sm:$0xff]
      %v231 = vld [vmem:[%s192 + $0x108] sm:$0xff]
      %v232 = vld [vmem:[%s192 + $0x110] sm:$0xff]
      %v233 = vld [vmem:[%s192 + $0x118] sm:$0xff]
      %v234 = vld [vmem:[%s192 + $0x120] sm:$0xff]
      %v235 = vld [vmem:[%s192 + $0x128] sm:$0xff]
      %v236 = vld [vmem:[%s192 + $0x130] sm:$0xff]
      %v237 = vld [vmem:[%s192 + $0x138] sm:$0xff]
      %v238 = vld [vmem:[%s192 + $0x140] sm:$0xff]
      %v239 = vld [vmem:[%s192 + $0x148] sm:$0xff]
      %v240 = vld [vmem:[%s192 + $0x150] sm:$0xff]
      %v241 = vld [vmem:[%s192 + $0x158] sm:$0xff]
      %v242 = vld [vmem:[%s192 + $0x160] sm:$0xff]
      %v243 = vld [vmem:[%s192 + $0x168] sm:$0xff]
      %v244 = vld [vmem:[%s192 + $0x170] sm:$0xff]
      %v245 = vld [vmem:[%s192 + $0x178] sm:$0xff]
      %v246 = vld [vmem:[%s192 + $0x180] sm:$0xff]
      %v247 = vld [vmem:[%s192 + $0x188] sm:$0xff]
      %v248 = vld [vmem:[%s192 + $0x190] sm:$0xff]
      %v249 = vld [vmem:[%s192 + $0x198] sm:$0xff]
      %v250 = vld [vmem:[%s192 + $0x1a0] sm:$0xff]
      %v251 = vld [vmem:[%s192 + $0x1a8] sm:$0xff]
      %v252 = vld [vmem:[%s192 + $0x1b0] sm:$0xff]
      %v253 = vld [vmem:[%s192 + $0x1b8] sm:$0xff]
      %v254 = vld [vmem:[%s192 + $0x1c0] sm:$0xff]
      %v255 = vld [vmem:[%s192 + $0x1c8] sm:$0xff]
      %v256 = vld [vmem:[%s192 + $0x1d0] sm:$0xff]
      %v257 = vld [vmem:[%s192 + $0x1d8] sm:$0xff]
      %v258 = vld [vmem:[%s192 + $0x1e0] sm:$0xff]
      %v259 = vld [vmem:[%s192 + $0x1e8] sm:$0xff]
      %v260 = vld [vmem:[%s192 + $0x1f0] sm:$0xff]
      %v261 = vld [vmem:[%s192 + $0x1f8] sm:$0xff]
      %v262 = vld [vmem:[%s192 + $0x200] sm:$0xff]
      %v263 = vld [vmem:[%s192 + $0x208] sm:$0xff]
      %v264 = vld [vmem:[%s192 + $0x210] sm:$0xff]
      %v265 = vld [vmem:[%s192 + $0x218] sm:$0xff]
      %v266 = vld [vmem:[%s192 + $0x220] sm:$0xff]
      %v267 = vld [vmem:[%s192 + $0x228] sm:$0xff]
      %v268 = vld [vmem:[%s192 + $0x230] sm:$0xff]
      %v269 = vld [vmem:[%s192 + $0x238] sm:$0xff]
      %v270 = vld [vmem:[%s192 + $0x240] sm:$0xff]
      %v271 = vld [vmem:[%s192 + $0x248] sm:$0xff]
      %v272 = vld [vmem:[%s192 + $0x250] sm:$0xff]
      %v273 = vld [vmem:[%s192 + $0x258] sm:$0xff]
      %v274 = vld [vmem:[%s192 + $0x260] sm:$0xff]
      %v275 = vld [vmem:[%s192 + $0x268] sm:$0xff]
      %v276 = vld [vmem:[%s192 + $0x270] sm:$0xff]
      %v277 = vld [vmem:[%s192 + $0x278] sm:$0xff]
      %v278 = vld [vmem:[%s192 + $0x280] sm:$0xff]
      %v279 = vld [vmem:[%s192 + $0x288] sm:$0xff]
      %v280 = vld [vmem:[%s192 + $0x290] sm:$0xff]
      %v281 = vld [vmem:[%s192 + $0x298] sm:$0xff]
      %v282 = vld [vmem:[%s192 + $0x2a0] sm:$0xff]
      %v283 = vld [vmem:[%s192 + $0x2a8] sm:$0xff]
      %v284 = vld [vmem:[%s192 + $0x2b0] sm:$0xff]
      %v285 = vld [vmem:[%s192 + $0x2b8] sm:$0xff]
      %v286 = vld [vmem:[%s192 + $0x2c0] sm:$0xff]
      %v287 = vld [vmem:[%s192 + $0x2c8] sm:$0xff]
      %v288 = vld [vmem:[%s192 + $0x2d0] sm:$0xff]
      %v289 = vld [vmem:[%s192 + $0x2d8] sm:$0xff]
      %v290 = vld [vmem:[%s192 + $0x2e0] sm:$0xff]
      %v291 = vld [vmem:[%s192 + $0x2e8] sm:$0xff]
      %v292 = vld [vmem:[%s192 + $0x2f0] sm:$0xff]
      %v293 = vld [vmem:[%s192 + $0x2f8] sm:$0xff]
      %v294 = vld [vmem:[%s192 + $0x300] sm:$0xff]
      %v295 = vld [vmem:[%s192 + $0x308] sm:$0xff]
      %v296 = vld [vmem:[%s192 + $0x310] sm:$0xff]
      %v297 = vld [vmem:[%s192 + $0x318] sm:$0xff]
      %v298 = vld [vmem:[%s192 + $0x320] sm:$0xff]
      %v299 = vld [vmem:[%s192 + $0x328] sm:$0xff]
      %v300 = vld [vmem:[%s192 + $0x330] sm:$0xff]
      %v301 = vld [vmem:[%s192 + $0x338] sm:$0xff]
      %v302 = vld [vmem:[%s192 + $0x340] sm:$0xff]
      %v303 = vld [vmem:[%s192 + $0x348] sm:$0xff]
      %v304 = vld [vmem:[%s192 + $0x350] sm:$0xff]
      %v305 = vld [vmem:[%s192 + $0x358] sm:$0xff]
      %v306 = vld [vmem:[%s192 + $0x360] sm:$0xff]
      %v307 = vld [vmem:[%s192 + $0x368] sm:$0xff]
      %v308 = vld [vmem:[%s192 + $0x370] sm:$0xff]
      %v309 = vld [vmem:[%s192 + $0x378] sm:$0xff]
      %v310 = vld [vmem:[%s192 + $0x380] sm:$0xff]
      %v311 = vld [vmem:[%s192 + $0x388] sm:$0xff]
      %v312 = vld [vmem:[%s192 + $0x390] sm:$0xff]
      %v313 = vld [vmem:[%s192 + $0x398] sm:$0xff]
      %v314 = vld [vmem:[%s192 + $0x3a0] sm:$0xff]
      %v315 = vld [vmem:[%s192 + $0x3a8] sm:$0xff]
      %v316 = vld [vmem:[%s192 + $0x3b0] sm:$0xff]
      %v317 = vld [vmem:[%s192 + $0x3b8] sm:$0xff]
      %v318 = vld [vmem:[%s192 + $0x3c0] sm:$0xff]
      %v319 = vld [vmem:[%s192 + $0x3c8] sm:$0xff]
      %v320 = vld [vmem:[%s192 + $0x3d0] sm:$0xff]
      %v321 = vld [vmem:[%s192 + $0x3d8] sm:$0xff]
      %v322 = vld [vmem:[%s192 + $0x3e0] sm:$0xff]
      %v323 = vld [vmem:[%s192 + $0x3e8] sm:$0xff]
      %v324 = vld [vmem:[%s192 + $0x3f0] sm:$0xff]
      %v325 = vld [vmem:[%s192 + $0x3f8] sm:$0xff]
      %vm326 = vcmask 23552
      %327 = vst.msk [vmem:[#allocation2] sm:$0xff] %vm326, 0.0
      %328 = vst.msk [vmem:[#allocation2 + $0x8] sm:$0xff] %vm326, 0.0
      %329 = vst.msk [vmem:[#allocation2 + $0x10] sm:$0xff] %vm326, 0.0
      %330 = vst.msk [vmem:[#allocation2 + $0x18] sm:$0xff] %vm326, 0.0
      %vm331 = vcmask 17408
      %332 = vst.msk [vmem:[#allocation2 + $0x20] sm:$0x3] %vm331, 0.0
      %333 = vst.msk [vmem:[#allocation2 + $0x28] sm:$0xff] %vm326, 0.0
      %334 = vst.msk [vmem:[#allocation2 + $0x30] sm:$0xff] %vm326, 0.0
      %335 = vst.msk [vmem:[#allocation2 + $0x38] sm:$0xff] %vm326, 0.0
      %336 = vst.msk [vmem:[#allocation2 + $0x40] sm:$0xff] %vm326, 0.0
      %337 = vst.msk [vmem:[#allocation2 + $0x48] sm:$0x3] %vm331, 0.0
      %338 = vst.msk [vmem:[#allocation2 + $0x50] sm:$0xff] %vm326, 0.0
      %339 = vst.msk [vmem:[#allocation2 + $0x58] sm:$0xff] %vm326, 0.0
      %340 = vst.msk [vmem:[#allocation2 + $0x60] sm:$0xff] %vm326, 0.0
      %341 = vst.msk [vmem:[#allocation2 + $0x68] sm:$0xff] %vm326, 0.0
      %342 = vst.msk [vmem:[#allocation2 + $0x70] sm:$0x3] %vm331, 0.0
      %343 = vst.msk [vmem:[#allocation2 + $0x78] sm:$0xff] %vm326, 0.0
      %344 = vst.msk [vmem:[#allocation2 + $0x80] sm:$0xff] %vm326, 0.0
      %345 = vst.msk [vmem:[#allocation2 + $0x88] sm:$0xff] %vm326, 0.0
      %346 = vst.msk [vmem:[#allocation2 + $0x90] sm:$0xff] %vm326, 0.0
      %347 = vst.msk [vmem:[#allocation2 + $0x98] sm:$0x3] %vm331, 0.0
      %348 = vst.msk [vmem:[#allocation2 + $0xa0] sm:$0xff] %vm326, 0.0
      %349 = vst.msk [vmem:[#allocation2 + $0xa8] sm:$0xff] %vm326, 0.0
      %350 = vst.msk [vmem:[#allocation2 + $0xb0] sm:$0xff] %vm326, 0.0
      %351 = vst.msk [vmem:[#allocation2 + $0xb8] sm:$0xff] %vm326, 0.0
      %352 = vst.msk [vmem:[#allocation2 + $0xc0] sm:$0x3] %vm331, 0.0
      %353 = vst.msk [vmem:[#allocation2 + $0xc8] sm:$0xff] %vm326, 0.0
      %354 = vst.msk [vmem:[#allocation2 + $0xd0] sm:$0xff] %vm326, 0.0
      %355 = vst.msk [vmem:[#allocation2 + $0xd8] sm:$0xff] %vm326, 0.0
      %356 = vst.msk [vmem:[#allocation2 + $0xe0] sm:$0xff] %vm326, 0.0
      %357 = vst.msk [vmem:[#allocation2 + $0xe8] sm:$0x3] %vm331, 0.0
      %358 = vst.msk [vmem:[#allocation2 + $0xf0] sm:$0xff] %vm326, 0.0
      %359 = vst.msk [vmem:[#allocation2 + $0xf8] sm:$0xff] %vm326, 0.0
      %360 = vst.msk [vmem:[#allocation2 + $0x100] sm:$0xff] %vm326, 0.0
      %361 = vst.msk [vmem:[#allocation2 + $0x108] sm:$0xff] %vm326, 0.0
      %362 = vst.msk [vmem:[#allocation2 + $0x110] sm:$0x3] %vm331, 0.0
      %363 = vst.msk [vmem:[#allocation2 + $0x118] sm:$0xff] %vm326, 0.0
      %364 = vst.msk [vmem:[#allocation2 + $0x120] sm:$0xff] %vm326, 0.0
      %365 = vst.msk [vmem:[#allocation2 + $0x128] sm:$0xff] %vm326, 0.0
      %366 = vst.msk [vmem:[#allocation2 + $0x130] sm:$0xff] %vm326, 0.0
      %367 = vst.msk [vmem:[#allocation2 + $0x138] sm:$0x3] %vm331, 0.0
      %368 = vst.msk [vmem:[#allocation2 + $0x140] sm:$0xff] %vm326, 0.0
      %369 = vst.msk [vmem:[#allocation2 + $0x148] sm:$0xff] %vm326, 0.0
      %370 = vst.msk [vmem:[#allocation2 + $0x150] sm:$0xff] %vm326, 0.0
      %371 = vst.msk [vmem:[#allocation2 + $0x158] sm:$0xff] %vm326, 0.0
      %372 = vst.msk [vmem:[#allocation2 + $0x160] sm:$0x3] %vm331, 0.0
      %373 = vst.msk [vmem:[#allocation2 + $0x168] sm:$0xff] %vm326, 0.0
      %374 = vst.msk [vmem:[#allocation2 + $0x170] sm:$0xff] %vm326, 0.0
      %375 = vst.msk [vmem:[#allocation2 + $0x178] sm:$0xff] %vm326, 0.0
      %376 = vst.msk [vmem:[#allocation2 + $0x180] sm:$0xff] %vm326, 0.0
      %377 = vst.msk [vmem:[#allocation2 + $0x188] sm:$0x3] %vm331, 0.0
      %378 = vst.msk [vmem:[#allocation2 + $0x190] sm:$0xff] %vm326, 0.0
      %379 = vst.msk [vmem:[#allocation2 + $0x198] sm:$0xff] %vm326, 0.0
      %380 = vst.msk [vmem:[#allocation2 + $0x1a0] sm:$0xff] %vm326, 0.0
      %381 = vst.msk [vmem:[#allocation2 + $0x1a8] sm:$0xff] %vm326, 0.0
      %382 = vst.msk [vmem:[#allocation2 + $0x1b0] sm:$0x3] %vm331, 0.0
      %383 = vst.msk [vmem:[#allocation2 + $0x1b8] sm:$0xff] %vm326, 0.0
      %384 = vst.msk [vmem:[#allocation2 + $0x1c0] sm:$0xff] %vm326, 0.0
      %385 = vst.msk [vmem:[#allocation2 + $0x1c8] sm:$0xff] %vm326, 0.0
      %386 = vst.msk [vmem:[#allocation2 + $0x1d0] sm:$0xff] %vm326, 0.0
      %387 = vst.msk [vmem:[#allocation2 + $0x1d8] sm:$0x3] %vm331, 0.0
      %388 = vst.msk [vmem:[#allocation2 + $0x1e0] sm:$0xff] %vm326, 0.0
      %389 = vst.msk [vmem:[#allocation2 + $0x1e8] sm:$0xff] %vm326, 0.0
      %390 = vst.msk [vmem:[#allocation2 + $0x1f0] sm:$0xff] %vm326, 0.0
      %391 = vst.msk [vmem:[#allocation2 + $0x1f8] sm:$0xff] %vm326, 0.0
      %392 = vst.msk [vmem:[#allocation2 + $0x200] sm:$0x3] %vm331, 0.0
      %393 = vst.msk [vmem:[#allocation2 + $0x208] sm:$0xff] %vm326, 0.0
      %394 = vst.msk [vmem:[#allocation2 + $0x210] sm:$0xff] %vm326, 0.0
      %395 = vst.msk [vmem:[#allocation2 + $0x218] sm:$0xff] %vm326, 0.0
      %396 = vst.msk [vmem:[#allocation2 + $0x220] sm:$0xff] %vm326, 0.0
      %397 = vst.msk [vmem:[#allocation2 + $0x228] sm:$0x3] %vm331, 0.0
      %398 = vst.msk [vmem:[#allocation2 + $0x230] sm:$0xff] %vm326, 0.0
      %399 = vst.msk [vmem:[#allocation2 + $0x238] sm:$0xff] %vm326, 0.0
      %400 = vst.msk [vmem:[#allocation2 + $0x240] sm:$0xff] %vm326, 0.0
      %401 = vst.msk [vmem:[#allocation2 + $0x248] sm:$0xff] %vm326, 0.0
      %402 = vst.msk [vmem:[#allocation2 + $0x250] sm:$0x3] %vm331, 0.0
      %403 = vst.msk [vmem:[#allocation2 + $0x258] sm:$0xff] %vm326, 0.0
      %404 = vst.msk [vmem:[#allocation2 + $0x260] sm:$0xff] %vm326, 0.0
      %405 = vst.msk [vmem:[#allocation2 + $0x268] sm:$0xff] %vm326, 0.0
      %406 = vst.msk [vmem:[#allocation2 + $0x270] sm:$0xff] %vm326, 0.0
      %407 = vst.msk [vmem:[#allocation2 + $0x278] sm:$0x3] %vm331, 0.0
      %408 = vst.msk [vmem:[#allocation2 + $0x280] sm:$0xff] %vm326, 0.0
      %409 = vst.msk [vmem:[#allocation2 + $0x288] sm:$0xff] %vm326, 0.0
      %410 = vst.msk [vmem:[#allocation2 + $0x290] sm:$0xff] %vm326, 0.0
      %411 = vst.msk [vmem:[#allocation2 + $0x298] sm:$0xff] %vm326, 0.0
      %412 = vst.msk [vmem:[#allocation2 + $0x2a0] sm:$0x3] %vm331, 0.0
      %413 = vst.msk [vmem:[#allocation2 + $0x2a8] sm:$0xff] %vm326, 0.0
      %414 = vst.msk [vmem:[#allocation2 + $0x2b0] sm:$0xff] %vm326, 0.0
      %415 = vst.msk [vmem:[#allocation2 + $0x2b8] sm:$0xff] %vm326, 0.0
      %416 = vst.msk [vmem:[#allocation2 + $0x2c0] sm:$0xff] %vm326, 0.0
      %417 = vst.msk [vmem:[#allocation2 + $0x2c8] sm:$0x3] %vm331, 0.0
      %418 = vst.msk [vmem:[#allocation2 + $0x2d0] sm:$0xff] %vm326, 0.0
      %419 = vst.msk [vmem:[#allocation2 + $0x2d8] sm:$0xff] %vm326, 0.0
      %420 = vst.msk [vmem:[#allocation2 + $0x2e0] sm:$0xff] %vm326, 0.0
      %421 = vst.msk [vmem:[#allocation2 + $0x2e8] sm:$0xff] %vm326, 0.0
      %422 = vst.msk [vmem:[#allocation2 + $0x2f0] sm:$0x3] %vm331, 0.0
      %423 = vst.msk [vmem:[#allocation2 + $0x2f8] sm:$0xff] %vm326, 0.0
      %424 = vst.msk [vmem:[#allocation2 + $0x300] sm:$0xff] %vm326, 0.0
      %425 = vst.msk [vmem:[#allocation2 + $0x308] sm:$0xff] %vm326, 0.0
      %426 = vst.msk [vmem:[#allocation2 + $0x310] sm:$0xff] %vm326, 0.0
      %427 = vst.msk [vmem:[#allocation2 + $0x318] sm:$0x3] %vm331, 0.0
      %428 = vst.msk [vmem:[#allocation2 + $0x320] sm:$0xff] %vm326, 0.0
      %429 = vst.msk [vmem:[#allocation2 + $0x328] sm:$0xff] %vm326, 0.0
      %430 = vst.msk [vmem:[#allocation2 + $0x330] sm:$0xff] %vm326, 0.0
      %431 = vst.msk [vmem:[#allocation2 + $0x338] sm:$0xff] %vm326, 0.0
      %432 = vst.msk [vmem:[#allocation2 + $0x340] sm:$0x3] %vm331, 0.0
      %433 = vst.msk [vmem:[#allocation2 + $0x348] sm:$0xff] %vm326, 0.0
      %434 = vst.msk [vmem:[#allocation2 + $0x350] sm:$0xff] %vm326, 0.0
      %435 = vst.msk [vmem:[#allocation2 + $0x358] sm:$0xff] %vm326, 0.0
      %436 = vst.msk [vmem:[#allocation2 + $0x360] sm:$0xff] %vm326, 0.0
      %437 = vst.msk [vmem:[#allocation2 + $0x368] sm:$0x3] %vm331, 0.0
      %438 = vst.msk [vmem:[#allocation2 + $0x370] sm:$0xff] %vm326, 0.0
      %439 = vst.msk [vmem:[#allocation2 + $0x378] sm:$0xff] %vm326, 0.0
      %440 = vst.msk [vmem:[#allocation2 + $0x380] sm:$0xff] %vm326, 0.0
      %441 = vst.msk [vmem:[#allocation2 + $0x388] sm:$0xff] %vm326, 0.0
      %442 = vst.msk [vmem:[#allocation2 + $0x390] sm:$0x3] %vm331, 0.0
      %443 = vst.msk [vmem:[#allocation2 + $0x398] sm:$0xff] %vm326, 0.0
      %444 = vst.msk [vmem:[#allocation2 + $0x3a0] sm:$0xff] %vm326, 0.0
      %445 = vst.msk [vmem:[#allocation2 + $0x3a8] sm:$0xff] %vm326, 0.0
      %446 = vst.msk [vmem:[#allocation2 + $0x3b0] sm:$0xff] %vm326, 0.0
      %447 = vst.msk [vmem:[#allocation2 + $0x3b8] sm:$0x3] %vm331, 0.0
      %448 = vst.msk [vmem:[#allocation2 + $0x3c0] sm:$0xff] %vm326, 0.0
      %449 = vst.msk [vmem:[#allocation2 + $0x3c8] sm:$0xff] %vm326, 0.0
      %450 = vst.msk [vmem:[#allocation2 + $0x3d0] sm:$0xff] %vm326, 0.0
      %451 = vst.msk [vmem:[#allocation2 + $0x3d8] sm:$0xff] %vm326, 0.0
      %452 = vst.msk [vmem:[#allocation2 + $0x3e0] sm:$0x3] %vm331, 0.0
      %453 = vst.msk [vmem:[#allocation2 + $0x3e8] sm:$0xff] %vm326, 0.0
      %454 = vst.msk [vmem:[#allocation2 + $0x3f0] sm:$0xff] %vm326, 0.0
      %455 = vst.msk [vmem:[#allocation2 + $0x3f8] sm:$0xff] %vm326, 0.0
      %456 = vst.msk [vmem:[#allocation2 + $0x400] sm:$0xff] %vm326, 0.0
      %457 = vst.msk [vmem:[#allocation2 + $0x408] sm:$0x3] %vm331, 0.0
      %458 = vst.msk [vmem:[#allocation2 + $0x410] sm:$0xff] %vm326, 0.0
      %459 = vst.msk [vmem:[#allocation2 + $0x418] sm:$0xff] %vm326, 0.0
      %460 = vst.msk [vmem:[#allocation2 + $0x420] sm:$0xff] %vm326, 0.0
      %461 = vst.msk [vmem:[#allocation2 + $0x428] sm:$0xff] %vm326, 0.0
      %462 = vst.msk [vmem:[#allocation2 + $0x430] sm:$0x3] %vm331, 0.0
      %463 = vst.msk [vmem:[#allocation2 + $0x438] sm:$0xff] %vm326, 0.0
      %464 = vst.msk [vmem:[#allocation2 + $0x440] sm:$0xff] %vm326, 0.0
      %465 = vst.msk [vmem:[#allocation2 + $0x448] sm:$0xff] %vm326, 0.0
      %466 = vst.msk [vmem:[#allocation2 + $0x450] sm:$0xff] %vm326, 0.0
      %467 = vst.msk [vmem:[#allocation2 + $0x458] sm:$0x3] %vm331, 0.0
      %468 = vst.msk [vmem:[#allocation2 + $0x460] sm:$0xff] %vm326, 0.0
      %469 = vst.msk [vmem:[#allocation2 + $0x468] sm:$0xff] %vm326, 0.0
      %470 = vst.msk [vmem:[#allocation2 + $0x470] sm:$0xff] %vm326, 0.0
      %471 = vst.msk [vmem:[#allocation2 + $0x478] sm:$0xff] %vm326, 0.0
      %472 = vst.msk [vmem:[#allocation2 + $0x480] sm:$0x3] %vm331, 0.0
      %473 = vst.msk [vmem:[#allocation2 + $0x488] sm:$0xff] %vm326, 0.0
      %474 = vst.msk [vmem:[#allocation2 + $0x490] sm:$0xff] %vm326, 0.0
      %475 = vst.msk [vmem:[#allocation2 + $0x498] sm:$0xff] %vm326, 0.0
      %476 = vst.msk [vmem:[#allocation2 + $0x4a0] sm:$0xff] %vm326, 0.0
      %477 = vst.msk [vmem:[#allocation2 + $0x4a8] sm:$0x3] %vm331, 0.0
      %478 = vst.msk [vmem:[#allocation2 + $0x4b0] sm:$0xff] %vm326, 0.0
      %479 = vst.msk [vmem:[#allocation2 + $0x4b8] sm:$0xff] %vm326, 0.0
      %480 = vst.msk [vmem:[#allocation2 + $0x4c0] sm:$0xff] %vm326, 0.0
      %481 = vst.msk [vmem:[#allocation2 + $0x4c8] sm:$0xff] %vm326, 0.0
      %482 = vst.msk [vmem:[#allocation2 + $0x4d0] sm:$0x3] %vm331, 0.0
      %483 = vst.msk [vmem:[#allocation2 + $0x4d8] sm:$0xff] %vm326, 0.0
      %484 = vst.msk [vmem:[#allocation2 + $0x4e0] sm:$0xff] %vm326, 0.0
      %485 = vst.msk [vmem:[#allocation2 + $0x4e8] sm:$0xff] %vm326, 0.0
      %486 = vst.msk [vmem:[#allocation2 + $0x4f0] sm:$0xff] %vm326, 0.0
      %487 = vst.msk [vmem:[#allocation2 + $0x4f8] sm:$0x3] %vm331, 0.0
      %488 = vst.msk [vmem:[#allocation2 + $0x500] sm:$0xff] %vm326, 0.0
      %489 = vst.msk [vmem:[#allocation2 + $0x508] sm:$0xff] %vm326, 0.0
      %490 = vst.msk [vmem:[#allocation2 + $0x510] sm:$0xff] %vm326, 0.0
      %491 = vst.msk [vmem:[#allocation2 + $0x518] sm:$0xff] %vm326, 0.0
      %492 = vst.msk [vmem:[#allocation2 + $0x520] sm:$0x3] %vm331, 0.0
      %493 = vst.msk [vmem:[#allocation2 + $0x528] sm:$0xff] %vm326, 0.0
      %494 = vst.msk [vmem:[#allocation2 + $0x530] sm:$0xff] %vm326, 0.0
      %495 = vst.msk [vmem:[#allocation2 + $0x538] sm:$0xff] %vm326, 0.0
      %496 = vst.msk [vmem:[#allocation2 + $0x540] sm:$0xff] %vm326, 0.0
      %497 = vst.msk [vmem:[#allocation2 + $0x548] sm:$0x3] %vm331, 0.0
      %s498 = scalar_lea.vmem [#allocation2], 40
      %499 = vst.msk [vmem:[%s498 + $0x1] sm:$0xff] %vm326, %v198
      %500 = vst.msk [vmem:[%s498 + $0x9] sm:$0xff] %vm326, %v199
      %501 = vst.msk [vmem:[%s498 + $0x11] sm:$0xff] %vm326, %v200
      %502 = vst.msk [vmem:[%s498 + $0x19] sm:$0xff] %vm326, %v201
      %503 = vst.msk [vmem:[%s498 + $0x29] sm:$0xff] %vm326, %v202
      %504 = vst.msk [vmem:[%s498 + $0x31] sm:$0xff] %vm326, %v203
      %505 = vst.msk [vmem:[%s498 + $0x39] sm:$0xff] %vm326, %v204
      %506 = vst.msk [vmem:[%s498 + $0x41] sm:$0xff] %vm326, %v205
      %507 = vst.msk [vmem:[%s498 + $0x51] sm:$0xff] %vm326, %v206
      %508 = vst.msk [vmem:[%s498 + $0x59] sm:$0xff] %vm326, %v207
      %509 = vst.msk [vmem:[%s498 + $0x61] sm:$0xff] %vm326, %v208
      %510 = vst.msk [vmem:[%s498 + $0x69] sm:$0xff] %vm326, %v209
      %511 = vst.msk [vmem:[%s498 + $0x79] sm:$0xff] %vm326, %v210
      %512 = vst.msk [vmem:[%s498 + $0x81] sm:$0xff] %vm326, %v211
      %513 = vst.msk [vmem:[%s498 + $0x89] sm:$0xff] %vm326, %v212
      %514 = vst.msk [vmem:[%s498 + $0x91] sm:$0xff] %vm326, %v213
      %515 = vst.msk [vmem:[%s498 + $0xa1] sm:$0xff] %vm326, %v214
      %516 = vst.msk [vmem:[%s498 + $0xa9] sm:$0xff] %vm326, %v215
      %517 = vst.msk [vmem:[%s498 + $0xb1] sm:$0xff] %vm326, %v216
      %518 = vst.msk [vmem:[%s498 + $0xb9] sm:$0xff] %vm326, %v217
      %519 = vst.msk [vmem:[%s498 + $0xc9] sm:$0xff] %vm326, %v218
      %520 = vst.msk [vmem:[%s498 + $0xd1] sm:$0xff] %vm326, %v219
      %521 = vst.msk [vmem:[%s498 + $0xd9] sm:$0xff] %vm326, %v220
      %522 = vst.msk [vmem:[%s498 + $0xe1] sm:$0xff] %vm326, %v221
      %523 = vst.msk [vmem:[%s498 + $0xf1] sm:$0xff] %vm326, %v222
      %524 = vst.msk [vmem:[%s498 + $0xf9] sm:$0xff] %vm326, %v223
      %525 = vst.msk [vmem:[%s498 + $0x101] sm:$0xff] %vm326, %v224
      %526 = vst.msk [vmem:[%s498 + $0x109] sm:$0xff] %vm326, %v225
      %527 = vst.msk [vmem:[%s498 + $0x119] sm:$0xff] %vm326, %v226
      %528 = vst.msk [vmem:[%s498 + $0x121] sm:$0xff] %vm326, %v227
      %529 = vst.msk [vmem:[%s498 + $0x129] sm:$0xff] %vm326, %v228
      %530 = vst.msk [vmem:[%s498 + $0x131] sm:$0xff] %vm326, %v229
      %531 = vst.msk [vmem:[%s498 + $0x141] sm:$0xff] %vm326, %v230
      %532 = vst.msk [vmem:[%s498 + $0x149] sm:$0xff] %vm326, %v231
      %533 = vst.msk [vmem:[%s498 + $0x151] sm:$0xff] %vm326, %v232
      %534 = vst.msk [vmem:[%s498 + $0x159] sm:$0xff] %vm326, %v233
      %535 = vst.msk [vmem:[%s498 + $0x169] sm:$0xff] %vm326, %v234
      %536 = vst.msk [vmem:[%s498 + $0x171] sm:$0xff] %vm326, %v235
      %537 = vst.msk [vmem:[%s498 + $0x179] sm:$0xff] %vm326, %v236
      %538 = vst.msk [vmem:[%s498 + $0x181] sm:$0xff] %vm326, %v237
      %539 = vst.msk [vmem:[%s498 + $0x191] sm:$0xff] %vm326, %v238
      %540 = vst.msk [vmem:[%s498 + $0x199] sm:$0xff] %vm326, %v239
      %541 = vst.msk [vmem:[%s498 + $0x1a1] sm:$0xff] %vm326, %v240
      %542 = vst.msk [vmem:[%s498 + $0x1a9] sm:$0xff] %vm326, %v241
      %543 = vst.msk [vmem:[%s498 + $0x1b9] sm:$0xff] %vm326, %v242
      %544 = vst.msk [vmem:[%s498 + $0x1c1] sm:$0xff] %vm326, %v243
      %545 = vst.msk [vmem:[%s498 + $0x1c9] sm:$0xff] %vm326, %v244
      %546 = vst.msk [vmem:[%s498 + $0x1d1] sm:$0xff] %vm326, %v245
      %547 = vst.msk [vmem:[%s498 + $0x1e1] sm:$0xff] %vm326, %v246
      %548 = vst.msk [vmem:[%s498 + $0x1e9] sm:$0xff] %vm326, %v247
      %549 = vst.msk [vmem:[%s498 + $0x1f1] sm:$0xff] %vm326, %v248
      %550 = vst.msk [vmem:[%s498 + $0x1f9] sm:$0xff] %vm326, %v249
      %551 = vst.msk [vmem:[%s498 + $0x209] sm:$0xff] %vm326, %v250
      %552 = vst.msk [vmem:[%s498 + $0x211] sm:$0xff] %vm326, %v251
      %553 = vst.msk [vmem:[%s498 + $0x219] sm:$0xff] %vm326, %v252
      %554 = vst.msk [vmem:[%s498 + $0x221] sm:$0xff] %vm326, %v253
      %555 = vst.msk [vmem:[%s498 + $0x231] sm:$0xff] %vm326, %v254
      %556 = vst.msk [vmem:[%s498 + $0x239] sm:$0xff] %vm326, %v255
      %557 = vst.msk [vmem:[%s498 + $0x241] sm:$0xff] %vm326, %v256
      %558 = vst.msk [vmem:[%s498 + $0x249] sm:$0xff] %vm326, %v257
      %559 = vst.msk [vmem:[%s498 + $0x259] sm:$0xff] %vm326, %v258
      %560 = vst.msk [vmem:[%s498 + $0x261] sm:$0xff] %vm326, %v259
      %561 = vst.msk [vmem:[%s498 + $0x269] sm:$0xff] %vm326, %v260
      %562 = vst.msk [vmem:[%s498 + $0x271] sm:$0xff] %vm326, %v261
      %563 = vst.msk [vmem:[%s498 + $0x281] sm:$0xff] %vm326, %v262
      %564 = vst.msk [vmem:[%s498 + $0x289] sm:$0xff] %vm326, %v263
      %565 = vst.msk [vmem:[%s498 + $0x291] sm:$0xff] %vm326, %v264
      %566 = vst.msk [vmem:[%s498 + $0x299] sm:$0xff] %vm326, %v265
      %567 = vst.msk [vmem:[%s498 + $0x2a9] sm:$0xff] %vm326, %v266
      %568 = vst.msk [vmem:[%s498 + $0x2b1] sm:$0xff] %vm326, %v267
      %569 = vst.msk [vmem:[%s498 + $0x2b9] sm:$0xff] %vm326, %v268
      %570 = vst.msk [vmem:[%s498 + $0x2c1] sm:$0xff] %vm326, %v269
      %571 = vst.msk [vmem:[%s498 + $0x2d1] sm:$0xff] %vm326, %v270
      %572 = vst.msk [vmem:[%s498 + $0x2d9] sm:$0xff] %vm326, %v271
      %573 = vst.msk [vmem:[%s498 + $0x2e1] sm:$0xff] %vm326, %v272
      %574 = vst.msk [vmem:[%s498 + $0x2e9] sm:$0xff] %vm326, %v273
      %575 = vst.msk [vmem:[%s498 + $0x2f9] sm:$0xff] %vm326, %v274
      %576 = vst.msk [vmem:[%s498 + $0x301] sm:$0xff] %vm326, %v275
      %577 = vst.msk [vmem:[%s498 + $0x309] sm:$0xff] %vm326, %v276
      %578 = vst.msk [vmem:[%s498 + $0x311] sm:$0xff] %vm326, %v277
      %579 = vst.msk [vmem:[%s498 + $0x321] sm:$0xff] %vm326, %v278
      %580 = vst.msk [vmem:[%s498 + $0x329] sm:$0xff] %vm326, %v279
      %581 = vst.msk [vmem:[%s498 + $0x331] sm:$0xff] %vm326, %v280
      %582 = vst.msk [vmem:[%s498 + $0x339] sm:$0xff] %vm326, %v281
      %583 = vst.msk [vmem:[%s498 + $0x349] sm:$0xff] %vm326, %v282
      %584 = vst.msk [vmem:[%s498 + $0x351] sm:$0xff] %vm326, %v283
      %585 = vst.msk [vmem:[%s498 + $0x359] sm:$0xff] %vm326, %v284
      %586 = vst.msk [vmem:[%s498 + $0x361] sm:$0xff] %vm326, %v285
      %587 = vst.msk [vmem:[%s498 + $0x371] sm:$0xff] %vm326, %v286
      %588 = vst.msk [vmem:[%s498 + $0x379] sm:$0xff] %vm326, %v287
      %589 = vst.msk [vmem:[%s498 + $0x381] sm:$0xff] %vm326, %v288
      %590 = vst.msk [vmem:[%s498 + $0x389] sm:$0xff] %vm326, %v289
      %591 = vst.msk [vmem:[%s498 + $0x399] sm:$0xff] %vm326, %v290
      %592 = vst.msk [vmem:[%s498 + $0x3a1] sm:$0xff] %vm326, %v291
      %593 = vst.msk [vmem:[%s498 + $0x3a9] sm:$0xff] %vm326, %v292
      %594 = vst.msk [vmem:[%s498 + $0x3b1] sm:$0xff] %vm326, %v293
      %595 = vst.msk [vmem:[%s498 + $0x3c1] sm:$0xff] %vm326, %v294
      %596 = vst.msk [vmem:[%s498 + $0x3c9] sm:$0xff] %vm326, %v295
      %597 = vst.msk [vmem:[%s498 + $0x3d1] sm:$0xff] %vm326, %v296
      %598 = vst.msk [vmem:[%s498 + $0x3d9] sm:$0xff] %vm326, %v297
      %599 = vst.msk [vmem:[%s498 + $0x3e9] sm:$0xff] %vm326, %v298
      %600 = vst.msk [vmem:[%s498 + $0x3f1] sm:$0xff] %vm326, %v299
      %601 = vst.msk [vmem:[%s498 + $0x3f9] sm:$0xff] %vm326, %v300
      %602 = vst.msk [vmem:[%s498 + $0x401] sm:$0xff] %vm326, %v301
      %603 = vst.msk [vmem:[%s498 + $0x411] sm:$0xff] %vm326, %v302
      %604 = vst.msk [vmem:[%s498 + $0x419] sm:$0xff] %vm326, %v303
      %605 = vst.msk [vmem:[%s498 + $0x421] sm:$0xff] %vm326, %v304
      %606 = vst.msk [vmem:[%s498 + $0x429] sm:$0xff] %vm326, %v305
      %607 = vst.msk [vmem:[%s498 + $0x439] sm:$0xff] %vm326, %v306
      %608 = vst.msk [vmem:[%s498 + $0x441] sm:$0xff] %vm326, %v307
      %609 = vst.msk [vmem:[%s498 + $0x449] sm:$0xff] %vm326, %v308
      %610 = vst.msk [vmem:[%s498 + $0x451] sm:$0xff] %vm326, %v309
      %611 = vst.msk [vmem:[%s498 + $0x461] sm:$0xff] %vm326, %v310
      %612 = vst.msk [vmem:[%s498 + $0x469] sm:$0xff] %vm326, %v311
      %613 = vst.msk [vmem:[%s498 + $0x471] sm:$0xff] %vm326, %v312
      %614 = vst.msk [vmem:[%s498 + $0x479] sm:$0xff] %vm326, %v313
      %615 = vst.msk [vmem:[%s498 + $0x489] sm:$0xff] %vm326, %v314
      %616 = vst.msk [vmem:[%s498 + $0x491] sm:$0xff] %vm326, %v315
      %617 = vst.msk [vmem:[%s498 + $0x499] sm:$0xff] %vm326, %v316
      %618 = vst.msk [vmem:[%s498 + $0x4a1] sm:$0xff] %vm326, %v317
      %619 = vst.msk [vmem:[%s498 + $0x4b1] sm:$0xff] %vm326, %v318
      %620 = vst.msk [vmem:[%s498 + $0x4b9] sm:$0xff] %vm326, %v319
      %621 = vst.msk [vmem:[%s498 + $0x4c1] sm:$0xff] %vm326, %v320
      %622 = vst.msk [vmem:[%s498 + $0x4c9] sm:$0xff] %vm326, %v321
      %623 = vst.msk [vmem:[%s498 + $0x4d9] sm:$0xff] %vm326, %v322
      %624 = vst.msk [vmem:[%s498 + $0x4e1] sm:$0xff] %vm326, %v323
      %625 = vst.msk [vmem:[%s498 + $0x4e9] sm:$0xff] %vm326, %v324
      %626 = vst.msk [vmem:[%s498 + $0x4f1] sm:$0xff] %vm326, %v325
      %v627 = vld [vmem:[#allocation2] sm:$0xff]
      %v628 = vld [vmem:[#allocation2 + $0x8] sm:$0xff]
      %v629 = vld [vmem:[#allocation2 + $0x10] sm:$0xff]
      %v630 = vld [vmem:[#allocation2 + $0x18] sm:$0xff]
      %v631 = vld [vmem:[#allocation2 + $0x28] sm:$0xff]
      %v632 = vld [vmem:[#allocation2 + $0x30] sm:$0xff]
      %v633 = vld [vmem:[#allocation2 + $0x38] sm:$0xff]
      %v634 = vld [vmem:[#allocation2 + $0x40] sm:$0xff]
      %v635 = vld [vmem:[#allocation2 + $0x50] sm:$0xff]
      %v636 = vld [vmem:[#allocation2 + $0x58] sm:$0xff]
      %v637 = vld [vmem:[#allocation2 + $0x60] sm:$0xff]
      %v638 = vld [vmem:[#allocation2 + $0x68] sm:$0xff]
      %v639 = vld [vmem:[#allocation2 + $0x78] sm:$0xff]
      %v640 = vld [vmem:[#allocation2 + $0x80] sm:$0xff]
      %v641 = vld [vmem:[#allocation2 + $0x88] sm:$0xff]
      %v642 = vld [vmem:[#allocation2 + $0x90] sm:$0xff]
      %v643 = vld [vmem:[#allocation2 + $0xa0] sm:$0xff]
      %v644 = vld [vmem:[#allocation2 + $0xa8] sm:$0xff]
      %v645 = vld [vmem:[#allocation2 + $0xb0] sm:$0xff]
      %v646 = vld [vmem:[#allocation2 + $0xb8] sm:$0xff]
      %v647 = vld [vmem:[#allocation2 + $0xc8] sm:$0xff]
      %v648 = vld [vmem:[#allocation2 + $0xd0] sm:$0xff]
      %v649 = vld [vmem:[#allocation2 + $0xd8] sm:$0xff]
      %v650 = vld [vmem:[#allocation2 + $0xe0] sm:$0xff]
      %v651 = vld [vmem:[#allocation2 + $0xf0] sm:$0xff]
      %v652 = vld [vmem:[#allocation2 + $0xf8] sm:$0xff]
      %v653 = vld [vmem:[#allocation2 + $0x100] sm:$0xff]
      %v654 = vld [vmem:[#allocation2 + $0x108] sm:$0xff]
      %v655 = vld [vmem:[#allocation2 + $0x118] sm:$0xff]
      %v656 = vld [vmem:[#allocation2 + $0x120] sm:$0xff]
      %v657 = vld [vmem:[#allocation2 + $0x128] sm:$0xff]
      %v658 = vld [vmem:[#allocation2 + $0x130] sm:$0xff]
      %v659 = vld [vmem:[#allocation2 + $0x140] sm:$0xff]
      %v660 = vld [vmem:[#allocation2 + $0x148] sm:$0xff]
      %v661 = vld [vmem:[#allocation2 + $0x150] sm:$0xff]
      %v662 = vld [vmem:[#allocation2 + $0x158] sm:$0xff]
      %v663 = vld [vmem:[#allocation2 + $0x168] sm:$0xff]
      %v664 = vld [vmem:[#allocation2 + $0x170] sm:$0xff]
      %v665 = vld [vmem:[#allocation2 + $0x178] sm:$0xff]
      %v666 = vld [vmem:[#allocation2 + $0x180] sm:$0xff]
      %v667 = vld [vmem:[#allocation2 + $0x190] sm:$0xff]
      %v668 = vld [vmem:[#allocation2 + $0x198] sm:$0xff]
      %v669 = vld [vmem:[#allocation2 + $0x1a0] sm:$0xff]
      %v670 = vld [vmem:[#allocation2 + $0x1a8] sm:$0xff]
      %v671 = vld [vmem:[#allocation2 + $0x1b8] sm:$0xff]
      %v672 = vld [vmem:[#allocation2 + $0x1c0] sm:$0xff]
      %v673 = vld [vmem:[#allocation2 + $0x1c8] sm:$0xff]
      %v674 = vld [vmem:[#allocation2 + $0x1d0] sm:$0xff]
      %v675 = vld [vmem:[#allocation2 + $0x1e0] sm:$0xff]
      %v676 = vld [vmem:[#allocation2 + $0x1e8] sm:$0xff]
      %v677 = vld [vmem:[#allocation2 + $0x1f0] sm:$0xff]
      %v678 = vld [vmem:[#allocation2 + $0x1f8] sm:$0xff]
      %v679 = vld [vmem:[#allocation2 + $0x208] sm:$0xff]
      %v680 = vld [vmem:[#allocation2 + $0x210] sm:$0xff]
      %v681 = vld [vmem:[#allocation2 + $0x218] sm:$0xff]
      %v682 = vld [vmem:[#allocation2 + $0x220] sm:$0xff]
      %v683 = vld [vmem:[#allocation2 + $0x230] sm:$0xff]
      %v684 = vld [vmem:[#allocation2 + $0x238] sm:$0xff]
      %v685 = vld [vmem:[#allocation2 + $0x240] sm:$0xff]
      %v686 = vld [vmem:[#allocation2 + $0x248] sm:$0xff]
      %v687 = vld [vmem:[#allocation2 + $0x258] sm:$0xff]
      %v688 = vld [vmem:[#allocation2 + $0x260] sm:$0xff]
      %v689 = vld [vmem:[#allocation2 + $0x268] sm:$0xff]
      %v690 = vld [vmem:[#allocation2 + $0x270] sm:$0xff]
      %v691 = vld [vmem:[#allocation2 + $0x280] sm:$0xff]
      %v692 = vld [vmem:[#allocation2 + $0x288] sm:$0xff]
      %v693 = vld [vmem:[#allocation2 + $0x290] sm:$0xff]
      %v694 = vld [vmem:[#allocation2 + $0x298] sm:$0xff]
      %v695 = vld [vmem:[#allocation2 + $0x2a8] sm:$0xff]
      %v696 = vld [vmem:[#allocation2 + $0x2b0] sm:$0xff]
      %v697 = vld [vmem:[#allocation2 + $0x2b8] sm:$0xff]
      %v698 = vld [vmem:[#allocation2 + $0x2c0] sm:$0xff]
      %v699 = vld [vmem:[#allocation2 + $0x2d0] sm:$0xff]
      %v700 = vld [vmem:[#allocation2 + $0x2d8] sm:$0xff]
      %v701 = vld [vmem:[#allocation2 + $0x2e0] sm:$0xff]
      %v702 = vld [vmem:[#allocation2 + $0x2e8] sm:$0xff]
      %v703 = vld [vmem:[#allocation2 + $0x2f8] sm:$0xff]
      %v704 = vld [vmem:[#allocation2 + $0x300] sm:$0xff]
      %v705 = vld [vmem:[#allocation2 + $0x308] sm:$0xff]
      %v706 = vld [vmem:[#allocation2 + $0x310] sm:$0xff]
      %v707 = vld [vmem:[#allocation2 + $0x320] sm:$0xff]
      %v708 = vld [vmem:[#allocation2 + $0x328] sm:$0xff]
      %v709 = vld [vmem:[#allocation2 + $0x330] sm:$0xff]
      %v710 = vld [vmem:[#allocation2 + $0x338] sm:$0xff]
      %v711 = vld [vmem:[#allocation2 + $0x348] sm:$0xff]
      %v712 = vld [vmem:[#allocation2 + $0x350] sm:$0xff]
      %v713 = vld [vmem:[#allocation2 + $0x358] sm:$0xff]
      %v714 = vld [vmem:[#allocation2 + $0x360] sm:$0xff]
      %v715 = vld [vmem:[#allocation2 + $0x370] sm:$0xff]
      %v716 = vld [vmem:[#allocation2 + $0x378] sm:$0xff]
      %v717 = vld [vmem:[#allocation2 + $0x380] sm:$0xff]
      %v718 = vld [vmem:[#allocation2 + $0x388] sm:$0xff]
      %v719 = vld [vmem:[#allocation2 + $0x398] sm:$0xff]
      %v720 = vld [vmem:[#allocation2 + $0x3a0] sm:$0xff]
      %v721 = vld [vmem:[#allocation2 + $0x3a8] sm:$0xff]
      %v722 = vld [vmem:[#allocation2 + $0x3b0] sm:$0xff]
      %v723 = vld [vmem:[#allocation2 + $0x3c0] sm:$0xff]
      %v724 = vld [vmem:[#allocation2 + $0x3c8] sm:$0xff]
      %v725 = vld [vmem:[#allocation2 + $0x3d0] sm:$0xff]
      %v726 = vld [vmem:[#allocation2 + $0x3d8] sm:$0xff]
      %v727 = vld [vmem:[#allocation2 + $0x3e8] sm:$0xff]
      %v728 = vld [vmem:[#allocation2 + $0x3f0] sm:$0xff]
      %v729 = vld [vmem:[#allocation2 + $0x3f8] sm:$0xff]
      %v730 = vld [vmem:[#allocation2 + $0x400] sm:$0xff]
      %v731 = vld [vmem:[#allocation2 + $0x410] sm:$0xff]
      %v732 = vld [vmem:[#allocation2 + $0x418] sm:$0xff]
      %v733 = vld [vmem:[#allocation2 + $0x420] sm:$0xff]
      %v734 = vld [vmem:[#allocation2 + $0x428] sm:$0xff]
      %v735 = vld [vmem:[#allocation2 + $0x438] sm:$0xff]
      %v736 = vld [vmem:[#allocation2 + $0x440] sm:$0xff]
      %v737 = vld [vmem:[#allocation2 + $0x448] sm:$0xff]
      %v738 = vld [vmem:[#allocation2 + $0x450] sm:$0xff]
      %v739 = vld [vmem:[#allocation2 + $0x460] sm:$0xff]
      %v740 = vld [vmem:[#allocation2 + $0x468] sm:$0xff]
      %v741 = vld [vmem:[#allocation2 + $0x470] sm:$0xff]
      %v742 = vld [vmem:[#allocation2 + $0x478] sm:$0xff]
      %v743 = vld [vmem:[#allocation2 + $0x488] sm:$0xff]
      %v744 = vld [vmem:[#allocation2 + $0x490] sm:$0xff]
      %v745 = vld [vmem:[#allocation2 + $0x498] sm:$0xff]
      %v746 = vld [vmem:[#allocation2 + $0x4a0] sm:$0xff]
      %v747 = vld [vmem:[#allocation2 + $0x4b0] sm:$0xff]
      %v748 = vld [vmem:[#allocation2 + $0x4b8] sm:$0xff]
      %v749 = vld [vmem:[#allocation2 + $0x4c0] sm:$0xff]
      %v750 = vld [vmem:[#allocation2 + $0x4c8] sm:$0xff]
      %v751 = vld [vmem:[#allocation2 + $0x4d8] sm:$0xff]
      %v752 = vld [vmem:[#allocation2 + $0x4e0] sm:$0xff]
      %v753 = vld [vmem:[#allocation2 + $0x4e8] sm:$0xff]
      %v754 = vld [vmem:[#allocation2 + $0x4f0] sm:$0xff]
      %v755 = vld [vmem:[%s1] sm:$0x7]
      %v756 = vld [vmem:[#allocation2 + $0x1] sm:$0xff]
      %v757 = vld [vmem:[#allocation2 + $0x9] sm:$0xff]
      %v758 = vld [vmem:[#allocation2 + $0x11] sm:$0xff]
      %v759 = vld [vmem:[#allocation2 + $0x19] sm:$0xff]
      %v760 = vld [vmem:[#allocation2 + $0x29] sm:$0xff]
      %v761 = vld [vmem:[#allocation2 + $0x31] sm:$0xff]
      %v762 = vld [vmem:[#allocation2 + $0x39] sm:$0xff]
      %v763 = vld [vmem:[#allocation2 + $0x41] sm:$0xff]
      %v764 = vld [vmem:[#allocation2 + $0x51] sm:$0xff]
      %v765 = vld [vmem:[#allocation2 + $0x59] sm:$0xff]
      %v766 = vld [vmem:[#allocation2 + $0x61] sm:$0xff]
      %v767 = vld [vmem:[#allocation2 + $0x69] sm:$0xff]
      %v768 = vld [vmem:[#allocation2 + $0x79] sm:$0xff]
      %v769 = vld [vmem:[#allocation2 + $0x81] sm:$0xff]
      %v770 = vld [vmem:[#allocation2 + $0x89] sm:$0xff]
      %v771 = vld [vmem:[#allocation2 + $0x91] sm:$0xff]
      %v772 = vld [vmem:[#allocation2 + $0xa1] sm:$0xff]
      %v773 = vld [vmem:[#allocation2 + $0xa9] sm:$0xff]
      %v774 = vld [vmem:[#allocation2 + $0xb1] sm:$0xff]
      %v775 = vld [vmem:[#allocation2 + $0xb9] sm:$0xff]
      %v776 = vld [vmem:[#allocation2 + $0xc9] sm:$0xff]
      %v777 = vld [vmem:[#allocation2 + $0xd1] sm:$0xff]
      %v778 = vld [vmem:[#allocation2 + $0xd9] sm:$0xff]
      %v779 = vld [vmem:[#allocation2 + $0xe1] sm:$0xff]
      %v780 = vld [vmem:[#allocation2 + $0xf1] sm:$0xff]
      %v781 = vld [vmem:[#allocation2 + $0xf9] sm:$0xff]
      %v782 = vld [vmem:[#allocation2 + $0x101] sm:$0xff]
      %v783 = vld [vmem:[#allocation2 + $0x109] sm:$0xff]
      %v784 = vld [vmem:[#allocation2 + $0x119] sm:$0xff]
      %v785 = vld [vmem:[#allocation2 + $0x121] sm:$0xff]
      %v786 = vld [vmem:[#allocation2 + $0x129] sm:$0xff]
      %v787 = vld [vmem:[#allocation2 + $0x131] sm:$0xff]
      %v788 = vld [vmem:[#allocation2 + $0x141] sm:$0xff]
      %v789 = vld [vmem:[#allocation2 + $0x149] sm:$0xff]
      %v790 = vld [vmem:[#allocation2 + $0x151] sm:$0xff]
      %v791 = vld [vmem:[#allocation2 + $0x159] sm:$0xff]
      %v792 = vld [vmem:[#allocation2 + $0x169] sm:$0xff]
      %v793 = vld [vmem:[#allocation2 + $0x171] sm:$0xff]
      %v794 = vld [vmem:[#allocation2 + $0x179] sm:$0xff]
      %v795 = vld [vmem:[#allocation2 + $0x181] sm:$0xff]
      %v796 = vld [vmem:[#allocation2 + $0x191] sm:$0xff]
      %v797 = vld [vmem:[#allocation2 + $0x199] sm:$0xff]
      %v798 = vld [vmem:[#allocation2 + $0x1a1] sm:$0xff]
      %v799 = vld [vmem:[#allocation2 + $0x1a9] sm:$0xff]
      %v800 = vld [vmem:[#allocation2 + $0x1b9] sm:$0xff]
      %v801 = vld [vmem:[#allocation2 + $0x1c1] sm:$0xff]
      %v802 = vld [vmem:[#allocation2 + $0x1c9] sm:$0xff]
      %v803 = vld [vmem:[#allocation2 + $0x1d1] sm:$0xff]
      %v804 = vld [vmem:[#allocation2 + $0x1e1] sm:$0xff]
      %v805 = vld [vmem:[#allocation2 + $0x1e9] sm:$0xff]
      %v806 = vld [vmem:[#allocation2 + $0x1f1] sm:$0xff]
      %v807 = vld [vmem:[#allocation2 + $0x1f9] sm:$0xff]
      %v808 = vld [vmem:[#allocation2 + $0x209] sm:$0xff]
      %v809 = vld [vmem:[#allocation2 + $0x211] sm:$0xff]
      %v810 = vld [vmem:[#allocation2 + $0x219] sm:$0xff]
      %v811 = vld [vmem:[#allocation2 + $0x221] sm:$0xff]
      %v812 = vld [vmem:[#allocation2 + $0x231] sm:$0xff]
      %v813 = vld [vmem:[#allocation2 + $0x239] sm:$0xff]
      %v814 = vld [vmem:[#allocation2 + $0x241] sm:$0xff]
      %v815 = vld [vmem:[#allocation2 + $0x249] sm:$0xff]
      %v816 = vld [vmem:[#allocation2 + $0x259] sm:$0xff]
      %v817 = vld [vmem:[#allocation2 + $0x261] sm:$0xff]
      %v818 = vld [vmem:[#allocation2 + $0x269] sm:$0xff]
      %v819 = vld [vmem:[#allocation2 + $0x271] sm:$0xff]
      %v820 = vld [vmem:[#allocation2 + $0x281] sm:$0xff]
      %v821 = vld [vmem:[#allocation2 + $0x289] sm:$0xff]
      %v822 = vld [vmem:[#allocation2 + $0x291] sm:$0xff]
      %v823 = vld [vmem:[#allocation2 + $0x299] sm:$0xff]
      %v824 = vld [vmem:[#allocation2 + $0x2a9] sm:$0xff]
      %v825 = vld [vmem:[#allocation2 + $0x2b1] sm:$0xff]
      %v826 = vld [vmem:[#allocation2 + $0x2b9] sm:$0xff]
      %v827 = vld [vmem:[#allocation2 + $0x2c1] sm:$0xff]
      %v828 = vld [vmem:[#allocation2 + $0x2d1] sm:$0xff]
      %v829 = vld [vmem:[#allocation2 + $0x2d9] sm:$0xff]
      %v830 = vld [vmem:[#allocation2 + $0x2e1] sm:$0xff]
      %v831 = vld [vmem:[#allocation2 + $0x2e9] sm:$0xff]
      %v832 = vld [vmem:[#allocation2 + $0x2f9] sm:$0xff]
      %v833 = vld [vmem:[#allocation2 + $0x301] sm:$0xff]
      %v834 = vld [vmem:[#allocation2 + $0x309] sm:$0xff]
      %v835 = vld [vmem:[#allocation2 + $0x311] sm:$0xff]
      %v836 = vld [vmem:[#allocation2 + $0x321] sm:$0xff]
      %v837 = vld [vmem:[#allocation2 + $0x329] sm:$0xff]
      %v838 = vld [vmem:[#allocation2 + $0x331] sm:$0xff]
      %v839 = vld [vmem:[#allocation2 + $0x339] sm:$0xff]
      %v840 = vld [vmem:[#allocation2 + $0x349] sm:$0xff]
      %v841 = vld [vmem:[#allocation2 + $0x351] sm:$0xff]
      %v842 = vld [vmem:[#allocation2 + $0x359] sm:$0xff]
      %v843 = vld [vmem:[#allocation2 + $0x361] sm:$0xff]
      %v844 = vld [vmem:[#allocation2 + $0x371] sm:$0xff]
      %v845 = vld [vmem:[#allocation2 + $0x379] sm:$0xff]
      %v846 = vld [vmem:[#allocation2 + $0x381] sm:$0xff]
      %v847 = vld [vmem:[#allocation2 + $0x389] sm:$0xff]
      %v848 = vld [vmem:[#allocation2 + $0x399] sm:$0xff]
      %v849 = vld [vmem:[#allocation2 + $0x3a1] sm:$0xff]
      %v850 = vld [vmem:[#allocation2 + $0x3a9] sm:$0xff]
      %v851 = vld [vmem:[#allocation2 + $0x3b1] sm:$0xff]
      %v852 = vld [vmem:[#allocation2 + $0x3c1] sm:$0xff]
      %v853 = vld [vmem:[#allocation2 + $0x3c9] sm:$0xff]
      %v854 = vld [vmem:[#allocation2 + $0x3d1] sm:$0xff]
      %v855 = vld [vmem:[#allocation2 + $0x3d9] sm:$0xff]
      %v856 = vld [vmem:[#allocation2 + $0x3e9] sm:$0xff]
      %v857 = vld [vmem:[#allocation2 + $0x3f1] sm:$0xff]
      %v858 = vld [vmem:[#allocation2 + $0x3f9] sm:$0xff]
      %v859 = vld [vmem:[#allocation2 + $0x401] sm:$0xff]
      %v860 = vld [vmem:[#allocation2 + $0x411] sm:$0xff]
      %v861 = vld [vmem:[#allocation2 + $0x419] sm:$0xff]
      %v862 = vld [vmem:[#allocation2 + $0x421] sm:$0xff]
      %v863 = vld [vmem:[#allocation2 + $0x429] sm:$0xff]
      %v864 = vld [vmem:[#allocation2 + $0x439] sm:$0xff]
      %v865 = vld [vmem:[#allocation2 + $0x441] sm:$0xff]
      %v866 = vld [vmem:[#allocation2 + $0x449] sm:$0xff]
      %v867 = vld [vmem:[#allocation2 + $0x451] sm:$0xff]
      %v868 = vld [vmem:[#allocation2 + $0x461] sm:$0xff]
      %v869 = vld [vmem:[#allocation2 + $0x469] sm:$0xff]
      %v870 = vld [vmem:[#allocation2 + $0x471] sm:$0xff]
      %v871 = vld [vmem:[#allocation2 + $0x479] sm:$0xff]
      %v872 = vld [vmem:[#allocation2 + $0x489] sm:$0xff]
      %v873 = vld [vmem:[#allocation2 + $0x491] sm:$0xff]
      %v874 = vld [vmem:[#allocation2 + $0x499] sm:$0xff]
      %v875 = vld [vmem:[#allocation2 + $0x4a1] sm:$0xff]
      %v876 = vld [vmem:[#allocation2 + $0x4b1] sm:$0xff]
      %v877 = vld [vmem:[#allocation2 + $0x4b9] sm:$0xff]
      %v878 = vld [vmem:[#allocation2 + $0x4c1] sm:$0xff]
      %v879 = vld [vmem:[#allocation2 + $0x4c9] sm:$0xff]
      %v880 = vld [vmem:[#allocation2 + $0x4d9] sm:$0xff]
      %v881 = vld [vmem:[#allocation2 + $0x4e1] sm:$0xff]
      %v882 = vld [vmem:[#allocation2 + $0x4e9] sm:$0xff]
      %v883 = vld [vmem:[#allocation2 + $0x4f1] sm:$0xff]
      %s884 = scalar_lea.vmem %s1, 4
      %v885 = vld [vmem:[%s884] sm:$0x7]
      %v887 = vsel %vm326, %v756, 0
      %v890 = vsel %vm326, %v757, 0
      %v893 = vsel %vm326, %v758, 0
      %v896 = vsel %vm326, %v759, 0
      %v899 = vsel %vm326, %v760, 0
      %v902 = vsel %vm326, %v761, 0
      %v905 = vsel %vm326, %v762, 0
      %v908 = vsel %vm326, %v763, 0
      %v911 = vsel %vm326, %v764, 0
      %v914 = vsel %vm326, %v765, 0
      %v917 = vsel %vm326, %v766, 0
      %v920 = vsel %vm326, %v767, 0
      %v923 = vsel %vm326, %v768, 0
      %v926 = vsel %vm326, %v769, 0
      %v929 = vsel %vm326, %v770, 0
      %v932 = vsel %vm326, %v771, 0
      %v935 = vsel %vm326, %v772, 0
      %v938 = vsel %vm326, %v773, 0
      %v941 = vsel %vm326, %v774, 0
      %v944 = vsel %vm326, %v775, 0
      %v947 = vsel %vm326, %v776, 0
      %v950 = vsel %vm326, %v777, 0
      %v953 = vsel %vm326, %v778, 0
      %v956 = vsel %vm326, %v779, 0
      %v959 = vsel %vm326, %v780, 0
      %v962 = vsel %vm326, %v781, 0
      %v965 = vsel %vm326, %v782, 0
      %v968 = vsel %vm326, %v783, 0
      %v971 = vsel %vm326, %v784, 0
      %v974 = vsel %vm326, %v785, 0
      %v977 = vsel %vm326, %v786, 0
      %v980 = vsel %vm326, %v787, 0
      %v983 = vsel %vm326, %v788, 0
      %v986 = vsel %vm326, %v789, 0
      %v989 = vsel %vm326, %v790, 0
      %v992 = vsel %vm326, %v791, 0
      %v995 = vsel %vm326, %v792, 0
      %v998 = vsel %vm326, %v793, 0
      %v1001 = vsel %vm326, %v794, 0
      %v1004 = vsel %vm326, %v795, 0
      %v1007 = vsel %vm326, %v796, 0
      %v1010 = vsel %vm326, %v797, 0
      %v1013 = vsel %vm326, %v798, 0
      %v1016 = vsel %vm326, %v799, 0
      %v1019 = vsel %vm326, %v800, 0
      %v1022 = vsel %vm326, %v801, 0
      %v1025 = vsel %vm326, %v802, 0
      %v1028 = vsel %vm326, %v803, 0
      %v1031 = vsel %vm326, %v804, 0
      %v1034 = vsel %vm326, %v805, 0
      %v1037 = vsel %vm326, %v806, 0
      %v1040 = vsel %vm326, %v807, 0
      %v1043 = vsel %vm326, %v808, 0
      %v1046 = vsel %vm326, %v809, 0
      %v1049 = vsel %vm326, %v810, 0
      %v1052 = vsel %vm326, %v811, 0
      %v1055 = vsel %vm326, %v812, 0
      %v1058 = vsel %vm326, %v813, 0
      %v1061 = vsel %vm326, %v814, 0
      %v1064 = vsel %vm326, %v815, 0
      %v1067 = vsel %vm326, %v816, 0
      %v1070 = vsel %vm326, %v817, 0
      %v1073 = vsel %vm326, %v818, 0
      %v1076 = vsel %vm326, %v819, 0
      %v1079 = vsel %vm326, %v820, 0
      %v1082 = vsel %vm326, %v821, 0
      %v1085 = vsel %vm326, %v822, 0
      %v1088 = vsel %vm326, %v823, 0
      %v1091 = vsel %vm326, %v824, 0
      %v1094 = vsel %vm326, %v825, 0
      %v1097 = vsel %vm326, %v826, 0
      %v1100 = vsel %vm326, %v827, 0
      %v1103 = vsel %vm326, %v828, 0
      %v1106 = vsel %vm326, %v829, 0
      %v1109 = vsel %vm326, %v830, 0
      %v1112 = vsel %vm326, %v831, 0
      %v1115 = vsel %vm326, %v832, 0
      %v1118 = vsel %vm326, %v833, 0
      %v1121 = vsel %vm326, %v834, 0
      %v1124 = vsel %vm326, %v835, 0
      %v1127 = vsel %vm326, %v836, 0
      %v1130 = vsel %vm326, %v837, 0
      %v1133 = vsel %vm326, %v838, 0
      %v1136 = vsel %vm326, %v839, 0
      %v1139 = vsel %vm326, %v840, 0
      %v1142 = vsel %vm326, %v841, 0
      %v1145 = vsel %vm326, %v842, 0
      %v1148 = vsel %vm326, %v843, 0
      %v1151 = vsel %vm326, %v844, 0
      %v1154 = vsel %vm326, %v845, 0
      %v1157 = vsel %vm326, %v846, 0
      %v1160 = vsel %vm326, %v847, 0
      %v1163 = vsel %vm326, %v848, 0
      %v1166 = vsel %vm326, %v849, 0
      %v1169 = vsel %vm326, %v850, 0
      %v1172 = vsel %vm326, %v851, 0
      %v1175 = vsel %vm326, %v852, 0
      %v1178 = vsel %vm326, %v853, 0
      %v1181 = vsel %vm326, %v854, 0
      %v1184 = vsel %vm326, %v855, 0
      %v1187 = vsel %vm326, %v856, 0
      %v1190 = vsel %vm326, %v857, 0
      %v1193 = vsel %vm326, %v858, 0
      %v1196 = vsel %vm326, %v859, 0
      %v1199 = vsel %vm326, %v860, 0
      %v1202 = vsel %vm326, %v861, 0
      %v1205 = vsel %vm326, %v862, 0
      %v1208 = vsel %vm326, %v863, 0
      %v1211 = vsel %vm326, %v864, 0
      %v1214 = vsel %vm326, %v865, 0
      %v1217 = vsel %vm326, %v866, 0
      %v1220 = vsel %vm326, %v867, 0
      %v1223 = vsel %vm326, %v868, 0
      %v1226 = vsel %vm326, %v869, 0
      %v1229 = vsel %vm326, %v870, 0
      %v1232 = vsel %vm326, %v871, 0
      %v1235 = vsel %vm326, %v872, 0
      %v1238 = vsel %vm326, %v873, 0
      %v1241 = vsel %vm326, %v874, 0
      %v1244 = vsel %vm326, %v875, 0
      %v1247 = vsel %vm326, %v876, 0
      %v1250 = vsel %vm326, %v877, 0
      %v1253 = vsel %vm326, %v878, 0
      %v1256 = vsel %vm326, %v879, 0
      %v1259 = vsel %vm326, %v880, 0
      %v1262 = vsel %vm326, %v881, 0
      %v1265 = vsel %vm326, %v882, 0
      %v1268 = vsel %vm326, %v883, 0
      %vm1270 = vcmask 1042432
      %v1272 = vsel %vm1270, %v885, 0
      %1274 = vmatprep.subr.mxu0 0.0
      %1275 = vmatpush1.msra.mxu0 %v1272
      %1276 = vmatprep.subr.mxu0 0.0
      %1277 = vmatpush1.msra.mxu0 0.0
      %1278 = vmatprep.subr.mxu0 0.0
      %1279 = vmatpush1.msra.mxu0 0.0
      %1280 = vmatprep.subr.mxu0 0.0
      %1281 = vmatpush1.msra.mxu0 0.0
      %1282 = vmatprep.subr.mxu0 0.0
      %1283 = vmatpush1.msra.mxu0 0.0
      %1284 = vmatprep.subr.mxu0 0.0
      %1285 = vmatpush1.msra.mxu0 0.0
      %1286 = vmatprep.subr.mxu0 0.0
      %1287 = vmatpush1.msra.mxu0 0.0
      %1288 = vmatprep.subr.mxu0 0.0
      %1289 = vmatpush1.msra.mxu0 0.0
      %1290 = vmatprep.subr.mxu0 0.0
      %1291 = vmatpush1.msra.mxu0 0.0
      %1292 = vmatprep.subr.mxu0 0.0
      %1293 = vmatpush1.msra.mxu0 0.0
      %1294 = vmatprep.subr.mxu0 0.0
      %1295 = vmatpush1.msra.mxu0 0.0
      %1296 = vmatprep.subr.mxu0 0.0
      %1297 = vmatpush1.msra.mxu0 0.0
      %1298 = vmatprep.subr.mxu0 0.0
      %1299 = vmatpush1.msra.mxu0 0.0
      %1300 = vmatprep.subr.mxu0 0.0
      %1301 = vmatpush1.msra.mxu0 0.0
      %1302 = vmatprep.subr.mxu0 0.0
      %1303 = vmatpush1.msra.mxu0 0.0
      %1304 = vmatprep.subr.mxu0 0.0
      %1305 = vmatpush1.msra.mxu0 0.0
      %1306 = vmatprep.subr.mxu0 0.0
      %1307 = vmatpush1.msra.mxu0 0.0
      %1308 = vmatprep.subr.mxu0 0.0
      %1309 = vmatpush1.msra.mxu0 0.0
      %1310 = vmatprep.subr.mxu0 0.0
      %1311 = vmatpush1.msra.mxu0 0.0
      %1312 = vmatprep.subr.mxu0 0.0
      %1313 = vmatpush1.msra.mxu0 0.0
      %1314 = vmatprep.subr.mxu0 0.0
      %1315 = vmatpush1.msra.mxu0 0.0
      %1316 = vmatprep.subr.mxu0 0.0
      %1317 = vmatpush1.msra.mxu0 0.0
      %1318 = vmatprep.subr.mxu0 0.0
      %1319 = vmatpush1.msra.mxu0 0.0
      %1320 = vmatprep.subr.mxu0 0.0
      %1321 = vmatpush1.msra.mxu0 0.0
      %1322 = vmatprep.subr.mxu0 0.0
      %1323 = vmatpush1.msra.mxu0 0.0
      %1324 = vmatprep.subr.mxu0 0.0
      %1325 = vmatpush1.msra.mxu0 0.0
      %1326 = vmatprep.subr.mxu0 0.0
      %1327 = vmatpush1.msra.mxu0 0.0
      %1328 = vmatprep.subr.mxu0 0.0
      %1329 = vmatpush1.msra.mxu0 0.0
      %1330 = vmatprep.subr.mxu0 0.0
      %1331 = vmatpush1.msra.mxu0 0.0
      %1332 = vmatprep.subr.mxu0 0.0
      %1333 = vmatpush1.msra.mxu0 0.0
      %1334 = vmatprep.subr.mxu0 0.0
      %1335 = vmatpush1.msra.mxu0 0.0
      %1336 = vmatprep.subr.mxu0 0.0
      %1337 = vmatpush1.msra.mxu0 0.0
      %1338 = vmatprep.mubr.f32.mxu0 0.0
      %1339 = vmatmul.mubr.f32.gmra.mrb[0].mxu0 %v887
      %v1340 = vpop.f32.mrb[0].mxu0
      %v1341 = vadd.f32 0.0, %v1340
      %v1342 = vpop.f32.mrb[0].mxu0
      %1343 = vmatprep.mubr.f32.mxu0 0.0
      %1344 = vmatmul.mubr.f32.gmra.mrb[0].mxu0 %v890
      %v1345 = vpop.f32.mrb[0].mxu0
      %v1346 = vadd.f32 0.0, %v1345
      %v1347 = vpop.f32.mrb[0].mxu0
      %1348 = vmatprep.mubr.f32.mxu0 0.0
      %1349 = vmatmul.mubr.f32.gmra.mrb[0].mxu0 %v893
      %v1350 = vpop.f32.mrb[0].mxu0
      %v1351 = vadd.f32 0.0, %v1350
      %v1352 = vpop.f32.mrb[0].mxu0
      %1353 = vmatprep.mubr.f32.mxu0 0.0
      %1354 = vmatmul.mubr.f32.gmra.mrb[0].mxu0 %v896
      %v1355 = vpop.f32.mrb[0].mxu0
      %v1356 = vadd.f32 0.0, %v1355
      %v1357 = vpop.f32.mrb[0].mxu0
      %1358 = vmatprep.mubr.f32.mxu0 0.0
      %1359 = vmatmul.mubr.f32.gmra.mrb[0].mxu0 %v899
      %v1360 = vpop.f32.mrb[0].mxu0
      %v1361 = vadd.f32 0.0, %v1360
      %v1362 = vpop.f32.mrb[0].mxu0
      %1363 = vmatprep.mubr.f32.mxu0 0.0
      %1364 = vmatmul.mubr.f32.gmra.mrb[0].mxu0 %v902
      %v1365 = vpop.f32.mrb[0].mxu0
      %v1366 = vadd.f32 0.0, %v1365
      %v1367 = vpop.f32.mrb[0].mxu0
      %1368 = vmatprep.mubr.f32.mxu0 0.0
      %1369 = vmatmul.mubr.f32.gmra.mrb[0].mxu0 %v905
      %v1370 = vpop.f32.mrb[0].mxu0
      %v1371 = vadd.f32 0.0, %v1370
      %v1372 = vpop.f32.mrb[0].mxu0
      %1373 = vmatprep.mubr.f32.mxu0 0.0
      %1374 = vmatmul.mubr.f32.gmra.mrb[0].mxu0 %v908
      %v1375 = vpop.f32.mrb[0].mxu0
      %v1376 = vadd.f32 0.0, %v1375
      %v1377 = vpop.f32.mrb[0].mxu0
      %1378 = vmatprep.mubr.f32.mxu0 0.0
      %1379 = vmatmul.mubr.f32.gmra.mrb[0].mxu0 %v911
      %v1380 = vpop.f32.mrb[0].mxu0
      %v1381 = vadd.f32 0.0, %v1380
      %v1382 = vpop.f32.mrb[0].mxu0
      %1383 = vmatprep.mubr.f32.mxu0 0.0
      %1384 = vmatmul.mubr.f32.gmra.mrb[0].mxu0 %v914
      %v1385 = vpop.f32.mrb[0].mxu0
      %v1386 = vadd.f32 0.0, %v1385
      %v1387 = vpop.f32.mrb[0].mxu0
      %1388 = vmatprep.mubr.f32.mxu0 0.0
      %1389 = vmatmul.mubr.f32.gmra.mrb[0].mxu0 %v917
      %v1390 = vpop.f32.mrb[0].mxu0
      %v1391 = vadd.f32 0.0, %v1390
      %v1392 = vpop.f32.mrb[0].mxu0
      %1393 = vmatprep.mubr.f32.mxu0 0.0
      %1394 = vmatmul.mubr.f32.gmra.mrb[0].mxu0 %v920
      %v1395 = vpop.f32.mrb[0].mxu0
      %v1396 = vadd.f32 0.0, %v1395
      %v1397 = vpop.f32.mrb[0].mxu0
      %1398 = vmatprep.mubr.f32.mxu0 0.0
      %1399 = vmatmul.mubr.f32.gmra.mrb[0].mxu0 %v923
      %v1400 = vpop.f32.mrb[0].mxu0
      %v1401 = vadd.f32 0.0, %v1400
      %v1402 = vpop.f32.mrb[0].mxu0
      %1403 = vmatprep.mubr.f32.mxu0 0.0
      %1404 = vmatmul.mubr.f32.gmra.mrb[0].mxu0 %v926
      %v1405 = vpop.f32.mrb[0].mxu0
      %v1406 = vadd.f32 0.0, %v1405
      %v1407 = vpop.f32.mrb[0].mxu0
      %1408 = vmatprep.mubr.f32.mxu0 0.0
      %1409 = vmatmul.mubr.f32.gmra.mrb[0].mxu0 %v929
      %v1410 = vpop.f32.mrb[0].mxu0
      %v1411 = vadd.f32 0.0, %v1410
      %v1412 = vpop.f32.mrb[0].mxu0
      %1413 = vmatprep.mubr.f32.mxu0 0.0
      %1414 = vmatmul.mubr.f32.gmra.mrb[0].mxu0 %v932
      %v1415 = vpop.f32.mrb[0].mxu0
      %v1416 = vadd.f32 0.0, %v1415
      %v1417 = vpop.f32.mrb[0].mxu0
      %1418 = vmatprep.mubr.f32.mxu0 0.0
      %1419 = vmatmul.mubr.f32.gmra.mrb[0].mxu0 %v935
      %v1420 = vpop.f32.mrb[0].mxu0
      %v1421 = vadd.f32 0.0, %v1420
      %v1422 = vpop.f32.mrb[0].mxu0
      %1423 = vmatprep.mubr.f32.mxu0 0.0
      %1424 = vmatmul.mubr.f32.gmra.mrb[0].mxu0 %v938
      %v1425 = vpop.f32.mrb[0].mxu0
      %v1426 = vadd.f32 0.0, %v1425
      %v1427 = vpop.f32.mrb[0].mxu0
      %1428 = vmatprep.mubr.f32.mxu0 0.0
      %1429 = vmatmul.mubr.f32.gmra.mrb[0].mxu0 %v941
      %v1430 = vpop.f32.mrb[0].mxu0
      %v1431 = vadd.f32 0.0, %v1430
      %v1432 = vpop.f32.mrb[0].mxu0
      %1433 = vmatprep.mubr.f32.mxu0 0.0
      %1434 = vmatmul.mubr.f32.gmra.mrb[0].mxu0 %v944
      %v1435 = vpop.f32.mrb[0].mxu0
      %v1436 = vadd.f32 0.0, %v1435
      %v1437 = vpop.f32.mrb[0].mxu0
      %1438 = vmatprep.mubr.f32.mxu0 0.0
      %1439 = vmatmul.mubr.f32.gmra.mrb[0].mxu0 %v947
      %v1440 = vpop.f32.mrb[0].mxu0
      %v1441 = vadd.f32 0.0, %v1440
      %v1442 = vpop.f32.mrb[0].mxu0
      %1443 = vmatprep.mubr.f32.mxu0 0.0
      %1444 = vmatmul.mubr.f32.gmra.mrb[0].mxu0 %v950
      %v1445 = vpop.f32.mrb[0].mxu0
      %v1446 = vadd.f32 0.0, %v1445
      %v1447 = vpop.f32.mrb[0].mxu0
      %1448 = vmatprep.mubr.f32.mxu0 0.0
      %1449 = vmatmul.mubr.f32.gmra.mrb[0].mxu0 %v953
      %v1450 = vpop.f32.mrb[0].mxu0
      %v1451 = vadd.f32 0.0, %v1450
      %v1452 = vpop.f32.mrb[0].mxu0
      %1453 = vmatprep.mubr.f32.mxu0 0.0
      %1454 = vmatmul.mubr.f32.gmra.mrb[0].mxu0 %v956
      %v1455 = vpop.f32.mrb[0].mxu0
      %v1456 = vadd.f32 0.0, %v1455
      %v1457 = vpop.f32.mrb[0].mxu0
      %1458 = vmatprep.mubr.f32.mxu0 0.0
      %1459 = vmatmul.mubr.f32.gmra.mrb[0].mxu0 %v959
      %v1460 = vpop.f32.mrb[0].mxu0
      %v1461 = vadd.f32 0.0, %v1460
      %v1462 = vpop.f32.mrb[0].mxu0
      %1463 = vmatprep.mubr.f32.mxu0 0.0
      %1464 = vmatmul.mubr.f32.gmra.mrb[0].mxu0 %v962
      %v1465 = vpop.f32.mrb[0].mxu0
      %v1466 = vadd.f32 0.0, %v1465
      %v1467 = vpop.f32.mrb[0].mxu0
      %1468 = vmatprep.mubr.f32.mxu0 0.0
      %1469 = vmatmul.mubr.f32.gmra.mrb[0].mxu0 %v965
      %v1470 = vpop.f32.mrb[0].mxu0
      %v1471 = vadd.f32 0.0, %v1470
      %v1472 = vpop.f32.mrb[0].mxu0
      %1473 = vmatprep.mubr.f32.mxu0 0.0
      %1474 = vmatmul.mubr.f32.gmra.mrb[0].mxu0 %v968
      %v1475 = vpop.f32.mrb[0].mxu0
      %v1476 = vadd.f32 0.0, %v1475
      %v1477 = vpop.f32.mrb[0].mxu0
      %1478 = vmatprep.mubr.f32.mxu0 0.0
      %1479 = vmatmul.mubr.f32.gmra.mrb[0].mxu0 %v971
      %v1480 = vpop.f32.mrb[0].mxu0
      %v1481 = vadd.f32 0.0, %v1480
      %v1482 = vpop.f32.mrb[0].mxu0
      %1483 = vmatprep.mubr.f32.mxu0 0.0
      %1484 = vmatmul.mubr.f32.gmra.mrb[0].mxu0 %v974
      %v1485 = vpop.f32.mrb[0].mxu0
      %v1486 = vadd.f32 0.0, %v1485
      %v1487 = vpop.f32.mrb[0].mxu0
      %1488 = vmatprep.mubr.f32.mxu0 0.0
      %1489 = vmatmul.mubr.f32.gmra.mrb[0].mxu0 %v977
      %v1490 = vpop.f32.mrb[0].mxu0
      %v1491 = vadd.f32 0.0, %v1490
      %v1492 = vpop.f32.mrb[0].mxu0
      %1493 = vmatprep.mubr.f32.mxu0 0.0
      %1494 = vmatmul.mubr.f32.gmra.mrb[0].mxu0 %v980
      %v1495 = vpop.f32.mrb[0].mxu0
      %v1496 = vadd.f32 0.0, %v1495
      %v1497 = vpop.f32.mrb[0].mxu0
      %1498 = vmatprep.mubr.f32.mxu0 0.0
      %1499 = vmatmul.mubr.f32.gmra.mrb[0].mxu0 %v983
      %v1500 = vpop.f32.mrb[0].mxu0
      %v1501 = vadd.f32 0.0, %v1500
      %v1502 = vpop.f32.mrb[0].mxu0
      %1503 = vmatprep.mubr.f32.mxu0 0.0
      %1504 = vmatmul.mubr.f32.gmra.mrb[0].mxu0 %v986
      %v1505 = vpop.f32.mrb[0].mxu0
      %v1506 = vadd.f32 0.0, %v1505
      %v1507 = vpop.f32.mrb[0].mxu0
      %1508 = vmatprep.mubr.f32.mxu0 0.0
      %1509 = vmatmul.mubr.f32.gmra.mrb[0].mxu0 %v989
      %v1510 = vpop.f32.mrb[0].mxu0
      %v1511 = vadd.f32 0.0, %v1510
      %v1512 = vpop.f32.mrb[0].mxu0
      %1513 = vmatprep.mubr.f32.mxu0 0.0
      %1514 = vmatmul.mubr.f32.gmra.mrb[0].mxu0 %v992
      %v1515 = vpop.f32.mrb[0].mxu0
      %v1516 = vadd.f32 0.0, %v1515
      %v1517 = vpop.f32.mrb[0].mxu0
      %1518 = vmatprep.mubr.f32.mxu0 0.0
      %1519 = vmatmul.mubr.f32.gmra.mrb[0].mxu0 %v995
      %v1520 = vpop.f32.mrb[0].mxu0
      %v1521 = vadd.f32 0.0, %v1520
      %v1522 = vpop.f32.mrb[0].mxu0
      %1523 = vmatprep.mubr.f32.mxu0 0.0
      %1524 = vmatmul.mubr.f32.gmra.mrb[0].mxu0 %v998
      %v1525 = vpop.f32.mrb[0].mxu0
      %v1526 = vadd.f32 0.0, %v1525
      %v1527 = vpop.f32.mrb[0].mxu0
      %1528 = vmatprep.mubr.f32.mxu0 0.0
      %1529 = vmatmul.mubr.f32.gmra.mrb[0].mxu0 %v1001
      %v1530 = vpop.f32.mrb[0].mxu0
      %v1531 = vadd.f32 0.0, %v1530
      %v1532 = vpop.f32.mrb[0].mxu0
      %1533 = vmatprep.mubr.f32.mxu0 0.0
      %1534 = vmatmul.mubr.f32.gmra.mrb[0].mxu0 %v1004
      %v1535 = vpop.f32.mrb[0].mxu0
      %v1536 = vadd.f32 0.0, %v1535
      %v1537 = vpop.f32.mrb[0].mxu0
      %1538 = vmatprep.mubr.f32.mxu0 0.0
      %1539 = vmatmul.mubr.f32.gmra.mrb[0].mxu0 %v1007
      %v1540 = vpop.f32.mrb[0].mxu0
      %v1541 = vadd.f32 0.0, %v1540
      %v1542 = vpop.f32.mrb[0].mxu0
      %1543 = vmatprep.mubr.f32.mxu0 0.0
      %1544 = vmatmul.mubr.f32.gmra.mrb[0].mxu0 %v1010
      %v1545 = vpop.f32.mrb[0].mxu0
      %v1546 = vadd.f32 0.0, %v1545
      %v1547 = vpop.f32.mrb[0].mxu0
      %1548 = vmatprep.mubr.f32.mxu0 0.0
      %1549 = vmatmul.mubr.f32.gmra.mrb[0].mxu0 %v1013
      %v1550 = vpop.f32.mrb[0].mxu0
      %v1551 = vadd.f32 0.0, %v1550
      %v1552 = vpop.f32.mrb[0].mxu0
      %1553 = vmatprep.mubr.f32.mxu0 0.0
      %1554 = vmatmul.mubr.f32.gmra.mrb[0].mxu0 %v1016
      %v1555 = vpop.f32.mrb[0].mxu0
      %v1556 = vadd.f32 0.0, %v1555
      %v1557 = vpop.f32.mrb[0].mxu0
      %1558 = vmatprep.mubr.f32.mxu0 0.0
      %1559 = vmatmul.mubr.f32.gmra.mrb[0].mxu0 %v1019
      %v1560 = vpop.f32.mrb[0].mxu0
      %v1561 = vadd.f32 0.0, %v1560
      %v1562 = vpop.f32.mrb[0].mxu0
      %1563 = vmatprep.mubr.f32.mxu0 0.0
      %1564 = vmatmul.mubr.f32.gmra.mrb[0].mxu0 %v1022
      %v1565 = vpop.f32.mrb[0].mxu0
      %v1566 = vadd.f32 0.0, %v1565
      %v1567 = vpop.f32.mrb[0].mxu0
      %1568 = vmatprep.mubr.f32.mxu0 0.0
      %1569 = vmatmul.mubr.f32.gmra.mrb[0].mxu0 %v1025
      %v1570 = vpop.f32.mrb[0].mxu0
      %v1571 = vadd.f32 0.0, %v1570
      %v1572 = vpop.f32.mrb[0].mxu0
      %1573 = vmatprep.mubr.f32.mxu0 0.0
      %1574 = vmatmul.mubr.f32.gmra.mrb[0].mxu0 %v1028
      %v1575 = vpop.f32.mrb[0].mxu0
      %v1576 = vadd.f32 0.0, %v1575
      %v1577 = vpop.f32.mrb[0].mxu0
      %1578 = vmatprep.mubr.f32.mxu0 0.0
      %1579 = vmatmul.mubr.f32.gmra.mrb[0].mxu0 %v1031
      %v1580 = vpop.f32.mrb[0].mxu0
      %v1581 = vadd.f32 0.0, %v1580
      %v1582 = vpop.f32.mrb[0].mxu0
      %1583 = vmatprep.mubr.f32.mxu0 0.0
      %1584 = vmatmul.mubr.f32.gmra.mrb[0].mxu0 %v1034
      %v1585 = vpop.f32.mrb[0].mxu0
      %v1586 = vadd.f32 0.0, %v1585
      %v1587 = vpop.f32.mrb[0].mxu0
      %1588 = vmatprep.mubr.f32.mxu0 0.0
      %1589 = vmatmul.mubr.f32.gmra.mrb[0].mxu0 %v1037
      %v1590 = vpop.f32.mrb[0].mxu0
      %v1591 = vadd.f32 0.0, %v1590
      %v1592 = vpop.f32.mrb[0].mxu0
      %1593 = vmatprep.mubr.f32.mxu0 0.0
      %1594 = vmatmul.mubr.f32.gmra.mrb[0].mxu0 %v1040
      %v1595 = vpop.f32.mrb[0].mxu0
      %v1596 = vadd.f32 0.0, %v1595
      %v1597 = vpop.f32.mrb[0].mxu0
      %1598 = vmatprep.mubr.f32.mxu0 0.0
      %1599 = vmatmul.mubr.f32.gmra.mrb[0].mxu0 %v1043
      %v1600 = vpop.f32.mrb[0].mxu0
      %v1601 = vadd.f32 0.0, %v1600
      %v1602 = vpop.f32.mrb[0].mxu0
      %1603 = vmatprep.mubr.f32.mxu0 0.0
      %1604 = vmatmul.mubr.f32.gmra.mrb[0].mxu0 %v1046
      %v1605 = vpop.f32.mrb[0].mxu0
      %v1606 = vadd.f32 0.0, %v1605
      %v1607 = vpop.f32.mrb[0].mxu0
      %1608 = vmatprep.mubr.f32.mxu0 0.0
      %1609 = vmatmul.mubr.f32.gmra.mrb[0].mxu0 %v1049
      %v1610 = vpop.f32.mrb[0].mxu0
      %v1611 = vadd.f32 0.0, %v1610
      %v1612 = vpop.f32.mrb[0].mxu0
      %1613 = vmatprep.mubr.f32.mxu0 0.0
      %1614 = vmatmul.mubr.f32.gmra.mrb[0].mxu0 %v1052
      %v1615 = vpop.f32.mrb[0].mxu0
      %v1616 = vadd.f32 0.0, %v1615
      %v1617 = vpop.f32.mrb[0].mxu0
      %1618 = vmatprep.mubr.f32.mxu0 0.0
      %1619 = vmatmul.mubr.f32.gmra.mrb[0].mxu0 %v1055
      %v1620 = vpop.f32.mrb[0].mxu0
      %v1621 = vadd.f32 0.0, %v1620
      %v1622 = vpop.f32.mrb[0].mxu0
      %1623 = vmatprep.mubr.f32.mxu0 0.0
      %1624 = vmatmul.mubr.f32.gmra.mrb[0].mxu0 %v1058
      %v1625 = vpop.f32.mrb[0].mxu0
      %v1626 = vadd.f32 0.0, %v1625
      %v1627 = vpop.f32.mrb[0].mxu0
      %1628 = vmatprep.mubr.f32.mxu0 0.0
      %1629 = vmatmul.mubr.f32.gmra.mrb[0].mxu0 %v1061
      %v1630 = vpop.f32.mrb[0].mxu0
      %v1631 = vadd.f32 0.0, %v1630
      %v1632 = vpop.f32.mrb[0].mxu0
      %1633 = vmatprep.mubr.f32.mxu0 0.0
      %1634 = vmatmul.mubr.f32.gmra.mrb[0].mxu0 %v1064
      %v1635 = vpop.f32.mrb[0].mxu0
      %v1636 = vadd.f32 0.0, %v1635
      %v1637 = vpop.f32.mrb[0].mxu0
      %1638 = vmatprep.mubr.f32.mxu0 0.0
      %1639 = vmatmul.mubr.f32.gmra.mrb[0].mxu0 %v1067
      %v1640 = vpop.f32.mrb[0].mxu0
      %v1641 = vadd.f32 0.0, %v1640
      %v1642 = vpop.f32.mrb[0].mxu0
      %1643 = vmatprep.mubr.f32.mxu0 0.0
      %1644 = vmatmul.mubr.f32.gmra.mrb[0].mxu0 %v1070
      %v1645 = vpop.f32.mrb[0].mxu0
      %v1646 = vadd.f32 0.0, %v1645
      %v1647 = vpop.f32.mrb[0].mxu0
      %1648 = vmatprep.mubr.f32.mxu0 0.0
      %1649 = vmatmul.mubr.f32.gmra.mrb[0].mxu0 %v1073
      %v1650 = vpop.f32.mrb[0].mxu0
      %v1651 = vadd.f32 0.0, %v1650
      %v1652 = vpop.f32.mrb[0].mxu0
      %1653 = vmatprep.mubr.f32.mxu0 0.0
      %1654 = vmatmul.mubr.f32.gmra.mrb[0].mxu0 %v1076
      %v1655 = vpop.f32.mrb[0].mxu0
      %v1656 = vadd.f32 0.0, %v1655
      %v1657 = vpop.f32.mrb[0].mxu0
      %1658 = vmatprep.mubr.f32.mxu0 0.0
      %1659 = vmatmul.mubr.f32.gmra.mrb[0].mxu0 %v1079
      %v1660 = vpop.f32.mrb[0].mxu0
      %v1661 = vadd.f32 0.0, %v1660
      %v1662 = vpop.f32.mrb[0].mxu0
      %1663 = vmatprep.mubr.f32.mxu0 0.0
      %1664 = vmatmul.mubr.f32.gmra.mrb[0].mxu0 %v1082
      %v1665 = vpop.f32.mrb[0].mxu0
      %v1666 = vadd.f32 0.0, %v1665
      %v1667 = vpop.f32.mrb[0].mxu0
      %1668 = vmatprep.mubr.f32.mxu0 0.0
      %1669 = vmatmul.mubr.f32.gmra.mrb[0].mxu0 %v1085
      %v1670 = vpop.f32.mrb[0].mxu0
      %v1671 = vadd.f32 0.0, %v1670
      %v1672 = vpop.f32.mrb[0].mxu0
      %1673 = vmatprep.mubr.f32.mxu0 0.0
      %1674 = vmatmul.mubr.f32.gmra.mrb[0].mxu0 %v1088
      %v1675 = vpop.f32.mrb[0].mxu0
      %v1676 = vadd.f32 0.0, %v1675
      %v1677 = vpop.f32.mrb[0].mxu0
      %1678 = vmatprep.mubr.f32.mxu0 0.0
      %1679 = vmatmul.mubr.f32.gmra.mrb[0].mxu0 %v1091
      %v1680 = vpop.f32.mrb[0].mxu0
      %v1681 = vadd.f32 0.0, %v1680
      %v1682 = vpop.f32.mrb[0].mxu0
      %1683 = vmatprep.mubr.f32.mxu0 0.0
      %1684 = vmatmul.mubr.f32.gmra.mrb[0].mxu0 %v1094
      %v1685 = vpop.f32.mrb[0].mxu0
      %v1686 = vadd.f32 0.0, %v1685
      %v1687 = vpop.f32.mrb[0].mxu0
      %1688 = vmatprep.mubr.f32.mxu0 0.0
      %1689 = vmatmul.mubr.f32.gmra.mrb[0].mxu0 %v1097
      %v1690 = vpop.f32.mrb[0].mxu0
      %v1691 = vadd.f32 0.0, %v1690
      %v1692 = vpop.f32.mrb[0].mxu0
      %1693 = vmatprep.mubr.f32.mxu0 0.0
      %1694 = vmatmul.mubr.f32.gmra.mrb[0].mxu0 %v1100
      %v1695 = vpop.f32.mrb[0].mxu0
      %v1696 = vadd.f32 0.0, %v1695
      %v1697 = vpop.f32.mrb[0].mxu0
      %1698 = vmatprep.mubr.f32.mxu0 0.0
      %1699 = vmatmul.mubr.f32.gmra.mrb[0].mxu0 %v1103
      %v1700 = vpop.f32.mrb[0].mxu0
      %v1701 = vadd.f32 0.0, %v1700
      %v1702 = vpop.f32.mrb[0].mxu0
      %1703 = vmatprep.mubr.f32.mxu0 0.0
      %1704 = vmatmul.mubr.f32.gmra.mrb[0].mxu0 %v1106
      %v1705 = vpop.f32.mrb[0].mxu0
      %v1706 = vadd.f32 0.0, %v1705
      %v1707 = vpop.f32.mrb[0].mxu0
      %1708 = vmatprep.mubr.f32.mxu0 0.0
      %1709 = vmatmul.mubr.f32.gmra.mrb[0].mxu0 %v1109
      %v1710 = vpop.f32.mrb[0].mxu0
      %v1711 = vadd.f32 0.0, %v1710
      %v1712 = vpop.f32.mrb[0].mxu0
      %1713 = vmatprep.mubr.f32.mxu0 0.0
      %1714 = vmatmul.mubr.f32.gmra.mrb[0].mxu0 %v1112
      %v1715 = vpop.f32.mrb[0].mxu0
      %v1716 = vadd.f32 0.0, %v1715
      %v1717 = vpop.f32.mrb[0].mxu0
      %1718 = vmatprep.mubr.f32.mxu0 0.0
      %1719 = vmatmul.mubr.f32.gmra.mrb[0].mxu0 %v1115
      %v1720 = vpop.f32.mrb[0].mxu0
      %v1721 = vadd.f32 0.0, %v1720
      %v1722 = vpop.f32.mrb[0].mxu0
      %1723 = vmatprep.mubr.f32.mxu0 0.0
      %1724 = vmatmul.mubr.f32.gmra.mrb[0].mxu0 %v1118
      %v1725 = vpop.f32.mrb[0].mxu0
      %v1726 = vadd.f32 0.0, %v1725
      %v1727 = vpop.f32.mrb[0].mxu0
      %1728 = vmatprep.mubr.f32.mxu0 0.0
      %1729 = vmatmul.mubr.f32.gmra.mrb[0].mxu0 %v1121
      %v1730 = vpop.f32.mrb[0].mxu0
      %v1731 = vadd.f32 0.0, %v1730
      %v1732 = vpop.f32.mrb[0].mxu0
      %1733 = vmatprep.mubr.f32.mxu0 0.0
      %1734 = vmatmul.mubr.f32.gmra.mrb[0].mxu0 %v1124
      %v1735 = vpop.f32.mrb[0].mxu0
      %v1736 = vadd.f32 0.0, %v1735
      %v1737 = vpop.f32.mrb[0].mxu0
      %1738 = vmatprep.mubr.f32.mxu0 0.0
      %1739 = vmatmul.mubr.f32.gmra.mrb[0].mxu0 %v1127
      %v1740 = vpop.f32.mrb[0].mxu0
      %v1741 = vadd.f32 0.0, %v1740
      %v1742 = vpop.f32.mrb[0].mxu0
      %1743 = vmatprep.mubr.f32.mxu0 0.0
      %1744 = vmatmul.mubr.f32.gmra.mrb[0].mxu0 %v1130
      %v1745 = vpop.f32.mrb[0].mxu0
      %v1746 = vadd.f32 0.0, %v1745
      %v1747 = vpop.f32.mrb[0].mxu0
      %1748 = vmatprep.mubr.f32.mxu0 0.0
      %1749 = vmatmul.mubr.f32.gmra.mrb[0].mxu0 %v1133
      %v1750 = vpop.f32.mrb[0].mxu0
      %v1751 = vadd.f32 0.0, %v1750
      %v1752 = vpop.f32.mrb[0].mxu0
      %1753 = vmatprep.mubr.f32.mxu0 0.0
      %1754 = vmatmul.mubr.f32.gmra.mrb[0].mxu0 %v1136
      %v1755 = vpop.f32.mrb[0].mxu0
      %v1756 = vadd.f32 0.0, %v1755
      %v1757 = vpop.f32.mrb[0].mxu0
      %1758 = vmatprep.mubr.f32.mxu0 0.0
      %1759 = vmatmul.mubr.f32.gmra.mrb[0].mxu0 %v1139
      %v1760 = vpop.f32.mrb[0].mxu0
      %v1761 = vadd.f32 0.0, %v1760
      %v1762 = vpop.f32.mrb[0].mxu0
      %1763 = vmatprep.mubr.f32.mxu0 0.0
      %1764 = vmatmul.mubr.f32.gmra.mrb[0].mxu0 %v1142
      %v1765 = vpop.f32.mrb[0].mxu0
      %v1766 = vadd.f32 0.0, %v1765
      %v1767 = vpop.f32.mrb[0].mxu0
      %1768 = vmatprep.mubr.f32.mxu0 0.0
      %1769 = vmatmul.mubr.f32.gmra.mrb[0].mxu0 %v1145
      %v1770 = vpop.f32.mrb[0].mxu0
      %v1771 = vadd.f32 0.0, %v1770
      %v1772 = vpop.f32.mrb[0].mxu0
      %1773 = vmatprep.mubr.f32.mxu0 0.0
      %1774 = vmatmul.mubr.f32.gmra.mrb[0].mxu0 %v1148
      %v1775 = vpop.f32.mrb[0].mxu0
      %v1776 = vadd.f32 0.0, %v1775
      %v1777 = vpop.f32.mrb[0].mxu0
      %1778 = vmatprep.mubr.f32.mxu0 0.0
      %1779 = vmatmul.mubr.f32.gmra.mrb[0].mxu0 %v1151
      %v1780 = vpop.f32.mrb[0].mxu0
      %v1781 = vadd.f32 0.0, %v1780
      %v1782 = vpop.f32.mrb[0].mxu0
      %1783 = vmatprep.mubr.f32.mxu0 0.0
      %1784 = vmatmul.mubr.f32.gmra.mrb[0].mxu0 %v1154
      %v1785 = vpop.f32.mrb[0].mxu0
      %v1786 = vadd.f32 0.0, %v1785
      %v1787 = vpop.f32.mrb[0].mxu0
      %1788 = vmatprep.mubr.f32.mxu0 0.0
      %1789 = vmatmul.mubr.f32.gmra.mrb[0].mxu0 %v1157
      %v1790 = vpop.f32.mrb[0].mxu0
      %v1791 = vadd.f32 0.0, %v1790
      %v1792 = vpop.f32.mrb[0].mxu0
      %1793 = vmatprep.mubr.f32.mxu0 0.0
      %1794 = vmatmul.mubr.f32.gmra.mrb[0].mxu0 %v1160
      %v1795 = vpop.f32.mrb[0].mxu0
      %v1796 = vadd.f32 0.0, %v1795
      %v1797 = vpop.f32.mrb[0].mxu0
      %1798 = vmatprep.mubr.f32.mxu0 0.0
      %1799 = vmatmul.mubr.f32.gmra.mrb[0].mxu0 %v1163
      %v1800 = vpop.f32.mrb[0].mxu0
      %v1801 = vadd.f32 0.0, %v1800
      %v1802 = vpop.f32.mrb[0].mxu0
      %1803 = vmatprep.mubr.f32.mxu0 0.0
      %1804 = vmatmul.mubr.f32.gmra.mrb[0].mxu0 %v1166
      %v1805 = vpop.f32.mrb[0].mxu0
      %v1806 = vadd.f32 0.0, %v1805
      %v1807 = vpop.f32.mrb[0].mxu0
      %1808 = vmatprep.mubr.f32.mxu0 0.0
      %1809 = vmatmul.mubr.f32.gmra.mrb[0].mxu0 %v1169
      %v1810 = vpop.f32.mrb[0].mxu0
      %v1811 = vadd.f32 0.0, %v1810
      %v1812 = vpop.f32.mrb[0].mxu0
      %1813 = vmatprep.mubr.f32.mxu0 0.0
      %1814 = vmatmul.mubr.f32.gmra.mrb[0].mxu0 %v1172
      %v1815 = vpop.f32.mrb[0].mxu0
      %v1816 = vadd.f32 0.0, %v1815
      %v1817 = vpop.f32.mrb[0].mxu0
      %1818 = vmatprep.mubr.f32.mxu0 0.0
      %1819 = vmatmul.mubr.f32.gmra.mrb[0].mxu0 %v1175
      %v1820 = vpop.f32.mrb[0].mxu0
      %v1821 = vadd.f32 0.0, %v1820
      %v1822 = vpop.f32.mrb[0].mxu0
      %1823 = vmatprep.mubr.f32.mxu0 0.0
      %1824 = vmatmul.mubr.f32.gmra.mrb[0].mxu0 %v1178
      %v1825 = vpop.f32.mrb[0].mxu0
      %v1826 = vadd.f32 0.0, %v1825
      %v1827 = vpop.f32.mrb[0].mxu0
      %1828 = vmatprep.mubr.f32.mxu0 0.0
      %1829 = vmatmul.mubr.f32.gmra.mrb[0].mxu0 %v1181
      %v1830 = vpop.f32.mrb[0].mxu0
      %v1831 = vadd.f32 0.0, %v1830
      %v1832 = vpop.f32.mrb[0].mxu0
      %1833 = vmatprep.mubr.f32.mxu0 0.0
      %1834 = vmatmul.mubr.f32.gmra.mrb[0].mxu0 %v1184
      %v1835 = vpop.f32.mrb[0].mxu0
      %v1836 = vadd.f32 0.0, %v1835
      %v1837 = vpop.f32.mrb[0].mxu0
      %1838 = vmatprep.mubr.f32.mxu0 0.0
      %1839 = vmatmul.mubr.f32.gmra.mrb[0].mxu0 %v1187
      %v1840 = vpop.f32.mrb[0].mxu0
      %v1841 = vadd.f32 0.0, %v1840
      %v1842 = vpop.f32.mrb[0].mxu0
      %1843 = vmatprep.mubr.f32.mxu0 0.0
      %1844 = vmatmul.mubr.f32.gmra.mrb[0].mxu0 %v1190
      %v1845 = vpop.f32.mrb[0].mxu0
      %v1846 = vadd.f32 0.0, %v1845
      %v1847 = vpop.f32.mrb[0].mxu0
      %1848 = vmatprep.mubr.f32.mxu0 0.0
      %1849 = vmatmul.mubr.f32.gmra.mrb[0].mxu0 %v1193
      %v1850 = vpop.f32.mrb[0].mxu0
      %v1851 = vadd.f32 0.0, %v1850
      %v1852 = vpop.f32.mrb[0].mxu0
      %1853 = vmatprep.mubr.f32.mxu0 0.0
      %1854 = vmatmul.mubr.f32.gmra.mrb[0].mxu0 %v1196
      %v1855 = vpop.f32.mrb[0].mxu0
      %v1856 = vadd.f32 0.0, %v1855
      %v1857 = vpop.f32.mrb[0].mxu0
      %1858 = vmatprep.mubr.f32.mxu0 0.0
      %1859 = vmatmul.mubr.f32.gmra.mrb[0].mxu0 %v1199
      %v1860 = vpop.f32.mrb[0].mxu0
      %v1861 = vadd.f32 0.0, %v1860
      %v1862 = vpop.f32.mrb[0].mxu0
      %1863 = vmatprep.mubr.f32.mxu0 0.0
      %1864 = vmatmul.mubr.f32.gmra.mrb[0].mxu0 %v1202
      %v1865 = vpop.f32.mrb[0].mxu0
      %v1866 = vadd.f32 0.0, %v1865
      %v1867 = vpop.f32.mrb[0].mxu0
      %1868 = vmatprep.mubr.f32.mxu0 0.0
      %1869 = vmatmul.mubr.f32.gmra.mrb[0].mxu0 %v1205
      %v1870 = vpop.f32.mrb[0].mxu0
      %v1871 = vadd.f32 0.0, %v1870
      %v1872 = vpop.f32.mrb[0].mxu0
      %1873 = vmatprep.mubr.f32.mxu0 0.0
      %1874 = vmatmul.mubr.f32.gmra.mrb[0].mxu0 %v1208
      %v1875 = vpop.f32.mrb[0].mxu0
      %v1876 = vadd.f32 0.0, %v1875
      %v1877 = vpop.f32.mrb[0].mxu0
      %1878 = vmatprep.mubr.f32.mxu0 0.0
      %1879 = vmatmul.mubr.f32.gmra.mrb[0].mxu0 %v1211
      %v1880 = vpop.f32.mrb[0].mxu0
      %v1881 = vadd.f32 0.0, %v1880
      %v1882 = vpop.f32.mrb[0].mxu0
      %1883 = vmatprep.mubr.f32.mxu0 0.0
      %1884 = vmatmul.mubr.f32.gmra.mrb[0].mxu0 %v1214
      %v1885 = vpop.f32.mrb[0].mxu0
      %v1886 = vadd.f32 0.0, %v1885
      %v1887 = vpop.f32.mrb[0].mxu0
      %1888 = vmatprep.mubr.f32.mxu0 0.0
      %1889 = vmatmul.mubr.f32.gmra.mrb[0].mxu0 %v1217
      %v1890 = vpop.f32.mrb[0].mxu0
      %v1891 = vadd.f32 0.0, %v1890
      %v1892 = vpop.f32.mrb[0].mxu0
      %1893 = vmatprep.mubr.f32.mxu0 0.0
      %1894 = vmatmul.mubr.f32.gmra.mrb[0].mxu0 %v1220
      %v1895 = vpop.f32.mrb[0].mxu0
      %v1896 = vadd.f32 0.0, %v1895
      %v1897 = vpop.f32.mrb[0].mxu0
      %1898 = vmatprep.mubr.f32.mxu0 0.0
      %1899 = vmatmul.mubr.f32.gmra.mrb[0].mxu0 %v1223
      %v1900 = vpop.f32.mrb[0].mxu0
      %v1901 = vadd.f32 0.0, %v1900
      %v1902 = vpop.f32.mrb[0].mxu0
      %1903 = vmatprep.mubr.f32.mxu0 0.0
      %1904 = vmatmul.mubr.f32.gmra.mrb[0].mxu0 %v1226
      %v1905 = vpop.f32.mrb[0].mxu0
      %v1906 = vadd.f32 0.0, %v1905
      %v1907 = vpop.f32.mrb[0].mxu0
      %1908 = vmatprep.mubr.f32.mxu0 0.0
      %1909 = vmatmul.mubr.f32.gmra.mrb[0].mxu0 %v1229
      %v1910 = vpop.f32.mrb[0].mxu0
      %v1911 = vadd.f32 0.0, %v1910
      %v1912 = vpop.f32.mrb[0].mxu0
      %1913 = vmatprep.mubr.f32.mxu0 0.0
      %1914 = vmatmul.mubr.f32.gmra.mrb[0].mxu0 %v1232
      %v1915 = vpop.f32.mrb[0].mxu0
      %v1916 = vadd.f32 0.0, %v1915
      %v1917 = vpop.f32.mrb[0].mxu0
      %1918 = vmatprep.mubr.f32.mxu0 0.0
      %1919 = vmatmul.mubr.f32.gmra.mrb[0].mxu0 %v1235
      %v1920 = vpop.f32.mrb[0].mxu0
      %v1921 = vadd.f32 0.0, %v1920
      %v1922 = vpop.f32.mrb[0].mxu0
      %1923 = vmatprep.mubr.f32.mxu0 0.0
      %1924 = vmatmul.mubr.f32.gmra.mrb[0].mxu0 %v1238
      %v1925 = vpop.f32.mrb[0].mxu0
      %v1926 = vadd.f32 0.0, %v1925
      %v1927 = vpop.f32.mrb[0].mxu0
      %1928 = vmatprep.mubr.f32.mxu0 0.0
      %1929 = vmatmul.mubr.f32.gmra.mrb[0].mxu0 %v1241
      %v1930 = vpop.f32.mrb[0].mxu0
      %v1931 = vadd.f32 0.0, %v1930
      %v1932 = vpop.f32.mrb[0].mxu0
      %1933 = vmatprep.mubr.f32.mxu0 0.0
      %1934 = vmatmul.mubr.f32.gmra.mrb[0].mxu0 %v1244
      %v1935 = vpop.f32.mrb[0].mxu0
      %v1936 = vadd.f32 0.0, %v1935
      %v1937 = vpop.f32.mrb[0].mxu0
      %1938 = vmatprep.mubr.f32.mxu0 0.0
      %1939 = vmatmul.mubr.f32.gmra.mrb[0].mxu0 %v1247
      %v1940 = vpop.f32.mrb[0].mxu0
      %v1941 = vadd.f32 0.0, %v1940
      %v1942 = vpop.f32.mrb[0].mxu0
      %1943 = vmatprep.mubr.f32.mxu0 0.0
      %1944 = vmatmul.mubr.f32.gmra.mrb[0].mxu0 %v1250
      %v1945 = vpop.f32.mrb[0].mxu0
      %v1946 = vadd.f32 0.0, %v1945
      %v1947 = vpop.f32.mrb[0].mxu0
      %1948 = vmatprep.mubr.f32.mxu0 0.0
      %1949 = vmatmul.mubr.f32.gmra.mrb[0].mxu0 %v1253
      %v1950 = vpop.f32.mrb[0].mxu0
      %v1951 = vadd.f32 0.0, %v1950
      %v1952 = vpop.f32.mrb[0].mxu0
      %1953 = vmatprep.mubr.f32.mxu0 0.0
      %1954 = vmatmul.mubr.f32.gmra.mrb[0].mxu0 %v1256
      %v1955 = vpop.f32.mrb[0].mxu0
      %v1956 = vadd.f32 0.0, %v1955
      %v1957 = vpop.f32.mrb[0].mxu0
      %1958 = vmatprep.mubr.f32.mxu0 0.0
      %1959 = vmatmul.mubr.f32.gmra.mrb[0].mxu0 %v1259
      %v1960 = vpop.f32.mrb[0].mxu0
      %v1961 = vadd.f32 0.0, %v1960
      %v1962 = vpop.f32.mrb[0].mxu0
      %1963 = vmatprep.mubr.f32.mxu0 0.0
      %1964 = vmatmul.mubr.f32.gmra.mrb[0].mxu0 %v1262
      %v1965 = vpop.f32.mrb[0].mxu0
      %v1966 = vadd.f32 0.0, %v1965
      %v1967 = vpop.f32.mrb[0].mxu0
      %1968 = vmatprep.mubr.f32.mxu0 0.0
      %1969 = vmatmul.mubr.f32.gmra.mrb[0].mxu0 %v1265
      %v1970 = vpop.f32.mrb[0].mxu0
      %v1971 = vadd.f32 0.0, %v1970
      %v1972 = vpop.f32.mrb[0].mxu0
      %1973 = vmatprep.mubr.f32.mxu0 0.0
      %1974 = vmatmul.mubr.f32.gmra.mrb[0].mxu0 %v1268
      %v1975 = vpop.f32.mrb[0].mxu0
      %v1976 = vadd.f32 0.0, %v1975
      %v1977 = vpop.f32.mrb[0].mxu0
      %1978 = vdwg.mxu0
      %v1980 = vsel %vm326, %v627, 0
      %v1983 = vsel %vm326, %v628, 0
      %v1986 = vsel %vm326, %v629, 0
      %v1989 = vsel %vm326, %v630, 0
      %v1992 = vsel %vm326, %v631, 0
      %v1995 = vsel %vm326, %v632, 0
      %v1998 = vsel %vm326, %v633, 0
      %v2001 = vsel %vm326, %v634, 0
      %v2004 = vsel %vm326, %v635, 0
      %v2007 = vsel %vm326, %v636, 0
      %v2010 = vsel %vm326, %v637, 0
      %v2013 = vsel %vm326, %v638, 0
      %v2016 = vsel %vm326, %v639, 0
      %v2019 = vsel %vm326, %v640, 0
      %v2022 = vsel %vm326, %v641, 0
      %v2025 = vsel %vm326, %v642, 0
      %v2028 = vsel %vm326, %v643, 0
      %v2031 = vsel %vm326, %v644, 0
      %v2034 = vsel %vm326, %v645, 0
      %v2037 = vsel %vm326, %v646, 0
      %v2040 = vsel %vm326, %v647, 0
      %v2043 = vsel %vm326, %v648, 0
      %v2046 = vsel %vm326, %v649, 0
      %v2049 = vsel %vm326, %v650, 0
      %v2052 = vsel %vm326, %v651, 0
      %v2055 = vsel %vm326, %v652, 0
      %v2058 = vsel %vm326, %v653, 0
      %v2061 = vsel %vm326, %v654, 0
      %v2064 = vsel %vm326, %v655, 0
      %v2067 = vsel %vm326, %v656, 0
      %v2070 = vsel %vm326, %v657, 0
      %v2073 = vsel %vm326, %v658, 0
      %v2076 = vsel %vm326, %v659, 0
      %v2079 = vsel %vm326, %v660, 0
      %v2082 = vsel %vm326, %v661, 0
      %v2085 = vsel %vm326, %v662, 0
      %v2088 = vsel %vm326, %v663, 0
      %v2091 = vsel %vm326, %v664, 0
      %v2094 = vsel %vm326, %v665, 0
      %v2097 = vsel %vm326, %v666, 0
      %v2100 = vsel %vm326, %v667, 0
      %v2103 = vsel %vm326, %v668, 0
      %v2106 = vsel %vm326, %v669, 0
      %v2109 = vsel %vm326, %v670, 0
      %v2112 = vsel %vm326, %v671, 0
      %v2115 = vsel %vm326, %v672, 0
      %v2118 = vsel %vm326, %v673, 0
      %v2121 = vsel %vm326, %v674, 0
      %v2124 = vsel %vm326, %v675, 0
      %v2127 = vsel %vm326, %v676, 0
      %v2130 = vsel %vm326, %v677, 0
      %v2133 = vsel %vm326, %v678, 0
      %v2136 = vsel %vm326, %v679, 0
      %v2139 = vsel %vm326, %v680, 0
      %v2142 = vsel %vm326, %v681, 0
      %v2145 = vsel %vm326, %v682, 0
      %v2148 = vsel %vm326, %v683, 0
      %v2151 = vsel %vm326, %v684, 0
      %v2154 = vsel %vm326, %v685, 0
      %v2157 = vsel %vm326, %v686, 0
      %v2160 = vsel %vm326, %v687, 0
      %v2163 = vsel %vm326, %v688, 0
      %v2166 = vsel %vm326, %v689, 0
      %v2169 = vsel %vm326, %v690, 0
      %v2172 = vsel %vm326, %v691, 0
      %v2175 = vsel %vm326, %v692, 0
      %v2178 = vsel %vm326, %v693, 0
      %v2181 = vsel %vm326, %v694, 0
      %v2184 = vsel %vm326, %v695, 0
      %v2187 = vsel %vm326, %v696, 0
      %v2190 = vsel %vm326, %v697, 0
      %v2193 = vsel %vm326, %v698, 0
      %v2196 = vsel %vm326, %v699, 0
      %v2199 = vsel %vm326, %v700, 0
      %v2202 = vsel %vm326, %v701, 0
      %v2205 = vsel %vm326, %v702, 0
      %v2208 = vsel %vm326, %v703, 0
      %v2211 = vsel %vm326, %v704, 0
      %v2214 = vsel %vm326, %v705, 0
      %v2217 = vsel %vm326, %v706, 0
      %v2220 = vsel %vm326, %v707, 0
      %v2223 = vsel %vm326, %v708, 0
      %v2226 = vsel %vm326, %v709, 0
      %v2229 = vsel %vm326, %v710, 0
      %v2232 = vsel %vm326, %v711, 0
      %v2235 = vsel %vm326, %v712, 0
      %v2238 = vsel %vm326, %v713, 0
      %v2241 = vsel %vm326, %v714, 0
      %v2244 = vsel %vm326, %v715, 0
      %v2247 = vsel %vm326, %v716, 0
      %v2250 = vsel %vm326, %v717, 0
      %v2253 = vsel %vm326, %v718, 0
      %v2256 = vsel %vm326, %v719, 0
      %v2259 = vsel %vm326, %v720, 0
      %v2262 = vsel %vm326, %v721, 0
      %v2265 = vsel %vm326, %v722, 0
      %v2268 = vsel %vm326, %v723, 0
      %v2271 = vsel %vm326, %v724, 0
      %v2274 = vsel %vm326, %v725, 0
      %v2277 = vsel %vm326, %v726, 0
      %v2280 = vsel %vm326, %v727, 0
      %v2283 = vsel %vm326, %v728, 0
      %v2286 = vsel %vm326, %v729, 0
      %v2289 = vsel %vm326, %v730, 0
      %v2292 = vsel %vm326, %v731, 0
      %v2295 = vsel %vm326, %v732, 0
      %v2298 = vsel %vm326, %v733, 0
      %v2301 = vsel %vm326, %v734, 0
      %v2304 = vsel %vm326, %v735, 0
      %v2307 = vsel %vm326, %v736, 0
      %v2310 = vsel %vm326, %v737, 0
      %v2313 = vsel %vm326, %v738, 0
      %v2316 = vsel %vm326, %v739, 0
      %v2319 = vsel %vm326, %v740, 0
      %v2322 = vsel %vm326, %v741, 0
      %v2325 = vsel %vm326, %v742, 0
      %v2328 = vsel %vm326, %v743, 0
      %v2331 = vsel %vm326, %v744, 0
      %v2334 = vsel %vm326, %v745, 0
      %v2337 = vsel %vm326, %v746, 0
      %v2340 = vsel %vm326, %v747, 0
      %v2343 = vsel %vm326, %v748, 0
      %v2346 = vsel %vm326, %v749, 0
      %v2349 = vsel %vm326, %v750, 0
      %v2352 = vsel %vm326, %v751, 0
      %v2355 = vsel %vm326, %v752, 0
      %v2358 = vsel %vm326, %v753, 0
      %v2361 = vsel %vm326, %v754, 0
      %v2364 = vsel %vm1270, %v755, 0
      %2366 = vmatprep.subr.mxu0 0.0
      %2367 = vmatpush1.msra.mxu0 %v2364
      %2368 = vmatprep.subr.mxu0 0.0
      %2369 = vmatpush1.msra.mxu0 0.0
      %2370 = vmatprep.subr.mxu0 0.0
      %2371 = vmatpush1.msra.mxu0 0.0
      %2372 = vmatprep.subr.mxu0 0.0
      %2373 = vmatpush1.msra.mxu0 0.0
      %2374 = vmatprep.subr.mxu0 0.0
      %2375 = vmatpush1.msra.mxu0 0.0
      %2376 = vmatprep.subr.mxu0 0.0
      %2377 = vmatpush1.msra.mxu0 0.0
      %2378 = vmatprep.subr.mxu0 0.0
      %2379 = vmatpush1.msra.mxu0 0.0
      %2380 = vmatprep.subr.mxu0 0.0
      %2381 = vmatpush1.msra.mxu0 0.0
      %2382 = vmatprep.subr.mxu0 0.0
      %2383 = vmatpush1.msra.mxu0 0.0
      %2384 = vmatprep.subr.mxu0 0.0
      %2385 = vmatpush1.msra.mxu0 0.0
      %2386 = vmatprep.subr.mxu0 0.0
      %2387 = vmatpush1.msra.mxu0 0.0
      %2388 = vmatprep.subr.mxu0 0.0
      %2389 = vmatpush1.msra.mxu0 0.0
      %2390 = vmatprep.subr.mxu0 0.0
      %2391 = vmatpush1.msra.mxu0 0.0
      %2392 = vmatprep.subr.mxu0 0.0
      %2393 = vmatpush1.msra.mxu0 0.0
      %2394 = vmatprep.subr.mxu0 0.0
      %2395 = vmatpush1.msra.mxu0 0.0
      %2396 = vmatprep.subr.mxu0 0.0
      %2397 = vmatpush1.msra.mxu0 0.0
      %2398 = vmatprep.subr.mxu0 0.0
      %2399 = vmatpush1.msra.mxu0 0.0
      %2400 = vmatprep.subr.mxu0 0.0
      %2401 = vmatpush1.msra.mxu0 0.0
      %2402 = vmatprep.subr.mxu0 0.0
      %2403 = vmatpush1.msra.mxu0 0.0
      %2404 = vmatprep.subr.mxu0 0.0
      %2405 = vmatpush1.msra.mxu0 0.0
      %2406 = vmatprep.subr.mxu0 0.0
      %2407 = vmatpush1.msra.mxu0 0.0
      %2408 = vmatprep.subr.mxu0 0.0
      %2409 = vmatpush1.msra.mxu0 0.0
      %2410 = vmatprep.subr.mxu0 0.0
      %2411 = vmatpush1.msra.mxu0 0.0
      %2412 = vmatprep.subr.mxu0 0.0
      %2413 = vmatpush1.msra.mxu0 0.0
      %2414 = vmatprep.subr.mxu0 0.0
      %2415 = vmatpush1.msra.mxu0 0.0
      %2416 = vmatprep.subr.mxu0 0.0
      %2417 = vmatpush1.msra.mxu0 0.0
      %2418 = vmatprep.subr.mxu0 0.0
      %2419 = vmatpush1.msra.mxu0 0.0
      %2420 = vmatprep.subr.mxu0 0.0
      %2421 = vmatpush1.msra.mxu0 0.0
      %2422 = vmatprep.subr.mxu0 0.0
      %2423 = vmatpush1.msra.mxu0 0.0
      %2424 = vmatprep.subr.mxu0 0.0
      %2425 = vmatpush1.msra.mxu0 0.0
      %2426 = vmatprep.subr.mxu0 0.0
      %2427 = vmatpush1.msra.mxu0 0.0
      %2428 = vmatprep.subr.mxu0 0.0
      %2429 = vmatpush1.msra.mxu0 0.0
      %2430 = vmatprep.mubr.f32.mxu0 0.0
      %2431 = vmatmul.mubr.f32.gmra.mrb[0].mxu0 %v1980
      %v2432 = vpop.f32.mrb[0].mxu0
      %v2433 = vadd.f32 %v1341, %v2432
      %v2434 = vpop.f32.mrb[0].mxu0
      %2435 = vmatprep.mubr.f32.mxu0 0.0
      %2436 = vmatmul.mubr.f32.gmra.mrb[0].mxu0 %v1983
      %v2437 = vpop.f32.mrb[0].mxu0
      %v2438 = vadd.f32 %v1346, %v2437
      %v2439 = vpop.f32.mrb[0].mxu0
      %2440 = vmatprep.mubr.f32.mxu0 0.0
      %2441 = vmatmul.mubr.f32.gmra.mrb[0].mxu0 %v1986
      %v2442 = vpop.f32.mrb[0].mxu0
      %v2443 = vadd.f32 %v1351, %v2442
      %v2444 = vpop.f32.mrb[0].mxu0
      %2445 = vmatprep.mubr.f32.mxu0 0.0
      %2446 = vmatmul.mubr.f32.gmra.mrb[0].mxu0 %v1989
      %v2447 = vpop.f32.mrb[0].mxu0
      %v2448 = vadd.f32 %v1356, %v2447
      %v2449 = vpop.f32.mrb[0].mxu0
      %2450 = vmatprep.mubr.f32.mxu0 0.0
      %2451 = vmatmul.mubr.f32.gmra.mrb[0].mxu0 %v1992
      %v2452 = vpop.f32.mrb[0].mxu0
      %v2453 = vadd.f32 %v1361, %v2452
      %v2454 = vpop.f32.mrb[0].mxu0
      %2455 = vmatprep.mubr.f32.mxu0 0.0
      %2456 = vmatmul.mubr.f32.gmra.mrb[0].mxu0 %v1995
      %v2457 = vpop.f32.mrb[0].mxu0
      %v2458 = vadd.f32 %v1366, %v2457
      %v2459 = vpop.f32.mrb[0].mxu0
      %2460 = vmatprep.mubr.f32.mxu0 0.0
      %2461 = vmatmul.mubr.f32.gmra.mrb[0].mxu0 %v1998
      %v2462 = vpop.f32.mrb[0].mxu0
      %v2463 = vadd.f32 %v1371, %v2462
      %v2464 = vpop.f32.mrb[0].mxu0
      %2465 = vmatprep.mubr.f32.mxu0 0.0
      %2466 = vmatmul.mubr.f32.gmra.mrb[0].mxu0 %v2001
      %v2467 = vpop.f32.mrb[0].mxu0
      %v2468 = vadd.f32 %v1376, %v2467
      %v2469 = vpop.f32.mrb[0].mxu0
      %2470 = vmatprep.mubr.f32.mxu0 0.0
      %2471 = vmatmul.mubr.f32.gmra.mrb[0].mxu0 %v2004
      %v2472 = vpop.f32.mrb[0].mxu0
      %v2473 = vadd.f32 %v1381, %v2472
      %v2474 = vpop.f32.mrb[0].mxu0
      %2475 = vmatprep.mubr.f32.mxu0 0.0
      %2476 = vmatmul.mubr.f32.gmra.mrb[0].mxu0 %v2007
      %v2477 = vpop.f32.mrb[0].mxu0
      %v2478 = vadd.f32 %v1386, %v2477
      %v2479 = vpop.f32.mrb[0].mxu0
      %2480 = vmatprep.mubr.f32.mxu0 0.0
      %2481 = vmatmul.mubr.f32.gmra.mrb[0].mxu0 %v2010
      %v2482 = vpop.f32.mrb[0].mxu0
      %v2483 = vadd.f32 %v1391, %v2482
      %v2484 = vpop.f32.mrb[0].mxu0
      %2485 = vmatprep.mubr.f32.mxu0 0.0
      %2486 = vmatmul.mubr.f32.gmra.mrb[0].mxu0 %v2013
      %v2487 = vpop.f32.mrb[0].mxu0
      %v2488 = vadd.f32 %v1396, %v2487
      %v2489 = vpop.f32.mrb[0].mxu0
      %2490 = vmatprep.mubr.f32.mxu0 0.0
      %2491 = vmatmul.mubr.f32.gmra.mrb[0].mxu0 %v2016
      %v2492 = vpop.f32.mrb[0].mxu0
      %v2493 = vadd.f32 %v1401, %v2492
      %v2494 = vpop.f32.mrb[0].mxu0
      %2495 = vmatprep.mubr.f32.mxu0 0.0
      %2496 = vmatmul.mubr.f32.gmra.mrb[0].mxu0 %v2019
      %v2497 = vpop.f32.mrb[0].mxu0
      %v2498 = vadd.f32 %v1406, %v2497
      %v2499 = vpop.f32.mrb[0].mxu0
      %2500 = vmatprep.mubr.f32.mxu0 0.0
      %2501 = vmatmul.mubr.f32.gmra.mrb[0].mxu0 %v2022
      %v2502 = vpop.f32.mrb[0].mxu0
      %v2503 = vadd.f32 %v1411, %v2502
      %v2504 = vpop.f32.mrb[0].mxu0
      %2505 = vmatprep.mubr.f32.mxu0 0.0
      %2506 = vmatmul.mubr.f32.gmra.mrb[0].mxu0 %v2025
      %v2507 = vpop.f32.mrb[0].mxu0
      %v2508 = vadd.f32 %v1416, %v2507
      %v2509 = vpop.f32.mrb[0].mxu0
      %2510 = vmatprep.mubr.f32.mxu0 0.0
      %2511 = vmatmul.mubr.f32.gmra.mrb[0].mxu0 %v2028
      %v2512 = vpop.f32.mrb[0].mxu0
      %v2513 = vadd.f32 %v1421, %v2512
      %v2514 = vpop.f32.mrb[0].mxu0
      %2515 = vmatprep.mubr.f32.mxu0 0.0
      %2516 = vmatmul.mubr.f32.gmra.mrb[0].mxu0 %v2031
      %v2517 = vpop.f32.mrb[0].mxu0
      %v2518 = vadd.f32 %v1426, %v2517
      %v2519 = vpop.f32.mrb[0].mxu0
      %2520 = vmatprep.mubr.f32.mxu0 0.0
      %2521 = vmatmul.mubr.f32.gmra.mrb[0].mxu0 %v2034
      %v2522 = vpop.f32.mrb[0].mxu0
      %v2523 = vadd.f32 %v1431, %v2522
      %v2524 = vpop.f32.mrb[0].mxu0
      %2525 = vmatprep.mubr.f32.mxu0 0.0
      %2526 = vmatmul.mubr.f32.gmra.mrb[0].mxu0 %v2037
      %v2527 = vpop.f32.mrb[0].mxu0
      %v2528 = vadd.f32 %v1436, %v2527
      %v2529 = vpop.f32.mrb[0].mxu0
      %2530 = vmatprep.mubr.f32.mxu0 0.0
      %2531 = vmatmul.mubr.f32.gmra.mrb[0].mxu0 %v2040
      %v2532 = vpop.f32.mrb[0].mxu0
      %v2533 = vadd.f32 %v1441, %v2532
      %v2534 = vpop.f32.mrb[0].mxu0
      %2535 = vmatprep.mubr.f32.mxu0 0.0
      %2536 = vmatmul.mubr.f32.gmra.mrb[0].mxu0 %v2043
      %v2537 = vpop.f32.mrb[0].mxu0
      %v2538 = vadd.f32 %v1446, %v2537
      %v2539 = vpop.f32.mrb[0].mxu0
      %2540 = vmatprep.mubr.f32.mxu0 0.0
      %2541 = vmatmul.mubr.f32.gmra.mrb[0].mxu0 %v2046
      %v2542 = vpop.f32.mrb[0].mxu0
      %v2543 = vadd.f32 %v1451, %v2542
      %v2544 = vpop.f32.mrb[0].mxu0
      %2545 = vmatprep.mubr.f32.mxu0 0.0
      %2546 = vmatmul.mubr.f32.gmra.mrb[0].mxu0 %v2049
      %v2547 = vpop.f32.mrb[0].mxu0
      %v2548 = vadd.f32 %v1456, %v2547
      %v2549 = vpop.f32.mrb[0].mxu0
      %2550 = vmatprep.mubr.f32.mxu0 0.0
      %2551 = vmatmul.mubr.f32.gmra.mrb[0].mxu0 %v2052
      %v2552 = vpop.f32.mrb[0].mxu0
      %v2553 = vadd.f32 %v1461, %v2552
      %v2554 = vpop.f32.mrb[0].mxu0
      %2555 = vmatprep.mubr.f32.mxu0 0.0
      %2556 = vmatmul.mubr.f32.gmra.mrb[0].mxu0 %v2055
      %v2557 = vpop.f32.mrb[0].mxu0
      %v2558 = vadd.f32 %v1466, %v2557
      %v2559 = vpop.f32.mrb[0].mxu0
      %2560 = vmatprep.mubr.f32.mxu0 0.0
      %2561 = vmatmul.mubr.f32.gmra.mrb[0].mxu0 %v2058
      %v2562 = vpop.f32.mrb[0].mxu0
      %v2563 = vadd.f32 %v1471, %v2562
      %v2564 = vpop.f32.mrb[0].mxu0
      %2565 = vmatprep.mubr.f32.mxu0 0.0
      %2566 = vmatmul.mubr.f32.gmra.mrb[0].mxu0 %v2061
      %v2567 = vpop.f32.mrb[0].mxu0
      %v2568 = vadd.f32 %v1476, %v2567
      %v2569 = vpop.f32.mrb[0].mxu0
      %2570 = vmatprep.mubr.f32.mxu0 0.0
      %2571 = vmatmul.mubr.f32.gmra.mrb[0].mxu0 %v2064
      %v2572 = vpop.f32.mrb[0].mxu0
      %v2573 = vadd.f32 %v1481, %v2572
      %v2574 = vpop.f32.mrb[0].mxu0
      %2575 = vmatprep.mubr.f32.mxu0 0.0
      %2576 = vmatmul.mubr.f32.gmra.mrb[0].mxu0 %v2067
      %v2577 = vpop.f32.mrb[0].mxu0
      %v2578 = vadd.f32 %v1486, %v2577
      %v2579 = vpop.f32.mrb[0].mxu0
      %2580 = vmatprep.mubr.f32.mxu0 0.0
      %2581 = vmatmul.mubr.f32.gmra.mrb[0].mxu0 %v2070
      %v2582 = vpop.f32.mrb[0].mxu0
      %v2583 = vadd.f32 %v1491, %v2582
      %v2584 = vpop.f32.mrb[0].mxu0
      %2585 = vmatprep.mubr.f32.mxu0 0.0
      %2586 = vmatmul.mubr.f32.gmra.mrb[0].mxu0 %v2073
      %v2587 = vpop.f32.mrb[0].mxu0
      %v2588 = vadd.f32 %v1496, %v2587
      %v2589 = vpop.f32.mrb[0].mxu0
      %2590 = vmatprep.mubr.f32.mxu0 0.0
      %2591 = vmatmul.mubr.f32.gmra.mrb[0].mxu0 %v2076
      %v2592 = vpop.f32.mrb[0].mxu0
      %v2593 = vadd.f32 %v1501, %v2592
      %v2594 = vpop.f32.mrb[0].mxu0
      %2595 = vmatprep.mubr.f32.mxu0 0.0
      %2596 = vmatmul.mubr.f32.gmra.mrb[0].mxu0 %v2079
      %v2597 = vpop.f32.mrb[0].mxu0
      %v2598 = vadd.f32 %v1506, %v2597
      %v2599 = vpop.f32.mrb[0].mxu0
      %2600 = vmatprep.mubr.f32.mxu0 0.0
      %2601 = vmatmul.mubr.f32.gmra.mrb[0].mxu0 %v2082
      %v2602 = vpop.f32.mrb[0].mxu0
      %v2603 = vadd.f32 %v1511, %v2602
      %v2604 = vpop.f32.mrb[0].mxu0
      %2605 = vmatprep.mubr.f32.mxu0 0.0
      %2606 = vmatmul.mubr.f32.gmra.mrb[0].mxu0 %v2085
      %v2607 = vpop.f32.mrb[0].mxu0
      %v2608 = vadd.f32 %v1516, %v2607
      %v2609 = vpop.f32.mrb[0].mxu0
      %2610 = vmatprep.mubr.f32.mxu0 0.0
      %2611 = vmatmul.mubr.f32.gmra.mrb[0].mxu0 %v2088
      %v2612 = vpop.f32.mrb[0].mxu0
      %v2613 = vadd.f32 %v1521, %v2612
      %v2614 = vpop.f32.mrb[0].mxu0
      %2615 = vmatprep.mubr.f32.mxu0 0.0
      %2616 = vmatmul.mubr.f32.gmra.mrb[0].mxu0 %v2091
      %v2617 = vpop.f32.mrb[0].mxu0
      %v2618 = vadd.f32 %v1526, %v2617
      %v2619 = vpop.f32.mrb[0].mxu0
      %2620 = vmatprep.mubr.f32.mxu0 0.0
      %2621 = vmatmul.mubr.f32.gmra.mrb[0].mxu0 %v2094
      %v2622 = vpop.f32.mrb[0].mxu0
      %v2623 = vadd.f32 %v1531, %v2622
      %v2624 = vpop.f32.mrb[0].mxu0
      %2625 = vmatprep.mubr.f32.mxu0 0.0
      %2626 = vmatmul.mubr.f32.gmra.mrb[0].mxu0 %v2097
      %v2627 = vpop.f32.mrb[0].mxu0
      %v2628 = vadd.f32 %v1536, %v2627
      %v2629 = vpop.f32.mrb[0].mxu0
      %2630 = vmatprep.mubr.f32.mxu0 0.0
      %2631 = vmatmul.mubr.f32.gmra.mrb[0].mxu0 %v2100
      %v2632 = vpop.f32.mrb[0].mxu0
      %v2633 = vadd.f32 %v1541, %v2632
      %v2634 = vpop.f32.mrb[0].mxu0
      %2635 = vmatprep.mubr.f32.mxu0 0.0
      %2636 = vmatmul.mubr.f32.gmra.mrb[0].mxu0 %v2103
      %v2637 = vpop.f32.mrb[0].mxu0
      %v2638 = vadd.f32 %v1546, %v2637
      %v2639 = vpop.f32.mrb[0].mxu0
      %2640 = vmatprep.mubr.f32.mxu0 0.0
      %2641 = vmatmul.mubr.f32.gmra.mrb[0].mxu0 %v2106
      %v2642 = vpop.f32.mrb[0].mxu0
      %v2643 = vadd.f32 %v1551, %v2642
      %v2644 = vpop.f32.mrb[0].mxu0
      %2645 = vmatprep.mubr.f32.mxu0 0.0
      %2646 = vmatmul.mubr.f32.gmra.mrb[0].mxu0 %v2109
      %v2647 = vpop.f32.mrb[0].mxu0
      %v2648 = vadd.f32 %v1556, %v2647
      %v2649 = vpop.f32.mrb[0].mxu0
      %2650 = vmatprep.mubr.f32.mxu0 0.0
      %2651 = vmatmul.mubr.f32.gmra.mrb[0].mxu0 %v2112
      %v2652 = vpop.f32.mrb[0].mxu0
      %v2653 = vadd.f32 %v1561, %v2652
      %v2654 = vpop.f32.mrb[0].mxu0
      %2655 = vmatprep.mubr.f32.mxu0 0.0
      %2656 = vmatmul.mubr.f32.gmra.mrb[0].mxu0 %v2115
      %v2657 = vpop.f32.mrb[0].mxu0
      %v2658 = vadd.f32 %v1566, %v2657
      %v2659 = vpop.f32.mrb[0].mxu0
      %2660 = vmatprep.mubr.f32.mxu0 0.0
      %2661 = vmatmul.mubr.f32.gmra.mrb[0].mxu0 %v2118
      %v2662 = vpop.f32.mrb[0].mxu0
      %v2663 = vadd.f32 %v1571, %v2662
      %v2664 = vpop.f32.mrb[0].mxu0
      %2665 = vmatprep.mubr.f32.mxu0 0.0
      %2666 = vmatmul.mubr.f32.gmra.mrb[0].mxu0 %v2121
      %v2667 = vpop.f32.mrb[0].mxu0
      %v2668 = vadd.f32 %v1576, %v2667
      %v2669 = vpop.f32.mrb[0].mxu0
      %2670 = vmatprep.mubr.f32.mxu0 0.0
      %2671 = vmatmul.mubr.f32.gmra.mrb[0].mxu0 %v2124
      %v2672 = vpop.f32.mrb[0].mxu0
      %v2673 = vadd.f32 %v1581, %v2672
      %v2674 = vpop.f32.mrb[0].mxu0
      %2675 = vmatprep.mubr.f32.mxu0 0.0
      %2676 = vmatmul.mubr.f32.gmra.mrb[0].mxu0 %v2127
      %v2677 = vpop.f32.mrb[0].mxu0
      %v2678 = vadd.f32 %v1586, %v2677
      %v2679 = vpop.f32.mrb[0].mxu0
      %2680 = vmatprep.mubr.f32.mxu0 0.0
      %2681 = vmatmul.mubr.f32.gmra.mrb[0].mxu0 %v2130
      %v2682 = vpop.f32.mrb[0].mxu0
      %v2683 = vadd.f32 %v1591, %v2682
      %v2684 = vpop.f32.mrb[0].mxu0
      %2685 = vmatprep.mubr.f32.mxu0 0.0
      %2686 = vmatmul.mubr.f32.gmra.mrb[0].mxu0 %v2133
      %v2687 = vpop.f32.mrb[0].mxu0
      %v2688 = vadd.f32 %v1596, %v2687
      %v2689 = vpop.f32.mrb[0].mxu0
      %2690 = vmatprep.mubr.f32.mxu0 0.0
      %2691 = vmatmul.mubr.f32.gmra.mrb[0].mxu0 %v2136
      %v2692 = vpop.f32.mrb[0].mxu0
      %v2693 = vadd.f32 %v1601, %v2692
      %v2694 = vpop.f32.mrb[0].mxu0
      %2695 = vmatprep.mubr.f32.mxu0 0.0
      %2696 = vmatmul.mubr.f32.gmra.mrb[0].mxu0 %v2139
      %v2697 = vpop.f32.mrb[0].mxu0
      %v2698 = vadd.f32 %v1606, %v2697
      %v2699 = vpop.f32.mrb[0].mxu0
      %2700 = vmatprep.mubr.f32.mxu0 0.0
      %2701 = vmatmul.mubr.f32.gmra.mrb[0].mxu0 %v2142
      %v2702 = vpop.f32.mrb[0].mxu0
      %v2703 = vadd.f32 %v1611, %v2702
      %v2704 = vpop.f32.mrb[0].mxu0
      %2705 = vmatprep.mubr.f32.mxu0 0.0
      %2706 = vmatmul.mubr.f32.gmra.mrb[0].mxu0 %v2145
      %v2707 = vpop.f32.mrb[0].mxu0
      %v2708 = vadd.f32 %v1616, %v2707
      %v2709 = vpop.f32.mrb[0].mxu0
      %2710 = vmatprep.mubr.f32.mxu0 0.0
      %2711 = vmatmul.mubr.f32.gmra.mrb[0].mxu0 %v2148
      %v2712 = vpop.f32.mrb[0].mxu0
      %v2713 = vadd.f32 %v1621, %v2712
      %v2714 = vpop.f32.mrb[0].mxu0
      %2715 = vmatprep.mubr.f32.mxu0 0.0
      %2716 = vmatmul.mubr.f32.gmra.mrb[0].mxu0 %v2151
      %v2717 = vpop.f32.mrb[0].mxu0
      %v2718 = vadd.f32 %v1626, %v2717
      %v2719 = vpop.f32.mrb[0].mxu0
      %2720 = vmatprep.mubr.f32.mxu0 0.0
      %2721 = vmatmul.mubr.f32.gmra.mrb[0].mxu0 %v2154
      %v2722 = vpop.f32.mrb[0].mxu0
      %v2723 = vadd.f32 %v1631, %v2722
      %v2724 = vpop.f32.mrb[0].mxu0
      %2725 = vmatprep.mubr.f32.mxu0 0.0
      %2726 = vmatmul.mubr.f32.gmra.mrb[0].mxu0 %v2157
      %v2727 = vpop.f32.mrb[0].mxu0
      %v2728 = vadd.f32 %v1636, %v2727
      %v2729 = vpop.f32.mrb[0].mxu0
      %2730 = vmatprep.mubr.f32.mxu0 0.0
      %2731 = vmatmul.mubr.f32.gmra.mrb[0].mxu0 %v2160
      %v2732 = vpop.f32.mrb[0].mxu0
      %v2733 = vadd.f32 %v1641, %v2732
      %v2734 = vpop.f32.mrb[0].mxu0
      %2735 = vmatprep.mubr.f32.mxu0 0.0
      %2736 = vmatmul.mubr.f32.gmra.mrb[0].mxu0 %v2163
      %v2737 = vpop.f32.mrb[0].mxu0
      %v2738 = vadd.f32 %v1646, %v2737
      %v2739 = vpop.f32.mrb[0].mxu0
      %2740 = vmatprep.mubr.f32.mxu0 0.0
      %2741 = vmatmul.mubr.f32.gmra.mrb[0].mxu0 %v2166
      %v2742 = vpop.f32.mrb[0].mxu0
      %v2743 = vadd.f32 %v1651, %v2742
      %v2744 = vpop.f32.mrb[0].mxu0
      %2745 = vmatprep.mubr.f32.mxu0 0.0
      %2746 = vmatmul.mubr.f32.gmra.mrb[0].mxu0 %v2169
      %v2747 = vpop.f32.mrb[0].mxu0
      %v2748 = vadd.f32 %v1656, %v2747
      %v2749 = vpop.f32.mrb[0].mxu0
      %2750 = vmatprep.mubr.f32.mxu0 0.0
      %2751 = vmatmul.mubr.f32.gmra.mrb[0].mxu0 %v2172
      %v2752 = vpop.f32.mrb[0].mxu0
      %v2753 = vadd.f32 %v1661, %v2752
      %v2754 = vpop.f32.mrb[0].mxu0
      %2755 = vmatprep.mubr.f32.mxu0 0.0
      %2756 = vmatmul.mubr.f32.gmra.mrb[0].mxu0 %v2175
      %v2757 = vpop.f32.mrb[0].mxu0
      %v2758 = vadd.f32 %v1666, %v2757
      %v2759 = vpop.f32.mrb[0].mxu0
      %2760 = vmatprep.mubr.f32.mxu0 0.0
      %2761 = vmatmul.mubr.f32.gmra.mrb[0].mxu0 %v2178
      %v2762 = vpop.f32.mrb[0].mxu0
      %v2763 = vadd.f32 %v1671, %v2762
      %v2764 = vpop.f32.mrb[0].mxu0
      %2765 = vmatprep.mubr.f32.mxu0 0.0
      %2766 = vmatmul.mubr.f32.gmra.mrb[0].mxu0 %v2181
      %v2767 = vpop.f32.mrb[0].mxu0
      %v2768 = vadd.f32 %v1676, %v2767
      %v2769 = vpop.f32.mrb[0].mxu0
      %2770 = vmatprep.mubr.f32.mxu0 0.0
      %2771 = vmatmul.mubr.f32.gmra.mrb[0].mxu0 %v2184
      %v2772 = vpop.f32.mrb[0].mxu0
      %v2773 = vadd.f32 %v1681, %v2772
      %v2774 = vpop.f32.mrb[0].mxu0
      %2775 = vmatprep.mubr.f32.mxu0 0.0
      %2776 = vmatmul.mubr.f32.gmra.mrb[0].mxu0 %v2187
      %v2777 = vpop.f32.mrb[0].mxu0
      %v2778 = vadd.f32 %v1686, %v2777
      %v2779 = vpop.f32.mrb[0].mxu0
      %2780 = vmatprep.mubr.f32.mxu0 0.0
      %2781 = vmatmul.mubr.f32.gmra.mrb[0].mxu0 %v2190
      %v2782 = vpop.f32.mrb[0].mxu0
      %v2783 = vadd.f32 %v1691, %v2782
      %v2784 = vpop.f32.mrb[0].mxu0
      %2785 = vmatprep.mubr.f32.mxu0 0.0
      %2786 = vmatmul.mubr.f32.gmra.mrb[0].mxu0 %v2193
      %v2787 = vpop.f32.mrb[0].mxu0
      %v2788 = vadd.f32 %v1696, %v2787
      %v2789 = vpop.f32.mrb[0].mxu0
      %2790 = vmatprep.mubr.f32.mxu0 0.0
      %2791 = vmatmul.mubr.f32.gmra.mrb[0].mxu0 %v2196
      %v2792 = vpop.f32.mrb[0].mxu0
      %v2793 = vadd.f32 %v1701, %v2792
      %v2794 = vpop.f32.mrb[0].mxu0
      %2795 = vmatprep.mubr.f32.mxu0 0.0
      %2796 = vmatmul.mubr.f32.gmra.mrb[0].mxu0 %v2199
      %v2797 = vpop.f32.mrb[0].mxu0
      %v2798 = vadd.f32 %v1706, %v2797
      %v2799 = vpop.f32.mrb[0].mxu0
      %2800 = vmatprep.mubr.f32.mxu0 0.0
      %2801 = vmatmul.mubr.f32.gmra.mrb[0].mxu0 %v2202
      %v2802 = vpop.f32.mrb[0].mxu0
      %v2803 = vadd.f32 %v1711, %v2802
      %v2804 = vpop.f32.mrb[0].mxu0
      %2805 = vmatprep.mubr.f32.mxu0 0.0
      %2806 = vmatmul.mubr.f32.gmra.mrb[0].mxu0 %v2205
      %v2807 = vpop.f32.mrb[0].mxu0
      %v2808 = vadd.f32 %v1716, %v2807
      %v2809 = vpop.f32.mrb[0].mxu0
      %2810 = vmatprep.mubr.f32.mxu0 0.0
      %2811 = vmatmul.mubr.f32.gmra.mrb[0].mxu0 %v2208
      %v2812 = vpop.f32.mrb[0].mxu0
      %v2813 = vadd.f32 %v1721, %v2812
      %v2814 = vpop.f32.mrb[0].mxu0
      %2815 = vmatprep.mubr.f32.mxu0 0.0
      %2816 = vmatmul.mubr.f32.gmra.mrb[0].mxu0 %v2211
      %v2817 = vpop.f32.mrb[0].mxu0
      %v2818 = vadd.f32 %v1726, %v2817
      %v2819 = vpop.f32.mrb[0].mxu0
      %2820 = vmatprep.mubr.f32.mxu0 0.0
      %2821 = vmatmul.mubr.f32.gmra.mrb[0].mxu0 %v2214
      %v2822 = vpop.f32.mrb[0].mxu0
      %v2823 = vadd.f32 %v1731, %v2822
      %v2824 = vpop.f32.mrb[0].mxu0
      %2825 = vmatprep.mubr.f32.mxu0 0.0
      %2826 = vmatmul.mubr.f32.gmra.mrb[0].mxu0 %v2217
      %v2827 = vpop.f32.mrb[0].mxu0
      %v2828 = vadd.f32 %v1736, %v2827
      %v2829 = vpop.f32.mrb[0].mxu0
      %2830 = vmatprep.mubr.f32.mxu0 0.0
      %2831 = vmatmul.mubr.f32.gmra.mrb[0].mxu0 %v2220
      %v2832 = vpop.f32.mrb[0].mxu0
      %v2833 = vadd.f32 %v1741, %v2832
      %v2834 = vpop.f32.mrb[0].mxu0
      %2835 = vmatprep.mubr.f32.mxu0 0.0
      %2836 = vmatmul.mubr.f32.gmra.mrb[0].mxu0 %v2223
      %v2837 = vpop.f32.mrb[0].mxu0
      %v2838 = vadd.f32 %v1746, %v2837
      %v2839 = vpop.f32.mrb[0].mxu0
      %2840 = vmatprep.mubr.f32.mxu0 0.0
      %2841 = vmatmul.mubr.f32.gmra.mrb[0].mxu0 %v2226
      %v2842 = vpop.f32.mrb[0].mxu0
      %v2843 = vadd.f32 %v1751, %v2842
      %v2844 = vpop.f32.mrb[0].mxu0
      %2845 = vmatprep.mubr.f32.mxu0 0.0
      %2846 = vmatmul.mubr.f32.gmra.mrb[0].mxu0 %v2229
      %v2847 = vpop.f32.mrb[0].mxu0
      %v2848 = vadd.f32 %v1756, %v2847
      %v2849 = vpop.f32.mrb[0].mxu0
      %2850 = vmatprep.mubr.f32.mxu0 0.0
      %2851 = vmatmul.mubr.f32.gmra.mrb[0].mxu0 %v2232
      %v2852 = vpop.f32.mrb[0].mxu0
      %v2853 = vadd.f32 %v1761, %v2852
      %v2854 = vpop.f32.mrb[0].mxu0
      %2855 = vmatprep.mubr.f32.mxu0 0.0
      %2856 = vmatmul.mubr.f32.gmra.mrb[0].mxu0 %v2235
      %v2857 = vpop.f32.mrb[0].mxu0
      %v2858 = vadd.f32 %v1766, %v2857
      %v2859 = vpop.f32.mrb[0].mxu0
      %2860 = vmatprep.mubr.f32.mxu0 0.0
      %2861 = vmatmul.mubr.f32.gmra.mrb[0].mxu0 %v2238
      %v2862 = vpop.f32.mrb[0].mxu0
      %v2863 = vadd.f32 %v1771, %v2862
      %v2864 = vpop.f32.mrb[0].mxu0
      %2865 = vmatprep.mubr.f32.mxu0 0.0
      %2866 = vmatmul.mubr.f32.gmra.mrb[0].mxu0 %v2241
      %v2867 = vpop.f32.mrb[0].mxu0
      %v2868 = vadd.f32 %v1776, %v2867
      %v2869 = vpop.f32.mrb[0].mxu0
      %2870 = vmatprep.mubr.f32.mxu0 0.0
      %2871 = vmatmul.mubr.f32.gmra.mrb[0].mxu0 %v2244
      %v2872 = vpop.f32.mrb[0].mxu0
      %v2873 = vadd.f32 %v1781, %v2872
      %v2874 = vpop.f32.mrb[0].mxu0
      %2875 = vmatprep.mubr.f32.mxu0 0.0
      %2876 = vmatmul.mubr.f32.gmra.mrb[0].mxu0 %v2247
      %v2877 = vpop.f32.mrb[0].mxu0
      %v2878 = vadd.f32 %v1786, %v2877
      %v2879 = vpop.f32.mrb[0].mxu0
      %2880 = vmatprep.mubr.f32.mxu0 0.0
      %2881 = vmatmul.mubr.f32.gmra.mrb[0].mxu0 %v2250
      %v2882 = vpop.f32.mrb[0].mxu0
      %v2883 = vadd.f32 %v1791, %v2882
      %v2884 = vpop.f32.mrb[0].mxu0
      %2885 = vmatprep.mubr.f32.mxu0 0.0
      %2886 = vmatmul.mubr.f32.gmra.mrb[0].mxu0 %v2253
      %v2887 = vpop.f32.mrb[0].mxu0
      %v2888 = vadd.f32 %v1796, %v2887
      %v2889 = vpop.f32.mrb[0].mxu0
      %2890 = vmatprep.mubr.f32.mxu0 0.0
      %2891 = vmatmul.mubr.f32.gmra.mrb[0].mxu0 %v2256
      %v2892 = vpop.f32.mrb[0].mxu0
      %v2893 = vadd.f32 %v1801, %v2892
      %v2894 = vpop.f32.mrb[0].mxu0
      %2895 = vmatprep.mubr.f32.mxu0 0.0
      %2896 = vmatmul.mubr.f32.gmra.mrb[0].mxu0 %v2259
      %v2897 = vpop.f32.mrb[0].mxu0
      %v2898 = vadd.f32 %v1806, %v2897
      %v2899 = vpop.f32.mrb[0].mxu0
      %2900 = vmatprep.mubr.f32.mxu0 0.0
      %2901 = vmatmul.mubr.f32.gmra.mrb[0].mxu0 %v2262
      %v2902 = vpop.f32.mrb[0].mxu0
      %v2903 = vadd.f32 %v1811, %v2902
      %v2904 = vpop.f32.mrb[0].mxu0
      %2905 = vmatprep.mubr.f32.mxu0 0.0
      %2906 = vmatmul.mubr.f32.gmra.mrb[0].mxu0 %v2265
      %v2907 = vpop.f32.mrb[0].mxu0
      %v2908 = vadd.f32 %v1816, %v2907
      %v2909 = vpop.f32.mrb[0].mxu0
      %2910 = vmatprep.mubr.f32.mxu0 0.0
      %2911 = vmatmul.mubr.f32.gmra.mrb[0].mxu0 %v2268
      %v2912 = vpop.f32.mrb[0].mxu0
      %v2913 = vadd.f32 %v1821, %v2912
      %v2914 = vpop.f32.mrb[0].mxu0
      %2915 = vmatprep.mubr.f32.mxu0 0.0
      %2916 = vmatmul.mubr.f32.gmra.mrb[0].mxu0 %v2271
      %v2917 = vpop.f32.mrb[0].mxu0
      %v2918 = vadd.f32 %v1826, %v2917
      %v2919 = vpop.f32.mrb[0].mxu0
      %2920 = vmatprep.mubr.f32.mxu0 0.0
      %2921 = vmatmul.mubr.f32.gmra.mrb[0].mxu0 %v2274
      %v2922 = vpop.f32.mrb[0].mxu0
      %v2923 = vadd.f32 %v1831, %v2922
      %v2924 = vpop.f32.mrb[0].mxu0
      %2925 = vmatprep.mubr.f32.mxu0 0.0
      %2926 = vmatmul.mubr.f32.gmra.mrb[0].mxu0 %v2277
      %v2927 = vpop.f32.mrb[0].mxu0
      %v2928 = vadd.f32 %v1836, %v2927
      %v2929 = vpop.f32.mrb[0].mxu0
      %2930 = vmatprep.mubr.f32.mxu0 0.0
      %2931 = vmatmul.mubr.f32.gmra.mrb[0].mxu0 %v2280
      %v2932 = vpop.f32.mrb[0].mxu0
      %v2933 = vadd.f32 %v1841, %v2932
      %v2934 = vpop.f32.mrb[0].mxu0
      %2935 = vmatprep.mubr.f32.mxu0 0.0
      %2936 = vmatmul.mubr.f32.gmra.mrb[0].mxu0 %v2283
      %v2937 = vpop.f32.mrb[0].mxu0
      %v2938 = vadd.f32 %v1846, %v2937
      %v2939 = vpop.f32.mrb[0].mxu0
      %2940 = vmatprep.mubr.f32.mxu0 0.0
      %2941 = vmatmul.mubr.f32.gmra.mrb[0].mxu0 %v2286
      %v2942 = vpop.f32.mrb[0].mxu0
      %v2943 = vadd.f32 %v1851, %v2942
      %v2944 = vpop.f32.mrb[0].mxu0
      %2945 = vmatprep.mubr.f32.mxu0 0.0
      %2946 = vmatmul.mubr.f32.gmra.mrb[0].mxu0 %v2289
      %v2947 = vpop.f32.mrb[0].mxu0
      %v2948 = vadd.f32 %v1856, %v2947
      %v2949 = vpop.f32.mrb[0].mxu0
      %2950 = vmatprep.mubr.f32.mxu0 0.0
      %2951 = vmatmul.mubr.f32.gmra.mrb[0].mxu0 %v2292
      %v2952 = vpop.f32.mrb[0].mxu0
      %v2953 = vadd.f32 %v1861, %v2952
      %v2954 = vpop.f32.mrb[0].mxu0
      %2955 = vmatprep.mubr.f32.mxu0 0.0
      %2956 = vmatmul.mubr.f32.gmra.mrb[0].mxu0 %v2295
      %v2957 = vpop.f32.mrb[0].mxu0
      %v2958 = vadd.f32 %v1866, %v2957
      %v2959 = vpop.f32.mrb[0].mxu0
      %2960 = vmatprep.mubr.f32.mxu0 0.0
      %2961 = vmatmul.mubr.f32.gmra.mrb[0].mxu0 %v2298
      %v2962 = vpop.f32.mrb[0].mxu0
      %v2963 = vadd.f32 %v1871, %v2962
      %v2964 = vpop.f32.mrb[0].mxu0
      %2965 = vmatprep.mubr.f32.mxu0 0.0
      %2966 = vmatmul.mubr.f32.gmra.mrb[0].mxu0 %v2301
      %v2967 = vpop.f32.mrb[0].mxu0
      %v2968 = vadd.f32 %v1876, %v2967
      %v2969 = vpop.f32.mrb[0].mxu0
      %2970 = vmatprep.mubr.f32.mxu0 0.0
      %2971 = vmatmul.mubr.f32.gmra.mrb[0].mxu0 %v2304
      %v2972 = vpop.f32.mrb[0].mxu0
      %v2973 = vadd.f32 %v1881, %v2972
      %v2974 = vpop.f32.mrb[0].mxu0
      %2975 = vmatprep.mubr.f32.mxu0 0.0
      %2976 = vmatmul.mubr.f32.gmra.mrb[0].mxu0 %v2307
      %v2977 = vpop.f32.mrb[0].mxu0
      %v2978 = vadd.f32 %v1886, %v2977
      %v2979 = vpop.f32.mrb[0].mxu0
      %2980 = vmatprep.mubr.f32.mxu0 0.0
      %2981 = vmatmul.mubr.f32.gmra.mrb[0].mxu0 %v2310
      %v2982 = vpop.f32.mrb[0].mxu0
      %v2983 = vadd.f32 %v1891, %v2982
      %v2984 = vpop.f32.mrb[0].mxu0
      %2985 = vmatprep.mubr.f32.mxu0 0.0
      %2986 = vmatmul.mubr.f32.gmra.mrb[0].mxu0 %v2313
      %v2987 = vpop.f32.mrb[0].mxu0
      %v2988 = vadd.f32 %v1896, %v2987
      %v2989 = vpop.f32.mrb[0].mxu0
      %2990 = vmatprep.mubr.f32.mxu0 0.0
      %2991 = vmatmul.mubr.f32.gmra.mrb[0].mxu0 %v2316
      %v2992 = vpop.f32.mrb[0].mxu0
      %v2993 = vadd.f32 %v1901, %v2992
      %v2994 = vpop.f32.mrb[0].mxu0
      %2995 = vmatprep.mubr.f32.mxu0 0.0
      %2996 = vmatmul.mubr.f32.gmra.mrb[0].mxu0 %v2319
      %v2997 = vpop.f32.mrb[0].mxu0
      %v2998 = vadd.f32 %v1906, %v2997
      %v2999 = vpop.f32.mrb[0].mxu0
      %3000 = vmatprep.mubr.f32.mxu0 0.0
      %3001 = vmatmul.mubr.f32.gmra.mrb[0].mxu0 %v2322
      %v3002 = vpop.f32.mrb[0].mxu0
      %v3003 = vadd.f32 %v1911, %v3002
      %v3004 = vpop.f32.mrb[0].mxu0
      %3005 = vmatprep.mubr.f32.mxu0 0.0
      %3006 = vmatmul.mubr.f32.gmra.mrb[0].mxu0 %v2325
      %v3007 = vpop.f32.mrb[0].mxu0
      %v3008 = vadd.f32 %v1916, %v3007
      %v3009 = vpop.f32.mrb[0].mxu0
      %3010 = vmatprep.mubr.f32.mxu0 0.0
      %3011 = vmatmul.mubr.f32.gmra.mrb[0].mxu0 %v2328
      %v3012 = vpop.f32.mrb[0].mxu0
      %v3013 = vadd.f32 %v1921, %v3012
      %v3014 = vpop.f32.mrb[0].mxu0
      %3015 = vmatprep.mubr.f32.mxu0 0.0
      %3016 = vmatmul.mubr.f32.gmra.mrb[0].mxu0 %v2331
      %v3017 = vpop.f32.mrb[0].mxu0
      %v3018 = vadd.f32 %v1926, %v3017
      %v3019 = vpop.f32.mrb[0].mxu0
      %3020 = vmatprep.mubr.f32.mxu0 0.0
      %3021 = vmatmul.mubr.f32.gmra.mrb[0].mxu0 %v2334
      %v3022 = vpop.f32.mrb[0].mxu0
      %v3023 = vadd.f32 %v1931, %v3022
      %v3024 = vpop.f32.mrb[0].mxu0
      %3025 = vmatprep.mubr.f32.mxu0 0.0
      %3026 = vmatmul.mubr.f32.gmra.mrb[0].mxu0 %v2337
      %v3027 = vpop.f32.mrb[0].mxu0
      %v3028 = vadd.f32 %v1936, %v3027
      %v3029 = vpop.f32.mrb[0].mxu0
      %3030 = vmatprep.mubr.f32.mxu0 0.0
      %3031 = vmatmul.mubr.f32.gmra.mrb[0].mxu0 %v2340
      %v3032 = vpop.f32.mrb[0].mxu0
      %v3033 = vadd.f32 %v1941, %v3032
      %v3034 = vpop.f32.mrb[0].mxu0
      %3035 = vmatprep.mubr.f32.mxu0 0.0
      %3036 = vmatmul.mubr.f32.gmra.mrb[0].mxu0 %v2343
      %v3037 = vpop.f32.mrb[0].mxu0
      %v3038 = vadd.f32 %v1946, %v3037
      %v3039 = vpop.f32.mrb[0].mxu0
      %3040 = vmatprep.mubr.f32.mxu0 0.0
      %3041 = vmatmul.mubr.f32.gmra.mrb[0].mxu0 %v2346
      %v3042 = vpop.f32.mrb[0].mxu0
      %v3043 = vadd.f32 %v1951, %v3042
      %v3044 = vpop.f32.mrb[0].mxu0
      %3045 = vmatprep.mubr.f32.mxu0 0.0
      %3046 = vmatmul.mubr.f32.gmra.mrb[0].mxu0 %v2349
      %v3047 = vpop.f32.mrb[0].mxu0
      %v3048 = vadd.f32 %v1956, %v3047
      %v3049 = vpop.f32.mrb[0].mxu0
      %3050 = vmatprep.mubr.f32.mxu0 0.0
      %3051 = vmatmul.mubr.f32.gmra.mrb[0].mxu0 %v2352
      %v3052 = vpop.f32.mrb[0].mxu0
      %v3053 = vadd.f32 %v1961, %v3052
      %v3054 = vpop.f32.mrb[0].mxu0
      %3055 = vmatprep.mubr.f32.mxu0 0.0
      %3056 = vmatmul.mubr.f32.gmra.mrb[0].mxu0 %v2355
      %v3057 = vpop.f32.mrb[0].mxu0
      %v3058 = vadd.f32 %v1966, %v3057
      %v3059 = vpop.f32.mrb[0].mxu0
      %3060 = vmatprep.mubr.f32.mxu0 0.0
      %3061 = vmatmul.mubr.f32.gmra.mrb[0].mxu0 %v2358
      %v3062 = vpop.f32.mrb[0].mxu0
      %v3063 = vadd.f32 %v1971, %v3062
      %v3064 = vpop.f32.mrb[0].mxu0
      %3065 = vmatprep.mubr.f32.mxu0 0.0
      %3066 = vmatmul.mubr.f32.gmra.mrb[0].mxu0 %v2361
      %v3067 = vpop.f32.mrb[0].mxu0
      %v3068 = vadd.f32 %v1976, %v3067
      %v3069 = vpop.f32.mrb[0].mxu0
      %3070 = vdwg.mxu0
      %v3071 = vld [vmem:[#allocation2 + $0x2] sm:$0xff]
      %v3072 = vld [vmem:[#allocation2 + $0xa] sm:$0xff]
      %v3073 = vld [vmem:[#allocation2 + $0x12] sm:$0xff]
      %v3074 = vld [vmem:[#allocation2 + $0x1a] sm:$0xff]
      %v3075 = vld [vmem:[#allocation2 + $0x2a] sm:$0xff]
      %v3076 = vld [vmem:[#allocation2 + $0x32] sm:$0xff]
      %v3077 = vld [vmem:[#allocation2 + $0x3a] sm:$0xff]
      %v3078 = vld [vmem:[#allocation2 + $0x42] sm:$0xff]
      %v3079 = vld [vmem:[#allocation2 + $0x52] sm:$0xff]
      %v3080 = vld [vmem:[#allocation2 + $0x5a] sm:$0xff]
      %v3081 = vld [vmem:[#allocation2 + $0x62] sm:$0xff]
      %v3082 = vld [vmem:[#allocation2 + $0x6a] sm:$0xff]
      %v3083 = vld [vmem:[#allocation2 + $0x7a] sm:$0xff]
      %v3084 = vld [vmem:[#allocation2 + $0x82] sm:$0xff]
      %v3085 = vld [vmem:[#allocation2 + $0x8a] sm:$0xff]
      %v3086 = vld [vmem:[#allocation2 + $0x92] sm:$0xff]
      %v3087 = vld [vmem:[#allocation2 + $0xa2] sm:$0xff]
      %v3088 = vld [vmem:[#allocation2 + $0xaa] sm:$0xff]
      %v3089 = vld [vmem:[#allocation2 + $0xb2] sm:$0xff]
      %v3090 = vld [vmem:[#allocation2 + $0xba] sm:$0xff]
      %v3091 = vld [vmem:[#allocation2 + $0xca] sm:$0xff]
      %v3092 = vld [vmem:[#allocation2 + $0xd2] sm:$0xff]
      %v3093 = vld [vmem:[#allocation2 + $0xda] sm:$0xff]
      %v3094 = vld [vmem:[#allocation2 + $0xe2] sm:$0xff]
      %v3095 = vld [vmem:[#allocation2 + $0xf2] sm:$0xff]
      %v3096 = vld [vmem:[#allocation2 + $0xfa] sm:$0xff]
      %v3097 = vld [vmem:[#allocation2 + $0x102] sm:$0xff]
      %v3098 = vld [vmem:[#allocation2 + $0x10a] sm:$0xff]
      %v3099 = vld [vmem:[#allocation2 + $0x11a] sm:$0xff]
      %v3100 = vld [vmem:[#allocation2 + $0x122] sm:$0xff]
      %v3101 = vld [vmem:[#allocation2 + $0x12a] sm:$0xff]
      %v3102 = vld [vmem:[#allocation2 + $0x132] sm:$0xff]
      %v3103 = vld [vmem:[#allocation2 + $0x142] sm:$0xff]
      %v3104 = vld [vmem:[#allocation2 + $0x14a] sm:$0xff]
      %v3105 = vld [vmem:[#allocation2 + $0x152] sm:$0xff]
      %v3106 = vld [vmem:[#allocation2 + $0x15a] sm:$0xff]
      %v3107 = vld [vmem:[#allocation2 + $0x16a] sm:$0xff]
      %v3108 = vld [vmem:[#allocation2 + $0x172] sm:$0xff]
      %v3109 = vld [vmem:[#allocation2 + $0x17a] sm:$0xff]
      %v3110 = vld [vmem:[#allocation2 + $0x182] sm:$0xff]
      %v3111 = vld [vmem:[#allocation2 + $0x192] sm:$0xff]
      %v3112 = vld [vmem:[#allocation2 + $0x19a] sm:$0xff]
      %v3113 = vld [vmem:[#allocation2 + $0x1a2] sm:$0xff]
      %v3114 = vld [vmem:[#allocation2 + $0x1aa] sm:$0xff]
      %v3115 = vld [vmem:[#allocation2 + $0x1ba] sm:$0xff]
      %v3116 = vld [vmem:[#allocation2 + $0x1c2] sm:$0xff]
      %v3117 = vld [vmem:[#allocation2 + $0x1ca] sm:$0xff]
      %v3118 = vld [vmem:[#allocation2 + $0x1d2] sm:$0xff]
      %v3119 = vld [vmem:[#allocation2 + $0x1e2] sm:$0xff]
      %v3120 = vld [vmem:[#allocation2 + $0x1ea] sm:$0xff]
      %v3121 = vld [vmem:[#allocation2 + $0x1f2] sm:$0xff]
      %v3122 = vld [vmem:[#allocation2 + $0x1fa] sm:$0xff]
      %v3123 = vld [vmem:[#allocation2 + $0x20a] sm:$0xff]
      %v3124 = vld [vmem:[#allocation2 + $0x212] sm:$0xff]
      %v3125 = vld [vmem:[#allocation2 + $0x21a] sm:$0xff]
      %v3126 = vld [vmem:[#allocation2 + $0x222] sm:$0xff]
      %v3127 = vld [vmem:[#allocation2 + $0x232] sm:$0xff]
      %v3128 = vld [vmem:[#allocation2 + $0x23a] sm:$0xff]
      %v3129 = vld [vmem:[#allocation2 + $0x242] sm:$0xff]
      %v3130 = vld [vmem:[#allocation2 + $0x24a] sm:$0xff]
      %v3131 = vld [vmem:[#allocation2 + $0x25a] sm:$0xff]
      %v3132 = vld [vmem:[#allocation2 + $0x262] sm:$0xff]
      %v3133 = vld [vmem:[#allocation2 + $0x26a] sm:$0xff]
      %v3134 = vld [vmem:[#allocation2 + $0x272] sm:$0xff]
      %v3135 = vld [vmem:[#allocation2 + $0x282] sm:$0xff]
      %v3136 = vld [vmem:[#allocation2 + $0x28a] sm:$0xff]
      %v3137 = vld [vmem:[#allocation2 + $0x292] sm:$0xff]
      %v3138 = vld [vmem:[#allocation2 + $0x29a] sm:$0xff]
      %v3139 = vld [vmem:[#allocation2 + $0x2aa] sm:$0xff]
      %v3140 = vld [vmem:[#allocation2 + $0x2b2] sm:$0xff]
      %v3141 = vld [vmem:[#allocation2 + $0x2ba] sm:$0xff]
      %v3142 = vld [vmem:[#allocation2 + $0x2c2] sm:$0xff]
      %v3143 = vld [vmem:[#allocation2 + $0x2d2] sm:$0xff]
      %v3144 = vld [vmem:[#allocation2 + $0x2da] sm:$0xff]
      %v3145 = vld [vmem:[#allocation2 + $0x2e2] sm:$0xff]
      %v3146 = vld [vmem:[#allocation2 + $0x2ea] sm:$0xff]
      %v3147 = vld [vmem:[#allocation2 + $0x2fa] sm:$0xff]
      %v3148 = vld [vmem:[#allocation2 + $0x302] sm:$0xff]
      %v3149 = vld [vmem:[#allocation2 + $0x30a] sm:$0xff]
      %v3150 = vld [vmem:[#allocation2 + $0x312] sm:$0xff]
      %v3151 = vld [vmem:[#allocation2 + $0x322] sm:$0xff]
      %v3152 = vld [vmem:[#allocation2 + $0x32a] sm:$0xff]
      %v3153 = vld [vmem:[#allocation2 + $0x332] sm:$0xff]
      %v3154 = vld [vmem:[#allocation2 + $0x33a] sm:$0xff]
      %v3155 = vld [vmem:[#allocation2 + $0x34a] sm:$0xff]
      %v3156 = vld [vmem:[#allocation2 + $0x352] sm:$0xff]
      %v3157 = vld [vmem:[#allocation2 + $0x35a] sm:$0xff]
      %v3158 = vld [vmem:[#allocation2 + $0x362] sm:$0xff]
      %v3159 = vld [vmem:[#allocation2 + $0x372] sm:$0xff]
      %v3160 = vld [vmem:[#allocation2 + $0x37a] sm:$0xff]
      %v3161 = vld [vmem:[#allocation2 + $0x382] sm:$0xff]
      %v3162 = vld [vmem:[#allocation2 + $0x38a] sm:$0xff]
      %v3163 = vld [vmem:[#allocation2 + $0x39a] sm:$0xff]
      %v3164 = vld [vmem:[#allocation2 + $0x3a2] sm:$0xff]
      %v3165 = vld [vmem:[#allocation2 + $0x3aa] sm:$0xff]
      %v3166 = vld [vmem:[#allocation2 + $0x3b2] sm:$0xff]
      %v3167 = vld [vmem:[#allocation2 + $0x3c2] sm:$0xff]
      %v3168 = vld [vmem:[#allocation2 + $0x3ca] sm:$0xff]
      %v3169 = vld [vmem:[#allocation2 + $0x3d2] sm:$0xff]
      %v3170 = vld [vmem:[#allocation2 + $0x3da] sm:$0xff]
      %v3171 = vld [vmem:[#allocation2 + $0x3ea] sm:$0xff]
      %v3172 = vld [vmem:[#allocation2 + $0x3f2] sm:$0xff]
      %v3173 = vld [vmem:[#allocation2 + $0x3fa] sm:$0xff]
      %v3174 = vld [vmem:[#allocation2 + $0x402] sm:$0xff]
      %v3175 = vld [vmem:[#allocation2 + $0x412] sm:$0xff]
      %v3176 = vld [vmem:[#allocation2 + $0x41a] sm:$0xff]
      %v3177 = vld [vmem:[#allocation2 + $0x422] sm:$0xff]
      %v3178 = vld [vmem:[#allocation2 + $0x42a] sm:$0xff]
      %v3179 = vld [vmem:[#allocation2 + $0x43a] sm:$0xff]
      %v3180 = vld [vmem:[#allocation2 + $0x442] sm:$0xff]
      %v3181 = vld [vmem:[#allocation2 + $0x44a] sm:$0xff]
      %v3182 = vld [vmem:[#allocation2 + $0x452] sm:$0xff]
      %v3183 = vld [vmem:[#allocation2 + $0x462] sm:$0xff]
      %v3184 = vld [vmem:[#allocation2 + $0x46a] sm:$0xff]
      %v3185 = vld [vmem:[#allocation2 + $0x472] sm:$0xff]
      %v3186 = vld [vmem:[#allocation2 + $0x47a] sm:$0xff]
      %v3187 = vld [vmem:[#allocation2 + $0x48a] sm:$0xff]
      %v3188 = vld [vmem:[#allocation2 + $0x492] sm:$0xff]
      %v3189 = vld [vmem:[#allocation2 + $0x49a] sm:$0xff]
      %v3190 = vld [vmem:[#allocation2 + $0x4a2] sm:$0xff]
      %v3191 = vld [vmem:[#allocation2 + $0x4b2] sm:$0xff]
      %v3192 = vld [vmem:[#allocation2 + $0x4ba] sm:$0xff]
      %v3193 = vld [vmem:[#allocation2 + $0x4c2] sm:$0xff]
      %v3194 = vld [vmem:[#allocation2 + $0x4ca] sm:$0xff]
      %v3195 = vld [vmem:[#allocation2 + $0x4da] sm:$0xff]
      %v3196 = vld [vmem:[#allocation2 + $0x4e2] sm:$0xff]
      %v3197 = vld [vmem:[#allocation2 + $0x4ea] sm:$0xff]
      %v3198 = vld [vmem:[#allocation2 + $0x4f2] sm:$0xff]
      %s3199 = scalar_lea.vmem %s1, 8
      %v3200 = vld [vmem:[%s3199] sm:$0x7]
      %v3202 = vsel %vm326, %v3071, 0
      %v3205 = vsel %vm326, %v3072, 0
      %v3208 = vsel %vm326, %v3073, 0
      %v3211 = vsel %vm326, %v3074, 0
      %v3214 = vsel %vm326, %v3075, 0
      %v3217 = vsel %vm326, %v3076, 0
      %v3220 = vsel %vm326, %v3077, 0
      %v3223 = vsel %vm326, %v3078, 0
      %v3226 = vsel %vm326, %v3079, 0
      %v3229 = vsel %vm326, %v3080, 0
      %v3232 = vsel %vm326, %v3081, 0
      %v3235 = vsel %vm326, %v3082, 0
      %v3238 = vsel %vm326, %v3083, 0
      %v3241 = vsel %vm326, %v3084, 0
      %v3244 = vsel %vm326, %v3085, 0
      %v3247 = vsel %vm326, %v3086, 0
      %v3250 = vsel %vm326, %v3087, 0
      %v3253 = vsel %vm326, %v3088, 0
      %v3256 = vsel %vm326, %v3089, 0
      %v3259 = vsel %vm326, %v3090, 0
      %v3262 = vsel %vm326, %v3091, 0
      %v3265 = vsel %vm326, %v3092, 0
      %v3268 = vsel %vm326, %v3093, 0
      %v3271 = vsel %vm326, %v3094, 0
      %v3274 = vsel %vm326, %v3095, 0
      %v3277 = vsel %vm326, %v3096, 0
      %v3280 = vsel %vm326, %v3097, 0
      %v3283 = vsel %vm326, %v3098, 0
      %v3286 = vsel %vm326, %v3099, 0
      %v3289 = vsel %vm326, %v3100, 0
      %v3292 = vsel %vm326, %v3101, 0
      %v3295 = vsel %vm326, %v3102, 0
      %v3298 = vsel %vm326, %v3103, 0
      %v3301 = vsel %vm326, %v3104, 0
      %v3304 = vsel %vm326, %v3105, 0
      %v3307 = vsel %vm326, %v3106, 0
      %v3310 = vsel %vm326, %v3107, 0
      %v3313 = vsel %vm326, %v3108, 0
      %v3316 = vsel %vm326, %v3109, 0
      %v3319 = vsel %vm326, %v3110, 0
      %v3322 = vsel %vm326, %v3111, 0
      %v3325 = vsel %vm326, %v3112, 0
      %v3328 = vsel %vm326, %v3113, 0
      %v3331 = vsel %vm326, %v3114, 0
      %v3334 = vsel %vm326, %v3115, 0
      %v3337 = vsel %vm326, %v3116, 0
      %v3340 = vsel %vm326, %v3117, 0
      %v3343 = vsel %vm326, %v3118, 0
      %v3346 = vsel %vm326, %v3119, 0
      %v3349 = vsel %vm326, %v3120, 0
      %v3352 = vsel %vm326, %v3121, 0
      %v3355 = vsel %vm326, %v3122, 0
      %v3358 = vsel %vm326, %v3123, 0
      %v3361 = vsel %vm326, %v3124, 0
      %v3364 = vsel %vm326, %v3125, 0
      %v3367 = vsel %vm326, %v3126, 0
      %v3370 = vsel %vm326, %v3127, 0
      %v3373 = vsel %vm326, %v3128, 0
      %v3376 = vsel %vm326, %v3129, 0
      %v3379 = vsel %vm326, %v3130, 0
      %v3382 = vsel %vm326, %v3131, 0
      %v3385 = vsel %vm326, %v3132, 0
      %v3388 = vsel %vm326, %v3133, 0
      %v3391 = vsel %vm326, %v3134, 0
      %v3394 = vsel %vm326, %v3135, 0
      %v3397 = vsel %vm326, %v3136, 0
      %v3400 = vsel %vm326, %v3137, 0
      %v3403 = vsel %vm326, %v3138, 0
      %v3406 = vsel %vm326, %v3139, 0
      %v3409 = vsel %vm326, %v3140, 0
      %v3412 = vsel %vm326, %v3141, 0
      %v3415 = vsel %vm326, %v3142, 0
      %v3418 = vsel %vm326, %v3143, 0
      %v3421 = vsel %vm326, %v3144, 0
      %v3424 = vsel %vm326, %v3145, 0
      %v3427 = vsel %vm326, %v3146, 0
      %v3430 = vsel %vm326, %v3147, 0
      %v3433 = vsel %vm326, %v3148, 0
      %v3436 = vsel %vm326, %v3149, 0
      %v3439 = vsel %vm326, %v3150, 0
      %v3442 = vsel %vm326, %v3151, 0
      %v3445 = vsel %vm326, %v3152, 0
      %v3448 = vsel %vm326, %v3153, 0
      %v3451 = vsel %vm326, %v3154, 0
      %v3454 = vsel %vm326, %v3155, 0
      %v3457 = vsel %vm326, %v3156, 0
      %v3460 = vsel %vm326, %v3157, 0
      %v3463 = vsel %vm326, %v3158, 0
      %v3466 = vsel %vm326, %v3159, 0
      %v3469 = vsel %vm326, %v3160, 0
      %v3472 = vsel %vm326, %v3161, 0
      %v3475 = vsel %vm326, %v3162, 0
      %v3478 = vsel %vm326, %v3163, 0
      %v3481 = vsel %vm326, %v3164, 0
      %v3484 = vsel %vm326, %v3165, 0
      %v3487 = vsel %vm326, %v3166, 0
      %v3490 = vsel %vm326, %v3167, 0
      %v3493 = vsel %vm326, %v3168, 0
      %v3496 = vsel %vm326, %v3169, 0
      %v3499 = vsel %vm326, %v3170, 0
      %v3502 = vsel %vm326, %v3171, 0
      %v3505 = vsel %vm326, %v3172, 0
      %v3508 = vsel %vm326, %v3173, 0
      %v3511 = vsel %vm326, %v3174, 0
      %v3514 = vsel %vm326, %v3175, 0
      %v3517 = vsel %vm326, %v3176, 0
      %v3520 = vsel %vm326, %v3177, 0
      %v3523 = vsel %vm326, %v3178, 0
      %v3526 = vsel %vm326, %v3179, 0
      %v3529 = vsel %vm326, %v3180, 0
      %v3532 = vsel %vm326, %v3181, 0
      %v3535 = vsel %vm326, %v3182, 0
      %v3538 = vsel %vm326, %v3183, 0
      %v3541 = vsel %vm326, %v3184, 0
      %v3544 = vsel %vm326, %v3185, 0
      %v3547 = vsel %vm326, %v3186, 0
      %v3550 = vsel %vm326, %v3187, 0
      %v3553 = vsel %vm326, %v3188, 0
      %v3556 = vsel %vm326, %v3189, 0
      %v3559 = vsel %vm326, %v3190, 0
      %v3562 = vsel %vm326, %v3191, 0
      %v3565 = vsel %vm326, %v3192, 0
      %v3568 = vsel %vm326, %v3193, 0
      %v3571 = vsel %vm326, %v3194, 0
      %v3574 = vsel %vm326, %v3195, 0
      %v3577 = vsel %vm326, %v3196, 0
      %v3580 = vsel %vm326, %v3197, 0
      %v3583 = vsel %vm326, %v3198, 0
      %v3586 = vsel %vm1270, %v3200, 0
      %3588 = vmatprep.subr.mxu0 0.0
      %3589 = vmatpush1.msra.mxu0 %v3586
      %3590 = vmatprep.subr.mxu0 0.0
      %3591 = vmatpush1.msra.mxu0 0.0
      %3592 = vmatprep.subr.mxu0 0.0
      %3593 = vmatpush1.msra.mxu0 0.0
      %3594 = vmatprep.subr.mxu0 0.0
      %3595 = vmatpush1.msra.mxu0 0.0
      %3596 = vmatprep.subr.mxu0 0.0
      %3597 = vmatpush1.msra.mxu0 0.0
      %3598 = vmatprep.subr.mxu0 0.0
      %3599 = vmatpush1.msra.mxu0 0.0
      %3600 = vmatprep.subr.mxu0 0.0
      %3601 = vmatpush1.msra.mxu0 0.0
      %3602 = vmatprep.subr.mxu0 0.0
      %3603 = vmatpush1.msra.mxu0 0.0
      %3604 = vmatprep.subr.mxu0 0.0
      %3605 = vmatpush1.msra.mxu0 0.0
      %3606 = vmatprep.subr.mxu0 0.0
      %3607 = vmatpush1.msra.mxu0 0.0
      %3608 = vmatprep.subr.mxu0 0.0
      %3609 = vmatpush1.msra.mxu0 0.0
      %3610 = vmatprep.subr.mxu0 0.0
      %3611 = vmatpush1.msra.mxu0 0.0
      %3612 = vmatprep.subr.mxu0 0.0
      %3613 = vmatpush1.msra.mxu0 0.0
      %3614 = vmatprep.subr.mxu0 0.0
      %3615 = vmatpush1.msra.mxu0 0.0
      %3616 = vmatprep.subr.mxu0 0.0
      %3617 = vmatpush1.msra.mxu0 0.0
      %3618 = vmatprep.subr.mxu0 0.0
      %3619 = vmatpush1.msra.mxu0 0.0
      %3620 = vmatprep.subr.mxu0 0.0
      %3621 = vmatpush1.msra.mxu0 0.0
      %3622 = vmatprep.subr.mxu0 0.0
      %3623 = vmatpush1.msra.mxu0 0.0
      %3624 = vmatprep.subr.mxu0 0.0
      %3625 = vmatpush1.msra.mxu0 0.0
      %3626 = vmatprep.subr.mxu0 0.0
      %3627 = vmatpush1.msra.mxu0 0.0
      %3628 = vmatprep.subr.mxu0 0.0
      %3629 = vmatpush1.msra.mxu0 0.0
      %3630 = vmatprep.subr.mxu0 0.0
      %3631 = vmatpush1.msra.mxu0 0.0
      %3632 = vmatprep.subr.mxu0 0.0
      %3633 = vmatpush1.msra.mxu0 0.0
      %3634 = vmatprep.subr.mxu0 0.0
      %3635 = vmatpush1.msra.mxu0 0.0
      %3636 = vmatprep.subr.mxu0 0.0
      %3637 = vmatpush1.msra.mxu0 0.0
      %3638 = vmatprep.subr.mxu0 0.0
      %3639 = vmatpush1.msra.mxu0 0.0
      %3640 = vmatprep.subr.mxu0 0.0
      %3641 = vmatpush1.msra.mxu0 0.0
      %3642 = vmatprep.subr.mxu0 0.0
      %3643 = vmatpush1.msra.mxu0 0.0
      %3644 = vmatprep.subr.mxu0 0.0
      %3645 = vmatpush1.msra.mxu0 0.0
      %3646 = vmatprep.subr.mxu0 0.0
      %3647 = vmatpush1.msra.mxu0 0.0
      %3648 = vmatprep.subr.mxu0 0.0
      %3649 = vmatpush1.msra.mxu0 0.0
      %3650 = vmatprep.subr.mxu0 0.0
      %3651 = vmatpush1.msra.mxu0 0.0
      %3652 = vmatprep.mubr.f32.mxu0 0.0
      %3653 = vmatmul.mubr.f32.gmra.mrb[0].mxu0 %v3202
      %v3654 = vpop.f32.mrb[0].mxu0
      %v3655 = vadd.f32 0.0, %v3654
      %v3656 = vpop.f32.mrb[0].mxu0
      %3657 = vmatprep.mubr.f32.mxu0 0.0
      %3658 = vmatmul.mubr.f32.gmra.mrb[0].mxu0 %v3205
      %v3659 = vpop.f32.mrb[0].mxu0
      %v3660 = vadd.f32 0.0, %v3659
      %v3661 = vpop.f32.mrb[0].mxu0
      %3662 = vmatprep.mubr.f32.mxu0 0.0
      %3663 = vmatmul.mubr.f32.gmra.mrb[0].mxu0 %v3208
      %v3664 = vpop.f32.mrb[0].mxu0
      %v3665 = vadd.f32 0.0, %v3664
      %v3666 = vpop.f32.mrb[0].mxu0
      %3667 = vmatprep.mubr.f32.mxu0 0.0
      %3668 = vmatmul.mubr.f32.gmra.mrb[0].mxu0 %v3211
      %v3669 = vpop.f32.mrb[0].mxu0
      %v3670 = vadd.f32 0.0, %v3669
      %v3671 = vpop.f32.mrb[0].mxu0
      %3672 = vmatprep.mubr.f32.mxu0 0.0
      %3673 = vmatmul.mubr.f32.gmra.mrb[0].mxu0 %v3214
      %v3674 = vpop.f32.mrb[0].mxu0
      %v3675 = vadd.f32 0.0, %v3674
      %v3676 = vpop.f32.mrb[0].mxu0
      %3677 = vmatprep.mubr.f32.mxu0 0.0
      %3678 = vmatmul.mubr.f32.gmra.mrb[0].mxu0 %v3217
      %v3679 = vpop.f32.mrb[0].mxu0
      %v3680 = vadd.f32 0.0, %v3679
      %v3681 = vpop.f32.mrb[0].mxu0
      %3682 = vmatprep.mubr.f32.mxu0 0.0
      %3683 = vmatmul.mubr.f32.gmra.mrb[0].mxu0 %v3220
      %v3684 = vpop.f32.mrb[0].mxu0
      %v3685 = vadd.f32 0.0, %v3684
      %v3686 = vpop.f32.mrb[0].mxu0
      %3687 = vmatprep.mubr.f32.mxu0 0.0
      %3688 = vmatmul.mubr.f32.gmra.mrb[0].mxu0 %v3223
      %v3689 = vpop.f32.mrb[0].mxu0
      %v3690 = vadd.f32 0.0, %v3689
      %v3691 = vpop.f32.mrb[0].mxu0
      %3692 = vmatprep.mubr.f32.mxu0 0.0
      %3693 = vmatmul.mubr.f32.gmra.mrb[0].mxu0 %v3226
      %v3694 = vpop.f32.mrb[0].mxu0
      %v3695 = vadd.f32 0.0, %v3694
      %v3696 = vpop.f32.mrb[0].mxu0
      %3697 = vmatprep.mubr.f32.mxu0 0.0
      %3698 = vmatmul.mubr.f32.gmra.mrb[0].mxu0 %v3229
      %v3699 = vpop.f32.mrb[0].mxu0
      %v3700 = vadd.f32 0.0, %v3699
      %v3701 = vpop.f32.mrb[0].mxu0
      %3702 = vmatprep.mubr.f32.mxu0 0.0
      %3703 = vmatmul.mubr.f32.gmra.mrb[0].mxu0 %v3232
      %v3704 = vpop.f32.mrb[0].mxu0
      %v3705 = vadd.f32 0.0, %v3704
      %v3706 = vpop.f32.mrb[0].mxu0
      %3707 = vmatprep.mubr.f32.mxu0 0.0
      %3708 = vmatmul.mubr.f32.gmra.mrb[0].mxu0 %v3235
      %v3709 = vpop.f32.mrb[0].mxu0
      %v3710 = vadd.f32 0.0, %v3709
      %v3711 = vpop.f32.mrb[0].mxu0
      %3712 = vmatprep.mubr.f32.mxu0 0.0
      %3713 = vmatmul.mubr.f32.gmra.mrb[0].mxu0 %v3238
      %v3714 = vpop.f32.mrb[0].mxu0
      %v3715 = vadd.f32 0.0, %v3714
      %v3716 = vpop.f32.mrb[0].mxu0
      %3717 = vmatprep.mubr.f32.mxu0 0.0
      %3718 = vmatmul.mubr.f32.gmra.mrb[0].mxu0 %v3241
      %v3719 = vpop.f32.mrb[0].mxu0
      %v3720 = vadd.f32 0.0, %v3719
      %v3721 = vpop.f32.mrb[0].mxu0
      %3722 = vmatprep.mubr.f32.mxu0 0.0
      %3723 = vmatmul.mubr.f32.gmra.mrb[0].mxu0 %v3244
      %v3724 = vpop.f32.mrb[0].mxu0
      %v3725 = vadd.f32 0.0, %v3724
      %v3726 = vpop.f32.mrb[0].mxu0
      %3727 = vmatprep.mubr.f32.mxu0 0.0
      %3728 = vmatmul.mubr.f32.gmra.mrb[0].mxu0 %v3247
      %v3729 = vpop.f32.mrb[0].mxu0
      %v3730 = vadd.f32 0.0, %v3729
      %v3731 = vpop.f32.mrb[0].mxu0
      %3732 = vmatprep.mubr.f32.mxu0 0.0
      %3733 = vmatmul.mubr.f32.gmra.mrb[0].mxu0 %v3250
      %v3734 = vpop.f32.mrb[0].mxu0
      %v3735 = vadd.f32 0.0, %v3734
      %v3736 = vpop.f32.mrb[0].mxu0
      %3737 = vmatprep.mubr.f32.mxu0 0.0
      %3738 = vmatmul.mubr.f32.gmra.mrb[0].mxu0 %v3253
      %v3739 = vpop.f32.mrb[0].mxu0
      %v3740 = vadd.f32 0.0, %v3739
      %v3741 = vpop.f32.mrb[0].mxu0
      %3742 = vmatprep.mubr.f32.mxu0 0.0
      %3743 = vmatmul.mubr.f32.gmra.mrb[0].mxu0 %v3256
      %v3744 = vpop.f32.mrb[0].mxu0
      %v3745 = vadd.f32 0.0, %v3744
      %v3746 = vpop.f32.mrb[0].mxu0
      %3747 = vmatprep.mubr.f32.mxu0 0.0
      %3748 = vmatmul.mubr.f32.gmra.mrb[0].mxu0 %v3259
      %v3749 = vpop.f32.mrb[0].mxu0
      %v3750 = vadd.f32 0.0, %v3749
      %v3751 = vpop.f32.mrb[0].mxu0
      %3752 = vmatprep.mubr.f32.mxu0 0.0
      %3753 = vmatmul.mubr.f32.gmra.mrb[0].mxu0 %v3262
      %v3754 = vpop.f32.mrb[0].mxu0
      %v3755 = vadd.f32 0.0, %v3754
      %v3756 = vpop.f32.mrb[0].mxu0
      %3757 = vmatprep.mubr.f32.mxu0 0.0
      %3758 = vmatmul.mubr.f32.gmra.mrb[0].mxu0 %v3265
      %v3759 = vpop.f32.mrb[0].mxu0
      %v3760 = vadd.f32 0.0, %v3759
      %v3761 = vpop.f32.mrb[0].mxu0
      %3762 = vmatprep.mubr.f32.mxu0 0.0
      %3763 = vmatmul.mubr.f32.gmra.mrb[0].mxu0 %v3268
      %v3764 = vpop.f32.mrb[0].mxu0
      %v3765 = vadd.f32 0.0, %v3764
      %v3766 = vpop.f32.mrb[0].mxu0
      %3767 = vmatprep.mubr.f32.mxu0 0.0
      %3768 = vmatmul.mubr.f32.gmra.mrb[0].mxu0 %v3271
      %v3769 = vpop.f32.mrb[0].mxu0
      %v3770 = vadd.f32 0.0, %v3769
      %v3771 = vpop.f32.mrb[0].mxu0
      %3772 = vmatprep.mubr.f32.mxu0 0.0
      %3773 = vmatmul.mubr.f32.gmra.mrb[0].mxu0 %v3274
      %v3774 = vpop.f32.mrb[0].mxu0
      %v3775 = vadd.f32 0.0, %v3774
      %v3776 = vpop.f32.mrb[0].mxu0
      %3777 = vmatprep.mubr.f32.mxu0 0.0
      %3778 = vmatmul.mubr.f32.gmra.mrb[0].mxu0 %v3277
      %v3779 = vpop.f32.mrb[0].mxu0
      %v3780 = vadd.f32 0.0, %v3779
      %v3781 = vpop.f32.mrb[0].mxu0
      %3782 = vmatprep.mubr.f32.mxu0 0.0
      %3783 = vmatmul.mubr.f32.gmra.mrb[0].mxu0 %v3280
      %v3784 = vpop.f32.mrb[0].mxu0
      %v3785 = vadd.f32 0.0, %v3784
      %v3786 = vpop.f32.mrb[0].mxu0
      %3787 = vmatprep.mubr.f32.mxu0 0.0
      %3788 = vmatmul.mubr.f32.gmra.mrb[0].mxu0 %v3283
      %v3789 = vpop.f32.mrb[0].mxu0
      %v3790 = vadd.f32 0.0, %v3789
      %v3791 = vpop.f32.mrb[0].mxu0
      %3792 = vmatprep.mubr.f32.mxu0 0.0
      %3793 = vmatmul.mubr.f32.gmra.mrb[0].mxu0 %v3286
      %v3794 = vpop.f32.mrb[0].mxu0
      %v3795 = vadd.f32 0.0, %v3794
      %v3796 = vpop.f32.mrb[0].mxu0
      %3797 = vmatprep.mubr.f32.mxu0 0.0
      %3798 = vmatmul.mubr.f32.gmra.mrb[0].mxu0 %v3289
      %v3799 = vpop.f32.mrb[0].mxu0
      %v3800 = vadd.f32 0.0, %v3799
      %v3801 = vpop.f32.mrb[0].mxu0
      %3802 = vmatprep.mubr.f32.mxu0 0.0
      %3803 = vmatmul.mubr.f32.gmra.mrb[0].mxu0 %v3292
      %v3804 = vpop.f32.mrb[0].mxu0
      %v3805 = vadd.f32 0.0, %v3804
      %v3806 = vpop.f32.mrb[0].mxu0
      %3807 = vmatprep.mubr.f32.mxu0 0.0
      %3808 = vmatmul.mubr.f32.gmra.mrb[0].mxu0 %v3295
      %v3809 = vpop.f32.mrb[0].mxu0
      %v3810 = vadd.f32 0.0, %v3809
      %v3811 = vpop.f32.mrb[0].mxu0
      %3812 = vmatprep.mubr.f32.mxu0 0.0
      %3813 = vmatmul.mubr.f32.gmra.mrb[0].mxu0 %v3298
      %v3814 = vpop.f32.mrb[0].mxu0
      %v3815 = vadd.f32 0.0, %v3814
      %v3816 = vpop.f32.mrb[0].mxu0
      %3817 = vmatprep.mubr.f32.mxu0 0.0
      %3818 = vmatmul.mubr.f32.gmra.mrb[0].mxu0 %v3301
      %v3819 = vpop.f32.mrb[0].mxu0
      %v3820 = vadd.f32 0.0, %v3819
      %v3821 = vpop.f32.mrb[0].mxu0
      %3822 = vmatprep.mubr.f32.mxu0 0.0
      %3823 = vmatmul.mubr.f32.gmra.mrb[0].mxu0 %v3304
      %v3824 = vpop.f32.mrb[0].mxu0
      %v3825 = vadd.f32 0.0, %v3824
      %v3826 = vpop.f32.mrb[0].mxu0
      %3827 = vmatprep.mubr.f32.mxu0 0.0
      %3828 = vmatmul.mubr.f32.gmra.mrb[0].mxu0 %v3307
      %v3829 = vpop.f32.mrb[0].mxu0
      %v3830 = vadd.f32 0.0, %v3829
      %v3831 = vpop.f32.mrb[0].mxu0
      %3832 = vmatprep.mubr.f32.mxu0 0.0
      %3833 = vmatmul.mubr.f32.gmra.mrb[0].mxu0 %v3310
      %v3834 = vpop.f32.mrb[0].mxu0
      %v3835 = vadd.f32 0.0, %v3834
      %v3836 = vpop.f32.mrb[0].mxu0
      %3837 = vmatprep.mubr.f32.mxu0 0.0
      %3838 = vmatmul.mubr.f32.gmra.mrb[0].mxu0 %v3313
      %v3839 = vpop.f32.mrb[0].mxu0
      %v3840 = vadd.f32 0.0, %v3839
      %v3841 = vpop.f32.mrb[0].mxu0
      %3842 = vmatprep.mubr.f32.mxu0 0.0
      %3843 = vmatmul.mubr.f32.gmra.mrb[0].mxu0 %v3316
      %v3844 = vpop.f32.mrb[0].mxu0
      %v3845 = vadd.f32 0.0, %v3844
      %v3846 = vpop.f32.mrb[0].mxu0
      %3847 = vmatprep.mubr.f32.mxu0 0.0
      %3848 = vmatmul.mubr.f32.gmra.mrb[0].mxu0 %v3319
      %v3849 = vpop.f32.mrb[0].mxu0
      %v3850 = vadd.f32 0.0, %v3849
      %v3851 = vpop.f32.mrb[0].mxu0
      %3852 = vmatprep.mubr.f32.mxu0 0.0
      %3853 = vmatmul.mubr.f32.gmra.mrb[0].mxu0 %v3322
      %v3854 = vpop.f32.mrb[0].mxu0
      %v3855 = vadd.f32 0.0, %v3854
      %v3856 = vpop.f32.mrb[0].mxu0
      %3857 = vmatprep.mubr.f32.mxu0 0.0
      %3858 = vmatmul.mubr.f32.gmra.mrb[0].mxu0 %v3325
      %v3859 = vpop.f32.mrb[0].mxu0
      %v3860 = vadd.f32 0.0, %v3859
      %v3861 = vpop.f32.mrb[0].mxu0
      %3862 = vmatprep.mubr.f32.mxu0 0.0
      %3863 = vmatmul.mubr.f32.gmra.mrb[0].mxu0 %v3328
      %v3864 = vpop.f32.mrb[0].mxu0
      %v3865 = vadd.f32 0.0, %v3864
      %v3866 = vpop.f32.mrb[0].mxu0
      %3867 = vmatprep.mubr.f32.mxu0 0.0
      %3868 = vmatmul.mubr.f32.gmra.mrb[0].mxu0 %v3331
      %v3869 = vpop.f32.mrb[0].mxu0
      %v3870 = vadd.f32 0.0, %v3869
      %v3871 = vpop.f32.mrb[0].mxu0
      %3872 = vmatprep.mubr.f32.mxu0 0.0
      %3873 = vmatmul.mubr.f32.gmra.mrb[0].mxu0 %v3334
      %v3874 = vpop.f32.mrb[0].mxu0
      %v3875 = vadd.f32 0.0, %v3874
      %v3876 = vpop.f32.mrb[0].mxu0
      %3877 = vmatprep.mubr.f32.mxu0 0.0
      %3878 = vmatmul.mubr.f32.gmra.mrb[0].mxu0 %v3337
      %v3879 = vpop.f32.mrb[0].mxu0
      %v3880 = vadd.f32 0.0, %v3879
      %v3881 = vpop.f32.mrb[0].mxu0
      %3882 = vmatprep.mubr.f32.mxu0 0.0
      %3883 = vmatmul.mubr.f32.gmra.mrb[0].mxu0 %v3340
      %v3884 = vpop.f32.mrb[0].mxu0
      %v3885 = vadd.f32 0.0, %v3884
      %v3886 = vpop.f32.mrb[0].mxu0
      %3887 = vmatprep.mubr.f32.mxu0 0.0
      %3888 = vmatmul.mubr.f32.gmra.mrb[0].mxu0 %v3343
      %v3889 = vpop.f32.mrb[0].mxu0
      %v3890 = vadd.f32 0.0, %v3889
      %v3891 = vpop.f32.mrb[0].mxu0
      %3892 = vmatprep.mubr.f32.mxu0 0.0
      %3893 = vmatmul.mubr.f32.gmra.mrb[0].mxu0 %v3346
      %v3894 = vpop.f32.mrb[0].mxu0
      %v3895 = vadd.f32 0.0, %v3894
      %v3896 = vpop.f32.mrb[0].mxu0
      %3897 = vmatprep.mubr.f32.mxu0 0.0
      %3898 = vmatmul.mubr.f32.gmra.mrb[0].mxu0 %v3349
      %v3899 = vpop.f32.mrb[0].mxu0
      %v3900 = vadd.f32 0.0, %v3899
      %v3901 = vpop.f32.mrb[0].mxu0
      %3902 = vmatprep.mubr.f32.mxu0 0.0
      %3903 = vmatmul.mubr.f32.gmra.mrb[0].mxu0 %v3352
      %v3904 = vpop.f32.mrb[0].mxu0
      %v3905 = vadd.f32 0.0, %v3904
      %v3906 = vpop.f32.mrb[0].mxu0
      %3907 = vmatprep.mubr.f32.mxu0 0.0
      %3908 = vmatmul.mubr.f32.gmra.mrb[0].mxu0 %v3355
      %v3909 = vpop.f32.mrb[0].mxu0
      %v3910 = vadd.f32 0.0, %v3909
      %v3911 = vpop.f32.mrb[0].mxu0
      %3912 = vmatprep.mubr.f32.mxu0 0.0
      %3913 = vmatmul.mubr.f32.gmra.mrb[0].mxu0 %v3358
      %v3914 = vpop.f32.mrb[0].mxu0
      %v3915 = vadd.f32 0.0, %v3914
      %v3916 = vpop.f32.mrb[0].mxu0
      %3917 = vmatprep.mubr.f32.mxu0 0.0
      %3918 = vmatmul.mubr.f32.gmra.mrb[0].mxu0 %v3361
      %v3919 = vpop.f32.mrb[0].mxu0
      %v3920 = vadd.f32 0.0, %v3919
      %v3921 = vpop.f32.mrb[0].mxu0
      %3922 = vmatprep.mubr.f32.mxu0 0.0
      %3923 = vmatmul.mubr.f32.gmra.mrb[0].mxu0 %v3364
      %v3924 = vpop.f32.mrb[0].mxu0
      %v3925 = vadd.f32 0.0, %v3924
      %v3926 = vpop.f32.mrb[0].mxu0
      %3927 = vmatprep.mubr.f32.mxu0 0.0
      %3928 = vmatmul.mubr.f32.gmra.mrb[0].mxu0 %v3367
      %v3929 = vpop.f32.mrb[0].mxu0
      %v3930 = vadd.f32 0.0, %v3929
      %v3931 = vpop.f32.mrb[0].mxu0
      %3932 = vmatprep.mubr.f32.mxu0 0.0
      %3933 = vmatmul.mubr.f32.gmra.mrb[0].mxu0 %v3370
      %v3934 = vpop.f32.mrb[0].mxu0
      %v3935 = vadd.f32 0.0, %v3934
      %v3936 = vpop.f32.mrb[0].mxu0
      %3937 = vmatprep.mubr.f32.mxu0 0.0
      %3938 = vmatmul.mubr.f32.gmra.mrb[0].mxu0 %v3373
      %v3939 = vpop.f32.mrb[0].mxu0
      %v3940 = vadd.f32 0.0, %v3939
      %v3941 = vpop.f32.mrb[0].mxu0
      %3942 = vmatprep.mubr.f32.mxu0 0.0
      %3943 = vmatmul.mubr.f32.gmra.mrb[0].mxu0 %v3376
      %v3944 = vpop.f32.mrb[0].mxu0
      %v3945 = vadd.f32 0.0, %v3944
      %v3946 = vpop.f32.mrb[0].mxu0
      %3947 = vmatprep.mubr.f32.mxu0 0.0
      %3948 = vmatmul.mubr.f32.gmra.mrb[0].mxu0 %v3379
      %v3949 = vpop.f32.mrb[0].mxu0
      %v3950 = vadd.f32 0.0, %v3949
      %v3951 = vpop.f32.mrb[0].mxu0
      %3952 = vmatprep.mubr.f32.mxu0 0.0
      %3953 = vmatmul.mubr.f32.gmra.mrb[0].mxu0 %v3382
      %v3954 = vpop.f32.mrb[0].mxu0
      %v3955 = vadd.f32 0.0, %v3954
      %v3956 = vpop.f32.mrb[0].mxu0
      %3957 = vmatprep.mubr.f32.mxu0 0.0
      %3958 = vmatmul.mubr.f32.gmra.mrb[0].mxu0 %v3385
      %v3959 = vpop.f32.mrb[0].mxu0
      %v3960 = vadd.f32 0.0, %v3959
      %v3961 = vpop.f32.mrb[0].mxu0
      %3962 = vmatprep.mubr.f32.mxu0 0.0
      %3963 = vmatmul.mubr.f32.gmra.mrb[0].mxu0 %v3388
      %v3964 = vpop.f32.mrb[0].mxu0
      %v3965 = vadd.f32 0.0, %v3964
      %v3966 = vpop.f32.mrb[0].mxu0
      %3967 = vmatprep.mubr.f32.mxu0 0.0
      %3968 = vmatmul.mubr.f32.gmra.mrb[0].mxu0 %v3391
      %v3969 = vpop.f32.mrb[0].mxu0
      %v3970 = vadd.f32 0.0, %v3969
      %v3971 = vpop.f32.mrb[0].mxu0
      %3972 = vmatprep.mubr.f32.mxu0 0.0
      %3973 = vmatmul.mubr.f32.gmra.mrb[0].mxu0 %v3394
      %v3974 = vpop.f32.mrb[0].mxu0
      %v3975 = vadd.f32 0.0, %v3974
      %v3976 = vpop.f32.mrb[0].mxu0
      %3977 = vmatprep.mubr.f32.mxu0 0.0
      %3978 = vmatmul.mubr.f32.gmra.mrb[0].mxu0 %v3397
      %v3979 = vpop.f32.mrb[0].mxu0
      %v3980 = vadd.f32 0.0, %v3979
      %v3981 = vpop.f32.mrb[0].mxu0
      %3982 = vmatprep.mubr.f32.mxu0 0.0
      %3983 = vmatmul.mubr.f32.gmra.mrb[0].mxu0 %v3400
      %v3984 = vpop.f32.mrb[0].mxu0
      %v3985 = vadd.f32 0.0, %v3984
      %v3986 = vpop.f32.mrb[0].mxu0
      %3987 = vmatprep.mubr.f32.mxu0 0.0
      %3988 = vmatmul.mubr.f32.gmra.mrb[0].mxu0 %v3403
      %v3989 = vpop.f32.mrb[0].mxu0
      %v3990 = vadd.f32 0.0, %v3989
      %v3991 = vpop.f32.mrb[0].mxu0
      %3992 = vmatprep.mubr.f32.mxu0 0.0
      %3993 = vmatmul.mubr.f32.gmra.mrb[0].mxu0 %v3406
      %v3994 = vpop.f32.mrb[0].mxu0
      %v3995 = vadd.f32 0.0, %v3994
      %v3996 = vpop.f32.mrb[0].mxu0
      %3997 = vmatprep.mubr.f32.mxu0 0.0
      %3998 = vmatmul.mubr.f32.gmra.mrb[0].mxu0 %v3409
      %v3999 = vpop.f32.mrb[0].mxu0
      %v4000 = vadd.f32 0.0, %v3999
      %v4001 = vpop.f32.mrb[0].mxu0
      %4002 = vmatprep.mubr.f32.mxu0 0.0
      %4003 = vmatmul.mubr.f32.gmra.mrb[0].mxu0 %v3412
      %v4004 = vpop.f32.mrb[0].mxu0
      %v4005 = vadd.f32 0.0, %v4004
      %v4006 = vpop.f32.mrb[0].mxu0
      %4007 = vmatprep.mubr.f32.mxu0 0.0
      %4008 = vmatmul.mubr.f32.gmra.mrb[0].mxu0 %v3415
      %v4009 = vpop.f32.mrb[0].mxu0
      %v4010 = vadd.f32 0.0, %v4009
      %v4011 = vpop.f32.mrb[0].mxu0
      %4012 = vmatprep.mubr.f32.mxu0 0.0
      %4013 = vmatmul.mubr.f32.gmra.mrb[0].mxu0 %v3418
      %v4014 = vpop.f32.mrb[0].mxu0
      %v4015 = vadd.f32 0.0, %v4014
      %v4016 = vpop.f32.mrb[0].mxu0
      %4017 = vmatprep.mubr.f32.mxu0 0.0
      %4018 = vmatmul.mubr.f32.gmra.mrb[0].mxu0 %v3421
      %v4019 = vpop.f32.mrb[0].mxu0
      %v4020 = vadd.f32 0.0, %v4019
      %v4021 = vpop.f32.mrb[0].mxu0
      %4022 = vmatprep.mubr.f32.mxu0 0.0
      %4023 = vmatmul.mubr.f32.gmra.mrb[0].mxu0 %v3424
      %v4024 = vpop.f32.mrb[0].mxu0
      %v4025 = vadd.f32 0.0, %v4024
      %v4026 = vpop.f32.mrb[0].mxu0
      %4027 = vmatprep.mubr.f32.mxu0 0.0
      %4028 = vmatmul.mubr.f32.gmra.mrb[0].mxu0 %v3427
      %v4029 = vpop.f32.mrb[0].mxu0
      %v4030 = vadd.f32 0.0, %v4029
      %v4031 = vpop.f32.mrb[0].mxu0
      %4032 = vmatprep.mubr.f32.mxu0 0.0
      %4033 = vmatmul.mubr.f32.gmra.mrb[0].mxu0 %v3430
      %v4034 = vpop.f32.mrb[0].mxu0
      %v4035 = vadd.f32 0.0, %v4034
      %v4036 = vpop.f32.mrb[0].mxu0
      %4037 = vmatprep.mubr.f32.mxu0 0.0
      %4038 = vmatmul.mubr.f32.gmra.mrb[0].mxu0 %v3433
      %v4039 = vpop.f32.mrb[0].mxu0
      %v4040 = vadd.f32 0.0, %v4039
      %v4041 = vpop.f32.mrb[0].mxu0
      %4042 = vmatprep.mubr.f32.mxu0 0.0
      %4043 = vmatmul.mubr.f32.gmra.mrb[0].mxu0 %v3436
      %v4044 = vpop.f32.mrb[0].mxu0
      %v4045 = vadd.f32 0.0, %v4044
      %v4046 = vpop.f32.mrb[0].mxu0
      %4047 = vmatprep.mubr.f32.mxu0 0.0
      %4048 = vmatmul.mubr.f32.gmra.mrb[0].mxu0 %v3439
      %v4049 = vpop.f32.mrb[0].mxu0
      %v4050 = vadd.f32 0.0, %v4049
      %v4051 = vpop.f32.mrb[0].mxu0
      %4052 = vmatprep.mubr.f32.mxu0 0.0
      %4053 = vmatmul.mubr.f32.gmra.mrb[0].mxu0 %v3442
      %v4054 = vpop.f32.mrb[0].mxu0
      %v4055 = vadd.f32 0.0, %v4054
      %v4056 = vpop.f32.mrb[0].mxu0
      %4057 = vmatprep.mubr.f32.mxu0 0.0
      %4058 = vmatmul.mubr.f32.gmra.mrb[0].mxu0 %v3445
      %v4059 = vpop.f32.mrb[0].mxu0
      %v4060 = vadd.f32 0.0, %v4059
      %v4061 = vpop.f32.mrb[0].mxu0
      %4062 = vmatprep.mubr.f32.mxu0 0.0
      %4063 = vmatmul.mubr.f32.gmra.mrb[0].mxu0 %v3448
      %v4064 = vpop.f32.mrb[0].mxu0
      %v4065 = vadd.f32 0.0, %v4064
      %v4066 = vpop.f32.mrb[0].mxu0
      %4067 = vmatprep.mubr.f32.mxu0 0.0
      %4068 = vmatmul.mubr.f32.gmra.mrb[0].mxu0 %v3451
      %v4069 = vpop.f32.mrb[0].mxu0
      %v4070 = vadd.f32 0.0, %v4069
      %v4071 = vpop.f32.mrb[0].mxu0
      %4072 = vmatprep.mubr.f32.mxu0 0.0
      %4073 = vmatmul.mubr.f32.gmra.mrb[0].mxu0 %v3454
      %v4074 = vpop.f32.mrb[0].mxu0
      %v4075 = vadd.f32 0.0, %v4074
      %v4076 = vpop.f32.mrb[0].mxu0
      %4077 = vmatprep.mubr.f32.mxu0 0.0
      %4078 = vmatmul.mubr.f32.gmra.mrb[0].mxu0 %v3457
      %v4079 = vpop.f32.mrb[0].mxu0
      %v4080 = vadd.f32 0.0, %v4079
      %v4081 = vpop.f32.mrb[0].mxu0
      %4082 = vmatprep.mubr.f32.mxu0 0.0
      %4083 = vmatmul.mubr.f32.gmra.mrb[0].mxu0 %v3460
      %v4084 = vpop.f32.mrb[0].mxu0
      %v4085 = vadd.f32 0.0, %v4084
      %v4086 = vpop.f32.mrb[0].mxu0
      %4087 = vmatprep.mubr.f32.mxu0 0.0
      %4088 = vmatmul.mubr.f32.gmra.mrb[0].mxu0 %v3463
      %v4089 = vpop.f32.mrb[0].mxu0
      %v4090 = vadd.f32 0.0, %v4089
      %v4091 = vpop.f32.mrb[0].mxu0
      %4092 = vmatprep.mubr.f32.mxu0 0.0
      %4093 = vmatmul.mubr.f32.gmra.mrb[0].mxu0 %v3466
      %v4094 = vpop.f32.mrb[0].mxu0
      %v4095 = vadd.f32 0.0, %v4094
      %v4096 = vpop.f32.mrb[0].mxu0
      %4097 = vmatprep.mubr.f32.mxu0 0.0
      %4098 = vmatmul.mubr.f32.gmra.mrb[0].mxu0 %v3469
      %v4099 = vpop.f32.mrb[0].mxu0
      %v4100 = vadd.f32 0.0, %v4099
      %v4101 = vpop.f32.mrb[0].mxu0
      %4102 = vmatprep.mubr.f32.mxu0 0.0
      %4103 = vmatmul.mubr.f32.gmra.mrb[0].mxu0 %v3472
      %v4104 = vpop.f32.mrb[0].mxu0
      %v4105 = vadd.f32 0.0, %v4104
      %v4106 = vpop.f32.mrb[0].mxu0
      %4107 = vmatprep.mubr.f32.mxu0 0.0
      %4108 = vmatmul.mubr.f32.gmra.mrb[0].mxu0 %v3475
      %v4109 = vpop.f32.mrb[0].mxu0
      %v4110 = vadd.f32 0.0, %v4109
      %v4111 = vpop.f32.mrb[0].mxu0
      %4112 = vmatprep.mubr.f32.mxu0 0.0
      %4113 = vmatmul.mubr.f32.gmra.mrb[0].mxu0 %v3478
      %v4114 = vpop.f32.mrb[0].mxu0
      %v4115 = vadd.f32 0.0, %v4114
      %v4116 = vpop.f32.mrb[0].mxu0
      %4117 = vmatprep.mubr.f32.mxu0 0.0
      %4118 = vmatmul.mubr.f32.gmra.mrb[0].mxu0 %v3481
      %v4119 = vpop.f32.mrb[0].mxu0
      %v4120 = vadd.f32 0.0, %v4119
      %v4121 = vpop.f32.mrb[0].mxu0
      %4122 = vmatprep.mubr.f32.mxu0 0.0
      %4123 = vmatmul.mubr.f32.gmra.mrb[0].mxu0 %v3484
      %v4124 = vpop.f32.mrb[0].mxu0
      %v4125 = vadd.f32 0.0, %v4124
      %v4126 = vpop.f32.mrb[0].mxu0
      %4127 = vmatprep.mubr.f32.mxu0 0.0
      %4128 = vmatmul.mubr.f32.gmra.mrb[0].mxu0 %v3487
      %v4129 = vpop.f32.mrb[0].mxu0
      %v4130 = vadd.f32 0.0, %v4129
      %v4131 = vpop.f32.mrb[0].mxu0
      %4132 = vmatprep.mubr.f32.mxu0 0.0
      %4133 = vmatmul.mubr.f32.gmra.mrb[0].mxu0 %v3490
      %v4134 = vpop.f32.mrb[0].mxu0
      %v4135 = vadd.f32 0.0, %v4134
      %v4136 = vpop.f32.mrb[0].mxu0
      %4137 = vmatprep.mubr.f32.mxu0 0.0
      %4138 = vmatmul.mubr.f32.gmra.mrb[0].mxu0 %v3493
      %v4139 = vpop.f32.mrb[0].mxu0
      %v4140 = vadd.f32 0.0, %v4139
      %v4141 = vpop.f32.mrb[0].mxu0
      %4142 = vmatprep.mubr.f32.mxu0 0.0
      %4143 = vmatmul.mubr.f32.gmra.mrb[0].mxu0 %v3496
      %v4144 = vpop.f32.mrb[0].mxu0
      %v4145 = vadd.f32 0.0, %v4144
      %v4146 = vpop.f32.mrb[0].mxu0
      %4147 = vmatprep.mubr.f32.mxu0 0.0
      %4148 = vmatmul.mubr.f32.gmra.mrb[0].mxu0 %v3499
      %v4149 = vpop.f32.mrb[0].mxu0
      %v4150 = vadd.f32 0.0, %v4149
      %v4151 = vpop.f32.mrb[0].mxu0
      %4152 = vmatprep.mubr.f32.mxu0 0.0
      %4153 = vmatmul.mubr.f32.gmra.mrb[0].mxu0 %v3502
      %v4154 = vpop.f32.mrb[0].mxu0
      %v4155 = vadd.f32 0.0, %v4154
      %v4156 = vpop.f32.mrb[0].mxu0
      %4157 = vmatprep.mubr.f32.mxu0 0.0
      %4158 = vmatmul.mubr.f32.gmra.mrb[0].mxu0 %v3505
      %v4159 = vpop.f32.mrb[0].mxu0
      %v4160 = vadd.f32 0.0, %v4159
      %v4161 = vpop.f32.mrb[0].mxu0
      %4162 = vmatprep.mubr.f32.mxu0 0.0
      %4163 = vmatmul.mubr.f32.gmra.mrb[0].mxu0 %v3508
      %v4164 = vpop.f32.mrb[0].mxu0
      %v4165 = vadd.f32 0.0, %v4164
      %v4166 = vpop.f32.mrb[0].mxu0
      %4167 = vmatprep.mubr.f32.mxu0 0.0
      %4168 = vmatmul.mubr.f32.gmra.mrb[0].mxu0 %v3511
      %v4169 = vpop.f32.mrb[0].mxu0
      %v4170 = vadd.f32 0.0, %v4169
      %v4171 = vpop.f32.mrb[0].mxu0
      %4172 = vmatprep.mubr.f32.mxu0 0.0
      %4173 = vmatmul.mubr.f32.gmra.mrb[0].mxu0 %v3514
      %v4174 = vpop.f32.mrb[0].mxu0
      %v4175 = vadd.f32 0.0, %v4174
      %v4176 = vpop.f32.mrb[0].mxu0
      %4177 = vmatprep.mubr.f32.mxu0 0.0
      %4178 = vmatmul.mubr.f32.gmra.mrb[0].mxu0 %v3517
      %v4179 = vpop.f32.mrb[0].mxu0
      %v4180 = vadd.f32 0.0, %v4179
      %v4181 = vpop.f32.mrb[0].mxu0
      %4182 = vmatprep.mubr.f32.mxu0 0.0
      %4183 = vmatmul.mubr.f32.gmra.mrb[0].mxu0 %v3520
      %v4184 = vpop.f32.mrb[0].mxu0
      %v4185 = vadd.f32 0.0, %v4184
      %v4186 = vpop.f32.mrb[0].mxu0
      %4187 = vmatprep.mubr.f32.mxu0 0.0
      %4188 = vmatmul.mubr.f32.gmra.mrb[0].mxu0 %v3523
      %v4189 = vpop.f32.mrb[0].mxu0
      %v4190 = vadd.f32 0.0, %v4189
      %v4191 = vpop.f32.mrb[0].mxu0
      %4192 = vmatprep.mubr.f32.mxu0 0.0
      %4193 = vmatmul.mubr.f32.gmra.mrb[0].mxu0 %v3526
      %v4194 = vpop.f32.mrb[0].mxu0
      %v4195 = vadd.f32 0.0, %v4194
      %v4196 = vpop.f32.mrb[0].mxu0
      %4197 = vmatprep.mubr.f32.mxu0 0.0
      %4198 = vmatmul.mubr.f32.gmra.mrb[0].mxu0 %v3529
      %v4199 = vpop.f32.mrb[0].mxu0
      %v4200 = vadd.f32 0.0, %v4199
      %v4201 = vpop.f32.mrb[0].mxu0
      %4202 = vmatprep.mubr.f32.mxu0 0.0
      %4203 = vmatmul.mubr.f32.gmra.mrb[0].mxu0 %v3532
      %v4204 = vpop.f32.mrb[0].mxu0
      %v4205 = vadd.f32 0.0, %v4204
      %v4206 = vpop.f32.mrb[0].mxu0
      %4207 = vmatprep.mubr.f32.mxu0 0.0
      %4208 = vmatmul.mubr.f32.gmra.mrb[0].mxu0 %v3535
      %v4209 = vpop.f32.mrb[0].mxu0
      %v4210 = vadd.f32 0.0, %v4209
      %v4211 = vpop.f32.mrb[0].mxu0
      %4212 = vmatprep.mubr.f32.mxu0 0.0
      %4213 = vmatmul.mubr.f32.gmra.mrb[0].mxu0 %v3538
      %v4214 = vpop.f32.mrb[0].mxu0
      %v4215 = vadd.f32 0.0, %v4214
      %v4216 = vpop.f32.mrb[0].mxu0
      %4217 = vmatprep.mubr.f32.mxu0 0.0
      %4218 = vmatmul.mubr.f32.gmra.mrb[0].mxu0 %v3541
      %v4219 = vpop.f32.mrb[0].mxu0
      %v4220 = vadd.f32 0.0, %v4219
      %v4221 = vpop.f32.mrb[0].mxu0
      %4222 = vmatprep.mubr.f32.mxu0 0.0
      %4223 = vmatmul.mubr.f32.gmra.mrb[0].mxu0 %v3544
      %v4224 = vpop.f32.mrb[0].mxu0
      %v4225 = vadd.f32 0.0, %v4224
      %v4226 = vpop.f32.mrb[0].mxu0
      %4227 = vmatprep.mubr.f32.mxu0 0.0
      %4228 = vmatmul.mubr.f32.gmra.mrb[0].mxu0 %v3547
      %v4229 = vpop.f32.mrb[0].mxu0
      %v4230 = vadd.f32 0.0, %v4229
      %v4231 = vpop.f32.mrb[0].mxu0
      %4232 = vmatprep.mubr.f32.mxu0 0.0
      %4233 = vmatmul.mubr.f32.gmra.mrb[0].mxu0 %v3550
      %v4234 = vpop.f32.mrb[0].mxu0
      %v4235 = vadd.f32 0.0, %v4234
      %v4236 = vpop.f32.mrb[0].mxu0
      %4237 = vmatprep.mubr.f32.mxu0 0.0
      %4238 = vmatmul.mubr.f32.gmra.mrb[0].mxu0 %v3553
      %v4239 = vpop.f32.mrb[0].mxu0
      %v4240 = vadd.f32 0.0, %v4239
      %v4241 = vpop.f32.mrb[0].mxu0
      %4242 = vmatprep.mubr.f32.mxu0 0.0
      %4243 = vmatmul.mubr.f32.gmra.mrb[0].mxu0 %v3556
      %v4244 = vpop.f32.mrb[0].mxu0
      %v4245 = vadd.f32 0.0, %v4244
      %v4246 = vpop.f32.mrb[0].mxu0
      %4247 = vmatprep.mubr.f32.mxu0 0.0
      %4248 = vmatmul.mubr.f32.gmra.mrb[0].mxu0 %v3559
      %v4249 = vpop.f32.mrb[0].mxu0
      %v4250 = vadd.f32 0.0, %v4249
      %v4251 = vpop.f32.mrb[0].mxu0
      %4252 = vmatprep.mubr.f32.mxu0 0.0
      %4253 = vmatmul.mubr.f32.gmra.mrb[0].mxu0 %v3562
      %v4254 = vpop.f32.mrb[0].mxu0
      %v4255 = vadd.f32 0.0, %v4254
      %v4256 = vpop.f32.mrb[0].mxu0
      %4257 = vmatprep.mubr.f32.mxu0 0.0
      %4258 = vmatmul.mubr.f32.gmra.mrb[0].mxu0 %v3565
      %v4259 = vpop.f32.mrb[0].mxu0
      %v4260 = vadd.f32 0.0, %v4259
      %v4261 = vpop.f32.mrb[0].mxu0
      %4262 = vmatprep.mubr.f32.mxu0 0.0
      %4263 = vmatmul.mubr.f32.gmra.mrb[0].mxu0 %v3568
      %v4264 = vpop.f32.mrb[0].mxu0
      %v4265 = vadd.f32 0.0, %v4264
      %v4266 = vpop.f32.mrb[0].mxu0
      %4267 = vmatprep.mubr.f32.mxu0 0.0
      %4268 = vmatmul.mubr.f32.gmra.mrb[0].mxu0 %v3571
      %v4269 = vpop.f32.mrb[0].mxu0
      %v4270 = vadd.f32 0.0, %v4269
      %v4271 = vpop.f32.mrb[0].mxu0
      %4272 = vmatprep.mubr.f32.mxu0 0.0
      %4273 = vmatmul.mubr.f32.gmra.mrb[0].mxu0 %v3574
      %v4274 = vpop.f32.mrb[0].mxu0
      %v4275 = vadd.f32 0.0, %v4274
      %v4276 = vpop.f32.mrb[0].mxu0
      %4277 = vmatprep.mubr.f32.mxu0 0.0
      %4278 = vmatmul.mubr.f32.gmra.mrb[0].mxu0 %v3577
      %v4279 = vpop.f32.mrb[0].mxu0
      %v4280 = vadd.f32 0.0, %v4279
      %v4281 = vpop.f32.mrb[0].mxu0
      %4282 = vmatprep.mubr.f32.mxu0 0.0
      %4283 = vmatmul.mubr.f32.gmra.mrb[0].mxu0 %v3580
      %v4284 = vpop.f32.mrb[0].mxu0
      %v4285 = vadd.f32 0.0, %v4284
      %v4286 = vpop.f32.mrb[0].mxu0
      %4287 = vmatprep.mubr.f32.mxu0 0.0
      %4288 = vmatmul.mubr.f32.gmra.mrb[0].mxu0 %v3583
      %v4289 = vpop.f32.mrb[0].mxu0
      %v4290 = vadd.f32 0.0, %v4289
      %v4291 = vpop.f32.mrb[0].mxu0
      %4292 = vdwg.mxu0
      %v4293 = vadd.f32 %v2433, %v3655
      %v4294 = vadd.f32 %v2438, %v3660
      %v4295 = vadd.f32 %v2443, %v3665
      %v4296 = vadd.f32 %v2448, %v3670
      %v4297 = vadd.f32 %v2453, %v3675
      %v4298 = vadd.f32 %v2458, %v3680
      %v4299 = vadd.f32 %v2463, %v3685
      %v4300 = vadd.f32 %v2468, %v3690
      %v4301 = vadd.f32 %v2473, %v3695
      %v4302 = vadd.f32 %v2478, %v3700
      %v4303 = vadd.f32 %v2483, %v3705
      %v4304 = vadd.f32 %v2488, %v3710
      %v4305 = vadd.f32 %v2493, %v3715
      %v4306 = vadd.f32 %v2498, %v3720
      %v4307 = vadd.f32 %v2503, %v3725
      %v4308 = vadd.f32 %v2508, %v3730
      %v4309 = vadd.f32 %v2513, %v3735
      %v4310 = vadd.f32 %v2518, %v3740
      %v4311 = vadd.f32 %v2523, %v3745
      %v4312 = vadd.f32 %v2528, %v3750
      %v4313 = vadd.f32 %v2533, %v3755
      %v4314 = vadd.f32 %v2538, %v3760
      %v4315 = vadd.f32 %v2543, %v3765
      %v4316 = vadd.f32 %v2548, %v3770
      %v4317 = vadd.f32 %v2553, %v3775
      %v4318 = vadd.f32 %v2558, %v3780
      %v4319 = vadd.f32 %v2563, %v3785
      %v4320 = vadd.f32 %v2568, %v3790
      %v4321 = vadd.f32 %v2573, %v3795
      %v4322 = vadd.f32 %v2578, %v3800
      %v4323 = vadd.f32 %v2583, %v3805
      %v4324 = vadd.f32 %v2588, %v3810
      %v4325 = vadd.f32 %v2593, %v3815
      %v4326 = vadd.f32 %v2598, %v3820
      %v4327 = vadd.f32 %v2603, %v3825
      %v4328 = vadd.f32 %v2608, %v3830
      %v4329 = vadd.f32 %v2613, %v3835
      %v4330 = vadd.f32 %v2618, %v3840
      %v4331 = vadd.f32 %v2623, %v3845
      %v4332 = vadd.f32 %v2628, %v3850
      %v4333 = vadd.f32 %v2633, %v3855
      %v4334 = vadd.f32 %v2638, %v3860
      %v4335 = vadd.f32 %v2643, %v3865
      %v4336 = vadd.f32 %v2648, %v3870
      %v4337 = vadd.f32 %v2653, %v3875
      %v4338 = vadd.f32 %v2658, %v3880
      %v4339 = vadd.f32 %v2663, %v3885
      %v4340 = vadd.f32 %v2668, %v3890
      %v4341 = vadd.f32 %v2673, %v3895
      %v4342 = vadd.f32 %v2678, %v3900
      %v4343 = vadd.f32 %v2683, %v3905
      %v4344 = vadd.f32 %v2688, %v3910
      %v4345 = vadd.f32 %v2693, %v3915
      %v4346 = vadd.f32 %v2698, %v3920
      %v4347 = vadd.f32 %v2703, %v3925
      %v4348 = vadd.f32 %v2708, %v3930
      %v4349 = vadd.f32 %v2713, %v3935
      %v4350 = vadd.f32 %v2718, %v3940
      %v4351 = vadd.f32 %v2723, %v3945
      %v4352 = vadd.f32 %v2728, %v3950
      %v4353 = vadd.f32 %v2733, %v3955
      %v4354 = vadd.f32 %v2738, %v3960
      %v4355 = vadd.f32 %v2743, %v3965
      %v4356 = vadd.f32 %v2748, %v3970
      %v4357 = vadd.f32 %v2753, %v3975
      %v4358 = vadd.f32 %v2758, %v3980
      %v4359 = vadd.f32 %v2763, %v3985
      %v4360 = vadd.f32 %v2768, %v3990
      %v4361 = vadd.f32 %v2773, %v3995
      %v4362 = vadd.f32 %v2778, %v4000
      %v4363 = vadd.f32 %v2783, %v4005
      %v4364 = vadd.f32 %v2788, %v4010
      %v4365 = vadd.f32 %v2793, %v4015
      %v4366 = vadd.f32 %v2798, %v4020
      %v4367 = vadd.f32 %v2803, %v4025
      %v4368 = vadd.f32 %v2808, %v4030
      %v4369 = vadd.f32 %v2813, %v4035
      %v4370 = vadd.f32 %v2818, %v4040
      %v4371 = vadd.f32 %v2823, %v4045
      %v4372 = vadd.f32 %v2828, %v4050
      %v4373 = vadd.f32 %v2833, %v4055
      %v4374 = vadd.f32 %v2838, %v4060
      %v4375 = vadd.f32 %v2843, %v4065
      %v4376 = vadd.f32 %v2848, %v4070
      %v4377 = vadd.f32 %v2853, %v4075
      %v4378 = vadd.f32 %v2858, %v4080
      %v4379 = vadd.f32 %v2863, %v4085
      %v4380 = vadd.f32 %v2868, %v4090
      %v4381 = vadd.f32 %v2873, %v4095
      %v4382 = vadd.f32 %v2878, %v4100
      %v4383 = vadd.f32 %v2883, %v4105
      %v4384 = vadd.f32 %v2888, %v4110
      %v4385 = vadd.f32 %v2893, %v4115
      %v4386 = vadd.f32 %v2898, %v4120
      %v4387 = vadd.f32 %v2903, %v4125
      %v4388 = vadd.f32 %v2908, %v4130
      %v4389 = vadd.f32 %v2913, %v4135
      %v4390 = vadd.f32 %v2918, %v4140
      %v4391 = vadd.f32 %v2923, %v4145
      %v4392 = vadd.f32 %v2928, %v4150
      %v4393 = vadd.f32 %v2933, %v4155
      %v4394 = vadd.f32 %v2938, %v4160
      %v4395 = vadd.f32 %v2943, %v4165
      %v4396 = vadd.f32 %v2948, %v4170
      %v4397 = vadd.f32 %v2953, %v4175
      %v4398 = vadd.f32 %v2958, %v4180
      %v4399 = vadd.f32 %v2963, %v4185
      %v4400 = vadd.f32 %v2968, %v4190
      %v4401 = vadd.f32 %v2973, %v4195
      %v4402 = vadd.f32 %v2978, %v4200
      %v4403 = vadd.f32 %v2983, %v4205
      %v4404 = vadd.f32 %v2988, %v4210
      %v4405 = vadd.f32 %v2993, %v4215
      %v4406 = vadd.f32 %v2998, %v4220
      %v4407 = vadd.f32 %v3003, %v4225
      %v4408 = vadd.f32 %v3008, %v4230
      %v4409 = vadd.f32 %v3013, %v4235
      %v4410 = vadd.f32 %v3018, %v4240
      %v4411 = vadd.f32 %v3023, %v4245
      %v4412 = vadd.f32 %v3028, %v4250
      %v4413 = vadd.f32 %v3033, %v4255
      %v4414 = vadd.f32 %v3038, %v4260
      %v4415 = vadd.f32 %v3043, %v4265
      %v4416 = vadd.f32 %v3048, %v4270
      %v4417 = vadd.f32 %v3053, %v4275
      %v4418 = vadd.f32 %v3058, %v4280
      %v4419 = vadd.f32 %v3063, %v4285
      %v4420 = vadd.f32 %v3068, %v4290
      %v4421 = vld [vmem:[%s498] sm:$0xff]
      %v4422 = vld [vmem:[%s498 + $0x8] sm:$0xff]
      %v4423 = vld [vmem:[%s498 + $0x10] sm:$0xff]
      %v4424 = vld [vmem:[%s498 + $0x18] sm:$0xff]
      %v4425 = vld [vmem:[%s498 + $0x28] sm:$0xff]
      %v4426 = vld [vmem:[%s498 + $0x30] sm:$0xff]
      %v4427 = vld [vmem:[%s498 + $0x38] sm:$0xff]
      %v4428 = vld [vmem:[%s498 + $0x40] sm:$0xff]
      %v4429 = vld [vmem:[%s498 + $0x50] sm:$0xff]
      %v4430 = vld [vmem:[%s498 + $0x58] sm:$0xff]
      %v4431 = vld [vmem:[%s498 + $0x60] sm:$0xff]
      %v4432 = vld [vmem:[%s498 + $0x68] sm:$0xff]
      %v4433 = vld [vmem:[%s498 + $0x78] sm:$0xff]
      %v4434 = vld [vmem:[%s498 + $0x80] sm:$0xff]
      %v4435 = vld [vmem:[%s498 + $0x88] sm:$0xff]
      %v4436 = vld [vmem:[%s498 + $0x90] sm:$0xff]
      %v4437 = vld [vmem:[%s498 + $0xa0] sm:$0xff]
      %v4438 = vld [vmem:[%s498 + $0xa8] sm:$0xff]
      %v4439 = vld [vmem:[%s498 + $0xb0] sm:$0xff]
      %v4440 = vld [vmem:[%s498 + $0xb8] sm:$0xff]
      %v4441 = vld [vmem:[%s498 + $0xc8] sm:$0xff]
      %v4442 = vld [vmem:[%s498 + $0xd0] sm:$0xff]
      %v4443 = vld [vmem:[%s498 + $0xd8] sm:$0xff]
      %v4444 = vld [vmem:[%s498 + $0xe0] sm:$0xff]
      %v4445 = vld [vmem:[%s498 + $0xf0] sm:$0xff]
      %v4446 = vld [vmem:[%s498 + $0xf8] sm:$0xff]
      %v4447 = vld [vmem:[%s498 + $0x100] sm:$0xff]
      %v4448 = vld [vmem:[%s498 + $0x108] sm:$0xff]
      %v4449 = vld [vmem:[%s498 + $0x118] sm:$0xff]
      %v4450 = vld [vmem:[%s498 + $0x120] sm:$0xff]
      %v4451 = vld [vmem:[%s498 + $0x128] sm:$0xff]
      %v4452 = vld [vmem:[%s498 + $0x130] sm:$0xff]
      %v4453 = vld [vmem:[%s498 + $0x140] sm:$0xff]
      %v4454 = vld [vmem:[%s498 + $0x148] sm:$0xff]
      %v4455 = vld [vmem:[%s498 + $0x150] sm:$0xff]
      %v4456 = vld [vmem:[%s498 + $0x158] sm:$0xff]
      %v4457 = vld [vmem:[%s498 + $0x168] sm:$0xff]
      %v4458 = vld [vmem:[%s498 + $0x170] sm:$0xff]
      %v4459 = vld [vmem:[%s498 + $0x178] sm:$0xff]
      %v4460 = vld [vmem:[%s498 + $0x180] sm:$0xff]
      %v4461 = vld [vmem:[%s498 + $0x190] sm:$0xff]
      %v4462 = vld [vmem:[%s498 + $0x198] sm:$0xff]
      %v4463 = vld [vmem:[%s498 + $0x1a0] sm:$0xff]
      %v4464 = vld [vmem:[%s498 + $0x1a8] sm:$0xff]
      %v4465 = vld [vmem:[%s498 + $0x1b8] sm:$0xff]
      %v4466 = vld [vmem:[%s498 + $0x1c0] sm:$0xff]
      %v4467 = vld [vmem:[%s498 + $0x1c8] sm:$0xff]
      %v4468 = vld [vmem:[%s498 + $0x1d0] sm:$0xff]
      %v4469 = vld [vmem:[%s498 + $0x1e0] sm:$0xff]
      %v4470 = vld [vmem:[%s498 + $0x1e8] sm:$0xff]
      %v4471 = vld [vmem:[%s498 + $0x1f0] sm:$0xff]
      %v4472 = vld [vmem:[%s498 + $0x1f8] sm:$0xff]
      %v4473 = vld [vmem:[%s498 + $0x208] sm:$0xff]
      %v4474 = vld [vmem:[%s498 + $0x210] sm:$0xff]
      %v4475 = vld [vmem:[%s498 + $0x218] sm:$0xff]
      %v4476 = vld [vmem:[%s498 + $0x220] sm:$0xff]
      %v4477 = vld [vmem:[%s498 + $0x230] sm:$0xff]
      %v4478 = vld [vmem:[%s498 + $0x238] sm:$0xff]
      %v4479 = vld [vmem:[%s498 + $0x240] sm:$0xff]
      %v4480 = vld [vmem:[%s498 + $0x248] sm:$0xff]
      %v4481 = vld [vmem:[%s498 + $0x258] sm:$0xff]
      %v4482 = vld [vmem:[%s498 + $0x260] sm:$0xff]
      %v4483 = vld [vmem:[%s498 + $0x268] sm:$0xff]
      %v4484 = vld [vmem:[%s498 + $0x270] sm:$0xff]
      %v4485 = vld [vmem:[%s498 + $0x280] sm:$0xff]
      %v4486 = vld [vmem:[%s498 + $0x288] sm:$0xff]
      %v4487 = vld [vmem:[%s498 + $0x290] sm:$0xff]
      %v4488 = vld [vmem:[%s498 + $0x298] sm:$0xff]
      %v4489 = vld [vmem:[%s498 + $0x2a8] sm:$0xff]
      %v4490 = vld [vmem:[%s498 + $0x2b0] sm:$0xff]
      %v4491 = vld [vmem:[%s498 + $0x2b8] sm:$0xff]
      %v4492 = vld [vmem:[%s498 + $0x2c0] sm:$0xff]
      %v4493 = vld [vmem:[%s498 + $0x2d0] sm:$0xff]
      %v4494 = vld [vmem:[%s498 + $0x2d8] sm:$0xff]
      %v4495 = vld [vmem:[%s498 + $0x2e0] sm:$0xff]
      %v4496 = vld [vmem:[%s498 + $0x2e8] sm:$0xff]
      %v4497 = vld [vmem:[%s498 + $0x2f8] sm:$0xff]
      %v4498 = vld [vmem:[%s498 + $0x300] sm:$0xff]
      %v4499 = vld [vmem:[%s498 + $0x308] sm:$0xff]
      %v4500 = vld [vmem:[%s498 + $0x310] sm:$0xff]
      %v4501 = vld [vmem:[%s498 + $0x320] sm:$0xff]
      %v4502 = vld [vmem:[%s498 + $0x328] sm:$0xff]
      %v4503 = vld [vmem:[%s498 + $0x330] sm:$0xff]
      %v4504 = vld [vmem:[%s498 + $0x338] sm:$0xff]
      %v4505 = vld [vmem:[%s498 + $0x348] sm:$0xff]
      %v4506 = vld [vmem:[%s498 + $0x350] sm:$0xff]
      %v4507 = vld [vmem:[%s498 + $0x358] sm:$0xff]
      %v4508 = vld [vmem:[%s498 + $0x360] sm:$0xff]
      %v4509 = vld [vmem:[%s498 + $0x370] sm:$0xff]
      %v4510 = vld [vmem:[%s498 + $0x378] sm:$0xff]
      %v4511 = vld [vmem:[%s498 + $0x380] sm:$0xff]
      %v4512 = vld [vmem:[%s498 + $0x388] sm:$0xff]
      %v4513 = vld [vmem:[%s498 + $0x398] sm:$0xff]
      %v4514 = vld [vmem:[%s498 + $0x3a0] sm:$0xff]
      %v4515 = vld [vmem:[%s498 + $0x3a8] sm:$0xff]
      %v4516 = vld [vmem:[%s498 + $0x3b0] sm:$0xff]
      %v4517 = vld [vmem:[%s498 + $0x3c0] sm:$0xff]
      %v4518 = vld [vmem:[%s498 + $0x3c8] sm:$0xff]
      %v4519 = vld [vmem:[%s498 + $0x3d0] sm:$0xff]
      %v4520 = vld [vmem:[%s498 + $0x3d8] sm:$0xff]
      %v4521 = vld [vmem:[%s498 + $0x3e8] sm:$0xff]
      %v4522 = vld [vmem:[%s498 + $0x3f0] sm:$0xff]
      %v4523 = vld [vmem:[%s498 + $0x3f8] sm:$0xff]
      %v4524 = vld [vmem:[%s498 + $0x400] sm:$0xff]
      %v4525 = vld [vmem:[%s498 + $0x410] sm:$0xff]
      %v4526 = vld [vmem:[%s498 + $0x418] sm:$0xff]
      %v4527 = vld [vmem:[%s498 + $0x420] sm:$0xff]
      %v4528 = vld [vmem:[%s498 + $0x428] sm:$0xff]
      %v4529 = vld [vmem:[%s498 + $0x438] sm:$0xff]
      %v4530 = vld [vmem:[%s498 + $0x440] sm:$0xff]
      %v4531 = vld [vmem:[%s498 + $0x448] sm:$0xff]
      %v4532 = vld [vmem:[%s498 + $0x450] sm:$0xff]
      %v4533 = vld [vmem:[%s498 + $0x460] sm:$0xff]
      %v4534 = vld [vmem:[%s498 + $0x468] sm:$0xff]
      %v4535 = vld [vmem:[%s498 + $0x470] sm:$0xff]
      %v4536 = vld [vmem:[%s498 + $0x478] sm:$0xff]
      %v4537 = vld [vmem:[%s498 + $0x488] sm:$0xff]
      %v4538 = vld [vmem:[%s498 + $0x490] sm:$0xff]
      %v4539 = vld [vmem:[%s498 + $0x498] sm:$0xff]
      %v4540 = vld [vmem:[%s498 + $0x4a0] sm:$0xff]
      %v4541 = vld [vmem:[%s498 + $0x4b0] sm:$0xff]
      %v4542 = vld [vmem:[%s498 + $0x4b8] sm:$0xff]
      %v4543 = vld [vmem:[%s498 + $0x4c0] sm:$0xff]
      %v4544 = vld [vmem:[%s498 + $0x4c8] sm:$0xff]
      %v4545 = vld [vmem:[%s498 + $0x4d8] sm:$0xff]
      %v4546 = vld [vmem:[%s498 + $0x4e0] sm:$0xff]
      %v4547 = vld [vmem:[%s498 + $0x4e8] sm:$0xff]
      %v4548 = vld [vmem:[%s498 + $0x4f0] sm:$0xff]
      %s4549 = scalar_lea.vmem %s1, 12
      %v4550 = vld [vmem:[%s4549] sm:$0x7]
      %v4552 = vsel %vm326, %v4421, 0
      %v4555 = vsel %vm326, %v4422, 0
      %v4558 = vsel %vm326, %v4423, 0
      %v4561 = vsel %vm326, %v4424, 0
      %v4564 = vsel %vm326, %v4425, 0
      %v4567 = vsel %vm326, %v4426, 0
      %v4570 = vsel %vm326, %v4427, 0
      %v4573 = vsel %vm326, %v4428, 0
      %v4576 = vsel %vm326, %v4429, 0
      %v4579 = vsel %vm326, %v4430, 0
      %v4582 = vsel %vm326, %v4431, 0
      %v4585 = vsel %vm326, %v4432, 0
      %v4588 = vsel %vm326, %v4433, 0
      %v4591 = vsel %vm326, %v4434, 0
      %v4594 = vsel %vm326, %v4435, 0
      %v4597 = vsel %vm326, %v4436, 0
      %v4600 = vsel %vm326, %v4437, 0
      %v4603 = vsel %vm326, %v4438, 0
      %v4606 = vsel %vm326, %v4439, 0
      %v4609 = vsel %vm326, %v4440, 0
      %v4612 = vsel %vm326, %v4441, 0
      %v4615 = vsel %vm326, %v4442, 0
      %v4618 = vsel %vm326, %v4443, 0
      %v4621 = vsel %vm326, %v4444, 0
      %v4624 = vsel %vm326, %v4445, 0
      %v4627 = vsel %vm326, %v4446, 0
      %v4630 = vsel %vm326, %v4447, 0
      %v4633 = vsel %vm326, %v4448, 0
      %v4636 = vsel %vm326, %v4449, 0
      %v4639 = vsel %vm326, %v4450, 0
      %v4642 = vsel %vm326, %v4451, 0
      %v4645 = vsel %vm326, %v4452, 0
      %v4648 = vsel %vm326, %v4453, 0
      %v4651 = vsel %vm326, %v4454, 0
      %v4654 = vsel %vm326, %v4455, 0
      %v4657 = vsel %vm326, %v4456, 0
      %v4660 = vsel %vm326, %v4457, 0
      %v4663 = vsel %vm326, %v4458, 0
      %v4666 = vsel %vm326, %v4459, 0
      %v4669 = vsel %vm326, %v4460, 0
      %v4672 = vsel %vm326, %v4461, 0
      %v4675 = vsel %vm326, %v4462, 0
      %v4678 = vsel %vm326, %v4463, 0
      %v4681 = vsel %vm326, %v4464, 0
      %v4684 = vsel %vm326, %v4465, 0
      %v4687 = vsel %vm326, %v4466, 0
      %v4690 = vsel %vm326, %v4467, 0
      %v4693 = vsel %vm326, %v4468, 0
      %v4696 = vsel %vm326, %v4469, 0
      %v4699 = vsel %vm326, %v4470, 0
      %v4702 = vsel %vm326, %v4471, 0
      %v4705 = vsel %vm326, %v4472, 0
      %v4708 = vsel %vm326, %v4473, 0
      %v4711 = vsel %vm326, %v4474, 0
      %v4714 = vsel %vm326, %v4475, 0
      %v4717 = vsel %vm326, %v4476, 0
      %v4720 = vsel %vm326, %v4477, 0
      %v4723 = vsel %vm326, %v4478, 0
      %v4726 = vsel %vm326, %v4479, 0
      %v4729 = vsel %vm326, %v4480, 0
      %v4732 = vsel %vm326, %v4481, 0
      %v4735 = vsel %vm326, %v4482, 0
      %v4738 = vsel %vm326, %v4483, 0
      %v4741 = vsel %vm326, %v4484, 0
      %v4744 = vsel %vm326, %v4485, 0
      %v4747 = vsel %vm326, %v4486, 0
      %v4750 = vsel %vm326, %v4487, 0
      %v4753 = vsel %vm326, %v4488, 0
      %v4756 = vsel %vm326, %v4489, 0
      %v4759 = vsel %vm326, %v4490, 0
      %v4762 = vsel %vm326, %v4491, 0
      %v4765 = vsel %vm326, %v4492, 0
      %v4768 = vsel %vm326, %v4493, 0
      %v4771 = vsel %vm326, %v4494, 0
      %v4774 = vsel %vm326, %v4495, 0
      %v4777 = vsel %vm326, %v4496, 0
      %v4780 = vsel %vm326, %v4497, 0
      %v4783 = vsel %vm326, %v4498, 0
      %v4786 = vsel %vm326, %v4499, 0
      %v4789 = vsel %vm326, %v4500, 0
      %v4792 = vsel %vm326, %v4501, 0
      %v4795 = vsel %vm326, %v4502, 0
      %v4798 = vsel %vm326, %v4503, 0
      %v4801 = vsel %vm326, %v4504, 0
      %v4804 = vsel %vm326, %v4505, 0
      %v4807 = vsel %vm326, %v4506, 0
      %v4810 = vsel %vm326, %v4507, 0
      %v4813 = vsel %vm326, %v4508, 0
      %v4816 = vsel %vm326, %v4509, 0
      %v4819 = vsel %vm326, %v4510, 0
      %v4822 = vsel %vm326, %v4511, 0
      %v4825 = vsel %vm326, %v4512, 0
      %v4828 = vsel %vm326, %v4513, 0
      %v4831 = vsel %vm326, %v4514, 0
      %v4834 = vsel %vm326, %v4515, 0
      %v4837 = vsel %vm326, %v4516, 0
      %v4840 = vsel %vm326, %v4517, 0
      %v4843 = vsel %vm326, %v4518, 0
      %v4846 = vsel %vm326, %v4519, 0
      %v4849 = vsel %vm326, %v4520, 0
      %v4852 = vsel %vm326, %v4521, 0
      %v4855 = vsel %vm326, %v4522, 0
      %v4858 = vsel %vm326, %v4523, 0
      %v4861 = vsel %vm326, %v4524, 0
      %v4864 = vsel %vm326, %v4525, 0
      %v4867 = vsel %vm326, %v4526, 0
      %v4870 = vsel %vm326, %v4527, 0
      %v4873 = vsel %vm326, %v4528, 0
      %v4876 = vsel %vm326, %v4529, 0
      %v4879 = vsel %vm326, %v4530, 0
      %v4882 = vsel %vm326, %v4531, 0
      %v4885 = vsel %vm326, %v4532, 0
      %v4888 = vsel %vm326, %v4533, 0
      %v4891 = vsel %vm326, %v4534, 0
      %v4894 = vsel %vm326, %v4535, 0
      %v4897 = vsel %vm326, %v4536, 0
      %v4900 = vsel %vm326, %v4537, 0
      %v4903 = vsel %vm326, %v4538, 0
      %v4906 = vsel %vm326, %v4539, 0
      %v4909 = vsel %vm326, %v4540, 0
      %v4912 = vsel %vm326, %v4541, 0
      %v4915 = vsel %vm326, %v4542, 0
      %v4918 = vsel %vm326, %v4543, 0
      %v4921 = vsel %vm326, %v4544, 0
      %v4924 = vsel %vm326, %v4545, 0
      %v4927 = vsel %vm326, %v4546, 0
      %v4930 = vsel %vm326, %v4547, 0
      %v4933 = vsel %vm326, %v4548, 0
      %v4936 = vsel %vm1270, %v4550, 0
      %4938 = vmatprep.subr.mxu0 0.0
      %4939 = vmatpush1.msra.mxu0 %v4936
      %4940 = vmatprep.subr.mxu0 0.0
      %4941 = vmatpush1.msra.mxu0 0.0
      %4942 = vmatprep.subr.mxu0 0.0
      %4943 = vmatpush1.msra.mxu0 0.0
      %4944 = vmatprep.subr.mxu0 0.0
      %4945 = vmatpush1.msra.mxu0 0.0
      %4946 = vmatprep.subr.mxu0 0.0
      %4947 = vmatpush1.msra.mxu0 0.0
      %4948 = vmatprep.subr.mxu0 0.0
      %4949 = vmatpush1.msra.mxu0 0.0
      %4950 = vmatprep.subr.mxu0 0.0
      %4951 = vmatpush1.msra.mxu0 0.0
      %4952 = vmatprep.subr.mxu0 0.0
      %4953 = vmatpush1.msra.mxu0 0.0
      %4954 = vmatprep.subr.mxu0 0.0
      %4955 = vmatpush1.msra.mxu0 0.0
      %4956 = vmatprep.subr.mxu0 0.0
      %4957 = vmatpush1.msra.mxu0 0.0
      %4958 = vmatprep.subr.mxu0 0.0
      %4959 = vmatpush1.msra.mxu0 0.0
      %4960 = vmatprep.subr.mxu0 0.0
      %4961 = vmatpush1.msra.mxu0 0.0
      %4962 = vmatprep.subr.mxu0 0.0
      %4963 = vmatpush1.msra.mxu0 0.0
      %4964 = vmatprep.subr.mxu0 0.0
      %4965 = vmatpush1.msra.mxu0 0.0
      %4966 = vmatprep.subr.mxu0 0.0
      %4967 = vmatpush1.msra.mxu0 0.0
      %4968 = vmatprep.subr.mxu0 0.0
      %4969 = vmatpush1.msra.mxu0 0.0
      %4970 = vmatprep.subr.mxu0 0.0
      %4971 = vmatpush1.msra.mxu0 0.0
      %4972 = vmatprep.subr.mxu0 0.0
      %4973 = vmatpush1.msra.mxu0 0.0
      %4974 = vmatprep.subr.mxu0 0.0
      %4975 = vmatpush1.msra.mxu0 0.0
      %4976 = vmatprep.subr.mxu0 0.0
      %4977 = vmatpush1.msra.mxu0 0.0
      %4978 = vmatprep.subr.mxu0 0.0
      %4979 = vmatpush1.msra.mxu0 0.0
      %4980 = vmatprep.subr.mxu0 0.0
      %4981 = vmatpush1.msra.mxu0 0.0
      %4982 = vmatprep.subr.mxu0 0.0
      %4983 = vmatpush1.msra.mxu0 0.0
      %4984 = vmatprep.subr.mxu0 0.0
      %4985 = vmatpush1.msra.mxu0 0.0
      %4986 = vmatprep.subr.mxu0 0.0
      %4987 = vmatpush1.msra.mxu0 0.0
      %4988 = vmatprep.subr.mxu0 0.0
      %4989 = vmatpush1.msra.mxu0 0.0
      %4990 = vmatprep.subr.mxu0 0.0
      %4991 = vmatpush1.msra.mxu0 0.0
      %4992 = vmatprep.subr.mxu0 0.0
      %4993 = vmatpush1.msra.mxu0 0.0
      %4994 = vmatprep.subr.mxu0 0.0
      %4995 = vmatpush1.msra.mxu0 0.0
      %4996 = vmatprep.subr.mxu0 0.0
      %4997 = vmatpush1.msra.mxu0 0.0
      %4998 = vmatprep.subr.mxu0 0.0
      %4999 = vmatpush1.msra.mxu0 0.0
      %5000 = vmatprep.subr.mxu0 0.0
      %5001 = vmatpush1.msra.mxu0 0.0
      %5002 = vmatprep.mubr.f32.mxu0 0.0
      %5003 = vmatmul.mubr.f32.gmra.mrb[0].mxu0 %v4552
      %v5004 = vpop.f32.mrb[0].mxu0
      %v5005 = vadd.f32 0.0, %v5004
      %v5006 = vpop.f32.mrb[0].mxu0
      %5007 = vmatprep.mubr.f32.mxu0 0.0
      %5008 = vmatmul.mubr.f32.gmra.mrb[0].mxu0 %v4555
      %v5009 = vpop.f32.mrb[0].mxu0
      %v5010 = vadd.f32 0.0, %v5009
      %v5011 = vpop.f32.mrb[0].mxu0
      %5012 = vmatprep.mubr.f32.mxu0 0.0
      %5013 = vmatmul.mubr.f32.gmra.mrb[0].mxu0 %v4558
      %v5014 = vpop.f32.mrb[0].mxu0
      %v5015 = vadd.f32 0.0, %v5014
      %v5016 = vpop.f32.mrb[0].mxu0
      %5017 = vmatprep.mubr.f32.mxu0 0.0
      %5018 = vmatmul.mubr.f32.gmra.mrb[0].mxu0 %v4561
      %v5019 = vpop.f32.mrb[0].mxu0
      %v5020 = vadd.f32 0.0, %v5019
      %v5021 = vpop.f32.mrb[0].mxu0
      %5022 = vmatprep.mubr.f32.mxu0 0.0
      %5023 = vmatmul.mubr.f32.gmra.mrb[0].mxu0 %v4564
      %v5024 = vpop.f32.mrb[0].mxu0
      %v5025 = vadd.f32 0.0, %v5024
      %v5026 = vpop.f32.mrb[0].mxu0
      %5027 = vmatprep.mubr.f32.mxu0 0.0
      %5028 = vmatmul.mubr.f32.gmra.mrb[0].mxu0 %v4567
      %v5029 = vpop.f32.mrb[0].mxu0
      %v5030 = vadd.f32 0.0, %v5029
      %v5031 = vpop.f32.mrb[0].mxu0
      %5032 = vmatprep.mubr.f32.mxu0 0.0
      %5033 = vmatmul.mubr.f32.gmra.mrb[0].mxu0 %v4570
      %v5034 = vpop.f32.mrb[0].mxu0
      %v5035 = vadd.f32 0.0, %v5034
      %v5036 = vpop.f32.mrb[0].mxu0
      %5037 = vmatprep.mubr.f32.mxu0 0.0
      %5038 = vmatmul.mubr.f32.gmra.mrb[0].mxu0 %v4573
      %v5039 = vpop.f32.mrb[0].mxu0
      %v5040 = vadd.f32 0.0, %v5039
      %v5041 = vpop.f32.mrb[0].mxu0
      %5042 = vmatprep.mubr.f32.mxu0 0.0
      %5043 = vmatmul.mubr.f32.gmra.mrb[0].mxu0 %v4576
      %v5044 = vpop.f32.mrb[0].mxu0
      %v5045 = vadd.f32 0.0, %v5044
      %v5046 = vpop.f32.mrb[0].mxu0
      %5047 = vmatprep.mubr.f32.mxu0 0.0
      %5048 = vmatmul.mubr.f32.gmra.mrb[0].mxu0 %v4579
      %v5049 = vpop.f32.mrb[0].mxu0
      %v5050 = vadd.f32 0.0, %v5049
      %v5051 = vpop.f32.mrb[0].mxu0
      %5052 = vmatprep.mubr.f32.mxu0 0.0
      %5053 = vmatmul.mubr.f32.gmra.mrb[0].mxu0 %v4582
      %v5054 = vpop.f32.mrb[0].mxu0
      %v5055 = vadd.f32 0.0, %v5054
      %v5056 = vpop.f32.mrb[0].mxu0
      %5057 = vmatprep.mubr.f32.mxu0 0.0
      %5058 = vmatmul.mubr.f32.gmra.mrb[0].mxu0 %v4585
      %v5059 = vpop.f32.mrb[0].mxu0
      %v5060 = vadd.f32 0.0, %v5059
      %v5061 = vpop.f32.mrb[0].mxu0
      %5062 = vmatprep.mubr.f32.mxu0 0.0
      %5063 = vmatmul.mubr.f32.gmra.mrb[0].mxu0 %v4588
      %v5064 = vpop.f32.mrb[0].mxu0
      %v5065 = vadd.f32 0.0, %v5064
      %v5066 = vpop.f32.mrb[0].mxu0
      %5067 = vmatprep.mubr.f32.mxu0 0.0
      %5068 = vmatmul.mubr.f32.gmra.mrb[0].mxu0 %v4591
      %v5069 = vpop.f32.mrb[0].mxu0
      %v5070 = vadd.f32 0.0, %v5069
      %v5071 = vpop.f32.mrb[0].mxu0
      %5072 = vmatprep.mubr.f32.mxu0 0.0
      %5073 = vmatmul.mubr.f32.gmra.mrb[0].mxu0 %v4594
      %v5074 = vpop.f32.mrb[0].mxu0
      %v5075 = vadd.f32 0.0, %v5074
      %v5076 = vpop.f32.mrb[0].mxu0
      %5077 = vmatprep.mubr.f32.mxu0 0.0
      %5078 = vmatmul.mubr.f32.gmra.mrb[0].mxu0 %v4597
      %v5079 = vpop.f32.mrb[0].mxu0
      %v5080 = vadd.f32 0.0, %v5079
      %v5081 = vpop.f32.mrb[0].mxu0
      %5082 = vmatprep.mubr.f32.mxu0 0.0
      %5083 = vmatmul.mubr.f32.gmra.mrb[0].mxu0 %v4600
      %v5084 = vpop.f32.mrb[0].mxu0
      %v5085 = vadd.f32 0.0, %v5084
      %v5086 = vpop.f32.mrb[0].mxu0
      %5087 = vmatprep.mubr.f32.mxu0 0.0
      %5088 = vmatmul.mubr.f32.gmra.mrb[0].mxu0 %v4603
      %v5089 = vpop.f32.mrb[0].mxu0
      %v5090 = vadd.f32 0.0, %v5089
      %v5091 = vpop.f32.mrb[0].mxu0
      %5092 = vmatprep.mubr.f32.mxu0 0.0
      %5093 = vmatmul.mubr.f32.gmra.mrb[0].mxu0 %v4606
      %v5094 = vpop.f32.mrb[0].mxu0
      %v5095 = vadd.f32 0.0, %v5094
      %v5096 = vpop.f32.mrb[0].mxu0
      %5097 = vmatprep.mubr.f32.mxu0 0.0
      %5098 = vmatmul.mubr.f32.gmra.mrb[0].mxu0 %v4609
      %v5099 = vpop.f32.mrb[0].mxu0
      %v5100 = vadd.f32 0.0, %v5099
      %v5101 = vpop.f32.mrb[0].mxu0
      %5102 = vmatprep.mubr.f32.mxu0 0.0
      %5103 = vmatmul.mubr.f32.gmra.mrb[0].mxu0 %v4612
      %v5104 = vpop.f32.mrb[0].mxu0
      %v5105 = vadd.f32 0.0, %v5104
      %v5106 = vpop.f32.mrb[0].mxu0
      %5107 = vmatprep.mubr.f32.mxu0 0.0
      %5108 = vmatmul.mubr.f32.gmra.mrb[0].mxu0 %v4615
      %v5109 = vpop.f32.mrb[0].mxu0
      %v5110 = vadd.f32 0.0, %v5109
      %v5111 = vpop.f32.mrb[0].mxu0
      %5112 = vmatprep.mubr.f32.mxu0 0.0
      %5113 = vmatmul.mubr.f32.gmra.mrb[0].mxu0 %v4618
      %v5114 = vpop.f32.mrb[0].mxu0
      %v5115 = vadd.f32 0.0, %v5114
      %v5116 = vpop.f32.mrb[0].mxu0
      %5117 = vmatprep.mubr.f32.mxu0 0.0
      %5118 = vmatmul.mubr.f32.gmra.mrb[0].mxu0 %v4621
      %v5119 = vpop.f32.mrb[0].mxu0
      %v5120 = vadd.f32 0.0, %v5119
      %v5121 = vpop.f32.mrb[0].mxu0
      %5122 = vmatprep.mubr.f32.mxu0 0.0
      %5123 = vmatmul.mubr.f32.gmra.mrb[0].mxu0 %v4624
      %v5124 = vpop.f32.mrb[0].mxu0
      %v5125 = vadd.f32 0.0, %v5124
      %v5126 = vpop.f32.mrb[0].mxu0
      %5127 = vmatprep.mubr.f32.mxu0 0.0
      %5128 = vmatmul.mubr.f32.gmra.mrb[0].mxu0 %v4627
      %v5129 = vpop.f32.mrb[0].mxu0
      %v5130 = vadd.f32 0.0, %v5129
      %v5131 = vpop.f32.mrb[0].mxu0
      %5132 = vmatprep.mubr.f32.mxu0 0.0
      %5133 = vmatmul.mubr.f32.gmra.mrb[0].mxu0 %v4630
      %v5134 = vpop.f32.mrb[0].mxu0
      %v5135 = vadd.f32 0.0, %v5134
      %v5136 = vpop.f32.mrb[0].mxu0
      %5137 = vmatprep.mubr.f32.mxu0 0.0
      %5138 = vmatmul.mubr.f32.gmra.mrb[0].mxu0 %v4633
      %v5139 = vpop.f32.mrb[0].mxu0
      %v5140 = vadd.f32 0.0, %v5139
      %v5141 = vpop.f32.mrb[0].mxu0
      %5142 = vmatprep.mubr.f32.mxu0 0.0
      %5143 = vmatmul.mubr.f32.gmra.mrb[0].mxu0 %v4636
      %v5144 = vpop.f32.mrb[0].mxu0
      %v5145 = vadd.f32 0.0, %v5144
      %v5146 = vpop.f32.mrb[0].mxu0
      %5147 = vmatprep.mubr.f32.mxu0 0.0
      %5148 = vmatmul.mubr.f32.gmra.mrb[0].mxu0 %v4639
      %v5149 = vpop.f32.mrb[0].mxu0
      %v5150 = vadd.f32 0.0, %v5149
      %v5151 = vpop.f32.mrb[0].mxu0
      %5152 = vmatprep.mubr.f32.mxu0 0.0
      %5153 = vmatmul.mubr.f32.gmra.mrb[0].mxu0 %v4642
      %v5154 = vpop.f32.mrb[0].mxu0
      %v5155 = vadd.f32 0.0, %v5154
      %v5156 = vpop.f32.mrb[0].mxu0
      %5157 = vmatprep.mubr.f32.mxu0 0.0
      %5158 = vmatmul.mubr.f32.gmra.mrb[0].mxu0 %v4645
      %v5159 = vpop.f32.mrb[0].mxu0
      %v5160 = vadd.f32 0.0, %v5159
      %v5161 = vpop.f32.mrb[0].mxu0
      %5162 = vmatprep.mubr.f32.mxu0 0.0
      %5163 = vmatmul.mubr.f32.gmra.mrb[0].mxu0 %v4648
      %v5164 = vpop.f32.mrb[0].mxu0
      %v5165 = vadd.f32 0.0, %v5164
      %v5166 = vpop.f32.mrb[0].mxu0
      %5167 = vmatprep.mubr.f32.mxu0 0.0
      %5168 = vmatmul.mubr.f32.gmra.mrb[0].mxu0 %v4651
      %v5169 = vpop.f32.mrb[0].mxu0
      %v5170 = vadd.f32 0.0, %v5169
      %v5171 = vpop.f32.mrb[0].mxu0
      %5172 = vmatprep.mubr.f32.mxu0 0.0
      %5173 = vmatmul.mubr.f32.gmra.mrb[0].mxu0 %v4654
      %v5174 = vpop.f32.mrb[0].mxu0
      %v5175 = vadd.f32 0.0, %v5174
      %v5176 = vpop.f32.mrb[0].mxu0
      %5177 = vmatprep.mubr.f32.mxu0 0.0
      %5178 = vmatmul.mubr.f32.gmra.mrb[0].mxu0 %v4657
      %v5179 = vpop.f32.mrb[0].mxu0
      %v5180 = vadd.f32 0.0, %v5179
      %v5181 = vpop.f32.mrb[0].mxu0
      %5182 = vmatprep.mubr.f32.mxu0 0.0
      %5183 = vmatmul.mubr.f32.gmra.mrb[0].mxu0 %v4660
      %v5184 = vpop.f32.mrb[0].mxu0
      %v5185 = vadd.f32 0.0, %v5184
      %v5186 = vpop.f32.mrb[0].mxu0
      %5187 = vmatprep.mubr.f32.mxu0 0.0
      %5188 = vmatmul.mubr.f32.gmra.mrb[0].mxu0 %v4663
      %v5189 = vpop.f32.mrb[0].mxu0
      %v5190 = vadd.f32 0.0, %v5189
      %v5191 = vpop.f32.mrb[0].mxu0
      %5192 = vmatprep.mubr.f32.mxu0 0.0
      %5193 = vmatmul.mubr.f32.gmra.mrb[0].mxu0 %v4666
      %v5194 = vpop.f32.mrb[0].mxu0
      %v5195 = vadd.f32 0.0, %v5194
      %v5196 = vpop.f32.mrb[0].mxu0
      %5197 = vmatprep.mubr.f32.mxu0 0.0
      %5198 = vmatmul.mubr.f32.gmra.mrb[0].mxu0 %v4669
      %v5199 = vpop.f32.mrb[0].mxu0
      %v5200 = vadd.f32 0.0, %v5199
      %v5201 = vpop.f32.mrb[0].mxu0
      %5202 = vmatprep.mubr.f32.mxu0 0.0
      %5203 = vmatmul.mubr.f32.gmra.mrb[0].mxu0 %v4672
      %v5204 = vpop.f32.mrb[0].mxu0
      %v5205 = vadd.f32 0.0, %v5204
      %v5206 = vpop.f32.mrb[0].mxu0
      %5207 = vmatprep.mubr.f32.mxu0 0.0
      %5208 = vmatmul.mubr.f32.gmra.mrb[0].mxu0 %v4675
      %v5209 = vpop.f32.mrb[0].mxu0
      %v5210 = vadd.f32 0.0, %v5209
      %v5211 = vpop.f32.mrb[0].mxu0
      %5212 = vmatprep.mubr.f32.mxu0 0.0
      %5213 = vmatmul.mubr.f32.gmra.mrb[0].mxu0 %v4678
      %v5214 = vpop.f32.mrb[0].mxu0
      %v5215 = vadd.f32 0.0, %v5214
      %v5216 = vpop.f32.mrb[0].mxu0
      %5217 = vmatprep.mubr.f32.mxu0 0.0
      %5218 = vmatmul.mubr.f32.gmra.mrb[0].mxu0 %v4681
      %v5219 = vpop.f32.mrb[0].mxu0
      %v5220 = vadd.f32 0.0, %v5219
      %v5221 = vpop.f32.mrb[0].mxu0
      %5222 = vmatprep.mubr.f32.mxu0 0.0
      %5223 = vmatmul.mubr.f32.gmra.mrb[0].mxu0 %v4684
      %v5224 = vpop.f32.mrb[0].mxu0
      %v5225 = vadd.f32 0.0, %v5224
      %v5226 = vpop.f32.mrb[0].mxu0
      %5227 = vmatprep.mubr.f32.mxu0 0.0
      %5228 = vmatmul.mubr.f32.gmra.mrb[0].mxu0 %v4687
      %v5229 = vpop.f32.mrb[0].mxu0
      %v5230 = vadd.f32 0.0, %v5229
      %v5231 = vpop.f32.mrb[0].mxu0
      %5232 = vmatprep.mubr.f32.mxu0 0.0
      %5233 = vmatmul.mubr.f32.gmra.mrb[0].mxu0 %v4690
      %v5234 = vpop.f32.mrb[0].mxu0
      %v5235 = vadd.f32 0.0, %v5234
      %v5236 = vpop.f32.mrb[0].mxu0
      %5237 = vmatprep.mubr.f32.mxu0 0.0
      %5238 = vmatmul.mubr.f32.gmra.mrb[0].mxu0 %v4693
      %v5239 = vpop.f32.mrb[0].mxu0
      %v5240 = vadd.f32 0.0, %v5239
      %v5241 = vpop.f32.mrb[0].mxu0
      %5242 = vmatprep.mubr.f32.mxu0 0.0
      %5243 = vmatmul.mubr.f32.gmra.mrb[0].mxu0 %v4696
      %v5244 = vpop.f32.mrb[0].mxu0
      %v5245 = vadd.f32 0.0, %v5244
      %v5246 = vpop.f32.mrb[0].mxu0
      %5247 = vmatprep.mubr.f32.mxu0 0.0
      %5248 = vmatmul.mubr.f32.gmra.mrb[0].mxu0 %v4699
      %v5249 = vpop.f32.mrb[0].mxu0
      %v5250 = vadd.f32 0.0, %v5249
      %v5251 = vpop.f32.mrb[0].mxu0
      %5252 = vmatprep.mubr.f32.mxu0 0.0
      %5253 = vmatmul.mubr.f32.gmra.mrb[0].mxu0 %v4702
      %v5254 = vpop.f32.mrb[0].mxu0
      %v5255 = vadd.f32 0.0, %v5254
      %v5256 = vpop.f32.mrb[0].mxu0
      %5257 = vmatprep.mubr.f32.mxu0 0.0
      %5258 = vmatmul.mubr.f32.gmra.mrb[0].mxu0 %v4705
      %v5259 = vpop.f32.mrb[0].mxu0
      %v5260 = vadd.f32 0.0, %v5259
      %v5261 = vpop.f32.mrb[0].mxu0
      %5262 = vmatprep.mubr.f32.mxu0 0.0
      %5263 = vmatmul.mubr.f32.gmra.mrb[0].mxu0 %v4708
      %v5264 = vpop.f32.mrb[0].mxu0
      %v5265 = vadd.f32 0.0, %v5264
      %v5266 = vpop.f32.mrb[0].mxu0
      %5267 = vmatprep.mubr.f32.mxu0 0.0
      %5268 = vmatmul.mubr.f32.gmra.mrb[0].mxu0 %v4711
      %v5269 = vpop.f32.mrb[0].mxu0
      %v5270 = vadd.f32 0.0, %v5269
      %v5271 = vpop.f32.mrb[0].mxu0
      %5272 = vmatprep.mubr.f32.mxu0 0.0
      %5273 = vmatmul.mubr.f32.gmra.mrb[0].mxu0 %v4714
      %v5274 = vpop.f32.mrb[0].mxu0
      %v5275 = vadd.f32 0.0, %v5274
      %v5276 = vpop.f32.mrb[0].mxu0
      %5277 = vmatprep.mubr.f32.mxu0 0.0
      %5278 = vmatmul.mubr.f32.gmra.mrb[0].mxu0 %v4717
      %v5279 = vpop.f32.mrb[0].mxu0
      %v5280 = vadd.f32 0.0, %v5279
      %v5281 = vpop.f32.mrb[0].mxu0
      %5282 = vmatprep.mubr.f32.mxu0 0.0
      %5283 = vmatmul.mubr.f32.gmra.mrb[0].mxu0 %v4720
      %v5284 = vpop.f32.mrb[0].mxu0
      %v5285 = vadd.f32 0.0, %v5284
      %v5286 = vpop.f32.mrb[0].mxu0
      %5287 = vmatprep.mubr.f32.mxu0 0.0
      %5288 = vmatmul.mubr.f32.gmra.mrb[0].mxu0 %v4723
      %v5289 = vpop.f32.mrb[0].mxu0
      %v5290 = vadd.f32 0.0, %v5289
      %v5291 = vpop.f32.mrb[0].mxu0
      %5292 = vmatprep.mubr.f32.mxu0 0.0
      %5293 = vmatmul.mubr.f32.gmra.mrb[0].mxu0 %v4726
      %v5294 = vpop.f32.mrb[0].mxu0
      %v5295 = vadd.f32 0.0, %v5294
      %v5296 = vpop.f32.mrb[0].mxu0
      %5297 = vmatprep.mubr.f32.mxu0 0.0
      %5298 = vmatmul.mubr.f32.gmra.mrb[0].mxu0 %v4729
      %v5299 = vpop.f32.mrb[0].mxu0
      %v5300 = vadd.f32 0.0, %v5299
      %v5301 = vpop.f32.mrb[0].mxu0
      %5302 = vmatprep.mubr.f32.mxu0 0.0
      %5303 = vmatmul.mubr.f32.gmra.mrb[0].mxu0 %v4732
      %v5304 = vpop.f32.mrb[0].mxu0
      %v5305 = vadd.f32 0.0, %v5304
      %v5306 = vpop.f32.mrb[0].mxu0
      %5307 = vmatprep.mubr.f32.mxu0 0.0
      %5308 = vmatmul.mubr.f32.gmra.mrb[0].mxu0 %v4735
      %v5309 = vpop.f32.mrb[0].mxu0
      %v5310 = vadd.f32 0.0, %v5309
      %v5311 = vpop.f32.mrb[0].mxu0
      %5312 = vmatprep.mubr.f32.mxu0 0.0
      %5313 = vmatmul.mubr.f32.gmra.mrb[0].mxu0 %v4738
      %v5314 = vpop.f32.mrb[0].mxu0
      %v5315 = vadd.f32 0.0, %v5314
      %v5316 = vpop.f32.mrb[0].mxu0
      %5317 = vmatprep.mubr.f32.mxu0 0.0
      %5318 = vmatmul.mubr.f32.gmra.mrb[0].mxu0 %v4741
      %v5319 = vpop.f32.mrb[0].mxu0
      %v5320 = vadd.f32 0.0, %v5319
      %v5321 = vpop.f32.mrb[0].mxu0
      %5322 = vmatprep.mubr.f32.mxu0 0.0
      %5323 = vmatmul.mubr.f32.gmra.mrb[0].mxu0 %v4744
      %v5324 = vpop.f32.mrb[0].mxu0
      %v5325 = vadd.f32 0.0, %v5324
      %v5326 = vpop.f32.mrb[0].mxu0
      %5327 = vmatprep.mubr.f32.mxu0 0.0
      %5328 = vmatmul.mubr.f32.gmra.mrb[0].mxu0 %v4747
      %v5329 = vpop.f32.mrb[0].mxu0
      %v5330 = vadd.f32 0.0, %v5329
      %v5331 = vpop.f32.mrb[0].mxu0
      %5332 = vmatprep.mubr.f32.mxu0 0.0
      %5333 = vmatmul.mubr.f32.gmra.mrb[0].mxu0 %v4750
      %v5334 = vpop.f32.mrb[0].mxu0
      %v5335 = vadd.f32 0.0, %v5334
      %v5336 = vpop.f32.mrb[0].mxu0
      %5337 = vmatprep.mubr.f32.mxu0 0.0
      %5338 = vmatmul.mubr.f32.gmra.mrb[0].mxu0 %v4753
      %v5339 = vpop.f32.mrb[0].mxu0
      %v5340 = vadd.f32 0.0, %v5339
      %v5341 = vpop.f32.mrb[0].mxu0
      %5342 = vmatprep.mubr.f32.mxu0 0.0
      %5343 = vmatmul.mubr.f32.gmra.mrb[0].mxu0 %v4756
      %v5344 = vpop.f32.mrb[0].mxu0
      %v5345 = vadd.f32 0.0, %v5344
      %v5346 = vpop.f32.mrb[0].mxu0
      %5347 = vmatprep.mubr.f32.mxu0 0.0
      %5348 = vmatmul.mubr.f32.gmra.mrb[0].mxu0 %v4759
      %v5349 = vpop.f32.mrb[0].mxu0
      %v5350 = vadd.f32 0.0, %v5349
      %v5351 = vpop.f32.mrb[0].mxu0
      %5352 = vmatprep.mubr.f32.mxu0 0.0
      %5353 = vmatmul.mubr.f32.gmra.mrb[0].mxu0 %v4762
      %v5354 = vpop.f32.mrb[0].mxu0
      %v5355 = vadd.f32 0.0, %v5354
      %v5356 = vpop.f32.mrb[0].mxu0
      %5357 = vmatprep.mubr.f32.mxu0 0.0
      %5358 = vmatmul.mubr.f32.gmra.mrb[0].mxu0 %v4765
      %v5359 = vpop.f32.mrb[0].mxu0
      %v5360 = vadd.f32 0.0, %v5359
      %v5361 = vpop.f32.mrb[0].mxu0
      %5362 = vmatprep.mubr.f32.mxu0 0.0
      %5363 = vmatmul.mubr.f32.gmra.mrb[0].mxu0 %v4768
      %v5364 = vpop.f32.mrb[0].mxu0
      %v5365 = vadd.f32 0.0, %v5364
      %v5366 = vpop.f32.mrb[0].mxu0
      %5367 = vmatprep.mubr.f32.mxu0 0.0
      %5368 = vmatmul.mubr.f32.gmra.mrb[0].mxu0 %v4771
      %v5369 = vpop.f32.mrb[0].mxu0
      %v5370 = vadd.f32 0.0, %v5369
      %v5371 = vpop.f32.mrb[0].mxu0
      %5372 = vmatprep.mubr.f32.mxu0 0.0
      %5373 = vmatmul.mubr.f32.gmra.mrb[0].mxu0 %v4774
      %v5374 = vpop.f32.mrb[0].mxu0
      %v5375 = vadd.f32 0.0, %v5374
      %v5376 = vpop.f32.mrb[0].mxu0
      %5377 = vmatprep.mubr.f32.mxu0 0.0
      %5378 = vmatmul.mubr.f32.gmra.mrb[0].mxu0 %v4777
      %v5379 = vpop.f32.mrb[0].mxu0
      %v5380 = vadd.f32 0.0, %v5379
      %v5381 = vpop.f32.mrb[0].mxu0
      %5382 = vmatprep.mubr.f32.mxu0 0.0
      %5383 = vmatmul.mubr.f32.gmra.mrb[0].mxu0 %v4780
      %v5384 = vpop.f32.mrb[0].mxu0
      %v5385 = vadd.f32 0.0, %v5384
      %v5386 = vpop.f32.mrb[0].mxu0
      %5387 = vmatprep.mubr.f32.mxu0 0.0
      %5388 = vmatmul.mubr.f32.gmra.mrb[0].mxu0 %v4783
      %v5389 = vpop.f32.mrb[0].mxu0
      %v5390 = vadd.f32 0.0, %v5389
      %v5391 = vpop.f32.mrb[0].mxu0
      %5392 = vmatprep.mubr.f32.mxu0 0.0
      %5393 = vmatmul.mubr.f32.gmra.mrb[0].mxu0 %v4786
      %v5394 = vpop.f32.mrb[0].mxu0
      %v5395 = vadd.f32 0.0, %v5394
      %v5396 = vpop.f32.mrb[0].mxu0
      %5397 = vmatprep.mubr.f32.mxu0 0.0
      %5398 = vmatmul.mubr.f32.gmra.mrb[0].mxu0 %v4789
      %v5399 = vpop.f32.mrb[0].mxu0
      %v5400 = vadd.f32 0.0, %v5399
      %v5401 = vpop.f32.mrb[0].mxu0
      %5402 = vmatprep.mubr.f32.mxu0 0.0
      %5403 = vmatmul.mubr.f32.gmra.mrb[0].mxu0 %v4792
      %v5404 = vpop.f32.mrb[0].mxu0
      %v5405 = vadd.f32 0.0, %v5404
      %v5406 = vpop.f32.mrb[0].mxu0
      %5407 = vmatprep.mubr.f32.mxu0 0.0
      %5408 = vmatmul.mubr.f32.gmra.mrb[0].mxu0 %v4795
      %v5409 = vpop.f32.mrb[0].mxu0
      %v5410 = vadd.f32 0.0, %v5409
      %v5411 = vpop.f32.mrb[0].mxu0
      %5412 = vmatprep.mubr.f32.mxu0 0.0
      %5413 = vmatmul.mubr.f32.gmra.mrb[0].mxu0 %v4798
      %v5414 = vpop.f32.mrb[0].mxu0
      %v5415 = vadd.f32 0.0, %v5414
      %v5416 = vpop.f32.mrb[0].mxu0
      %5417 = vmatprep.mubr.f32.mxu0 0.0
      %5418 = vmatmul.mubr.f32.gmra.mrb[0].mxu0 %v4801
      %v5419 = vpop.f32.mrb[0].mxu0
      %v5420 = vadd.f32 0.0, %v5419
      %v5421 = vpop.f32.mrb[0].mxu0
      %5422 = vmatprep.mubr.f32.mxu0 0.0
      %5423 = vmatmul.mubr.f32.gmra.mrb[0].mxu0 %v4804
      %v5424 = vpop.f32.mrb[0].mxu0
      %v5425 = vadd.f32 0.0, %v5424
      %v5426 = vpop.f32.mrb[0].mxu0
      %5427 = vmatprep.mubr.f32.mxu0 0.0
      %5428 = vmatmul.mubr.f32.gmra.mrb[0].mxu0 %v4807
      %v5429 = vpop.f32.mrb[0].mxu0
      %v5430 = vadd.f32 0.0, %v5429
      %v5431 = vpop.f32.mrb[0].mxu0
      %5432 = vmatprep.mubr.f32.mxu0 0.0
      %5433 = vmatmul.mubr.f32.gmra.mrb[0].mxu0 %v4810
      %v5434 = vpop.f32.mrb[0].mxu0
      %v5435 = vadd.f32 0.0, %v5434
      %v5436 = vpop.f32.mrb[0].mxu0
      %5437 = vmatprep.mubr.f32.mxu0 0.0
      %5438 = vmatmul.mubr.f32.gmra.mrb[0].mxu0 %v4813
      %v5439 = vpop.f32.mrb[0].mxu0
      %v5440 = vadd.f32 0.0, %v5439
      %v5441 = vpop.f32.mrb[0].mxu0
      %5442 = vmatprep.mubr.f32.mxu0 0.0
      %5443 = vmatmul.mubr.f32.gmra.mrb[0].mxu0 %v4816
      %v5444 = vpop.f32.mrb[0].mxu0
      %v5445 = vadd.f32 0.0, %v5444
      %v5446 = vpop.f32.mrb[0].mxu0
      %5447 = vmatprep.mubr.f32.mxu0 0.0
      %5448 = vmatmul.mubr.f32.gmra.mrb[0].mxu0 %v4819
      %v5449 = vpop.f32.mrb[0].mxu0
      %v5450 = vadd.f32 0.0, %v5449
      %v5451 = vpop.f32.mrb[0].mxu0
      %5452 = vmatprep.mubr.f32.mxu0 0.0
      %5453 = vmatmul.mubr.f32.gmra.mrb[0].mxu0 %v4822
      %v5454 = vpop.f32.mrb[0].mxu0
      %v5455 = vadd.f32 0.0, %v5454
      %v5456 = vpop.f32.mrb[0].mxu0
      %5457 = vmatprep.mubr.f32.mxu0 0.0
      %5458 = vmatmul.mubr.f32.gmra.mrb[0].mxu0 %v4825
      %v5459 = vpop.f32.mrb[0].mxu0
      %v5460 = vadd.f32 0.0, %v5459
      %v5461 = vpop.f32.mrb[0].mxu0
      %5462 = vmatprep.mubr.f32.mxu0 0.0
      %5463 = vmatmul.mubr.f32.gmra.mrb[0].mxu0 %v4828
      %v5464 = vpop.f32.mrb[0].mxu0
      %v5465 = vadd.f32 0.0, %v5464
      %v5466 = vpop.f32.mrb[0].mxu0
      %5467 = vmatprep.mubr.f32.mxu0 0.0
      %5468 = vmatmul.mubr.f32.gmra.mrb[0].mxu0 %v4831
      %v5469 = vpop.f32.mrb[0].mxu0
      %v5470 = vadd.f32 0.0, %v5469
      %v5471 = vpop.f32.mrb[0].mxu0
      %5472 = vmatprep.mubr.f32.mxu0 0.0
      %5473 = vmatmul.mubr.f32.gmra.mrb[0].mxu0 %v4834
      %v5474 = vpop.f32.mrb[0].mxu0
      %v5475 = vadd.f32 0.0, %v5474
      %v5476 = vpop.f32.mrb[0].mxu0
      %5477 = vmatprep.mubr.f32.mxu0 0.0
      %5478 = vmatmul.mubr.f32.gmra.mrb[0].mxu0 %v4837
      %v5479 = vpop.f32.mrb[0].mxu0
      %v5480 = vadd.f32 0.0, %v5479
      %v5481 = vpop.f32.mrb[0].mxu0
      %5482 = vmatprep.mubr.f32.mxu0 0.0
      %5483 = vmatmul.mubr.f32.gmra.mrb[0].mxu0 %v4840
      %v5484 = vpop.f32.mrb[0].mxu0
      %v5485 = vadd.f32 0.0, %v5484
      %v5486 = vpop.f32.mrb[0].mxu0
      %5487 = vmatprep.mubr.f32.mxu0 0.0
      %5488 = vmatmul.mubr.f32.gmra.mrb[0].mxu0 %v4843
      %v5489 = vpop.f32.mrb[0].mxu0
      %v5490 = vadd.f32 0.0, %v5489
      %v5491 = vpop.f32.mrb[0].mxu0
      %5492 = vmatprep.mubr.f32.mxu0 0.0
      %5493 = vmatmul.mubr.f32.gmra.mrb[0].mxu0 %v4846
      %v5494 = vpop.f32.mrb[0].mxu0
      %v5495 = vadd.f32 0.0, %v5494
      %v5496 = vpop.f32.mrb[0].mxu0
      %5497 = vmatprep.mubr.f32.mxu0 0.0
      %5498 = vmatmul.mubr.f32.gmra.mrb[0].mxu0 %v4849
      %v5499 = vpop.f32.mrb[0].mxu0
      %v5500 = vadd.f32 0.0, %v5499
      %v5501 = vpop.f32.mrb[0].mxu0
      %5502 = vmatprep.mubr.f32.mxu0 0.0
      %5503 = vmatmul.mubr.f32.gmra.mrb[0].mxu0 %v4852
      %v5504 = vpop.f32.mrb[0].mxu0
      %v5505 = vadd.f32 0.0, %v5504
      %v5506 = vpop.f32.mrb[0].mxu0
      %5507 = vmatprep.mubr.f32.mxu0 0.0
      %5508 = vmatmul.mubr.f32.gmra.mrb[0].mxu0 %v4855
      %v5509 = vpop.f32.mrb[0].mxu0
      %v5510 = vadd.f32 0.0, %v5509
      %v5511 = vpop.f32.mrb[0].mxu0
      %5512 = vmatprep.mubr.f32.mxu0 0.0
      %5513 = vmatmul.mubr.f32.gmra.mrb[0].mxu0 %v4858
      %v5514 = vpop.f32.mrb[0].mxu0
      %v5515 = vadd.f32 0.0, %v5514
      %v5516 = vpop.f32.mrb[0].mxu0
      %5517 = vmatprep.mubr.f32.mxu0 0.0
      %5518 = vmatmul.mubr.f32.gmra.mrb[0].mxu0 %v4861
      %v5519 = vpop.f32.mrb[0].mxu0
      %v5520 = vadd.f32 0.0, %v5519
      %v5521 = vpop.f32.mrb[0].mxu0
      %5522 = vmatprep.mubr.f32.mxu0 0.0
      %5523 = vmatmul.mubr.f32.gmra.mrb[0].mxu0 %v4864
      %v5524 = vpop.f32.mrb[0].mxu0
      %v5525 = vadd.f32 0.0, %v5524
      %v5526 = vpop.f32.mrb[0].mxu0
      %5527 = vmatprep.mubr.f32.mxu0 0.0
      %5528 = vmatmul.mubr.f32.gmra.mrb[0].mxu0 %v4867
      %v5529 = vpop.f32.mrb[0].mxu0
      %v5530 = vadd.f32 0.0, %v5529
      %v5531 = vpop.f32.mrb[0].mxu0
      %5532 = vmatprep.mubr.f32.mxu0 0.0
      %5533 = vmatmul.mubr.f32.gmra.mrb[0].mxu0 %v4870
      %v5534 = vpop.f32.mrb[0].mxu0
      %v5535 = vadd.f32 0.0, %v5534
      %v5536 = vpop.f32.mrb[0].mxu0
      %5537 = vmatprep.mubr.f32.mxu0 0.0
      %5538 = vmatmul.mubr.f32.gmra.mrb[0].mxu0 %v4873
      %v5539 = vpop.f32.mrb[0].mxu0
      %v5540 = vadd.f32 0.0, %v5539
      %v5541 = vpop.f32.mrb[0].mxu0
      %5542 = vmatprep.mubr.f32.mxu0 0.0
      %5543 = vmatmul.mubr.f32.gmra.mrb[0].mxu0 %v4876
      %v5544 = vpop.f32.mrb[0].mxu0
      %v5545 = vadd.f32 0.0, %v5544
      %v5546 = vpop.f32.mrb[0].mxu0
      %5547 = vmatprep.mubr.f32.mxu0 0.0
      %5548 = vmatmul.mubr.f32.gmra.mrb[0].mxu0 %v4879
      %v5549 = vpop.f32.mrb[0].mxu0
      %v5550 = vadd.f32 0.0, %v5549
      %v5551 = vpop.f32.mrb[0].mxu0
      %5552 = vmatprep.mubr.f32.mxu0 0.0
      %5553 = vmatmul.mubr.f32.gmra.mrb[0].mxu0 %v4882
      %v5554 = vpop.f32.mrb[0].mxu0
      %v5555 = vadd.f32 0.0, %v5554
      %v5556 = vpop.f32.mrb[0].mxu0
      %5557 = vmatprep.mubr.f32.mxu0 0.0
      %5558 = vmatmul.mubr.f32.gmra.mrb[0].mxu0 %v4885
      %v5559 = vpop.f32.mrb[0].mxu0
      %v5560 = vadd.f32 0.0, %v5559
      %v5561 = vpop.f32.mrb[0].mxu0
      %5562 = vmatprep.mubr.f32.mxu0 0.0
      %5563 = vmatmul.mubr.f32.gmra.mrb[0].mxu0 %v4888
      %v5564 = vpop.f32.mrb[0].mxu0
      %v5565 = vadd.f32 0.0, %v5564
      %v5566 = vpop.f32.mrb[0].mxu0
      %5567 = vmatprep.mubr.f32.mxu0 0.0
      %5568 = vmatmul.mubr.f32.gmra.mrb[0].mxu0 %v4891
      %v5569 = vpop.f32.mrb[0].mxu0
      %v5570 = vadd.f32 0.0, %v5569
      %v5571 = vpop.f32.mrb[0].mxu0
      %5572 = vmatprep.mubr.f32.mxu0 0.0
      %5573 = vmatmul.mubr.f32.gmra.mrb[0].mxu0 %v4894
      %v5574 = vpop.f32.mrb[0].mxu0
      %v5575 = vadd.f32 0.0, %v5574
      %v5576 = vpop.f32.mrb[0].mxu0
      %5577 = vmatprep.mubr.f32.mxu0 0.0
      %5578 = vmatmul.mubr.f32.gmra.mrb[0].mxu0 %v4897
      %v5579 = vpop.f32.mrb[0].mxu0
      %v5580 = vadd.f32 0.0, %v5579
      %v5581 = vpop.f32.mrb[0].mxu0
      %5582 = vmatprep.mubr.f32.mxu0 0.0
      %5583 = vmatmul.mubr.f32.gmra.mrb[0].mxu0 %v4900
      %v5584 = vpop.f32.mrb[0].mxu0
      %v5585 = vadd.f32 0.0, %v5584
      %v5586 = vpop.f32.mrb[0].mxu0
      %5587 = vmatprep.mubr.f32.mxu0 0.0
      %5588 = vmatmul.mubr.f32.gmra.mrb[0].mxu0 %v4903
      %v5589 = vpop.f32.mrb[0].mxu0
      %v5590 = vadd.f32 0.0, %v5589
      %v5591 = vpop.f32.mrb[0].mxu0
      %5592 = vmatprep.mubr.f32.mxu0 0.0
      %5593 = vmatmul.mubr.f32.gmra.mrb[0].mxu0 %v4906
      %v5594 = vpop.f32.mrb[0].mxu0
      %v5595 = vadd.f32 0.0, %v5594
      %v5596 = vpop.f32.mrb[0].mxu0
      %5597 = vmatprep.mubr.f32.mxu0 0.0
      %5598 = vmatmul.mubr.f32.gmra.mrb[0].mxu0 %v4909
      %v5599 = vpop.f32.mrb[0].mxu0
      %v5600 = vadd.f32 0.0, %v5599
      %v5601 = vpop.f32.mrb[0].mxu0
      %5602 = vmatprep.mubr.f32.mxu0 0.0
      %5603 = vmatmul.mubr.f32.gmra.mrb[0].mxu0 %v4912
      %v5604 = vpop.f32.mrb[0].mxu0
      %v5605 = vadd.f32 0.0, %v5604
      %v5606 = vpop.f32.mrb[0].mxu0
      %5607 = vmatprep.mubr.f32.mxu0 0.0
      %5608 = vmatmul.mubr.f32.gmra.mrb[0].mxu0 %v4915
      %v5609 = vpop.f32.mrb[0].mxu0
      %v5610 = vadd.f32 0.0, %v5609
      %v5611 = vpop.f32.mrb[0].mxu0
      %5612 = vmatprep.mubr.f32.mxu0 0.0
      %5613 = vmatmul.mubr.f32.gmra.mrb[0].mxu0 %v4918
      %v5614 = vpop.f32.mrb[0].mxu0
      %v5615 = vadd.f32 0.0, %v5614
      %v5616 = vpop.f32.mrb[0].mxu0
      %5617 = vmatprep.mubr.f32.mxu0 0.0
      %5618 = vmatmul.mubr.f32.gmra.mrb[0].mxu0 %v4921
      %v5619 = vpop.f32.mrb[0].mxu0
      %v5620 = vadd.f32 0.0, %v5619
      %v5621 = vpop.f32.mrb[0].mxu0
      %5622 = vmatprep.mubr.f32.mxu0 0.0
      %5623 = vmatmul.mubr.f32.gmra.mrb[0].mxu0 %v4924
      %v5624 = vpop.f32.mrb[0].mxu0
      %v5625 = vadd.f32 0.0, %v5624
      %v5626 = vpop.f32.mrb[0].mxu0
      %5627 = vmatprep.mubr.f32.mxu0 0.0
      %5628 = vmatmul.mubr.f32.gmra.mrb[0].mxu0 %v4927
      %v5629 = vpop.f32.mrb[0].mxu0
      %v5630 = vadd.f32 0.0, %v5629
      %v5631 = vpop.f32.mrb[0].mxu0
      %5632 = vmatprep.mubr.f32.mxu0 0.0
      %5633 = vmatmul.mubr.f32.gmra.mrb[0].mxu0 %v4930
      %v5634 = vpop.f32.mrb[0].mxu0
      %v5635 = vadd.f32 0.0, %v5634
      %v5636 = vpop.f32.mrb[0].mxu0
      %5637 = vmatprep.mubr.f32.mxu0 0.0
      %5638 = vmatmul.mubr.f32.gmra.mrb[0].mxu0 %v4933
      %v5639 = vpop.f32.mrb[0].mxu0
      %v5640 = vadd.f32 0.0, %v5639
      %v5641 = vpop.f32.mrb[0].mxu0
      %5642 = vdwg.mxu0
      %v5643 = vadd.f32 %v4293, %v5005
      %v5644 = vadd.f32 %v4294, %v5010
      %v5645 = vadd.f32 %v4295, %v5015
      %v5646 = vadd.f32 %v4296, %v5020
      %v5647 = vadd.f32 %v4297, %v5025
      %v5648 = vadd.f32 %v4298, %v5030
      %v5649 = vadd.f32 %v4299, %v5035
      %v5650 = vadd.f32 %v4300, %v5040
      %v5651 = vadd.f32 %v4301, %v5045
      %v5652 = vadd.f32 %v4302, %v5050
      %v5653 = vadd.f32 %v4303, %v5055
      %v5654 = vadd.f32 %v4304, %v5060
      %v5655 = vadd.f32 %v4305, %v5065
      %v5656 = vadd.f32 %v4306, %v5070
      %v5657 = vadd.f32 %v4307, %v5075
      %v5658 = vadd.f32 %v4308, %v5080
      %v5659 = vadd.f32 %v4309, %v5085
      %v5660 = vadd.f32 %v4310, %v5090
      %v5661 = vadd.f32 %v4311, %v5095
      %v5662 = vadd.f32 %v4312, %v5100
      %v5663 = vadd.f32 %v4313, %v5105
      %v5664 = vadd.f32 %v4314, %v5110
      %v5665 = vadd.f32 %v4315, %v5115
      %v5666 = vadd.f32 %v4316, %v5120
      %v5667 = vadd.f32 %v4317, %v5125
      %v5668 = vadd.f32 %v4318, %v5130
      %v5669 = vadd.f32 %v4319, %v5135
      %v5670 = vadd.f32 %v4320, %v5140
      %v5671 = vadd.f32 %v4321, %v5145
      %v5672 = vadd.f32 %v4322, %v5150
      %v5673 = vadd.f32 %v4323, %v5155
      %v5674 = vadd.f32 %v4324, %v5160
      %v5675 = vadd.f32 %v4325, %v5165
      %v5676 = vadd.f32 %v4326, %v5170
      %v5677 = vadd.f32 %v4327, %v5175
      %v5678 = vadd.f32 %v4328, %v5180
      %v5679 = vadd.f32 %v4329, %v5185
      %v5680 = vadd.f32 %v4330, %v5190
      %v5681 = vadd.f32 %v4331, %v5195
      %v5682 = vadd.f32 %v4332, %v5200
      %v5683 = vadd.f32 %v4333, %v5205
      %v5684 = vadd.f32 %v4334, %v5210
      %v5685 = vadd.f32 %v4335, %v5215
      %v5686 = vadd.f32 %v4336, %v5220
      %v5687 = vadd.f32 %v4337, %v5225
      %v5688 = vadd.f32 %v4338, %v5230
      %v5689 = vadd.f32 %v4339, %v5235
      %v5690 = vadd.f32 %v4340, %v5240
      %v5691 = vadd.f32 %v4341, %v5245
      %v5692 = vadd.f32 %v4342, %v5250
      %v5693 = vadd.f32 %v4343, %v5255
      %v5694 = vadd.f32 %v4344, %v5260
      %v5695 = vadd.f32 %v4345, %v5265
      %v5696 = vadd.f32 %v4346, %v5270
      %v5697 = vadd.f32 %v4347, %v5275
      %v5698 = vadd.f32 %v4348, %v5280
      %v5699 = vadd.f32 %v4349, %v5285
      %v5700 = vadd.f32 %v4350, %v5290
      %v5701 = vadd.f32 %v4351, %v5295
      %v5702 = vadd.f32 %v4352, %v5300
      %v5703 = vadd.f32 %v4353, %v5305
      %v5704 = vadd.f32 %v4354, %v5310
      %v5705 = vadd.f32 %v4355, %v5315
      %v5706 = vadd.f32 %v4356, %v5320
      %v5707 = vadd.f32 %v4357, %v5325
      %v5708 = vadd.f32 %v4358, %v5330
      %v5709 = vadd.f32 %v4359, %v5335
      %v5710 = vadd.f32 %v4360, %v5340
      %v5711 = vadd.f32 %v4361, %v5345
      %v5712 = vadd.f32 %v4362, %v5350
      %v5713 = vadd.f32 %v4363, %v5355
      %v5714 = vadd.f32 %v4364, %v5360
      %v5715 = vadd.f32 %v4365, %v5365
      %v5716 = vadd.f32 %v4366, %v5370
      %v5717 = vadd.f32 %v4367, %v5375
      %v5718 = vadd.f32 %v4368, %v5380
      %v5719 = vadd.f32 %v4369, %v5385
      %v5720 = vadd.f32 %v4370, %v5390
      %v5721 = vadd.f32 %v4371, %v5395
      %v5722 = vadd.f32 %v4372, %v5400
      %v5723 = vadd.f32 %v4373, %v5405
      %v5724 = vadd.f32 %v4374, %v5410
      %v5725 = vadd.f32 %v4375, %v5415
      %v5726 = vadd.f32 %v4376, %v5420
      %v5727 = vadd.f32 %v4377, %v5425
      %v5728 = vadd.f32 %v4378, %v5430
      %v5729 = vadd.f32 %v4379, %v5435
      %v5730 = vadd.f32 %v4380, %v5440
      %v5731 = vadd.f32 %v4381, %v5445
      %v5732 = vadd.f32 %v4382, %v5450
      %v5733 = vadd.f32 %v4383, %v5455
      %v5734 = vadd.f32 %v4384, %v5460
      %v5735 = vadd.f32 %v4385, %v5465
      %v5736 = vadd.f32 %v4386, %v5470
      %v5737 = vadd.f32 %v4387, %v5475
      %v5738 = vadd.f32 %v4388, %v5480
      %v5739 = vadd.f32 %v4389, %v5485
      %v5740 = vadd.f32 %v4390, %v5490
      %v5741 = vadd.f32 %v4391, %v5495
      %v5742 = vadd.f32 %v4392, %v5500
      %v5743 = vadd.f32 %v4393, %v5505
      %v5744 = vadd.f32 %v4394, %v5510
      %v5745 = vadd.f32 %v4395, %v5515
      %v5746 = vadd.f32 %v4396, %v5520
      %v5747 = vadd.f32 %v4397, %v5525
      %v5748 = vadd.f32 %v4398, %v5530
      %v5749 = vadd.f32 %v4399, %v5535
      %v5750 = vadd.f32 %v4400, %v5540
      %v5751 = vadd.f32 %v4401, %v5545
      %v5752 = vadd.f32 %v4402, %v5550
      %v5753 = vadd.f32 %v4403, %v5555
      %v5754 = vadd.f32 %v4404, %v5560
      %v5755 = vadd.f32 %v4405, %v5565
      %v5756 = vadd.f32 %v4406, %v5570
      %v5757 = vadd.f32 %v4407, %v5575
      %v5758 = vadd.f32 %v4408, %v5580
      %v5759 = vadd.f32 %v4409, %v5585
      %v5760 = vadd.f32 %v4410, %v5590
      %v5761 = vadd.f32 %v4411, %v5595
      %v5762 = vadd.f32 %v4412, %v5600
      %v5763 = vadd.f32 %v4413, %v5605
      %v5764 = vadd.f32 %v4414, %v5610
      %v5765 = vadd.f32 %v4415, %v5615
      %v5766 = vadd.f32 %v4416, %v5620
      %v5767 = vadd.f32 %v4417, %v5625
      %v5768 = vadd.f32 %v4418, %v5630
      %v5769 = vadd.f32 %v4419, %v5635
      %v5770 = vadd.f32 %v4420, %v5640
      %v5771 = vld [vmem:[%s498 + $0x1] sm:$0xff]
      %v5772 = vld [vmem:[%s498 + $0x9] sm:$0xff]
      %v5773 = vld [vmem:[%s498 + $0x11] sm:$0xff]
      %v5774 = vld [vmem:[%s498 + $0x19] sm:$0xff]
      %v5775 = vld [vmem:[%s498 + $0x29] sm:$0xff]
      %v5776 = vld [vmem:[%s498 + $0x31] sm:$0xff]
      %v5777 = vld [vmem:[%s498 + $0x39] sm:$0xff]
      %v5778 = vld [vmem:[%s498 + $0x41] sm:$0xff]
      %v5779 = vld [vmem:[%s498 + $0x51] sm:$0xff]
      %v5780 = vld [vmem:[%s498 + $0x59] sm:$0xff]
      %v5781 = vld [vmem:[%s498 + $0x61] sm:$0xff]
      %v5782 = vld [vmem:[%s498 + $0x69] sm:$0xff]
      %v5783 = vld [vmem:[%s498 + $0x79] sm:$0xff]
      %v5784 = vld [vmem:[%s498 + $0x81] sm:$0xff]
      %v5785 = vld [vmem:[%s498 + $0x89] sm:$0xff]
      %v5786 = vld [vmem:[%s498 + $0x91] sm:$0xff]
      %v5787 = vld [vmem:[%s498 + $0xa1] sm:$0xff]
      %v5788 = vld [vmem:[%s498 + $0xa9] sm:$0xff]
      %v5789 = vld [vmem:[%s498 + $0xb1] sm:$0xff]
      %v5790 = vld [vmem:[%s498 + $0xb9] sm:$0xff]
      %v5791 = vld [vmem:[%s498 + $0xc9] sm:$0xff]
      %v5792 = vld [vmem:[%s498 + $0xd1] sm:$0xff]
      %v5793 = vld [vmem:[%s498 + $0xd9] sm:$0xff]
      %v5794 = vld [vmem:[%s498 + $0xe1] sm:$0xff]
      %v5795 = vld [vmem:[%s498 + $0xf1] sm:$0xff]
      %v5796 = vld [vmem:[%s498 + $0xf9] sm:$0xff]
      %v5797 = vld [vmem:[%s498 + $0x101] sm:$0xff]
      %v5798 = vld [vmem:[%s498 + $0x109] sm:$0xff]
      %v5799 = vld [vmem:[%s498 + $0x119] sm:$0xff]
      %v5800 = vld [vmem:[%s498 + $0x121] sm:$0xff]
      %v5801 = vld [vmem:[%s498 + $0x129] sm:$0xff]
      %v5802 = vld [vmem:[%s498 + $0x131] sm:$0xff]
      %v5803 = vld [vmem:[%s498 + $0x141] sm:$0xff]
      %v5804 = vld [vmem:[%s498 + $0x149] sm:$0xff]
      %v5805 = vld [vmem:[%s498 + $0x151] sm:$0xff]
      %v5806 = vld [vmem:[%s498 + $0x159] sm:$0xff]
      %v5807 = vld [vmem:[%s498 + $0x169] sm:$0xff]
      %v5808 = vld [vmem:[%s498 + $0x171] sm:$0xff]
      %v5809 = vld [vmem:[%s498 + $0x179] sm:$0xff]
      %v5810 = vld [vmem:[%s498 + $0x181] sm:$0xff]
      %v5811 = vld [vmem:[%s498 + $0x191] sm:$0xff]
      %v5812 = vld [vmem:[%s498 + $0x199] sm:$0xff]
      %v5813 = vld [vmem:[%s498 + $0x1a1] sm:$0xff]
      %v5814 = vld [vmem:[%s498 + $0x1a9] sm:$0xff]
      %v5815 = vld [vmem:[%s498 + $0x1b9] sm:$0xff]
      %v5816 = vld [vmem:[%s498 + $0x1c1] sm:$0xff]
      %v5817 = vld [vmem:[%s498 + $0x1c9] sm:$0xff]
      %v5818 = vld [vmem:[%s498 + $0x1d1] sm:$0xff]
      %v5819 = vld [vmem:[%s498 + $0x1e1] sm:$0xff]
      %v5820 = vld [vmem:[%s498 + $0x1e9] sm:$0xff]
      %v5821 = vld [vmem:[%s498 + $0x1f1] sm:$0xff]
      %v5822 = vld [vmem:[%s498 + $0x1f9] sm:$0xff]
      %v5823 = vld [vmem:[%s498 + $0x209] sm:$0xff]
      %v5824 = vld [vmem:[%s498 + $0x211] sm:$0xff]
      %v5825 = vld [vmem:[%s498 + $0x219] sm:$0xff]
      %v5826 = vld [vmem:[%s498 + $0x221] sm:$0xff]
      %v5827 = vld [vmem:[%s498 + $0x231] sm:$0xff]
      %v5828 = vld [vmem:[%s498 + $0x239] sm:$0xff]
      %v5829 = vld [vmem:[%s498 + $0x241] sm:$0xff]
      %v5830 = vld [vmem:[%s498 + $0x249] sm:$0xff]
      %v5831 = vld [vmem:[%s498 + $0x259] sm:$0xff]
      %v5832 = vld [vmem:[%s498 + $0x261] sm:$0xff]
      %v5833 = vld [vmem:[%s498 + $0x269] sm:$0xff]
      %v5834 = vld [vmem:[%s498 + $0x271] sm:$0xff]
      %v5835 = vld [vmem:[%s498 + $0x281] sm:$0xff]
      %v5836 = vld [vmem:[%s498 + $0x289] sm:$0xff]
      %v5837 = vld [vmem:[%s498 + $0x291] sm:$0xff]
      %v5838 = vld [vmem:[%s498 + $0x299] sm:$0xff]
      %v5839 = vld [vmem:[%s498 + $0x2a9] sm:$0xff]
      %v5840 = vld [vmem:[%s498 + $0x2b1] sm:$0xff]
      %v5841 = vld [vmem:[%s498 + $0x2b9] sm:$0xff]
      %v5842 = vld [vmem:[%s498 + $0x2c1] sm:$0xff]
      %v5843 = vld [vmem:[%s498 + $0x2d1] sm:$0xff]
      %v5844 = vld [vmem:[%s498 + $0x2d9] sm:$0xff]
      %v5845 = vld [vmem:[%s498 + $0x2e1] sm:$0xff]
      %v5846 = vld [vmem:[%s498 + $0x2e9] sm:$0xff]
      %v5847 = vld [vmem:[%s498 + $0x2f9] sm:$0xff]
      %v5848 = vld [vmem:[%s498 + $0x301] sm:$0xff]
      %v5849 = vld [vmem:[%s498 + $0x309] sm:$0xff]
      %v5850 = vld [vmem:[%s498 + $0x311] sm:$0xff]
      %v5851 = vld [vmem:[%s498 + $0x321] sm:$0xff]
      %v5852 = vld [vmem:[%s498 + $0x329] sm:$0xff]
      %v5853 = vld [vmem:[%s498 + $0x331] sm:$0xff]
      %v5854 = vld [vmem:[%s498 + $0x339] sm:$0xff]
      %v5855 = vld [vmem:[%s498 + $0x349] sm:$0xff]
      %v5856 = vld [vmem:[%s498 + $0x351] sm:$0xff]
      %v5857 = vld [vmem:[%s498 + $0x359] sm:$0xff]
      %v5858 = vld [vmem:[%s498 + $0x361] sm:$0xff]
      %v5859 = vld [vmem:[%s498 + $0x371] sm:$0xff]
      %v5860 = vld [vmem:[%s498 + $0x379] sm:$0xff]
      %v5861 = vld [vmem:[%s498 + $0x381] sm:$0xff]
      %v5862 = vld [vmem:[%s498 + $0x389] sm:$0xff]
      %v5863 = vld [vmem:[%s498 + $0x399] sm:$0xff]
      %v5864 = vld [vmem:[%s498 + $0x3a1] sm:$0xff]
      %v5865 = vld [vmem:[%s498 + $0x3a9] sm:$0xff]
      %v5866 = vld [vmem:[%s498 + $0x3b1] sm:$0xff]
      %v5867 = vld [vmem:[%s498 + $0x3c1] sm:$0xff]
      %v5868 = vld [vmem:[%s498 + $0x3c9] sm:$0xff]
      %v5869 = vld [vmem:[%s498 + $0x3d1] sm:$0xff]
      %v5870 = vld [vmem:[%s498 + $0x3d9] sm:$0xff]
      %v5871 = vld [vmem:[%s498 + $0x3e9] sm:$0xff]
      %v5872 = vld [vmem:[%s498 + $0x3f1] sm:$0xff]
      %v5873 = vld [vmem:[%s498 + $0x3f9] sm:$0xff]
      %v5874 = vld [vmem:[%s498 + $0x401] sm:$0xff]
      %v5875 = vld [vmem:[%s498 + $0x411] sm:$0xff]
      %v5876 = vld [vmem:[%s498 + $0x419] sm:$0xff]
      %v5877 = vld [vmem:[%s498 + $0x421] sm:$0xff]
      %v5878 = vld [vmem:[%s498 + $0x429] sm:$0xff]
      %v5879 = vld [vmem:[%s498 + $0x439] sm:$0xff]
      %v5880 = vld [vmem:[%s498 + $0x441] sm:$0xff]
      %v5881 = vld [vmem:[%s498 + $0x449] sm:$0xff]
      %v5882 = vld [vmem:[%s498 + $0x451] sm:$0xff]
      %v5883 = vld [vmem:[%s498 + $0x461] sm:$0xff]
      %v5884 = vld [vmem:[%s498 + $0x469] sm:$0xff]
      %v5885 = vld [vmem:[%s498 + $0x471] sm:$0xff]
      %v5886 = vld [vmem:[%s498 + $0x479] sm:$0xff]
      %v5887 = vld [vmem:[%s498 + $0x489] sm:$0xff]
      %v5888 = vld [vmem:[%s498 + $0x491] sm:$0xff]
      %v5889 = vld [vmem:[%s498 + $0x499] sm:$0xff]
      %v5890 = vld [vmem:[%s498 + $0x4a1] sm:$0xff]
      %v5891 = vld [vmem:[%s498 + $0x4b1] sm:$0xff]
      %v5892 = vld [vmem:[%s498 + $0x4b9] sm:$0xff]
      %v5893 = vld [vmem:[%s498 + $0x4c1] sm:$0xff]
      %v5894 = vld [vmem:[%s498 + $0x4c9] sm:$0xff]
      %v5895 = vld [vmem:[%s498 + $0x4d9] sm:$0xff]
      %v5896 = vld [vmem:[%s498 + $0x4e1] sm:$0xff]
      %v5897 = vld [vmem:[%s498 + $0x4e9] sm:$0xff]
      %v5898 = vld [vmem:[%s498 + $0x4f1] sm:$0xff]
      %s5899 = scalar_lea.vmem %s1, 16
      %v5900 = vld [vmem:[%s5899] sm:$0x7]
      %v5902 = vsel %vm326, %v5771, 0
      %v5905 = vsel %vm326, %v5772, 0
      %v5908 = vsel %vm326, %v5773, 0
      %v5911 = vsel %vm326, %v5774, 0
      %v5914 = vsel %vm326, %v5775, 0
      %v5917 = vsel %vm326, %v5776, 0
      %v5920 = vsel %vm326, %v5777, 0
      %v5923 = vsel %vm326, %v5778, 0
      %v5926 = vsel %vm326, %v5779, 0
      %v5929 = vsel %vm326, %v5780, 0
      %v5932 = vsel %vm326, %v5781, 0
      %v5935 = vsel %vm326, %v5782, 0
      %v5938 = vsel %vm326, %v5783, 0
      %v5941 = vsel %vm326, %v5784, 0
      %v5944 = vsel %vm326, %v5785, 0
      %v5947 = vsel %vm326, %v5786, 0
      %v5950 = vsel %vm326, %v5787, 0
      %v5953 = vsel %vm326, %v5788, 0
      %v5956 = vsel %vm326, %v5789, 0
      %v5959 = vsel %vm326, %v5790, 0
      %v5962 = vsel %vm326, %v5791, 0
      %v5965 = vsel %vm326, %v5792, 0
      %v5968 = vsel %vm326, %v5793, 0
      %v5971 = vsel %vm326, %v5794, 0
      %v5974 = vsel %vm326, %v5795, 0
      %v5977 = vsel %vm326, %v5796, 0
      %v5980 = vsel %vm326, %v5797, 0
      %v5983 = vsel %vm326, %v5798, 0
      %v5986 = vsel %vm326, %v5799, 0
      %v5989 = vsel %vm326, %v5800, 0
      %v5992 = vsel %vm326, %v5801, 0
      %v5995 = vsel %vm326, %v5802, 0
      %v5998 = vsel %vm326, %v5803, 0
      %v6001 = vsel %vm326, %v5804, 0
      %v6004 = vsel %vm326, %v5805, 0
      %v6007 = vsel %vm326, %v5806, 0
      %v6010 = vsel %vm326, %v5807, 0
      %v6013 = vsel %vm326, %v5808, 0
      %v6016 = vsel %vm326, %v5809, 0
      %v6019 = vsel %vm326, %v5810, 0
      %v6022 = vsel %vm326, %v5811, 0
      %v6025 = vsel %vm326, %v5812, 0
      %v6028 = vsel %vm326, %v5813, 0
      %v6031 = vsel %vm326, %v5814, 0
      %v6034 = vsel %vm326, %v5815, 0
      %v6037 = vsel %vm326, %v5816, 0
      %v6040 = vsel %vm326, %v5817, 0
      %v6043 = vsel %vm326, %v5818, 0
      %v6046 = vsel %vm326, %v5819, 0
      %v6049 = vsel %vm326, %v5820, 0
      %v6052 = vsel %vm326, %v5821, 0
      %v6055 = vsel %vm326, %v5822, 0
      %v6058 = vsel %vm326, %v5823, 0
      %v6061 = vsel %vm326, %v5824, 0
      %v6064 = vsel %vm326, %v5825, 0
      %v6067 = vsel %vm326, %v5826, 0
      %v6070 = vsel %vm326, %v5827, 0
      %v6073 = vsel %vm326, %v5828, 0
      %v6076 = vsel %vm326, %v5829, 0
      %v6079 = vsel %vm326, %v5830, 0
      %v6082 = vsel %vm326, %v5831, 0
      %v6085 = vsel %vm326, %v5832, 0
      %v6088 = vsel %vm326, %v5833, 0
      %v6091 = vsel %vm326, %v5834, 0
      %v6094 = vsel %vm326, %v5835, 0
      %v6097 = vsel %vm326, %v5836, 0
      %v6100 = vsel %vm326, %v5837, 0
      %v6103 = vsel %vm326, %v5838, 0
      %v6106 = vsel %vm326, %v5839, 0
      %v6109 = vsel %vm326, %v5840, 0
      %v6112 = vsel %vm326, %v5841, 0
      %v6115 = vsel %vm326, %v5842, 0
      %v6118 = vsel %vm326, %v5843, 0
      %v6121 = vsel %vm326, %v5844, 0
      %v6124 = vsel %vm326, %v5845, 0
      %v6127 = vsel %vm326, %v5846, 0
      %v6130 = vsel %vm326, %v5847, 0
      %v6133 = vsel %vm326, %v5848, 0
      %v6136 = vsel %vm326, %v5849, 0
      %v6139 = vsel %vm326, %v5850, 0
      %v6142 = vsel %vm326, %v5851, 0
      %v6145 = vsel %vm326, %v5852, 0
      %v6148 = vsel %vm326, %v5853, 0
      %v6151 = vsel %vm326, %v5854, 0
      %v6154 = vsel %vm326, %v5855, 0
      %v6157 = vsel %vm326, %v5856, 0
      %v6160 = vsel %vm326, %v5857, 0
      %v6163 = vsel %vm326, %v5858, 0
      %v6166 = vsel %vm326, %v5859, 0
      %v6169 = vsel %vm326, %v5860, 0
      %v6172 = vsel %vm326, %v5861, 0
      %v6175 = vsel %vm326, %v5862, 0
      %v6178 = vsel %vm326, %v5863, 0
      %v6181 = vsel %vm326, %v5864, 0
      %v6184 = vsel %vm326, %v5865, 0
      %v6187 = vsel %vm326, %v5866, 0
      %v6190 = vsel %vm326, %v5867, 0
      %v6193 = vsel %vm326, %v5868, 0
      %v6196 = vsel %vm326, %v5869, 0
      %v6199 = vsel %vm326, %v5870, 0
      %v6202 = vsel %vm326, %v5871, 0
      %v6205 = vsel %vm326, %v5872, 0
      %v6208 = vsel %vm326, %v5873, 0
      %v6211 = vsel %vm326, %v5874, 0
      %v6214 = vsel %vm326, %v5875, 0
      %v6217 = vsel %vm326, %v5876, 0
      %v6220 = vsel %vm326, %v5877, 0
      %v6223 = vsel %vm326, %v5878, 0
      %v6226 = vsel %vm326, %v5879, 0
      %v6229 = vsel %vm326, %v5880, 0
      %v6232 = vsel %vm326, %v5881, 0
      %v6235 = vsel %vm326, %v5882, 0
      %v6238 = vsel %vm326, %v5883, 0
      %v6241 = vsel %vm326, %v5884, 0
      %v6244 = vsel %vm326, %v5885, 0
      %v6247 = vsel %vm326, %v5886, 0
      %v6250 = vsel %vm326, %v5887, 0
      %v6253 = vsel %vm326, %v5888, 0
      %v6256 = vsel %vm326, %v5889, 0
      %v6259 = vsel %vm326, %v5890, 0
      %v6262 = vsel %vm326, %v5891, 0
      %v6265 = vsel %vm326, %v5892, 0
      %v6268 = vsel %vm326, %v5893, 0
      %v6271 = vsel %vm326, %v5894, 0
      %v6274 = vsel %vm326, %v5895, 0
      %v6277 = vsel %vm326, %v5896, 0
      %v6280 = vsel %vm326, %v5897, 0
      %v6283 = vsel %vm326, %v5898, 0
      %v6286 = vsel %vm1270, %v5900, 0
      %6288 = vmatprep.subr.mxu0 0.0
      %6289 = vmatpush1.msra.mxu0 %v6286
      %6290 = vmatprep.subr.mxu0 0.0
      %6291 = vmatpush1.msra.mxu0 0.0
      %6292 = vmatprep.subr.mxu0 0.0
      %6293 = vmatpush1.msra.mxu0 0.0
      %6294 = vmatprep.subr.mxu0 0.0
      %6295 = vmatpush1.msra.mxu0 0.0
      %6296 = vmatprep.subr.mxu0 0.0
      %6297 = vmatpush1.msra.mxu0 0.0
      %6298 = vmatprep.subr.mxu0 0.0
      %6299 = vmatpush1.msra.mxu0 0.0
      %6300 = vmatprep.subr.mxu0 0.0
      %6301 = vmatpush1.msra.mxu0 0.0
      %6302 = vmatprep.subr.mxu0 0.0
      %6303 = vmatpush1.msra.mxu0 0.0
      %6304 = vmatprep.subr.mxu0 0.0
      %6305 = vmatpush1.msra.mxu0 0.0
      %6306 = vmatprep.subr.mxu0 0.0
      %6307 = vmatpush1.msra.mxu0 0.0
      %6308 = vmatprep.subr.mxu0 0.0
      %6309 = vmatpush1.msra.mxu0 0.0
      %6310 = vmatprep.subr.mxu0 0.0
      %6311 = vmatpush1.msra.mxu0 0.0
      %6312 = vmatprep.subr.mxu0 0.0
      %6313 = vmatpush1.msra.mxu0 0.0
      %6314 = vmatprep.subr.mxu0 0.0
      %6315 = vmatpush1.msra.mxu0 0.0
      %6316 = vmatprep.subr.mxu0 0.0
      %6317 = vmatpush1.msra.mxu0 0.0
      %6318 = vmatprep.subr.mxu0 0.0
      %6319 = vmatpush1.msra.mxu0 0.0
      %6320 = vmatprep.subr.mxu0 0.0
      %6321 = vmatpush1.msra.mxu0 0.0
      %6322 = vmatprep.subr.mxu0 0.0
      %6323 = vmatpush1.msra.mxu0 0.0
      %6324 = vmatprep.subr.mxu0 0.0
      %6325 = vmatpush1.msra.mxu0 0.0
      %6326 = vmatprep.subr.mxu0 0.0
      %6327 = vmatpush1.msra.mxu0 0.0
      %6328 = vmatprep.subr.mxu0 0.0
      %6329 = vmatpush1.msra.mxu0 0.0
      %6330 = vmatprep.subr.mxu0 0.0
      %6331 = vmatpush1.msra.mxu0 0.0
      %6332 = vmatprep.subr.mxu0 0.0
      %6333 = vmatpush1.msra.mxu0 0.0
      %6334 = vmatprep.subr.mxu0 0.0
      %6335 = vmatpush1.msra.mxu0 0.0
      %6336 = vmatprep.subr.mxu0 0.0
      %6337 = vmatpush1.msra.mxu0 0.0
      %6338 = vmatprep.subr.mxu0 0.0
      %6339 = vmatpush1.msra.mxu0 0.0
      %6340 = vmatprep.subr.mxu0 0.0
      %6341 = vmatpush1.msra.mxu0 0.0
      %6342 = vmatprep.subr.mxu0 0.0
      %6343 = vmatpush1.msra.mxu0 0.0
      %6344 = vmatprep.subr.mxu0 0.0
      %6345 = vmatpush1.msra.mxu0 0.0
      %6346 = vmatprep.subr.mxu0 0.0
      %6347 = vmatpush1.msra.mxu0 0.0
      %6348 = vmatprep.subr.mxu0 0.0
      %6349 = vmatpush1.msra.mxu0 0.0
      %6350 = vmatprep.subr.mxu0 0.0
      %6351 = vmatpush1.msra.mxu0 0.0
      %6352 = vmatprep.mubr.f32.mxu0 0.0
      %6353 = vmatmul.mubr.f32.gmra.mrb[0].mxu0 %v5902
      %v6354 = vpop.f32.mrb[0].mxu0
      %v6355 = vadd.f32 0.0, %v6354
      %v6356 = vpop.f32.mrb[0].mxu0
      %6357 = vmatprep.mubr.f32.mxu0 0.0
      %6358 = vmatmul.mubr.f32.gmra.mrb[0].mxu0 %v5905
      %v6359 = vpop.f32.mrb[0].mxu0
      %v6360 = vadd.f32 0.0, %v6359
      %v6361 = vpop.f32.mrb[0].mxu0
      %6362 = vmatprep.mubr.f32.mxu0 0.0
      %6363 = vmatmul.mubr.f32.gmra.mrb[0].mxu0 %v5908
      %v6364 = vpop.f32.mrb[0].mxu0
      %v6365 = vadd.f32 0.0, %v6364
      %v6366 = vpop.f32.mrb[0].mxu0
      %6367 = vmatprep.mubr.f32.mxu0 0.0
      %6368 = vmatmul.mubr.f32.gmra.mrb[0].mxu0 %v5911
      %v6369 = vpop.f32.mrb[0].mxu0
      %v6370 = vadd.f32 0.0, %v6369
      %v6371 = vpop.f32.mrb[0].mxu0
      %6372 = vmatprep.mubr.f32.mxu0 0.0
      %6373 = vmatmul.mubr.f32.gmra.mrb[0].mxu0 %v5914
      %v6374 = vpop.f32.mrb[0].mxu0
      %v6375 = vadd.f32 0.0, %v6374
      %v6376 = vpop.f32.mrb[0].mxu0
      %6377 = vmatprep.mubr.f32.mxu0 0.0
      %6378 = vmatmul.mubr.f32.gmra.mrb[0].mxu0 %v5917
      %v6379 = vpop.f32.mrb[0].mxu0
      %v6380 = vadd.f32 0.0, %v6379
      %v6381 = vpop.f32.mrb[0].mxu0
      %6382 = vmatprep.mubr.f32.mxu0 0.0
      %6383 = vmatmul.mubr.f32.gmra.mrb[0].mxu0 %v5920
      %v6384 = vpop.f32.mrb[0].mxu0
      %v6385 = vadd.f32 0.0, %v6384
      %v6386 = vpop.f32.mrb[0].mxu0
      %6387 = vmatprep.mubr.f32.mxu0 0.0
      %6388 = vmatmul.mubr.f32.gmra.mrb[0].mxu0 %v5923
      %v6389 = vpop.f32.mrb[0].mxu0
      %v6390 = vadd.f32 0.0, %v6389
      %v6391 = vpop.f32.mrb[0].mxu0
      %6392 = vmatprep.mubr.f32.mxu0 0.0
      %6393 = vmatmul.mubr.f32.gmra.mrb[0].mxu0 %v5926
      %v6394 = vpop.f32.mrb[0].mxu0
      %v6395 = vadd.f32 0.0, %v6394
      %v6396 = vpop.f32.mrb[0].mxu0
      %6397 = vmatprep.mubr.f32.mxu0 0.0
      %6398 = vmatmul.mubr.f32.gmra.mrb[0].mxu0 %v5929
      %v6399 = vpop.f32.mrb[0].mxu0
      %v6400 = vadd.f32 0.0, %v6399
      %v6401 = vpop.f32.mrb[0].mxu0
      %6402 = vmatprep.mubr.f32.mxu0 0.0
      %6403 = vmatmul.mubr.f32.gmra.mrb[0].mxu0 %v5932
      %v6404 = vpop.f32.mrb[0].mxu0
      %v6405 = vadd.f32 0.0, %v6404
      %v6406 = vpop.f32.mrb[0].mxu0
      %6407 = vmatprep.mubr.f32.mxu0 0.0
      %6408 = vmatmul.mubr.f32.gmra.mrb[0].mxu0 %v5935
      %v6409 = vpop.f32.mrb[0].mxu0
      %v6410 = vadd.f32 0.0, %v6409
      %v6411 = vpop.f32.mrb[0].mxu0
      %6412 = vmatprep.mubr.f32.mxu0 0.0
      %6413 = vmatmul.mubr.f32.gmra.mrb[0].mxu0 %v5938
      %v6414 = vpop.f32.mrb[0].mxu0
      %v6415 = vadd.f32 0.0, %v6414
      %v6416 = vpop.f32.mrb[0].mxu0
      %6417 = vmatprep.mubr.f32.mxu0 0.0
      %6418 = vmatmul.mubr.f32.gmra.mrb[0].mxu0 %v5941
      %v6419 = vpop.f32.mrb[0].mxu0
      %v6420 = vadd.f32 0.0, %v6419
      %v6421 = vpop.f32.mrb[0].mxu0
      %6422 = vmatprep.mubr.f32.mxu0 0.0
      %6423 = vmatmul.mubr.f32.gmra.mrb[0].mxu0 %v5944
      %v6424 = vpop.f32.mrb[0].mxu0
      %v6425 = vadd.f32 0.0, %v6424
      %v6426 = vpop.f32.mrb[0].mxu0
      %6427 = vmatprep.mubr.f32.mxu0 0.0
      %6428 = vmatmul.mubr.f32.gmra.mrb[0].mxu0 %v5947
      %v6429 = vpop.f32.mrb[0].mxu0
      %v6430 = vadd.f32 0.0, %v6429
      %v6431 = vpop.f32.mrb[0].mxu0
      %6432 = vmatprep.mubr.f32.mxu0 0.0
      %6433 = vmatmul.mubr.f32.gmra.mrb[0].mxu0 %v5950
      %v6434 = vpop.f32.mrb[0].mxu0
      %v6435 = vadd.f32 0.0, %v6434
      %v6436 = vpop.f32.mrb[0].mxu0
      %6437 = vmatprep.mubr.f32.mxu0 0.0
      %6438 = vmatmul.mubr.f32.gmra.mrb[0].mxu0 %v5953
      %v6439 = vpop.f32.mrb[0].mxu0
      %v6440 = vadd.f32 0.0, %v6439
      %v6441 = vpop.f32.mrb[0].mxu0
      %6442 = vmatprep.mubr.f32.mxu0 0.0
      %6443 = vmatmul.mubr.f32.gmra.mrb[0].mxu0 %v5956
      %v6444 = vpop.f32.mrb[0].mxu0
      %v6445 = vadd.f32 0.0, %v6444
      %v6446 = vpop.f32.mrb[0].mxu0
      %6447 = vmatprep.mubr.f32.mxu0 0.0
      %6448 = vmatmul.mubr.f32.gmra.mrb[0].mxu0 %v5959
      %v6449 = vpop.f32.mrb[0].mxu0
      %v6450 = vadd.f32 0.0, %v6449
      %v6451 = vpop.f32.mrb[0].mxu0
      %6452 = vmatprep.mubr.f32.mxu0 0.0
      %6453 = vmatmul.mubr.f32.gmra.mrb[0].mxu0 %v5962
      %v6454 = vpop.f32.mrb[0].mxu0
      %v6455 = vadd.f32 0.0, %v6454
      %v6456 = vpop.f32.mrb[0].mxu0
      %6457 = vmatprep.mubr.f32.mxu0 0.0
      %6458 = vmatmul.mubr.f32.gmra.mrb[0].mxu0 %v5965
      %v6459 = vpop.f32.mrb[0].mxu0
      %v6460 = vadd.f32 0.0, %v6459
      %v6461 = vpop.f32.mrb[0].mxu0
      %6462 = vmatprep.mubr.f32.mxu0 0.0
      %6463 = vmatmul.mubr.f32.gmra.mrb[0].mxu0 %v5968
      %v6464 = vpop.f32.mrb[0].mxu0
      %v6465 = vadd.f32 0.0, %v6464
      %v6466 = vpop.f32.mrb[0].mxu0
      %6467 = vmatprep.mubr.f32.mxu0 0.0
      %6468 = vmatmul.mubr.f32.gmra.mrb[0].mxu0 %v5971
      %v6469 = vpop.f32.mrb[0].mxu0
      %v6470 = vadd.f32 0.0, %v6469
      %v6471 = vpop.f32.mrb[0].mxu0
      %6472 = vmatprep.mubr.f32.mxu0 0.0
      %6473 = vmatmul.mubr.f32.gmra.mrb[0].mxu0 %v5974
      %v6474 = vpop.f32.mrb[0].mxu0
      %v6475 = vadd.f32 0.0, %v6474
      %v6476 = vpop.f32.mrb[0].mxu0
      %6477 = vmatprep.mubr.f32.mxu0 0.0
      %6478 = vmatmul.mubr.f32.gmra.mrb[0].mxu0 %v5977
      %v6479 = vpop.f32.mrb[0].mxu0
      %v6480 = vadd.f32 0.0, %v6479
      %v6481 = vpop.f32.mrb[0].mxu0
      %6482 = vmatprep.mubr.f32.mxu0 0.0
      %6483 = vmatmul.mubr.f32.gmra.mrb[0].mxu0 %v5980
      %v6484 = vpop.f32.mrb[0].mxu0
      %v6485 = vadd.f32 0.0, %v6484
      %v6486 = vpop.f32.mrb[0].mxu0
      %6487 = vmatprep.mubr.f32.mxu0 0.0
      %6488 = vmatmul.mubr.f32.gmra.mrb[0].mxu0 %v5983
      %v6489 = vpop.f32.mrb[0].mxu0
      %v6490 = vadd.f32 0.0, %v6489
      %v6491 = vpop.f32.mrb[0].mxu0
      %6492 = vmatprep.mubr.f32.mxu0 0.0
      %6493 = vmatmul.mubr.f32.gmra.mrb[0].mxu0 %v5986
      %v6494 = vpop.f32.mrb[0].mxu0
      %v6495 = vadd.f32 0.0, %v6494
      %v6496 = vpop.f32.mrb[0].mxu0
      %6497 = vmatprep.mubr.f32.mxu0 0.0
      %6498 = vmatmul.mubr.f32.gmra.mrb[0].mxu0 %v5989
      %v6499 = vpop.f32.mrb[0].mxu0
      %v6500 = vadd.f32 0.0, %v6499
      %v6501 = vpop.f32.mrb[0].mxu0
      %6502 = vmatprep.mubr.f32.mxu0 0.0
      %6503 = vmatmul.mubr.f32.gmra.mrb[0].mxu0 %v5992
      %v6504 = vpop.f32.mrb[0].mxu0
      %v6505 = vadd.f32 0.0, %v6504
      %v6506 = vpop.f32.mrb[0].mxu0
      %6507 = vmatprep.mubr.f32.mxu0 0.0
      %6508 = vmatmul.mubr.f32.gmra.mrb[0].mxu0 %v5995
      %v6509 = vpop.f32.mrb[0].mxu0
      %v6510 = vadd.f32 0.0, %v6509
      %v6511 = vpop.f32.mrb[0].mxu0
      %6512 = vmatprep.mubr.f32.mxu0 0.0
      %6513 = vmatmul.mubr.f32.gmra.mrb[0].mxu0 %v5998
      %v6514 = vpop.f32.mrb[0].mxu0
      %v6515 = vadd.f32 0.0, %v6514
      %v6516 = vpop.f32.mrb[0].mxu0
      %6517 = vmatprep.mubr.f32.mxu0 0.0
      %6518 = vmatmul.mubr.f32.gmra.mrb[0].mxu0 %v6001
      %v6519 = vpop.f32.mrb[0].mxu0
      %v6520 = vadd.f32 0.0, %v6519
      %v6521 = vpop.f32.mrb[0].mxu0
      %6522 = vmatprep.mubr.f32.mxu0 0.0
      %6523 = vmatmul.mubr.f32.gmra.mrb[0].mxu0 %v6004
      %v6524 = vpop.f32.mrb[0].mxu0
      %v6525 = vadd.f32 0.0, %v6524
      %v6526 = vpop.f32.mrb[0].mxu0
      %6527 = vmatprep.mubr.f32.mxu0 0.0
      %6528 = vmatmul.mubr.f32.gmra.mrb[0].mxu0 %v6007
      %v6529 = vpop.f32.mrb[0].mxu0
      %v6530 = vadd.f32 0.0, %v6529
      %v6531 = vpop.f32.mrb[0].mxu0
      %6532 = vmatprep.mubr.f32.mxu0 0.0
      %6533 = vmatmul.mubr.f32.gmra.mrb[0].mxu0 %v6010
      %v6534 = vpop.f32.mrb[0].mxu0
      %v6535 = vadd.f32 0.0, %v6534
      %v6536 = vpop.f32.mrb[0].mxu0
      %6537 = vmatprep.mubr.f32.mxu0 0.0
      %6538 = vmatmul.mubr.f32.gmra.mrb[0].mxu0 %v6013
      %v6539 = vpop.f32.mrb[0].mxu0
      %v6540 = vadd.f32 0.0, %v6539
      %v6541 = vpop.f32.mrb[0].mxu0
      %6542 = vmatprep.mubr.f32.mxu0 0.0
      %6543 = vmatmul.mubr.f32.gmra.mrb[0].mxu0 %v6016
      %v6544 = vpop.f32.mrb[0].mxu0
      %v6545 = vadd.f32 0.0, %v6544
      %v6546 = vpop.f32.mrb[0].mxu0
      %6547 = vmatprep.mubr.f32.mxu0 0.0
      %6548 = vmatmul.mubr.f32.gmra.mrb[0].mxu0 %v6019
      %v6549 = vpop.f32.mrb[0].mxu0
      %v6550 = vadd.f32 0.0, %v6549
      %v6551 = vpop.f32.mrb[0].mxu0
      %6552 = vmatprep.mubr.f32.mxu0 0.0
      %6553 = vmatmul.mubr.f32.gmra.mrb[0].mxu0 %v6022
      %v6554 = vpop.f32.mrb[0].mxu0
      %v6555 = vadd.f32 0.0, %v6554
      %v6556 = vpop.f32.mrb[0].mxu0
      %6557 = vmatprep.mubr.f32.mxu0 0.0
      %6558 = vmatmul.mubr.f32.gmra.mrb[0].mxu0 %v6025
      %v6559 = vpop.f32.mrb[0].mxu0
      %v6560 = vadd.f32 0.0, %v6559
      %v6561 = vpop.f32.mrb[0].mxu0
      %6562 = vmatprep.mubr.f32.mxu0 0.0
      %6563 = vmatmul.mubr.f32.gmra.mrb[0].mxu0 %v6028
      %v6564 = vpop.f32.mrb[0].mxu0
      %v6565 = vadd.f32 0.0, %v6564
      %v6566 = vpop.f32.mrb[0].mxu0
      %6567 = vmatprep.mubr.f32.mxu0 0.0
      %6568 = vmatmul.mubr.f32.gmra.mrb[0].mxu0 %v6031
      %v6569 = vpop.f32.mrb[0].mxu0
      %v6570 = vadd.f32 0.0, %v6569
      %v6571 = vpop.f32.mrb[0].mxu0
      %6572 = vmatprep.mubr.f32.mxu0 0.0
      %6573 = vmatmul.mubr.f32.gmra.mrb[0].mxu0 %v6034
      %v6574 = vpop.f32.mrb[0].mxu0
      %v6575 = vadd.f32 0.0, %v6574
      %v6576 = vpop.f32.mrb[0].mxu0
      %6577 = vmatprep.mubr.f32.mxu0 0.0
      %6578 = vmatmul.mubr.f32.gmra.mrb[0].mxu0 %v6037
      %v6579 = vpop.f32.mrb[0].mxu0
      %v6580 = vadd.f32 0.0, %v6579
      %v6581 = vpop.f32.mrb[0].mxu0
      %6582 = vmatprep.mubr.f32.mxu0 0.0
      %6583 = vmatmul.mubr.f32.gmra.mrb[0].mxu0 %v6040
      %v6584 = vpop.f32.mrb[0].mxu0
      %v6585 = vadd.f32 0.0, %v6584
      %v6586 = vpop.f32.mrb[0].mxu0
      %6587 = vmatprep.mubr.f32.mxu0 0.0
      %6588 = vmatmul.mubr.f32.gmra.mrb[0].mxu0 %v6043
      %v6589 = vpop.f32.mrb[0].mxu0
      %v6590 = vadd.f32 0.0, %v6589
      %v6591 = vpop.f32.mrb[0].mxu0
      %6592 = vmatprep.mubr.f32.mxu0 0.0
      %6593 = vmatmul.mubr.f32.gmra.mrb[0].mxu0 %v6046
      %v6594 = vpop.f32.mrb[0].mxu0
      %v6595 = vadd.f32 0.0, %v6594
      %v6596 = vpop.f32.mrb[0].mxu0
      %6597 = vmatprep.mubr.f32.mxu0 0.0
      %6598 = vmatmul.mubr.f32.gmra.mrb[0].mxu0 %v6049
      %v6599 = vpop.f32.mrb[0].mxu0
      %v6600 = vadd.f32 0.0, %v6599
      %v6601 = vpop.f32.mrb[0].mxu0
      %6602 = vmatprep.mubr.f32.mxu0 0.0
      %6603 = vmatmul.mubr.f32.gmra.mrb[0].mxu0 %v6052
      %v6604 = vpop.f32.mrb[0].mxu0
      %v6605 = vadd.f32 0.0, %v6604
      %v6606 = vpop.f32.mrb[0].mxu0
      %6607 = vmatprep.mubr.f32.mxu0 0.0
      %6608 = vmatmul.mubr.f32.gmra.mrb[0].mxu0 %v6055
      %v6609 = vpop.f32.mrb[0].mxu0
      %v6610 = vadd.f32 0.0, %v6609
      %v6611 = vpop.f32.mrb[0].mxu0
      %6612 = vmatprep.mubr.f32.mxu0 0.0
      %6613 = vmatmul.mubr.f32.gmra.mrb[0].mxu0 %v6058
      %v6614 = vpop.f32.mrb[0].mxu0
      %v6615 = vadd.f32 0.0, %v6614
      %v6616 = vpop.f32.mrb[0].mxu0
      %6617 = vmatprep.mubr.f32.mxu0 0.0
      %6618 = vmatmul.mubr.f32.gmra.mrb[0].mxu0 %v6061
      %v6619 = vpop.f32.mrb[0].mxu0
      %v6620 = vadd.f32 0.0, %v6619
      %v6621 = vpop.f32.mrb[0].mxu0
      %6622 = vmatprep.mubr.f32.mxu0 0.0
      %6623 = vmatmul.mubr.f32.gmra.mrb[0].mxu0 %v6064
      %v6624 = vpop.f32.mrb[0].mxu0
      %v6625 = vadd.f32 0.0, %v6624
      %v6626 = vpop.f32.mrb[0].mxu0
      %6627 = vmatprep.mubr.f32.mxu0 0.0
      %6628 = vmatmul.mubr.f32.gmra.mrb[0].mxu0 %v6067
      %v6629 = vpop.f32.mrb[0].mxu0
      %v6630 = vadd.f32 0.0, %v6629
      %v6631 = vpop.f32.mrb[0].mxu0
      %6632 = vmatprep.mubr.f32.mxu0 0.0
      %6633 = vmatmul.mubr.f32.gmra.mrb[0].mxu0 %v6070
      %v6634 = vpop.f32.mrb[0].mxu0
      %v6635 = vadd.f32 0.0, %v6634
      %v6636 = vpop.f32.mrb[0].mxu0
      %6637 = vmatprep.mubr.f32.mxu0 0.0
      %6638 = vmatmul.mubr.f32.gmra.mrb[0].mxu0 %v6073
      %v6639 = vpop.f32.mrb[0].mxu0
      %v6640 = vadd.f32 0.0, %v6639
      %v6641 = vpop.f32.mrb[0].mxu0
      %6642 = vmatprep.mubr.f32.mxu0 0.0
      %6643 = vmatmul.mubr.f32.gmra.mrb[0].mxu0 %v6076
      %v6644 = vpop.f32.mrb[0].mxu0
      %v6645 = vadd.f32 0.0, %v6644
      %v6646 = vpop.f32.mrb[0].mxu0
      %6647 = vmatprep.mubr.f32.mxu0 0.0
      %6648 = vmatmul.mubr.f32.gmra.mrb[0].mxu0 %v6079
      %v6649 = vpop.f32.mrb[0].mxu0
      %v6650 = vadd.f32 0.0, %v6649
      %v6651 = vpop.f32.mrb[0].mxu0
      %6652 = vmatprep.mubr.f32.mxu0 0.0
      %6653 = vmatmul.mubr.f32.gmra.mrb[0].mxu0 %v6082
      %v6654 = vpop.f32.mrb[0].mxu0
      %v6655 = vadd.f32 0.0, %v6654
      %v6656 = vpop.f32.mrb[0].mxu0
      %6657 = vmatprep.mubr.f32.mxu0 0.0
      %6658 = vmatmul.mubr.f32.gmra.mrb[0].mxu0 %v6085
      %v6659 = vpop.f32.mrb[0].mxu0
      %v6660 = vadd.f32 0.0, %v6659
      %v6661 = vpop.f32.mrb[0].mxu0
      %6662 = vmatprep.mubr.f32.mxu0 0.0
      %6663 = vmatmul.mubr.f32.gmra.mrb[0].mxu0 %v6088
      %v6664 = vpop.f32.mrb[0].mxu0
      %v6665 = vadd.f32 0.0, %v6664
      %v6666 = vpop.f32.mrb[0].mxu0
      %6667 = vmatprep.mubr.f32.mxu0 0.0
      %6668 = vmatmul.mubr.f32.gmra.mrb[0].mxu0 %v6091
      %v6669 = vpop.f32.mrb[0].mxu0
      %v6670 = vadd.f32 0.0, %v6669
      %v6671 = vpop.f32.mrb[0].mxu0
      %6672 = vmatprep.mubr.f32.mxu0 0.0
      %6673 = vmatmul.mubr.f32.gmra.mrb[0].mxu0 %v6094
      %v6674 = vpop.f32.mrb[0].mxu0
      %v6675 = vadd.f32 0.0, %v6674
      %v6676 = vpop.f32.mrb[0].mxu0
      %6677 = vmatprep.mubr.f32.mxu0 0.0
      %6678 = vmatmul.mubr.f32.gmra.mrb[0].mxu0 %v6097
      %v6679 = vpop.f32.mrb[0].mxu0
      %v6680 = vadd.f32 0.0, %v6679
      %v6681 = vpop.f32.mrb[0].mxu0
      %6682 = vmatprep.mubr.f32.mxu0 0.0
      %6683 = vmatmul.mubr.f32.gmra.mrb[0].mxu0 %v6100
      %v6684 = vpop.f32.mrb[0].mxu0
      %v6685 = vadd.f32 0.0, %v6684
      %v6686 = vpop.f32.mrb[0].mxu0
      %6687 = vmatprep.mubr.f32.mxu0 0.0
      %6688 = vmatmul.mubr.f32.gmra.mrb[0].mxu0 %v6103
      %v6689 = vpop.f32.mrb[0].mxu0
      %v6690 = vadd.f32 0.0, %v6689
      %v6691 = vpop.f32.mrb[0].mxu0
      %6692 = vmatprep.mubr.f32.mxu0 0.0
      %6693 = vmatmul.mubr.f32.gmra.mrb[0].mxu0 %v6106
      %v6694 = vpop.f32.mrb[0].mxu0
      %v6695 = vadd.f32 0.0, %v6694
      %v6696 = vpop.f32.mrb[0].mxu0
      %6697 = vmatprep.mubr.f32.mxu0 0.0
      %6698 = vmatmul.mubr.f32.gmra.mrb[0].mxu0 %v6109
      %v6699 = vpop.f32.mrb[0].mxu0
      %v6700 = vadd.f32 0.0, %v6699
      %v6701 = vpop.f32.mrb[0].mxu0
      %6702 = vmatprep.mubr.f32.mxu0 0.0
      %6703 = vmatmul.mubr.f32.gmra.mrb[0].mxu0 %v6112
      %v6704 = vpop.f32.mrb[0].mxu0
      %v6705 = vadd.f32 0.0, %v6704
      %v6706 = vpop.f32.mrb[0].mxu0
      %6707 = vmatprep.mubr.f32.mxu0 0.0
      %6708 = vmatmul.mubr.f32.gmra.mrb[0].mxu0 %v6115
      %v6709 = vpop.f32.mrb[0].mxu0
      %v6710 = vadd.f32 0.0, %v6709
      %v6711 = vpop.f32.mrb[0].mxu0
      %6712 = vmatprep.mubr.f32.mxu0 0.0
      %6713 = vmatmul.mubr.f32.gmra.mrb[0].mxu0 %v6118
      %v6714 = vpop.f32.mrb[0].mxu0
      %v6715 = vadd.f32 0.0, %v6714
      %v6716 = vpop.f32.mrb[0].mxu0
      %6717 = vmatprep.mubr.f32.mxu0 0.0
      %6718 = vmatmul.mubr.f32.gmra.mrb[0].mxu0 %v6121
      %v6719 = vpop.f32.mrb[0].mxu0
      %v6720 = vadd.f32 0.0, %v6719
      %v6721 = vpop.f32.mrb[0].mxu0
      %6722 = vmatprep.mubr.f32.mxu0 0.0
      %6723 = vmatmul.mubr.f32.gmra.mrb[0].mxu0 %v6124
      %v6724 = vpop.f32.mrb[0].mxu0
      %v6725 = vadd.f32 0.0, %v6724
      %v6726 = vpop.f32.mrb[0].mxu0
      %6727 = vmatprep.mubr.f32.mxu0 0.0
      %6728 = vmatmul.mubr.f32.gmra.mrb[0].mxu0 %v6127
      %v6729 = vpop.f32.mrb[0].mxu0
      %v6730 = vadd.f32 0.0, %v6729
      %v6731 = vpop.f32.mrb[0].mxu0
      %6732 = vmatprep.mubr.f32.mxu0 0.0
      %6733 = vmatmul.mubr.f32.gmra.mrb[0].mxu0 %v6130
      %v6734 = vpop.f32.mrb[0].mxu0
      %v6735 = vadd.f32 0.0, %v6734
      %v6736 = vpop.f32.mrb[0].mxu0
      %6737 = vmatprep.mubr.f32.mxu0 0.0
      %6738 = vmatmul.mubr.f32.gmra.mrb[0].mxu0 %v6133
      %v6739 = vpop.f32.mrb[0].mxu0
      %v6740 = vadd.f32 0.0, %v6739
      %v6741 = vpop.f32.mrb[0].mxu0
      %6742 = vmatprep.mubr.f32.mxu0 0.0
      %6743 = vmatmul.mubr.f32.gmra.mrb[0].mxu0 %v6136
      %v6744 = vpop.f32.mrb[0].mxu0
      %v6745 = vadd.f32 0.0, %v6744
      %v6746 = vpop.f32.mrb[0].mxu0
      %6747 = vmatprep.mubr.f32.mxu0 0.0
      %6748 = vmatmul.mubr.f32.gmra.mrb[0].mxu0 %v6139
      %v6749 = vpop.f32.mrb[0].mxu0
      %v6750 = vadd.f32 0.0, %v6749
      %v6751 = vpop.f32.mrb[0].mxu0
      %6752 = vmatprep.mubr.f32.mxu0 0.0
      %6753 = vmatmul.mubr.f32.gmra.mrb[0].mxu0 %v6142
      %v6754 = vpop.f32.mrb[0].mxu0
      %v6755 = vadd.f32 0.0, %v6754
      %v6756 = vpop.f32.mrb[0].mxu0
      %6757 = vmatprep.mubr.f32.mxu0 0.0
      %6758 = vmatmul.mubr.f32.gmra.mrb[0].mxu0 %v6145
      %v6759 = vpop.f32.mrb[0].mxu0
      %v6760 = vadd.f32 0.0, %v6759
      %v6761 = vpop.f32.mrb[0].mxu0
      %6762 = vmatprep.mubr.f32.mxu0 0.0
      %6763 = vmatmul.mubr.f32.gmra.mrb[0].mxu0 %v6148
      %v6764 = vpop.f32.mrb[0].mxu0
      %v6765 = vadd.f32 0.0, %v6764
      %v6766 = vpop.f32.mrb[0].mxu0
      %6767 = vmatprep.mubr.f32.mxu0 0.0
      %6768 = vmatmul.mubr.f32.gmra.mrb[0].mxu0 %v6151
      %v6769 = vpop.f32.mrb[0].mxu0
      %v6770 = vadd.f32 0.0, %v6769
      %v6771 = vpop.f32.mrb[0].mxu0
      %6772 = vmatprep.mubr.f32.mxu0 0.0
      %6773 = vmatmul.mubr.f32.gmra.mrb[0].mxu0 %v6154
      %v6774 = vpop.f32.mrb[0].mxu0
      %v6775 = vadd.f32 0.0, %v6774
      %v6776 = vpop.f32.mrb[0].mxu0
      %6777 = vmatprep.mubr.f32.mxu0 0.0
      %6778 = vmatmul.mubr.f32.gmra.mrb[0].mxu0 %v6157
      %v6779 = vpop.f32.mrb[0].mxu0
      %v6780 = vadd.f32 0.0, %v6779
      %v6781 = vpop.f32.mrb[0].mxu0
      %6782 = vmatprep.mubr.f32.mxu0 0.0
      %6783 = vmatmul.mubr.f32.gmra.mrb[0].mxu0 %v6160
      %v6784 = vpop.f32.mrb[0].mxu0
      %v6785 = vadd.f32 0.0, %v6784
      %v6786 = vpop.f32.mrb[0].mxu0
      %6787 = vmatprep.mubr.f32.mxu0 0.0
      %6788 = vmatmul.mubr.f32.gmra.mrb[0].mxu0 %v6163
      %v6789 = vpop.f32.mrb[0].mxu0
      %v6790 = vadd.f32 0.0, %v6789
      %v6791 = vpop.f32.mrb[0].mxu0
      %6792 = vmatprep.mubr.f32.mxu0 0.0
      %6793 = vmatmul.mubr.f32.gmra.mrb[0].mxu0 %v6166
      %v6794 = vpop.f32.mrb[0].mxu0
      %v6795 = vadd.f32 0.0, %v6794
      %v6796 = vpop.f32.mrb[0].mxu0
      %6797 = vmatprep.mubr.f32.mxu0 0.0
      %6798 = vmatmul.mubr.f32.gmra.mrb[0].mxu0 %v6169
      %v6799 = vpop.f32.mrb[0].mxu0
      %v6800 = vadd.f32 0.0, %v6799
      %v6801 = vpop.f32.mrb[0].mxu0
      %6802 = vmatprep.mubr.f32.mxu0 0.0
      %6803 = vmatmul.mubr.f32.gmra.mrb[0].mxu0 %v6172
      %v6804 = vpop.f32.mrb[0].mxu0
      %v6805 = vadd.f32 0.0, %v6804
      %v6806 = vpop.f32.mrb[0].mxu0
      %6807 = vmatprep.mubr.f32.mxu0 0.0
      %6808 = vmatmul.mubr.f32.gmra.mrb[0].mxu0 %v6175
      %v6809 = vpop.f32.mrb[0].mxu0
      %v6810 = vadd.f32 0.0, %v6809
      %v6811 = vpop.f32.mrb[0].mxu0
      %6812 = vmatprep.mubr.f32.mxu0 0.0
      %6813 = vmatmul.mubr.f32.gmra.mrb[0].mxu0 %v6178
      %v6814 = vpop.f32.mrb[0].mxu0
      %v6815 = vadd.f32 0.0, %v6814
      %v6816 = vpop.f32.mrb[0].mxu0
      %6817 = vmatprep.mubr.f32.mxu0 0.0
      %6818 = vmatmul.mubr.f32.gmra.mrb[0].mxu0 %v6181
      %v6819 = vpop.f32.mrb[0].mxu0
      %v6820 = vadd.f32 0.0, %v6819
      %v6821 = vpop.f32.mrb[0].mxu0
      %6822 = vmatprep.mubr.f32.mxu0 0.0
      %6823 = vmatmul.mubr.f32.gmra.mrb[0].mxu0 %v6184
      %v6824 = vpop.f32.mrb[0].mxu0
      %v6825 = vadd.f32 0.0, %v6824
      %v6826 = vpop.f32.mrb[0].mxu0
      %6827 = vmatprep.mubr.f32.mxu0 0.0
      %6828 = vmatmul.mubr.f32.gmra.mrb[0].mxu0 %v6187
      %v6829 = vpop.f32.mrb[0].mxu0
      %v6830 = vadd.f32 0.0, %v6829
      %v6831 = vpop.f32.mrb[0].mxu0
      %6832 = vmatprep.mubr.f32.mxu0 0.0
      %6833 = vmatmul.mubr.f32.gmra.mrb[0].mxu0 %v6190
      %v6834 = vpop.f32.mrb[0].mxu0
      %v6835 = vadd.f32 0.0, %v6834
      %v6836 = vpop.f32.mrb[0].mxu0
      %6837 = vmatprep.mubr.f32.mxu0 0.0
      %6838 = vmatmul.mubr.f32.gmra.mrb[0].mxu0 %v6193
      %v6839 = vpop.f32.mrb[0].mxu0
      %v6840 = vadd.f32 0.0, %v6839
      %v6841 = vpop.f32.mrb[0].mxu0
      %6842 = vmatprep.mubr.f32.mxu0 0.0
      %6843 = vmatmul.mubr.f32.gmra.mrb[0].mxu0 %v6196
      %v6844 = vpop.f32.mrb[0].mxu0
      %v6845 = vadd.f32 0.0, %v6844
      %v6846 = vpop.f32.mrb[0].mxu0
      %6847 = vmatprep.mubr.f32.mxu0 0.0
      %6848 = vmatmul.mubr.f32.gmra.mrb[0].mxu0 %v6199
      %v6849 = vpop.f32.mrb[0].mxu0
      %v6850 = vadd.f32 0.0, %v6849
      %v6851 = vpop.f32.mrb[0].mxu0
      %6852 = vmatprep.mubr.f32.mxu0 0.0
      %6853 = vmatmul.mubr.f32.gmra.mrb[0].mxu0 %v6202
      %v6854 = vpop.f32.mrb[0].mxu0
      %v6855 = vadd.f32 0.0, %v6854
      %v6856 = vpop.f32.mrb[0].mxu0
      %6857 = vmatprep.mubr.f32.mxu0 0.0
      %6858 = vmatmul.mubr.f32.gmra.mrb[0].mxu0 %v6205
      %v6859 = vpop.f32.mrb[0].mxu0
      %v6860 = vadd.f32 0.0, %v6859
      %v6861 = vpop.f32.mrb[0].mxu0
      %6862 = vmatprep.mubr.f32.mxu0 0.0
      %6863 = vmatmul.mubr.f32.gmra.mrb[0].mxu0 %v6208
      %v6864 = vpop.f32.mrb[0].mxu0
      %v6865 = vadd.f32 0.0, %v6864
      %v6866 = vpop.f32.mrb[0].mxu0
      %6867 = vmatprep.mubr.f32.mxu0 0.0
      %6868 = vmatmul.mubr.f32.gmra.mrb[0].mxu0 %v6211
      %v6869 = vpop.f32.mrb[0].mxu0
      %v6870 = vadd.f32 0.0, %v6869
      %v6871 = vpop.f32.mrb[0].mxu0
      %6872 = vmatprep.mubr.f32.mxu0 0.0
      %6873 = vmatmul.mubr.f32.gmra.mrb[0].mxu0 %v6214
      %v6874 = vpop.f32.mrb[0].mxu0
      %v6875 = vadd.f32 0.0, %v6874
      %v6876 = vpop.f32.mrb[0].mxu0
      %6877 = vmatprep.mubr.f32.mxu0 0.0
      %6878 = vmatmul.mubr.f32.gmra.mrb[0].mxu0 %v6217
      %v6879 = vpop.f32.mrb[0].mxu0
      %v6880 = vadd.f32 0.0, %v6879
      %v6881 = vpop.f32.mrb[0].mxu0
      %6882 = vmatprep.mubr.f32.mxu0 0.0
      %6883 = vmatmul.mubr.f32.gmra.mrb[0].mxu0 %v6220
      %v6884 = vpop.f32.mrb[0].mxu0
      %v6885 = vadd.f32 0.0, %v6884
      %v6886 = vpop.f32.mrb[0].mxu0
      %6887 = vmatprep.mubr.f32.mxu0 0.0
      %6888 = vmatmul.mubr.f32.gmra.mrb[0].mxu0 %v6223
      %v6889 = vpop.f32.mrb[0].mxu0
      %v6890 = vadd.f32 0.0, %v6889
      %v6891 = vpop.f32.mrb[0].mxu0
      %6892 = vmatprep.mubr.f32.mxu0 0.0
      %6893 = vmatmul.mubr.f32.gmra.mrb[0].mxu0 %v6226
      %v6894 = vpop.f32.mrb[0].mxu0
      %v6895 = vadd.f32 0.0, %v6894
      %v6896 = vpop.f32.mrb[0].mxu0
      %6897 = vmatprep.mubr.f32.mxu0 0.0
      %6898 = vmatmul.mubr.f32.gmra.mrb[0].mxu0 %v6229
      %v6899 = vpop.f32.mrb[0].mxu0
      %v6900 = vadd.f32 0.0, %v6899
      %v6901 = vpop.f32.mrb[0].mxu0
      %6902 = vmatprep.mubr.f32.mxu0 0.0
      %6903 = vmatmul.mubr.f32.gmra.mrb[0].mxu0 %v6232
      %v6904 = vpop.f32.mrb[0].mxu0
      %v6905 = vadd.f32 0.0, %v6904
      %v6906 = vpop.f32.mrb[0].mxu0
      %6907 = vmatprep.mubr.f32.mxu0 0.0
      %6908 = vmatmul.mubr.f32.gmra.mrb[0].mxu0 %v6235
      %v6909 = vpop.f32.mrb[0].mxu0
      %v6910 = vadd.f32 0.0, %v6909
      %v6911 = vpop.f32.mrb[0].mxu0
      %6912 = vmatprep.mubr.f32.mxu0 0.0
      %6913 = vmatmul.mubr.f32.gmra.mrb[0].mxu0 %v6238
      %v6914 = vpop.f32.mrb[0].mxu0
      %v6915 = vadd.f32 0.0, %v6914
      %v6916 = vpop.f32.mrb[0].mxu0
      %6917 = vmatprep.mubr.f32.mxu0 0.0
      %6918 = vmatmul.mubr.f32.gmra.mrb[0].mxu0 %v6241
      %v6919 = vpop.f32.mrb[0].mxu0
      %v6920 = vadd.f32 0.0, %v6919
      %v6921 = vpop.f32.mrb[0].mxu0
      %6922 = vmatprep.mubr.f32.mxu0 0.0
      %6923 = vmatmul.mubr.f32.gmra.mrb[0].mxu0 %v6244
      %v6924 = vpop.f32.mrb[0].mxu0
      %v6925 = vadd.f32 0.0, %v6924
      %v6926 = vpop.f32.mrb[0].mxu0
      %6927 = vmatprep.mubr.f32.mxu0 0.0
      %6928 = vmatmul.mubr.f32.gmra.mrb[0].mxu0 %v6247
      %v6929 = vpop.f32.mrb[0].mxu0
      %v6930 = vadd.f32 0.0, %v6929
      %v6931 = vpop.f32.mrb[0].mxu0
      %6932 = vmatprep.mubr.f32.mxu0 0.0
      %6933 = vmatmul.mubr.f32.gmra.mrb[0].mxu0 %v6250
      %v6934 = vpop.f32.mrb[0].mxu0
      %v6935 = vadd.f32 0.0, %v6934
      %v6936 = vpop.f32.mrb[0].mxu0
      %6937 = vmatprep.mubr.f32.mxu0 0.0
      %6938 = vmatmul.mubr.f32.gmra.mrb[0].mxu0 %v6253
      %v6939 = vpop.f32.mrb[0].mxu0
      %v6940 = vadd.f32 0.0, %v6939
      %v6941 = vpop.f32.mrb[0].mxu0
      %6942 = vmatprep.mubr.f32.mxu0 0.0
      %6943 = vmatmul.mubr.f32.gmra.mrb[0].mxu0 %v6256
      %v6944 = vpop.f32.mrb[0].mxu0
      %v6945 = vadd.f32 0.0, %v6944
      %v6946 = vpop.f32.mrb[0].mxu0
      %6947 = vmatprep.mubr.f32.mxu0 0.0
      %6948 = vmatmul.mubr.f32.gmra.mrb[0].mxu0 %v6259
      %v6949 = vpop.f32.mrb[0].mxu0
      %v6950 = vadd.f32 0.0, %v6949
      %v6951 = vpop.f32.mrb[0].mxu0
      %6952 = vmatprep.mubr.f32.mxu0 0.0
      %6953 = vmatmul.mubr.f32.gmra.mrb[0].mxu0 %v6262
      %v6954 = vpop.f32.mrb[0].mxu0
      %v6955 = vadd.f32 0.0, %v6954
      %v6956 = vpop.f32.mrb[0].mxu0
      %6957 = vmatprep.mubr.f32.mxu0 0.0
      %6958 = vmatmul.mubr.f32.gmra.mrb[0].mxu0 %v6265
      %v6959 = vpop.f32.mrb[0].mxu0
      %v6960 = vadd.f32 0.0, %v6959
      %v6961 = vpop.f32.mrb[0].mxu0
      %6962 = vmatprep.mubr.f32.mxu0 0.0
      %6963 = vmatmul.mubr.f32.gmra.mrb[0].mxu0 %v6268
      %v6964 = vpop.f32.mrb[0].mxu0
      %v6965 = vadd.f32 0.0, %v6964
      %v6966 = vpop.f32.mrb[0].mxu0
      %6967 = vmatprep.mubr.f32.mxu0 0.0
      %6968 = vmatmul.mubr.f32.gmra.mrb[0].mxu0 %v6271
      %v6969 = vpop.f32.mrb[0].mxu0
      %v6970 = vadd.f32 0.0, %v6969
      %v6971 = vpop.f32.mrb[0].mxu0
      %6972 = vmatprep.mubr.f32.mxu0 0.0
      %6973 = vmatmul.mubr.f32.gmra.mrb[0].mxu0 %v6274
      %v6974 = vpop.f32.mrb[0].mxu0
      %v6975 = vadd.f32 0.0, %v6974
      %v6976 = vpop.f32.mrb[0].mxu0
      %6977 = vmatprep.mubr.f32.mxu0 0.0
      %6978 = vmatmul.mubr.f32.gmra.mrb[0].mxu0 %v6277
      %v6979 = vpop.f32.mrb[0].mxu0
      %v6980 = vadd.f32 0.0, %v6979
      %v6981 = vpop.f32.mrb[0].mxu0
      %6982 = vmatprep.mubr.f32.mxu0 0.0
      %6983 = vmatmul.mubr.f32.gmra.mrb[0].mxu0 %v6280
      %v6984 = vpop.f32.mrb[0].mxu0
      %v6985 = vadd.f32 0.0, %v6984
      %v6986 = vpop.f32.mrb[0].mxu0
      %6987 = vmatprep.mubr.f32.mxu0 0.0
      %6988 = vmatmul.mubr.f32.gmra.mrb[0].mxu0 %v6283
      %v6989 = vpop.f32.mrb[0].mxu0
      %v6990 = vadd.f32 0.0, %v6989
      %v6991 = vpop.f32.mrb[0].mxu0
      %6992 = vdwg.mxu0
      %v6993 = vadd.f32 %v5643, %v6355
      %v6994 = vadd.f32 %v5644, %v6360
      %v6995 = vadd.f32 %v5645, %v6365
      %v6996 = vadd.f32 %v5646, %v6370
      %v6997 = vadd.f32 %v5647, %v6375
      %v6998 = vadd.f32 %v5648, %v6380
      %v6999 = vadd.f32 %v5649, %v6385
      %v7000 = vadd.f32 %v5650, %v6390
      %v7001 = vadd.f32 %v5651, %v6395
      %v7002 = vadd.f32 %v5652, %v6400
      %v7003 = vadd.f32 %v5653, %v6405
      %v7004 = vadd.f32 %v5654, %v6410
      %v7005 = vadd.f32 %v5655, %v6415
      %v7006 = vadd.f32 %v5656, %v6420
      %v7007 = vadd.f32 %v5657, %v6425
      %v7008 = vadd.f32 %v5658, %v6430
      %v7009 = vadd.f32 %v5659, %v6435
      %v7010 = vadd.f32 %v5660, %v6440
      %v7011 = vadd.f32 %v5661, %v6445
      %v7012 = vadd.f32 %v5662, %v6450
      %v7013 = vadd.f32 %v5663, %v6455
      %v7014 = vadd.f32 %v5664, %v6460
      %v7015 = vadd.f32 %v5665, %v6465
      %v7016 = vadd.f32 %v5666, %v6470
      %v7017 = vadd.f32 %v5667, %v6475
      %v7018 = vadd.f32 %v5668, %v6480
      %v7019 = vadd.f32 %v5669, %v6485
      %v7020 = vadd.f32 %v5670, %v6490
      %v7021 = vadd.f32 %v5671, %v6495
      %v7022 = vadd.f32 %v5672, %v6500
      %v7023 = vadd.f32 %v5673, %v6505
      %v7024 = vadd.f32 %v5674, %v6510
      %v7025 = vadd.f32 %v5675, %v6515
      %v7026 = vadd.f32 %v5676, %v6520
      %v7027 = vadd.f32 %v5677, %v6525
      %v7028 = vadd.f32 %v5678, %v6530
      %v7029 = vadd.f32 %v5679, %v6535
      %v7030 = vadd.f32 %v5680, %v6540
      %v7031 = vadd.f32 %v5681, %v6545
      %v7032 = vadd.f32 %v5682, %v6550
      %v7033 = vadd.f32 %v5683, %v6555
      %v7034 = vadd.f32 %v5684, %v6560
      %v7035 = vadd.f32 %v5685, %v6565
      %v7036 = vadd.f32 %v5686, %v6570
      %v7037 = vadd.f32 %v5687, %v6575
      %v7038 = vadd.f32 %v5688, %v6580
      %v7039 = vadd.f32 %v5689, %v6585
      %v7040 = vadd.f32 %v5690, %v6590
      %v7041 = vadd.f32 %v5691, %v6595
      %v7042 = vadd.f32 %v5692, %v6600
      %v7043 = vadd.f32 %v5693, %v6605
      %v7044 = vadd.f32 %v5694, %v6610
      %v7045 = vadd.f32 %v5695, %v6615
      %v7046 = vadd.f32 %v5696, %v6620
      %v7047 = vadd.f32 %v5697, %v6625
      %v7048 = vadd.f32 %v5698, %v6630
      %v7049 = vadd.f32 %v5699, %v6635
      %v7050 = vadd.f32 %v5700, %v6640
      %v7051 = vadd.f32 %v5701, %v6645
      %v7052 = vadd.f32 %v5702, %v6650
      %v7053 = vadd.f32 %v5703, %v6655
      %v7054 = vadd.f32 %v5704, %v6660
      %v7055 = vadd.f32 %v5705, %v6665
      %v7056 = vadd.f32 %v5706, %v6670
      %v7057 = vadd.f32 %v5707, %v6675
      %v7058 = vadd.f32 %v5708, %v6680
      %v7059 = vadd.f32 %v5709, %v6685
      %v7060 = vadd.f32 %v5710, %v6690
      %v7061 = vadd.f32 %v5711, %v6695
      %v7062 = vadd.f32 %v5712, %v6700
      %v7063 = vadd.f32 %v5713, %v6705
      %v7064 = vadd.f32 %v5714, %v6710
      %v7065 = vadd.f32 %v5715, %v6715
      %v7066 = vadd.f32 %v5716, %v6720
      %v7067 = vadd.f32 %v5717, %v6725
      %v7068 = vadd.f32 %v5718, %v6730
      %v7069 = vadd.f32 %v5719, %v6735
      %v7070 = vadd.f32 %v5720, %v6740
      %v7071 = vadd.f32 %v5721, %v6745
      %v7072 = vadd.f32 %v5722, %v6750
      %v7073 = vadd.f32 %v5723, %v6755
      %v7074 = vadd.f32 %v5724, %v6760
      %v7075 = vadd.f32 %v5725, %v6765
      %v7076 = vadd.f32 %v5726, %v6770
      %v7077 = vadd.f32 %v5727, %v6775
      %v7078 = vadd.f32 %v5728, %v6780
      %v7079 = vadd.f32 %v5729, %v6785
      %v7080 = vadd.f32 %v5730, %v6790
      %v7081 = vadd.f32 %v5731, %v6795
      %v7082 = vadd.f32 %v5732, %v6800
      %v7083 = vadd.f32 %v5733, %v6805
      %v7084 = vadd.f32 %v5734, %v6810
      %v7085 = vadd.f32 %v5735, %v6815
      %v7086 = vadd.f32 %v5736, %v6820
      %v7087 = vadd.f32 %v5737, %v6825
      %v7088 = vadd.f32 %v5738, %v6830
      %v7089 = vadd.f32 %v5739, %v6835
      %v7090 = vadd.f32 %v5740, %v6840
      %v7091 = vadd.f32 %v5741, %v6845
      %v7092 = vadd.f32 %v5742, %v6850
      %v7093 = vadd.f32 %v5743, %v6855
      %v7094 = vadd.f32 %v5744, %v6860
      %v7095 = vadd.f32 %v5745, %v6865
      %v7096 = vadd.f32 %v5746, %v6870
      %v7097 = vadd.f32 %v5747, %v6875
      %v7098 = vadd.f32 %v5748, %v6880
      %v7099 = vadd.f32 %v5749, %v6885
      %v7100 = vadd.f32 %v5750, %v6890
      %v7101 = vadd.f32 %v5751, %v6895
      %v7102 = vadd.f32 %v5752, %v6900
      %v7103 = vadd.f32 %v5753, %v6905
      %v7104 = vadd.f32 %v5754, %v6910
      %v7105 = vadd.f32 %v5755, %v6915
      %v7106 = vadd.f32 %v5756, %v6920
      %v7107 = vadd.f32 %v5757, %v6925
      %v7108 = vadd.f32 %v5758, %v6930
      %v7109 = vadd.f32 %v5759, %v6935
      %v7110 = vadd.f32 %v5760, %v6940
      %v7111 = vadd.f32 %v5761, %v6945
      %v7112 = vadd.f32 %v5762, %v6950
      %v7113 = vadd.f32 %v5763, %v6955
      %v7114 = vadd.f32 %v5764, %v6960
      %v7115 = vadd.f32 %v5765, %v6965
      %v7116 = vadd.f32 %v5766, %v6970
      %v7117 = vadd.f32 %v5767, %v6975
      %v7118 = vadd.f32 %v5768, %v6980
      %v7119 = vadd.f32 %v5769, %v6985
      %v7120 = vadd.f32 %v5770, %v6990
      %v7121 = vld [vmem:[%s498 + $0x2] sm:$0xff]
      %v7122 = vld [vmem:[%s498 + $0xa] sm:$0xff]
      %v7123 = vld [vmem:[%s498 + $0x12] sm:$0xff]
      %v7124 = vld [vmem:[%s498 + $0x1a] sm:$0xff]
      %v7125 = vld [vmem:[%s498 + $0x2a] sm:$0xff]
      %v7126 = vld [vmem:[%s498 + $0x32] sm:$0xff]
      %v7127 = vld [vmem:[%s498 + $0x3a] sm:$0xff]
      %v7128 = vld [vmem:[%s498 + $0x42] sm:$0xff]
      %v7129 = vld [vmem:[%s498 + $0x52] sm:$0xff]
      %v7130 = vld [vmem:[%s498 + $0x5a] sm:$0xff]
      %v7131 = vld [vmem:[%s498 + $0x62] sm:$0xff]
      %v7132 = vld [vmem:[%s498 + $0x6a] sm:$0xff]
      %v7133 = vld [vmem:[%s498 + $0x7a] sm:$0xff]
      %v7134 = vld [vmem:[%s498 + $0x82] sm:$0xff]
      %v7135 = vld [vmem:[%s498 + $0x8a] sm:$0xff]
      %v7136 = vld [vmem:[%s498 + $0x92] sm:$0xff]
      %v7137 = vld [vmem:[%s498 + $0xa2] sm:$0xff]
      %v7138 = vld [vmem:[%s498 + $0xaa] sm:$0xff]
      %v7139 = vld [vmem:[%s498 + $0xb2] sm:$0xff]
      %v7140 = vld [vmem:[%s498 + $0xba] sm:$0xff]
      %v7141 = vld [vmem:[%s498 + $0xca] sm:$0xff]
      %v7142 = vld [vmem:[%s498 + $0xd2] sm:$0xff]
      %v7143 = vld [vmem:[%s498 + $0xda] sm:$0xff]
      %v7144 = vld [vmem:[%s498 + $0xe2] sm:$0xff]
      %v7145 = vld [vmem:[%s498 + $0xf2] sm:$0xff]
      %v7146 = vld [vmem:[%s498 + $0xfa] sm:$0xff]
      %v7147 = vld [vmem:[%s498 + $0x102] sm:$0xff]
      %v7148 = vld [vmem:[%s498 + $0x10a] sm:$0xff]
      %v7149 = vld [vmem:[%s498 + $0x11a] sm:$0xff]
      %v7150 = vld [vmem:[%s498 + $0x122] sm:$0xff]
      %v7151 = vld [vmem:[%s498 + $0x12a] sm:$0xff]
      %v7152 = vld [vmem:[%s498 + $0x132] sm:$0xff]
      %v7153 = vld [vmem:[%s498 + $0x142] sm:$0xff]
      %v7154 = vld [vmem:[%s498 + $0x14a] sm:$0xff]
      %v7155 = vld [vmem:[%s498 + $0x152] sm:$0xff]
      %v7156 = vld [vmem:[%s498 + $0x15a] sm:$0xff]
      %v7157 = vld [vmem:[%s498 + $0x16a] sm:$0xff]
      %v7158 = vld [vmem:[%s498 + $0x172] sm:$0xff]
      %v7159 = vld [vmem:[%s498 + $0x17a] sm:$0xff]
      %v7160 = vld [vmem:[%s498 + $0x182] sm:$0xff]
      %v7161 = vld [vmem:[%s498 + $0x192] sm:$0xff]
      %v7162 = vld [vmem:[%s498 + $0x19a] sm:$0xff]
      %v7163 = vld [vmem:[%s498 + $0x1a2] sm:$0xff]
      %v7164 = vld [vmem:[%s498 + $0x1aa] sm:$0xff]
      %v7165 = vld [vmem:[%s498 + $0x1ba] sm:$0xff]
      %v7166 = vld [vmem:[%s498 + $0x1c2] sm:$0xff]
      %v7167 = vld [vmem:[%s498 + $0x1ca] sm:$0xff]
      %v7168 = vld [vmem:[%s498 + $0x1d2] sm:$0xff]
      %v7169 = vld [vmem:[%s498 + $0x1e2] sm:$0xff]
      %v7170 = vld [vmem:[%s498 + $0x1ea] sm:$0xff]
      %v7171 = vld [vmem:[%s498 + $0x1f2] sm:$0xff]
      %v7172 = vld [vmem:[%s498 + $0x1fa] sm:$0xff]
      %v7173 = vld [vmem:[%s498 + $0x20a] sm:$0xff]
      %v7174 = vld [vmem:[%s498 + $0x212] sm:$0xff]
      %v7175 = vld [vmem:[%s498 + $0x21a] sm:$0xff]
      %v7176 = vld [vmem:[%s498 + $0x222] sm:$0xff]
      %v7177 = vld [vmem:[%s498 + $0x232] sm:$0xff]
      %v7178 = vld [vmem:[%s498 + $0x23a] sm:$0xff]
      %v7179 = vld [vmem:[%s498 + $0x242] sm:$0xff]
      %v7180 = vld [vmem:[%s498 + $0x24a] sm:$0xff]
      %v7181 = vld [vmem:[%s498 + $0x25a] sm:$0xff]
      %v7182 = vld [vmem:[%s498 + $0x262] sm:$0xff]
      %v7183 = vld [vmem:[%s498 + $0x26a] sm:$0xff]
      %v7184 = vld [vmem:[%s498 + $0x272] sm:$0xff]
      %v7185 = vld [vmem:[%s498 + $0x282] sm:$0xff]
      %v7186 = vld [vmem:[%s498 + $0x28a] sm:$0xff]
      %v7187 = vld [vmem:[%s498 + $0x292] sm:$0xff]
      %v7188 = vld [vmem:[%s498 + $0x29a] sm:$0xff]
      %v7189 = vld [vmem:[%s498 + $0x2aa] sm:$0xff]
      %v7190 = vld [vmem:[%s498 + $0x2b2] sm:$0xff]
      %v7191 = vld [vmem:[%s498 + $0x2ba] sm:$0xff]
      %v7192 = vld [vmem:[%s498 + $0x2c2] sm:$0xff]
      %v7193 = vld [vmem:[%s498 + $0x2d2] sm:$0xff]
      %v7194 = vld [vmem:[%s498 + $0x2da] sm:$0xff]
      %v7195 = vld [vmem:[%s498 + $0x2e2] sm:$0xff]
      %v7196 = vld [vmem:[%s498 + $0x2ea] sm:$0xff]
      %v7197 = vld [vmem:[%s498 + $0x2fa] sm:$0xff]
      %v7198 = vld [vmem:[%s498 + $0x302] sm:$0xff]
      %v7199 = vld [vmem:[%s498 + $0x30a] sm:$0xff]
      %v7200 = vld [vmem:[%s498 + $0x312] sm:$0xff]
      %v7201 = vld [vmem:[%s498 + $0x322] sm:$0xff]
      %v7202 = vld [vmem:[%s498 + $0x32a] sm:$0xff]
      %v7203 = vld [vmem:[%s498 + $0x332] sm:$0xff]
      %v7204 = vld [vmem:[%s498 + $0x33a] sm:$0xff]
      %v7205 = vld [vmem:[%s498 + $0x34a] sm:$0xff]
      %v7206 = vld [vmem:[%s498 + $0x352] sm:$0xff]
      %v7207 = vld [vmem:[%s498 + $0x35a] sm:$0xff]
      %v7208 = vld [vmem:[%s498 + $0x362] sm:$0xff]
      %v7209 = vld [vmem:[%s498 + $0x372] sm:$0xff]
      %v7210 = vld [vmem:[%s498 + $0x37a] sm:$0xff]
      %v7211 = vld [vmem:[%s498 + $0x382] sm:$0xff]
      %v7212 = vld [vmem:[%s498 + $0x38a] sm:$0xff]
      %v7213 = vld [vmem:[%s498 + $0x39a] sm:$0xff]
      %v7214 = vld [vmem:[%s498 + $0x3a2] sm:$0xff]
      %v7215 = vld [vmem:[%s498 + $0x3aa] sm:$0xff]
      %v7216 = vld [vmem:[%s498 + $0x3b2] sm:$0xff]
      %v7217 = vld [vmem:[%s498 + $0x3c2] sm:$0xff]
      %v7218 = vld [vmem:[%s498 + $0x3ca] sm:$0xff]
      %v7219 = vld [vmem:[%s498 + $0x3d2] sm:$0xff]
      %v7220 = vld [vmem:[%s498 + $0x3da] sm:$0xff]
      %v7221 = vld [vmem:[%s498 + $0x3ea] sm:$0xff]
      %v7222 = vld [vmem:[%s498 + $0x3f2] sm:$0xff]
      %v7223 = vld [vmem:[%s498 + $0x3fa] sm:$0xff]
      %v7224 = vld [vmem:[%s498 + $0x402] sm:$0xff]
      %v7225 = vld [vmem:[%s498 + $0x412] sm:$0xff]
      %v7226 = vld [vmem:[%s498 + $0x41a] sm:$0xff]
      %v7227 = vld [vmem:[%s498 + $0x422] sm:$0xff]
      %v7228 = vld [vmem:[%s498 + $0x42a] sm:$0xff]
      %v7229 = vld [vmem:[%s498 + $0x43a] sm:$0xff]
      %v7230 = vld [vmem:[%s498 + $0x442] sm:$0xff]
      %v7231 = vld [vmem:[%s498 + $0x44a] sm:$0xff]
      %v7232 = vld [vmem:[%s498 + $0x452] sm:$0xff]
      %v7233 = vld [vmem:[%s498 + $0x462] sm:$0xff]
      %v7234 = vld [vmem:[%s498 + $0x46a] sm:$0xff]
      %v7235 = vld [vmem:[%s498 + $0x472] sm:$0xff]
      %v7236 = vld [vmem:[%s498 + $0x47a] sm:$0xff]
      %v7237 = vld [vmem:[%s498 + $0x48a] sm:$0xff]
      %v7238 = vld [vmem:[%s498 + $0x492] sm:$0xff]
      %v7239 = vld [vmem:[%s498 + $0x49a] sm:$0xff]
      %v7240 = vld [vmem:[%s498 + $0x4a2] sm:$0xff]
      %v7241 = vld [vmem:[%s498 + $0x4b2] sm:$0xff]
      %v7242 = vld [vmem:[%s498 + $0x4ba] sm:$0xff]
      %v7243 = vld [vmem:[%s498 + $0x4c2] sm:$0xff]
      %v7244 = vld [vmem:[%s498 + $0x4ca] sm:$0xff]
      %v7245 = vld [vmem:[%s498 + $0x4da] sm:$0xff]
      %v7246 = vld [vmem:[%s498 + $0x4e2] sm:$0xff]
      %v7247 = vld [vmem:[%s498 + $0x4ea] sm:$0xff]
      %v7248 = vld [vmem:[%s498 + $0x4f2] sm:$0xff]
      %s7249 = scalar_lea.vmem %s1, 20
      %v7250 = vld [vmem:[%s7249] sm:$0x7]
      %v7252 = vsel %vm326, %v7121, 0
      %v7255 = vsel %vm326, %v7122, 0
      %v7258 = vsel %vm326, %v7123, 0
      %v7261 = vsel %vm326, %v7124, 0
      %v7264 = vsel %vm326, %v7125, 0
      %v7267 = vsel %vm326, %v7126, 0
      %v7270 = vsel %vm326, %v7127, 0
      %v7273 = vsel %vm326, %v7128, 0
      %v7276 = vsel %vm326, %v7129, 0
      %v7279 = vsel %vm326, %v7130, 0
      %v7282 = vsel %vm326, %v7131, 0
      %v7285 = vsel %vm326, %v7132, 0
      %v7288 = vsel %vm326, %v7133, 0
      %v7291 = vsel %vm326, %v7134, 0
      %v7294 = vsel %vm326, %v7135, 0
      %v7297 = vsel %vm326, %v7136, 0
      %v7300 = vsel %vm326, %v7137, 0
      %v7303 = vsel %vm326, %v7138, 0
      %v7306 = vsel %vm326, %v7139, 0
      %v7309 = vsel %vm326, %v7140, 0
      %v7312 = vsel %vm326, %v7141, 0
      %v7315 = vsel %vm326, %v7142, 0
      %v7318 = vsel %vm326, %v7143, 0
      %v7321 = vsel %vm326, %v7144, 0
      %v7324 = vsel %vm326, %v7145, 0
      %v7327 = vsel %vm326, %v7146, 0
      %v7330 = vsel %vm326, %v7147, 0
      %v7333 = vsel %vm326, %v7148, 0
      %v7336 = vsel %vm326, %v7149, 0
      %v7339 = vsel %vm326, %v7150, 0
      %v7342 = vsel %vm326, %v7151, 0
      %v7345 = vsel %vm326, %v7152, 0
      %v7348 = vsel %vm326, %v7153, 0
      %v7351 = vsel %vm326, %v7154, 0
      %v7354 = vsel %vm326, %v7155, 0
      %v7357 = vsel %vm326, %v7156, 0
      %v7360 = vsel %vm326, %v7157, 0
      %v7363 = vsel %vm326, %v7158, 0
      %v7366 = vsel %vm326, %v7159, 0
      %v7369 = vsel %vm326, %v7160, 0
      %v7372 = vsel %vm326, %v7161, 0
      %v7375 = vsel %vm326, %v7162, 0
      %v7378 = vsel %vm326, %v7163, 0
      %v7381 = vsel %vm326, %v7164, 0
      %v7384 = vsel %vm326, %v7165, 0
      %v7387 = vsel %vm326, %v7166, 0
      %v7390 = vsel %vm326, %v7167, 0
      %v7393 = vsel %vm326, %v7168, 0
      %v7396 = vsel %vm326, %v7169, 0
      %v7399 = vsel %vm326, %v7170, 0
      %v7402 = vsel %vm326, %v7171, 0
      %v7405 = vsel %vm326, %v7172, 0
      %v7408 = vsel %vm326, %v7173, 0
      %v7411 = vsel %vm326, %v7174, 0
      %v7414 = vsel %vm326, %v7175, 0
      %v7417 = vsel %vm326, %v7176, 0
      %v7420 = vsel %vm326, %v7177, 0
      %v7423 = vsel %vm326, %v7178, 0
      %v7426 = vsel %vm326, %v7179, 0
      %v7429 = vsel %vm326, %v7180, 0
      %v7432 = vsel %vm326, %v7181, 0
      %v7435 = vsel %vm326, %v7182, 0
      %v7438 = vsel %vm326, %v7183, 0
      %v7441 = vsel %vm326, %v7184, 0
      %v7444 = vsel %vm326, %v7185, 0
      %v7447 = vsel %vm326, %v7186, 0
      %v7450 = vsel %vm326, %v7187, 0
      %v7453 = vsel %vm326, %v7188, 0
      %v7456 = vsel %vm326, %v7189, 0
      %v7459 = vsel %vm326, %v7190, 0
      %v7462 = vsel %vm326, %v7191, 0
      %v7465 = vsel %vm326, %v7192, 0
      %v7468 = vsel %vm326, %v7193, 0
      %v7471 = vsel %vm326, %v7194, 0
      %v7474 = vsel %vm326, %v7195, 0
      %v7477 = vsel %vm326, %v7196, 0
      %v7480 = vsel %vm326, %v7197, 0
      %v7483 = vsel %vm326, %v7198, 0
      %v7486 = vsel %vm326, %v7199, 0
      %v7489 = vsel %vm326, %v7200, 0
      %v7492 = vsel %vm326, %v7201, 0
      %v7495 = vsel %vm326, %v7202, 0
      %v7498 = vsel %vm326, %v7203, 0
      %v7501 = vsel %vm326, %v7204, 0
      %v7504 = vsel %vm326, %v7205, 0
      %v7507 = vsel %vm326, %v7206, 0
      %v7510 = vsel %vm326, %v7207, 0
      %v7513 = vsel %vm326, %v7208, 0
      %v7516 = vsel %vm326, %v7209, 0
      %v7519 = vsel %vm326, %v7210, 0
      %v7522 = vsel %vm326, %v7211, 0
      %v7525 = vsel %vm326, %v7212, 0
      %v7528 = vsel %vm326, %v7213, 0
      %v7531 = vsel %vm326, %v7214, 0
      %v7534 = vsel %vm326, %v7215, 0
      %v7537 = vsel %vm326, %v7216, 0
      %v7540 = vsel %vm326, %v7217, 0
      %v7543 = vsel %vm326, %v7218, 0
      %v7546 = vsel %vm326, %v7219, 0
      %v7549 = vsel %vm326, %v7220, 0
      %v7552 = vsel %vm326, %v7221, 0
      %v7555 = vsel %vm326, %v7222, 0
      %v7558 = vsel %vm326, %v7223, 0
      %v7561 = vsel %vm326, %v7224, 0
      %v7564 = vsel %vm326, %v7225, 0
      %v7567 = vsel %vm326, %v7226, 0
      %v7570 = vsel %vm326, %v7227, 0
      %v7573 = vsel %vm326, %v7228, 0
      %v7576 = vsel %vm326, %v7229, 0
      %v7579 = vsel %vm326, %v7230, 0
      %v7582 = vsel %vm326, %v7231, 0
      %v7585 = vsel %vm326, %v7232, 0
      %v7588 = vsel %vm326, %v7233, 0
      %v7591 = vsel %vm326, %v7234, 0
      %v7594 = vsel %vm326, %v7235, 0
      %v7597 = vsel %vm326, %v7236, 0
      %v7600 = vsel %vm326, %v7237, 0
      %v7603 = vsel %vm326, %v7238, 0
      %v7606 = vsel %vm326, %v7239, 0
      %v7609 = vsel %vm326, %v7240, 0
      %v7612 = vsel %vm326, %v7241, 0
      %v7615 = vsel %vm326, %v7242, 0
      %v7618 = vsel %vm326, %v7243, 0
      %v7621 = vsel %vm326, %v7244, 0
      %v7624 = vsel %vm326, %v7245, 0
      %v7627 = vsel %vm326, %v7246, 0
      %v7630 = vsel %vm326, %v7247, 0
      %v7633 = vsel %vm326, %v7248, 0
      %v7636 = vsel %vm1270, %v7250, 0
      %7638 = vmatprep.subr.mxu0 0.0
      %7639 = vmatpush1.msra.mxu0 %v7636
      %7640 = vmatprep.subr.mxu0 0.0
      %7641 = vmatpush1.msra.mxu0 0.0
      %7642 = vmatprep.subr.mxu0 0.0
      %7643 = vmatpush1.msra.mxu0 0.0
      %7644 = vmatprep.subr.mxu0 0.0
      %7645 = vmatpush1.msra.mxu0 0.0
      %7646 = vmatprep.subr.mxu0 0.0
      %7647 = vmatpush1.msra.mxu0 0.0
      %7648 = vmatprep.subr.mxu0 0.0
      %7649 = vmatpush1.msra.mxu0 0.0
      %7650 = vmatprep.subr.mxu0 0.0
      %7651 = vmatpush1.msra.mxu0 0.0
      %7652 = vmatprep.subr.mxu0 0.0
      %7653 = vmatpush1.msra.mxu0 0.0
      %7654 = vmatprep.subr.mxu0 0.0
      %7655 = vmatpush1.msra.mxu0 0.0
      %7656 = vmatprep.subr.mxu0 0.0
      %7657 = vmatpush1.msra.mxu0 0.0
      %7658 = vmatprep.subr.mxu0 0.0
      %7659 = vmatpush1.msra.mxu0 0.0
      %7660 = vmatprep.subr.mxu0 0.0
      %7661 = vmatpush1.msra.mxu0 0.0
      %7662 = vmatprep.subr.mxu0 0.0
      %7663 = vmatpush1.msra.mxu0 0.0
      %7664 = vmatprep.subr.mxu0 0.0
      %7665 = vmatpush1.msra.mxu0 0.0
      %7666 = vmatprep.subr.mxu0 0.0
      %7667 = vmatpush1.msra.mxu0 0.0
      %7668 = vmatprep.subr.mxu0 0.0
      %7669 = vmatpush1.msra.mxu0 0.0
      %7670 = vmatprep.subr.mxu0 0.0
      %7671 = vmatpush1.msra.mxu0 0.0
      %7672 = vmatprep.subr.mxu0 0.0
      %7673 = vmatpush1.msra.mxu0 0.0
      %7674 = vmatprep.subr.mxu0 0.0
      %7675 = vmatpush1.msra.mxu0 0.0
      %7676 = vmatprep.subr.mxu0 0.0
      %7677 = vmatpush1.msra.mxu0 0.0
      %7678 = vmatprep.subr.mxu0 0.0
      %7679 = vmatpush1.msra.mxu0 0.0
      %7680 = vmatprep.subr.mxu0 0.0
      %7681 = vmatpush1.msra.mxu0 0.0
      %7682 = vmatprep.subr.mxu0 0.0
      %7683 = vmatpush1.msra.mxu0 0.0
      %7684 = vmatprep.subr.mxu0 0.0
      %7685 = vmatpush1.msra.mxu0 0.0
      %7686 = vmatprep.subr.mxu0 0.0
      %7687 = vmatpush1.msra.mxu0 0.0
      %7688 = vmatprep.subr.mxu0 0.0
      %7689 = vmatpush1.msra.mxu0 0.0
      %7690 = vmatprep.subr.mxu0 0.0
      %7691 = vmatpush1.msra.mxu0 0.0
      %7692 = vmatprep.subr.mxu0 0.0
      %7693 = vmatpush1.msra.mxu0 0.0
      %7694 = vmatprep.subr.mxu0 0.0
      %7695 = vmatpush1.msra.mxu0 0.0
      %7696 = vmatprep.subr.mxu0 0.0
      %7697 = vmatpush1.msra.mxu0 0.0
      %7698 = vmatprep.subr.mxu0 0.0
      %7699 = vmatpush1.msra.mxu0 0.0
      %7700 = vmatprep.subr.mxu0 0.0
      %7701 = vmatpush1.msra.mxu0 0.0
      %7702 = vmatprep.mubr.f32.mxu0 0.0
      %7703 = vmatmul.mubr.f32.gmra.mrb[0].mxu0 %v7252
      %v7704 = vpop.f32.mrb[0].mxu0
      %v7705 = vadd.f32 0.0, %v7704
      %v7706 = vpop.f32.mrb[0].mxu0
      %7707 = vmatprep.mubr.f32.mxu0 0.0
      %7708 = vmatmul.mubr.f32.gmra.mrb[0].mxu0 %v7255
      %v7709 = vpop.f32.mrb[0].mxu0
      %v7710 = vadd.f32 0.0, %v7709
      %v7711 = vpop.f32.mrb[0].mxu0
      %7712 = vmatprep.mubr.f32.mxu0 0.0
      %7713 = vmatmul.mubr.f32.gmra.mrb[0].mxu0 %v7258
      %v7714 = vpop.f32.mrb[0].mxu0
      %v7715 = vadd.f32 0.0, %v7714
      %v7716 = vpop.f32.mrb[0].mxu0
      %7717 = vmatprep.mubr.f32.mxu0 0.0
      %7718 = vmatmul.mubr.f32.gmra.mrb[0].mxu0 %v7261
      %v7719 = vpop.f32.mrb[0].mxu0
      %v7720 = vadd.f32 0.0, %v7719
      %v7721 = vpop.f32.mrb[0].mxu0
      %7722 = vmatprep.mubr.f32.mxu0 0.0
      %7723 = vmatmul.mubr.f32.gmra.mrb[0].mxu0 %v7264
      %v7724 = vpop.f32.mrb[0].mxu0
      %v7725 = vadd.f32 0.0, %v7724
      %v7726 = vpop.f32.mrb[0].mxu0
      %7727 = vmatprep.mubr.f32.mxu0 0.0
      %7728 = vmatmul.mubr.f32.gmra.mrb[0].mxu0 %v7267
      %v7729 = vpop.f32.mrb[0].mxu0
      %v7730 = vadd.f32 0.0, %v7729
      %v7731 = vpop.f32.mrb[0].mxu0
      %7732 = vmatprep.mubr.f32.mxu0 0.0
      %7733 = vmatmul.mubr.f32.gmra.mrb[0].mxu0 %v7270
      %v7734 = vpop.f32.mrb[0].mxu0
      %v7735 = vadd.f32 0.0, %v7734
      %v7736 = vpop.f32.mrb[0].mxu0
      %7737 = vmatprep.mubr.f32.mxu0 0.0
      %7738 = vmatmul.mubr.f32.gmra.mrb[0].mxu0 %v7273
      %v7739 = vpop.f32.mrb[0].mxu0
      %v7740 = vadd.f32 0.0, %v7739
      %v7741 = vpop.f32.mrb[0].mxu0
      %7742 = vmatprep.mubr.f32.mxu0 0.0
      %7743 = vmatmul.mubr.f32.gmra.mrb[0].mxu0 %v7276
      %v7744 = vpop.f32.mrb[0].mxu0
      %v7745 = vadd.f32 0.0, %v7744
      %v7746 = vpop.f32.mrb[0].mxu0
      %7747 = vmatprep.mubr.f32.mxu0 0.0
      %7748 = vmatmul.mubr.f32.gmra.mrb[0].mxu0 %v7279
      %v7749 = vpop.f32.mrb[0].mxu0
      %v7750 = vadd.f32 0.0, %v7749
      %v7751 = vpop.f32.mrb[0].mxu0
      %7752 = vmatprep.mubr.f32.mxu0 0.0
      %7753 = vmatmul.mubr.f32.gmra.mrb[0].mxu0 %v7282
      %v7754 = vpop.f32.mrb[0].mxu0
      %v7755 = vadd.f32 0.0, %v7754
      %v7756 = vpop.f32.mrb[0].mxu0
      %7757 = vmatprep.mubr.f32.mxu0 0.0
      %7758 = vmatmul.mubr.f32.gmra.mrb[0].mxu0 %v7285
      %v7759 = vpop.f32.mrb[0].mxu0
      %v7760 = vadd.f32 0.0, %v7759
      %v7761 = vpop.f32.mrb[0].mxu0
      %7762 = vmatprep.mubr.f32.mxu0 0.0
      %7763 = vmatmul.mubr.f32.gmra.mrb[0].mxu0 %v7288
      %v7764 = vpop.f32.mrb[0].mxu0
      %v7765 = vadd.f32 0.0, %v7764
      %v7766 = vpop.f32.mrb[0].mxu0
      %7767 = vmatprep.mubr.f32.mxu0 0.0
      %7768 = vmatmul.mubr.f32.gmra.mrb[0].mxu0 %v7291
      %v7769 = vpop.f32.mrb[0].mxu0
      %v7770 = vadd.f32 0.0, %v7769
      %v7771 = vpop.f32.mrb[0].mxu0
      %7772 = vmatprep.mubr.f32.mxu0 0.0
      %7773 = vmatmul.mubr.f32.gmra.mrb[0].mxu0 %v7294
      %v7774 = vpop.f32.mrb[0].mxu0
      %v7775 = vadd.f32 0.0, %v7774
      %v7776 = vpop.f32.mrb[0].mxu0
      %7777 = vmatprep.mubr.f32.mxu0 0.0
      %7778 = vmatmul.mubr.f32.gmra.mrb[0].mxu0 %v7297
      %v7779 = vpop.f32.mrb[0].mxu0
      %v7780 = vadd.f32 0.0, %v7779
      %v7781 = vpop.f32.mrb[0].mxu0
      %7782 = vmatprep.mubr.f32.mxu0 0.0
      %7783 = vmatmul.mubr.f32.gmra.mrb[0].mxu0 %v7300
      %v7784 = vpop.f32.mrb[0].mxu0
      %v7785 = vadd.f32 0.0, %v7784
      %v7786 = vpop.f32.mrb[0].mxu0
      %7787 = vmatprep.mubr.f32.mxu0 0.0
      %7788 = vmatmul.mubr.f32.gmra.mrb[0].mxu0 %v7303
      %v7789 = vpop.f32.mrb[0].mxu0
      %v7790 = vadd.f32 0.0, %v7789
      %v7791 = vpop.f32.mrb[0].mxu0
      %7792 = vmatprep.mubr.f32.mxu0 0.0
      %7793 = vmatmul.mubr.f32.gmra.mrb[0].mxu0 %v7306
      %v7794 = vpop.f32.mrb[0].mxu0
      %v7795 = vadd.f32 0.0, %v7794
      %v7796 = vpop.f32.mrb[0].mxu0
      %7797 = vmatprep.mubr.f32.mxu0 0.0
      %7798 = vmatmul.mubr.f32.gmra.mrb[0].mxu0 %v7309
      %v7799 = vpop.f32.mrb[0].mxu0
      %v7800 = vadd.f32 0.0, %v7799
      %v7801 = vpop.f32.mrb[0].mxu0
      %7802 = vmatprep.mubr.f32.mxu0 0.0
      %7803 = vmatmul.mubr.f32.gmra.mrb[0].mxu0 %v7312
      %v7804 = vpop.f32.mrb[0].mxu0
      %v7805 = vadd.f32 0.0, %v7804
      %v7806 = vpop.f32.mrb[0].mxu0
      %7807 = vmatprep.mubr.f32.mxu0 0.0
      %7808 = vmatmul.mubr.f32.gmra.mrb[0].mxu0 %v7315
      %v7809 = vpop.f32.mrb[0].mxu0
      %v7810 = vadd.f32 0.0, %v7809
      %v7811 = vpop.f32.mrb[0].mxu0
      %7812 = vmatprep.mubr.f32.mxu0 0.0
      %7813 = vmatmul.mubr.f32.gmra.mrb[0].mxu0 %v7318
      %v7814 = vpop.f32.mrb[0].mxu0
      %v7815 = vadd.f32 0.0, %v7814
      %v7816 = vpop.f32.mrb[0].mxu0
      %7817 = vmatprep.mubr.f32.mxu0 0.0
      %7818 = vmatmul.mubr.f32.gmra.mrb[0].mxu0 %v7321
      %v7819 = vpop.f32.mrb[0].mxu0
      %v7820 = vadd.f32 0.0, %v7819
      %v7821 = vpop.f32.mrb[0].mxu0
      %7822 = vmatprep.mubr.f32.mxu0 0.0
      %7823 = vmatmul.mubr.f32.gmra.mrb[0].mxu0 %v7324
      %v7824 = vpop.f32.mrb[0].mxu0
      %v7825 = vadd.f32 0.0, %v7824
      %v7826 = vpop.f32.mrb[0].mxu0
      %7827 = vmatprep.mubr.f32.mxu0 0.0
      %7828 = vmatmul.mubr.f32.gmra.mrb[0].mxu0 %v7327
      %v7829 = vpop.f32.mrb[0].mxu0
      %v7830 = vadd.f32 0.0, %v7829
      %v7831 = vpop.f32.mrb[0].mxu0
      %7832 = vmatprep.mubr.f32.mxu0 0.0
      %7833 = vmatmul.mubr.f32.gmra.mrb[0].mxu0 %v7330
      %v7834 = vpop.f32.mrb[0].mxu0
      %v7835 = vadd.f32 0.0, %v7834
      %v7836 = vpop.f32.mrb[0].mxu0
      %7837 = vmatprep.mubr.f32.mxu0 0.0
      %7838 = vmatmul.mubr.f32.gmra.mrb[0].mxu0 %v7333
      %v7839 = vpop.f32.mrb[0].mxu0
      %v7840 = vadd.f32 0.0, %v7839
      %v7841 = vpop.f32.mrb[0].mxu0
      %7842 = vmatprep.mubr.f32.mxu0 0.0
      %7843 = vmatmul.mubr.f32.gmra.mrb[0].mxu0 %v7336
      %v7844 = vpop.f32.mrb[0].mxu0
      %v7845 = vadd.f32 0.0, %v7844
      %v7846 = vpop.f32.mrb[0].mxu0
      %7847 = vmatprep.mubr.f32.mxu0 0.0
      %7848 = vmatmul.mubr.f32.gmra.mrb[0].mxu0 %v7339
      %v7849 = vpop.f32.mrb[0].mxu0
      %v7850 = vadd.f32 0.0, %v7849
      %v7851 = vpop.f32.mrb[0].mxu0
      %7852 = vmatprep.mubr.f32.mxu0 0.0
      %7853 = vmatmul.mubr.f32.gmra.mrb[0].mxu0 %v7342
      %v7854 = vpop.f32.mrb[0].mxu0
      %v7855 = vadd.f32 0.0, %v7854
      %v7856 = vpop.f32.mrb[0].mxu0
      %7857 = vmatprep.mubr.f32.mxu0 0.0
      %7858 = vmatmul.mubr.f32.gmra.mrb[0].mxu0 %v7345
      %v7859 = vpop.f32.mrb[0].mxu0
      %v7860 = vadd.f32 0.0, %v7859
      %v7861 = vpop.f32.mrb[0].mxu0
      %7862 = vmatprep.mubr.f32.mxu0 0.0
      %7863 = vmatmul.mubr.f32.gmra.mrb[0].mxu0 %v7348
      %v7864 = vpop.f32.mrb[0].mxu0
      %v7865 = vadd.f32 0.0, %v7864
      %v7866 = vpop.f32.mrb[0].mxu0
      %7867 = vmatprep.mubr.f32.mxu0 0.0
      %7868 = vmatmul.mubr.f32.gmra.mrb[0].mxu0 %v7351
      %v7869 = vpop.f32.mrb[0].mxu0
      %v7870 = vadd.f32 0.0, %v7869
      %v7871 = vpop.f32.mrb[0].mxu0
      %7872 = vmatprep.mubr.f32.mxu0 0.0
      %7873 = vmatmul.mubr.f32.gmra.mrb[0].mxu0 %v7354
      %v7874 = vpop.f32.mrb[0].mxu0
      %v7875 = vadd.f32 0.0, %v7874
      %v7876 = vpop.f32.mrb[0].mxu0
      %7877 = vmatprep.mubr.f32.mxu0 0.0
      %7878 = vmatmul.mubr.f32.gmra.mrb[0].mxu0 %v7357
      %v7879 = vpop.f32.mrb[0].mxu0
      %v7880 = vadd.f32 0.0, %v7879
      %v7881 = vpop.f32.mrb[0].mxu0
      %7882 = vmatprep.mubr.f32.mxu0 0.0
      %7883 = vmatmul.mubr.f32.gmra.mrb[0].mxu0 %v7360
      %v7884 = vpop.f32.mrb[0].mxu0
      %v7885 = vadd.f32 0.0, %v7884
      %v7886 = vpop.f32.mrb[0].mxu0
      %7887 = vmatprep.mubr.f32.mxu0 0.0
      %7888 = vmatmul.mubr.f32.gmra.mrb[0].mxu0 %v7363
      %v7889 = vpop.f32.mrb[0].mxu0
      %v7890 = vadd.f32 0.0, %v7889
      %v7891 = vpop.f32.mrb[0].mxu0
      %7892 = vmatprep.mubr.f32.mxu0 0.0
      %7893 = vmatmul.mubr.f32.gmra.mrb[0].mxu0 %v7366
      %v7894 = vpop.f32.mrb[0].mxu0
      %v7895 = vadd.f32 0.0, %v7894
      %v7896 = vpop.f32.mrb[0].mxu0
      %7897 = vmatprep.mubr.f32.mxu0 0.0
      %7898 = vmatmul.mubr.f32.gmra.mrb[0].mxu0 %v7369
      %v7899 = vpop.f32.mrb[0].mxu0
      %v7900 = vadd.f32 0.0, %v7899
      %v7901 = vpop.f32.mrb[0].mxu0
      %7902 = vmatprep.mubr.f32.mxu0 0.0
      %7903 = vmatmul.mubr.f32.gmra.mrb[0].mxu0 %v7372
      %v7904 = vpop.f32.mrb[0].mxu0
      %v7905 = vadd.f32 0.0, %v7904
      %v7906 = vpop.f32.mrb[0].mxu0
      %7907 = vmatprep.mubr.f32.mxu0 0.0
      %7908 = vmatmul.mubr.f32.gmra.mrb[0].mxu0 %v7375
      %v7909 = vpop.f32.mrb[0].mxu0
      %v7910 = vadd.f32 0.0, %v7909
      %v7911 = vpop.f32.mrb[0].mxu0
      %7912 = vmatprep.mubr.f32.mxu0 0.0
      %7913 = vmatmul.mubr.f32.gmra.mrb[0].mxu0 %v7378
      %v7914 = vpop.f32.mrb[0].mxu0
      %v7915 = vadd.f32 0.0, %v7914
      %v7916 = vpop.f32.mrb[0].mxu0
      %7917 = vmatprep.mubr.f32.mxu0 0.0
      %7918 = vmatmul.mubr.f32.gmra.mrb[0].mxu0 %v7381
      %v7919 = vpop.f32.mrb[0].mxu0
      %v7920 = vadd.f32 0.0, %v7919
      %v7921 = vpop.f32.mrb[0].mxu0
      %7922 = vmatprep.mubr.f32.mxu0 0.0
      %7923 = vmatmul.mubr.f32.gmra.mrb[0].mxu0 %v7384
      %v7924 = vpop.f32.mrb[0].mxu0
      %v7925 = vadd.f32 0.0, %v7924
      %v7926 = vpop.f32.mrb[0].mxu0
      %7927 = vmatprep.mubr.f32.mxu0 0.0
      %7928 = vmatmul.mubr.f32.gmra.mrb[0].mxu0 %v7387
      %v7929 = vpop.f32.mrb[0].mxu0
      %v7930 = vadd.f32 0.0, %v7929
      %v7931 = vpop.f32.mrb[0].mxu0
      %7932 = vmatprep.mubr.f32.mxu0 0.0
      %7933 = vmatmul.mubr.f32.gmra.mrb[0].mxu0 %v7390
      %v7934 = vpop.f32.mrb[0].mxu0
      %v7935 = vadd.f32 0.0, %v7934
      %v7936 = vpop.f32.mrb[0].mxu0
      %7937 = vmatprep.mubr.f32.mxu0 0.0
      %7938 = vmatmul.mubr.f32.gmra.mrb[0].mxu0 %v7393
      %v7939 = vpop.f32.mrb[0].mxu0
      %v7940 = vadd.f32 0.0, %v7939
      %v7941 = vpop.f32.mrb[0].mxu0
      %7942 = vmatprep.mubr.f32.mxu0 0.0
      %7943 = vmatmul.mubr.f32.gmra.mrb[0].mxu0 %v7396
      %v7944 = vpop.f32.mrb[0].mxu0
      %v7945 = vadd.f32 0.0, %v7944
      %v7946 = vpop.f32.mrb[0].mxu0
      %7947 = vmatprep.mubr.f32.mxu0 0.0
      %7948 = vmatmul.mubr.f32.gmra.mrb[0].mxu0 %v7399
      %v7949 = vpop.f32.mrb[0].mxu0
      %v7950 = vadd.f32 0.0, %v7949
      %v7951 = vpop.f32.mrb[0].mxu0
      %7952 = vmatprep.mubr.f32.mxu0 0.0
      %7953 = vmatmul.mubr.f32.gmra.mrb[0].mxu0 %v7402
      %v7954 = vpop.f32.mrb[0].mxu0
      %v7955 = vadd.f32 0.0, %v7954
      %v7956 = vpop.f32.mrb[0].mxu0
      %7957 = vmatprep.mubr.f32.mxu0 0.0
      %7958 = vmatmul.mubr.f32.gmra.mrb[0].mxu0 %v7405
      %v7959 = vpop.f32.mrb[0].mxu0
      %v7960 = vadd.f32 0.0, %v7959
      %v7961 = vpop.f32.mrb[0].mxu0
      %7962 = vmatprep.mubr.f32.mxu0 0.0
      %7963 = vmatmul.mubr.f32.gmra.mrb[0].mxu0 %v7408
      %v7964 = vpop.f32.mrb[0].mxu0
      %v7965 = vadd.f32 0.0, %v7964
      %v7966 = vpop.f32.mrb[0].mxu0
      %7967 = vmatprep.mubr.f32.mxu0 0.0
      %7968 = vmatmul.mubr.f32.gmra.mrb[0].mxu0 %v7411
      %v7969 = vpop.f32.mrb[0].mxu0
      %v7970 = vadd.f32 0.0, %v7969
      %v7971 = vpop.f32.mrb[0].mxu0
      %7972 = vmatprep.mubr.f32.mxu0 0.0
      %7973 = vmatmul.mubr.f32.gmra.mrb[0].mxu0 %v7414
      %v7974 = vpop.f32.mrb[0].mxu0
      %v7975 = vadd.f32 0.0, %v7974
      %v7976 = vpop.f32.mrb[0].mxu0
      %7977 = vmatprep.mubr.f32.mxu0 0.0
      %7978 = vmatmul.mubr.f32.gmra.mrb[0].mxu0 %v7417
      %v7979 = vpop.f32.mrb[0].mxu0
      %v7980 = vadd.f32 0.0, %v7979
      %v7981 = vpop.f32.mrb[0].mxu0
      %7982 = vmatprep.mubr.f32.mxu0 0.0
      %7983 = vmatmul.mubr.f32.gmra.mrb[0].mxu0 %v7420
      %v7984 = vpop.f32.mrb[0].mxu0
      %v7985 = vadd.f32 0.0, %v7984
      %v7986 = vpop.f32.mrb[0].mxu0
      %7987 = vmatprep.mubr.f32.mxu0 0.0
      %7988 = vmatmul.mubr.f32.gmra.mrb[0].mxu0 %v7423
      %v7989 = vpop.f32.mrb[0].mxu0
      %v7990 = vadd.f32 0.0, %v7989
      %v7991 = vpop.f32.mrb[0].mxu0
      %7992 = vmatprep.mubr.f32.mxu0 0.0
      %7993 = vmatmul.mubr.f32.gmra.mrb[0].mxu0 %v7426
      %v7994 = vpop.f32.mrb[0].mxu0
      %v7995 = vadd.f32 0.0, %v7994
      %v7996 = vpop.f32.mrb[0].mxu0
      %7997 = vmatprep.mubr.f32.mxu0 0.0
      %7998 = vmatmul.mubr.f32.gmra.mrb[0].mxu0 %v7429
      %v7999 = vpop.f32.mrb[0].mxu0
      %v8000 = vadd.f32 0.0, %v7999
      %v8001 = vpop.f32.mrb[0].mxu0
      %8002 = vmatprep.mubr.f32.mxu0 0.0
      %8003 = vmatmul.mubr.f32.gmra.mrb[0].mxu0 %v7432
      %v8004 = vpop.f32.mrb[0].mxu0
      %v8005 = vadd.f32 0.0, %v8004
      %v8006 = vpop.f32.mrb[0].mxu0
      %8007 = vmatprep.mubr.f32.mxu0 0.0
      %8008 = vmatmul.mubr.f32.gmra.mrb[0].mxu0 %v7435
      %v8009 = vpop.f32.mrb[0].mxu0
      %v8010 = vadd.f32 0.0, %v8009
      %v8011 = vpop.f32.mrb[0].mxu0
      %8012 = vmatprep.mubr.f32.mxu0 0.0
      %8013 = vmatmul.mubr.f32.gmra.mrb[0].mxu0 %v7438
      %v8014 = vpop.f32.mrb[0].mxu0
      %v8015 = vadd.f32 0.0, %v8014
      %v8016 = vpop.f32.mrb[0].mxu0
      %8017 = vmatprep.mubr.f32.mxu0 0.0
      %8018 = vmatmul.mubr.f32.gmra.mrb[0].mxu0 %v7441
      %v8019 = vpop.f32.mrb[0].mxu0
      %v8020 = vadd.f32 0.0, %v8019
      %v8021 = vpop.f32.mrb[0].mxu0
      %8022 = vmatprep.mubr.f32.mxu0 0.0
      %8023 = vmatmul.mubr.f32.gmra.mrb[0].mxu0 %v7444
      %v8024 = vpop.f32.mrb[0].mxu0
      %v8025 = vadd.f32 0.0, %v8024
      %v8026 = vpop.f32.mrb[0].mxu0
      %8027 = vmatprep.mubr.f32.mxu0 0.0
      %8028 = vmatmul.mubr.f32.gmra.mrb[0].mxu0 %v7447
      %v8029 = vpop.f32.mrb[0].mxu0
      %v8030 = vadd.f32 0.0, %v8029
      %v8031 = vpop.f32.mrb[0].mxu0
      %8032 = vmatprep.mubr.f32.mxu0 0.0
      %8033 = vmatmul.mubr.f32.gmra.mrb[0].mxu0 %v7450
      %v8034 = vpop.f32.mrb[0].mxu0
      %v8035 = vadd.f32 0.0, %v8034
      %v8036 = vpop.f32.mrb[0].mxu0
      %8037 = vmatprep.mubr.f32.mxu0 0.0
      %8038 = vmatmul.mubr.f32.gmra.mrb[0].mxu0 %v7453
      %v8039 = vpop.f32.mrb[0].mxu0
      %v8040 = vadd.f32 0.0, %v8039
      %v8041 = vpop.f32.mrb[0].mxu0
      %8042 = vmatprep.mubr.f32.mxu0 0.0
      %8043 = vmatmul.mubr.f32.gmra.mrb[0].mxu0 %v7456
      %v8044 = vpop.f32.mrb[0].mxu0
      %v8045 = vadd.f32 0.0, %v8044
      %v8046 = vpop.f32.mrb[0].mxu0
      %8047 = vmatprep.mubr.f32.mxu0 0.0
      %8048 = vmatmul.mubr.f32.gmra.mrb[0].mxu0 %v7459
      %v8049 = vpop.f32.mrb[0].mxu0
      %v8050 = vadd.f32 0.0, %v8049
      %v8051 = vpop.f32.mrb[0].mxu0
      %8052 = vmatprep.mubr.f32.mxu0 0.0
      %8053 = vmatmul.mubr.f32.gmra.mrb[0].mxu0 %v7462
      %v8054 = vpop.f32.mrb[0].mxu0
      %v8055 = vadd.f32 0.0, %v8054
      %v8056 = vpop.f32.mrb[0].mxu0
      %8057 = vmatprep.mubr.f32.mxu0 0.0
      %8058 = vmatmul.mubr.f32.gmra.mrb[0].mxu0 %v7465
      %v8059 = vpop.f32.mrb[0].mxu0
      %v8060 = vadd.f32 0.0, %v8059
      %v8061 = vpop.f32.mrb[0].mxu0
      %8062 = vmatprep.mubr.f32.mxu0 0.0
      %8063 = vmatmul.mubr.f32.gmra.mrb[0].mxu0 %v7468
      %v8064 = vpop.f32.mrb[0].mxu0
      %v8065 = vadd.f32 0.0, %v8064
      %v8066 = vpop.f32.mrb[0].mxu0
      %8067 = vmatprep.mubr.f32.mxu0 0.0
      %8068 = vmatmul.mubr.f32.gmra.mrb[0].mxu0 %v7471
      %v8069 = vpop.f32.mrb[0].mxu0
      %v8070 = vadd.f32 0.0, %v8069
      %v8071 = vpop.f32.mrb[0].mxu0
      %8072 = vmatprep.mubr.f32.mxu0 0.0
      %8073 = vmatmul.mubr.f32.gmra.mrb[0].mxu0 %v7474
      %v8074 = vpop.f32.mrb[0].mxu0
      %v8075 = vadd.f32 0.0, %v8074
      %v8076 = vpop.f32.mrb[0].mxu0
      %8077 = vmatprep.mubr.f32.mxu0 0.0
      %8078 = vmatmul.mubr.f32.gmra.mrb[0].mxu0 %v7477
      %v8079 = vpop.f32.mrb[0].mxu0
      %v8080 = vadd.f32 0.0, %v8079
      %v8081 = vpop.f32.mrb[0].mxu0
      %8082 = vmatprep.mubr.f32.mxu0 0.0
      %8083 = vmatmul.mubr.f32.gmra.mrb[0].mxu0 %v7480
      %v8084 = vpop.f32.mrb[0].mxu0
      %v8085 = vadd.f32 0.0, %v8084
      %v8086 = vpop.f32.mrb[0].mxu0
      %8087 = vmatprep.mubr.f32.mxu0 0.0
      %8088 = vmatmul.mubr.f32.gmra.mrb[0].mxu0 %v7483
      %v8089 = vpop.f32.mrb[0].mxu0
      %v8090 = vadd.f32 0.0, %v8089
      %v8091 = vpop.f32.mrb[0].mxu0
      %8092 = vmatprep.mubr.f32.mxu0 0.0
      %8093 = vmatmul.mubr.f32.gmra.mrb[0].mxu0 %v7486
      %v8094 = vpop.f32.mrb[0].mxu0
      %v8095 = vadd.f32 0.0, %v8094
      %v8096 = vpop.f32.mrb[0].mxu0
      %8097 = vmatprep.mubr.f32.mxu0 0.0
      %8098 = vmatmul.mubr.f32.gmra.mrb[0].mxu0 %v7489
      %v8099 = vpop.f32.mrb[0].mxu0
      %v8100 = vadd.f32 0.0, %v8099
      %v8101 = vpop.f32.mrb[0].mxu0
      %8102 = vmatprep.mubr.f32.mxu0 0.0
      %8103 = vmatmul.mubr.f32.gmra.mrb[0].mxu0 %v7492
      %v8104 = vpop.f32.mrb[0].mxu0
      %v8105 = vadd.f32 0.0, %v8104
      %v8106 = vpop.f32.mrb[0].mxu0
      %8107 = vmatprep.mubr.f32.mxu0 0.0
      %8108 = vmatmul.mubr.f32.gmra.mrb[0].mxu0 %v7495
      %v8109 = vpop.f32.mrb[0].mxu0
      %v8110 = vadd.f32 0.0, %v8109
      %v8111 = vpop.f32.mrb[0].mxu0
      %8112 = vmatprep.mubr.f32.mxu0 0.0
      %8113 = vmatmul.mubr.f32.gmra.mrb[0].mxu0 %v7498
      %v8114 = vpop.f32.mrb[0].mxu0
      %v8115 = vadd.f32 0.0, %v8114
      %v8116 = vpop.f32.mrb[0].mxu0
      %8117 = vmatprep.mubr.f32.mxu0 0.0
      %8118 = vmatmul.mubr.f32.gmra.mrb[0].mxu0 %v7501
      %v8119 = vpop.f32.mrb[0].mxu0
      %v8120 = vadd.f32 0.0, %v8119
      %v8121 = vpop.f32.mrb[0].mxu0
      %8122 = vmatprep.mubr.f32.mxu0 0.0
      %8123 = vmatmul.mubr.f32.gmra.mrb[0].mxu0 %v7504
      %v8124 = vpop.f32.mrb[0].mxu0
      %v8125 = vadd.f32 0.0, %v8124
      %v8126 = vpop.f32.mrb[0].mxu0
      %8127 = vmatprep.mubr.f32.mxu0 0.0
      %8128 = vmatmul.mubr.f32.gmra.mrb[0].mxu0 %v7507
      %v8129 = vpop.f32.mrb[0].mxu0
      %v8130 = vadd.f32 0.0, %v8129
      %v8131 = vpop.f32.mrb[0].mxu0
      %8132 = vmatprep.mubr.f32.mxu0 0.0
      %8133 = vmatmul.mubr.f32.gmra.mrb[0].mxu0 %v7510
      %v8134 = vpop.f32.mrb[0].mxu0
      %v8135 = vadd.f32 0.0, %v8134
      %v8136 = vpop.f32.mrb[0].mxu0
      %8137 = vmatprep.mubr.f32.mxu0 0.0
      %8138 = vmatmul.mubr.f32.gmra.mrb[0].mxu0 %v7513
      %v8139 = vpop.f32.mrb[0].mxu0
      %v8140 = vadd.f32 0.0, %v8139
      %v8141 = vpop.f32.mrb[0].mxu0
      %8142 = vmatprep.mubr.f32.mxu0 0.0
      %8143 = vmatmul.mubr.f32.gmra.mrb[0].mxu0 %v7516
      %v8144 = vpop.f32.mrb[0].mxu0
      %v8145 = vadd.f32 0.0, %v8144
      %v8146 = vpop.f32.mrb[0].mxu0
      %8147 = vmatprep.mubr.f32.mxu0 0.0
      %8148 = vmatmul.mubr.f32.gmra.mrb[0].mxu0 %v7519
      %v8149 = vpop.f32.mrb[0].mxu0
      %v8150 = vadd.f32 0.0, %v8149
      %v8151 = vpop.f32.mrb[0].mxu0
      %8152 = vmatprep.mubr.f32.mxu0 0.0
      %8153 = vmatmul.mubr.f32.gmra.mrb[0].mxu0 %v7522
      %v8154 = vpop.f32.mrb[0].mxu0
      %v8155 = vadd.f32 0.0, %v8154
      %v8156 = vpop.f32.mrb[0].mxu0
      %8157 = vmatprep.mubr.f32.mxu0 0.0
      %8158 = vmatmul.mubr.f32.gmra.mrb[0].mxu0 %v7525
      %v8159 = vpop.f32.mrb[0].mxu0
      %v8160 = vadd.f32 0.0, %v8159
      %v8161 = vpop.f32.mrb[0].mxu0
      %8162 = vmatprep.mubr.f32.mxu0 0.0
      %8163 = vmatmul.mubr.f32.gmra.mrb[0].mxu0 %v7528
      %v8164 = vpop.f32.mrb[0].mxu0
      %v8165 = vadd.f32 0.0, %v8164
      %v8166 = vpop.f32.mrb[0].mxu0
      %8167 = vmatprep.mubr.f32.mxu0 0.0
      %8168 = vmatmul.mubr.f32.gmra.mrb[0].mxu0 %v7531
      %v8169 = vpop.f32.mrb[0].mxu0
      %v8170 = vadd.f32 0.0, %v8169
      %v8171 = vpop.f32.mrb[0].mxu0
      %8172 = vmatprep.mubr.f32.mxu0 0.0
      %8173 = vmatmul.mubr.f32.gmra.mrb[0].mxu0 %v7534
      %v8174 = vpop.f32.mrb[0].mxu0
      %v8175 = vadd.f32 0.0, %v8174
      %v8176 = vpop.f32.mrb[0].mxu0
      %8177 = vmatprep.mubr.f32.mxu0 0.0
      %8178 = vmatmul.mubr.f32.gmra.mrb[0].mxu0 %v7537
      %v8179 = vpop.f32.mrb[0].mxu0
      %v8180 = vadd.f32 0.0, %v8179
      %v8181 = vpop.f32.mrb[0].mxu0
      %8182 = vmatprep.mubr.f32.mxu0 0.0
      %8183 = vmatmul.mubr.f32.gmra.mrb[0].mxu0 %v7540
      %v8184 = vpop.f32.mrb[0].mxu0
      %v8185 = vadd.f32 0.0, %v8184
      %v8186 = vpop.f32.mrb[0].mxu0
      %8187 = vmatprep.mubr.f32.mxu0 0.0
      %8188 = vmatmul.mubr.f32.gmra.mrb[0].mxu0 %v7543
      %v8189 = vpop.f32.mrb[0].mxu0
      %v8190 = vadd.f32 0.0, %v8189
      %v8191 = vpop.f32.mrb[0].mxu0
      %8192 = vmatprep.mubr.f32.mxu0 0.0
      %8193 = vmatmul.mubr.f32.gmra.mrb[0].mxu0 %v7546
      %v8194 = vpop.f32.mrb[0].mxu0
      %v8195 = vadd.f32 0.0, %v8194
      %v8196 = vpop.f32.mrb[0].mxu0
      %8197 = vmatprep.mubr.f32.mxu0 0.0
      %8198 = vmatmul.mubr.f32.gmra.mrb[0].mxu0 %v7549
      %v8199 = vpop.f32.mrb[0].mxu0
      %v8200 = vadd.f32 0.0, %v8199
      %v8201 = vpop.f32.mrb[0].mxu0
      %8202 = vmatprep.mubr.f32.mxu0 0.0
      %8203 = vmatmul.mubr.f32.gmra.mrb[0].mxu0 %v7552
      %v8204 = vpop.f32.mrb[0].mxu0
      %v8205 = vadd.f32 0.0, %v8204
      %v8206 = vpop.f32.mrb[0].mxu0
      %8207 = vmatprep.mubr.f32.mxu0 0.0
      %8208 = vmatmul.mubr.f32.gmra.mrb[0].mxu0 %v7555
      %v8209 = vpop.f32.mrb[0].mxu0
      %v8210 = vadd.f32 0.0, %v8209
      %v8211 = vpop.f32.mrb[0].mxu0
      %8212 = vmatprep.mubr.f32.mxu0 0.0
      %8213 = vmatmul.mubr.f32.gmra.mrb[0].mxu0 %v7558
      %v8214 = vpop.f32.mrb[0].mxu0
      %v8215 = vadd.f32 0.0, %v8214
      %v8216 = vpop.f32.mrb[0].mxu0
      %8217 = vmatprep.mubr.f32.mxu0 0.0
      %8218 = vmatmul.mubr.f32.gmra.mrb[0].mxu0 %v7561
      %v8219 = vpop.f32.mrb[0].mxu0
      %v8220 = vadd.f32 0.0, %v8219
      %v8221 = vpop.f32.mrb[0].mxu0
      %8222 = vmatprep.mubr.f32.mxu0 0.0
      %8223 = vmatmul.mubr.f32.gmra.mrb[0].mxu0 %v7564
      %v8224 = vpop.f32.mrb[0].mxu0
      %v8225 = vadd.f32 0.0, %v8224
      %v8226 = vpop.f32.mrb[0].mxu0
      %8227 = vmatprep.mubr.f32.mxu0 0.0
      %8228 = vmatmul.mubr.f32.gmra.mrb[0].mxu0 %v7567
      %v8229 = vpop.f32.mrb[0].mxu0
      %v8230 = vadd.f32 0.0, %v8229
      %v8231 = vpop.f32.mrb[0].mxu0
      %8232 = vmatprep.mubr.f32.mxu0 0.0
      %8233 = vmatmul.mubr.f32.gmra.mrb[0].mxu0 %v7570
      %v8234 = vpop.f32.mrb[0].mxu0
      %v8235 = vadd.f32 0.0, %v8234
      %v8236 = vpop.f32.mrb[0].mxu0
      %8237 = vmatprep.mubr.f32.mxu0 0.0
      %8238 = vmatmul.mubr.f32.gmra.mrb[0].mxu0 %v7573
      %v8239 = vpop.f32.mrb[0].mxu0
      %v8240 = vadd.f32 0.0, %v8239
      %v8241 = vpop.f32.mrb[0].mxu0
      %8242 = vmatprep.mubr.f32.mxu0 0.0
      %8243 = vmatmul.mubr.f32.gmra.mrb[0].mxu0 %v7576
      %v8244 = vpop.f32.mrb[0].mxu0
      %v8245 = vadd.f32 0.0, %v8244
      %v8246 = vpop.f32.mrb[0].mxu0
      %8247 = vmatprep.mubr.f32.mxu0 0.0
      %8248 = vmatmul.mubr.f32.gmra.mrb[0].mxu0 %v7579
      %v8249 = vpop.f32.mrb[0].mxu0
      %v8250 = vadd.f32 0.0, %v8249
      %v8251 = vpop.f32.mrb[0].mxu0
      %8252 = vmatprep.mubr.f32.mxu0 0.0
      %8253 = vmatmul.mubr.f32.gmra.mrb[0].mxu0 %v7582
      %v8254 = vpop.f32.mrb[0].mxu0
      %v8255 = vadd.f32 0.0, %v8254
      %v8256 = vpop.f32.mrb[0].mxu0
      %8257 = vmatprep.mubr.f32.mxu0 0.0
      %8258 = vmatmul.mubr.f32.gmra.mrb[0].mxu0 %v7585
      %v8259 = vpop.f32.mrb[0].mxu0
      %v8260 = vadd.f32 0.0, %v8259
      %v8261 = vpop.f32.mrb[0].mxu0
      %8262 = vmatprep.mubr.f32.mxu0 0.0
      %8263 = vmatmul.mubr.f32.gmra.mrb[0].mxu0 %v7588
      %v8264 = vpop.f32.mrb[0].mxu0
      %v8265 = vadd.f32 0.0, %v8264
      %v8266 = vpop.f32.mrb[0].mxu0
      %8267 = vmatprep.mubr.f32.mxu0 0.0
      %8268 = vmatmul.mubr.f32.gmra.mrb[0].mxu0 %v7591
      %v8269 = vpop.f32.mrb[0].mxu0
      %v8270 = vadd.f32 0.0, %v8269
      %v8271 = vpop.f32.mrb[0].mxu0
      %8272 = vmatprep.mubr.f32.mxu0 0.0
      %8273 = vmatmul.mubr.f32.gmra.mrb[0].mxu0 %v7594
      %v8274 = vpop.f32.mrb[0].mxu0
      %v8275 = vadd.f32 0.0, %v8274
      %v8276 = vpop.f32.mrb[0].mxu0
      %8277 = vmatprep.mubr.f32.mxu0 0.0
      %8278 = vmatmul.mubr.f32.gmra.mrb[0].mxu0 %v7597
      %v8279 = vpop.f32.mrb[0].mxu0
      %v8280 = vadd.f32 0.0, %v8279
      %v8281 = vpop.f32.mrb[0].mxu0
      %8282 = vmatprep.mubr.f32.mxu0 0.0
      %8283 = vmatmul.mubr.f32.gmra.mrb[0].mxu0 %v7600
      %v8284 = vpop.f32.mrb[0].mxu0
      %v8285 = vadd.f32 0.0, %v8284
      %v8286 = vpop.f32.mrb[0].mxu0
      %8287 = vmatprep.mubr.f32.mxu0 0.0
      %8288 = vmatmul.mubr.f32.gmra.mrb[0].mxu0 %v7603
      %v8289 = vpop.f32.mrb[0].mxu0
      %v8290 = vadd.f32 0.0, %v8289
      %v8291 = vpop.f32.mrb[0].mxu0
      %8292 = vmatprep.mubr.f32.mxu0 0.0
      %8293 = vmatmul.mubr.f32.gmra.mrb[0].mxu0 %v7606
      %v8294 = vpop.f32.mrb[0].mxu0
      %v8295 = vadd.f32 0.0, %v8294
      %v8296 = vpop.f32.mrb[0].mxu0
      %8297 = vmatprep.mubr.f32.mxu0 0.0
      %8298 = vmatmul.mubr.f32.gmra.mrb[0].mxu0 %v7609
      %v8299 = vpop.f32.mrb[0].mxu0
      %v8300 = vadd.f32 0.0, %v8299
      %v8301 = vpop.f32.mrb[0].mxu0
      %8302 = vmatprep.mubr.f32.mxu0 0.0
      %8303 = vmatmul.mubr.f32.gmra.mrb[0].mxu0 %v7612
      %v8304 = vpop.f32.mrb[0].mxu0
      %v8305 = vadd.f32 0.0, %v8304
      %v8306 = vpop.f32.mrb[0].mxu0
      %8307 = vmatprep.mubr.f32.mxu0 0.0
      %8308 = vmatmul.mubr.f32.gmra.mrb[0].mxu0 %v7615
      %v8309 = vpop.f32.mrb[0].mxu0
      %v8310 = vadd.f32 0.0, %v8309
      %v8311 = vpop.f32.mrb[0].mxu0
      %8312 = vmatprep.mubr.f32.mxu0 0.0
      %8313 = vmatmul.mubr.f32.gmra.mrb[0].mxu0 %v7618
      %v8314 = vpop.f32.mrb[0].mxu0
      %v8315 = vadd.f32 0.0, %v8314
      %v8316 = vpop.f32.mrb[0].mxu0
      %8317 = vmatprep.mubr.f32.mxu0 0.0
      %8318 = vmatmul.mubr.f32.gmra.mrb[0].mxu0 %v7621
      %v8319 = vpop.f32.mrb[0].mxu0
      %v8320 = vadd.f32 0.0, %v8319
      %v8321 = vpop.f32.mrb[0].mxu0
      %8322 = vmatprep.mubr.f32.mxu0 0.0
      %8323 = vmatmul.mubr.f32.gmra.mrb[0].mxu0 %v7624
      %v8324 = vpop.f32.mrb[0].mxu0
      %v8325 = vadd.f32 0.0, %v8324
      %v8326 = vpop.f32.mrb[0].mxu0
      %8327 = vmatprep.mubr.f32.mxu0 0.0
      %8328 = vmatmul.mubr.f32.gmra.mrb[0].mxu0 %v7627
      %v8329 = vpop.f32.mrb[0].mxu0
      %v8330 = vadd.f32 0.0, %v8329
      %v8331 = vpop.f32.mrb[0].mxu0
      %8332 = vmatprep.mubr.f32.mxu0 0.0
      %8333 = vmatmul.mubr.f32.gmra.mrb[0].mxu0 %v7630
      %v8334 = vpop.f32.mrb[0].mxu0
      %v8335 = vadd.f32 0.0, %v8334
      %v8336 = vpop.f32.mrb[0].mxu0
      %8337 = vmatprep.mubr.f32.mxu0 0.0
      %8338 = vmatmul.mubr.f32.gmra.mrb[0].mxu0 %v7633
      %v8339 = vpop.f32.mrb[0].mxu0
      %v8340 = vadd.f32 0.0, %v8339
      %v8341 = vpop.f32.mrb[0].mxu0
      %8342 = vdwg.mxu0
      %v8343 = vadd.f32 %v6993, %v7705
      %v8344 = vadd.f32 %v6994, %v7710
      %v8345 = vadd.f32 %v6995, %v7715
      %v8346 = vadd.f32 %v6996, %v7720
      %v8347 = vadd.f32 %v6997, %v7725
      %v8348 = vadd.f32 %v6998, %v7730
      %v8349 = vadd.f32 %v6999, %v7735
      %v8350 = vadd.f32 %v7000, %v7740
      %v8351 = vadd.f32 %v7001, %v7745
      %v8352 = vadd.f32 %v7002, %v7750
      %v8353 = vadd.f32 %v7003, %v7755
      %v8354 = vadd.f32 %v7004, %v7760
      %v8355 = vadd.f32 %v7005, %v7765
      %v8356 = vadd.f32 %v7006, %v7770
      %v8357 = vadd.f32 %v7007, %v7775
      %v8358 = vadd.f32 %v7008, %v7780
      %v8359 = vadd.f32 %v7009, %v7785
      %v8360 = vadd.f32 %v7010, %v7790
      %v8361 = vadd.f32 %v7011, %v7795
      %v8362 = vadd.f32 %v7012, %v7800
      %v8363 = vadd.f32 %v7013, %v7805
      %v8364 = vadd.f32 %v7014, %v7810
      %v8365 = vadd.f32 %v7015, %v7815
      %v8366 = vadd.f32 %v7016, %v7820
      %v8367 = vadd.f32 %v7017, %v7825
      %v8368 = vadd.f32 %v7018, %v7830
      %v8369 = vadd.f32 %v7019, %v7835
      %v8370 = vadd.f32 %v7020, %v7840
      %v8371 = vadd.f32 %v7021, %v7845
      %v8372 = vadd.f32 %v7022, %v7850
      %v8373 = vadd.f32 %v7023, %v7855
      %v8374 = vadd.f32 %v7024, %v7860
      %v8375 = vadd.f32 %v7025, %v7865
      %v8376 = vadd.f32 %v7026, %v7870
      %v8377 = vadd.f32 %v7027, %v7875
      %v8378 = vadd.f32 %v7028, %v7880
      %v8379 = vadd.f32 %v7029, %v7885
      %v8380 = vadd.f32 %v7030, %v7890
      %v8381 = vadd.f32 %v7031, %v7895
      %v8382 = vadd.f32 %v7032, %v7900
      %v8383 = vadd.f32 %v7033, %v7905
      %v8384 = vadd.f32 %v7034, %v7910
      %v8385 = vadd.f32 %v7035, %v7915
      %v8386 = vadd.f32 %v7036, %v7920
      %v8387 = vadd.f32 %v7037, %v7925
      %v8388 = vadd.f32 %v7038, %v7930
      %v8389 = vadd.f32 %v7039, %v7935
      %v8390 = vadd.f32 %v7040, %v7940
      %v8391 = vadd.f32 %v7041, %v7945
      %v8392 = vadd.f32 %v7042, %v7950
      %v8393 = vadd.f32 %v7043, %v7955
      %v8394 = vadd.f32 %v7044, %v7960
      %v8395 = vadd.f32 %v7045, %v7965
      %v8396 = vadd.f32 %v7046, %v7970
      %v8397 = vadd.f32 %v7047, %v7975
      %v8398 = vadd.f32 %v7048, %v7980
      %v8399 = vadd.f32 %v7049, %v7985
      %v8400 = vadd.f32 %v7050, %v7990
      %v8401 = vadd.f32 %v7051, %v7995
      %v8402 = vadd.f32 %v7052, %v8000
      %v8403 = vadd.f32 %v7053, %v8005
      %v8404 = vadd.f32 %v7054, %v8010
      %v8405 = vadd.f32 %v7055, %v8015
      %v8406 = vadd.f32 %v7056, %v8020
      %v8407 = vadd.f32 %v7057, %v8025
      %v8408 = vadd.f32 %v7058, %v8030
      %v8409 = vadd.f32 %v7059, %v8035
      %v8410 = vadd.f32 %v7060, %v8040
      %v8411 = vadd.f32 %v7061, %v8045
      %v8412 = vadd.f32 %v7062, %v8050
      %v8413 = vadd.f32 %v7063, %v8055
      %v8414 = vadd.f32 %v7064, %v8060
      %v8415 = vadd.f32 %v7065, %v8065
      %v8416 = vadd.f32 %v7066, %v8070
      %v8417 = vadd.f32 %v7067, %v8075
      %v8418 = vadd.f32 %v7068, %v8080
      %v8419 = vadd.f32 %v7069, %v8085
      %v8420 = vadd.f32 %v7070, %v8090
      %v8421 = vadd.f32 %v7071, %v8095
      %v8422 = vadd.f32 %v7072, %v8100
      %v8423 = vadd.f32 %v7073, %v8105
      %v8424 = vadd.f32 %v7074, %v8110
      %v8425 = vadd.f32 %v7075, %v8115
      %v8426 = vadd.f32 %v7076, %v8120
      %v8427 = vadd.f32 %v7077, %v8125
      %v8428 = vadd.f32 %v7078, %v8130
      %v8429 = vadd.f32 %v7079, %v8135
      %v8430 = vadd.f32 %v7080, %v8140
      %v8431 = vadd.f32 %v7081, %v8145
      %v8432 = vadd.f32 %v7082, %v8150
      %v8433 = vadd.f32 %v7083, %v8155
      %v8434 = vadd.f32 %v7084, %v8160
      %v8435 = vadd.f32 %v7085, %v8165
      %v8436 = vadd.f32 %v7086, %v8170
      %v8437 = vadd.f32 %v7087, %v8175
      %v8438 = vadd.f32 %v7088, %v8180
      %v8439 = vadd.f32 %v7089, %v8185
      %v8440 = vadd.f32 %v7090, %v8190
      %v8441 = vadd.f32 %v7091, %v8195
      %v8442 = vadd.f32 %v7092, %v8200
      %v8443 = vadd.f32 %v7093, %v8205
      %v8444 = vadd.f32 %v7094, %v8210
      %v8445 = vadd.f32 %v7095, %v8215
      %v8446 = vadd.f32 %v7096, %v8220
      %v8447 = vadd.f32 %v7097, %v8225
      %v8448 = vadd.f32 %v7098, %v8230
      %v8449 = vadd.f32 %v7099, %v8235
      %v8450 = vadd.f32 %v7100, %v8240
      %v8451 = vadd.f32 %v7101, %v8245
      %v8452 = vadd.f32 %v7102, %v8250
      %v8453 = vadd.f32 %v7103, %v8255
      %v8454 = vadd.f32 %v7104, %v8260
      %v8455 = vadd.f32 %v7105, %v8265
      %v8456 = vadd.f32 %v7106, %v8270
      %v8457 = vadd.f32 %v7107, %v8275
      %v8458 = vadd.f32 %v7108, %v8280
      %v8459 = vadd.f32 %v7109, %v8285
      %v8460 = vadd.f32 %v7110, %v8290
      %v8461 = vadd.f32 %v7111, %v8295
      %v8462 = vadd.f32 %v7112, %v8300
      %v8463 = vadd.f32 %v7113, %v8305
      %v8464 = vadd.f32 %v7114, %v8310
      %v8465 = vadd.f32 %v7115, %v8315
      %v8466 = vadd.f32 %v7116, %v8320
      %v8467 = vadd.f32 %v7117, %v8325
      %v8468 = vadd.f32 %v7118, %v8330
      %v8469 = vadd.f32 %v7119, %v8335
      %v8470 = vadd.f32 %v7120, %v8340
      %s8471 = scalar_lea.vmem [#allocation2], 80
      %v8472 = vld [vmem:[%s8471] sm:$0xff]
      %v8473 = vld [vmem:[%s8471 + $0x8] sm:$0xff]
      %v8474 = vld [vmem:[%s8471 + $0x10] sm:$0xff]
      %v8475 = vld [vmem:[%s8471 + $0x18] sm:$0xff]
      %v8476 = vld [vmem:[%s8471 + $0x28] sm:$0xff]
      %v8477 = vld [vmem:[%s8471 + $0x30] sm:$0xff]
      %v8478 = vld [vmem:[%s8471 + $0x38] sm:$0xff]
      %v8479 = vld [vmem:[%s8471 + $0x40] sm:$0xff]
      %v8480 = vld [vmem:[%s8471 + $0x50] sm:$0xff]
      %v8481 = vld [vmem:[%s8471 + $0x58] sm:$0xff]
      %v8482 = vld [vmem:[%s8471 + $0x60] sm:$0xff]
      %v8483 = vld [vmem:[%s8471 + $0x68] sm:$0xff]
      %v8484 = vld [vmem:[%s8471 + $0x78] sm:$0xff]
      %v8485 = vld [vmem:[%s8471 + $0x80] sm:$0xff]
      %v8486 = vld [vmem:[%s8471 + $0x88] sm:$0xff]
      %v8487 = vld [vmem:[%s8471 + $0x90] sm:$0xff]
      %v8488 = vld [vmem:[%s8471 + $0xa0] sm:$0xff]
      %v8489 = vld [vmem:[%s8471 + $0xa8] sm:$0xff]
      %v8490 = vld [vmem:[%s8471 + $0xb0] sm:$0xff]
      %v8491 = vld [vmem:[%s8471 + $0xb8] sm:$0xff]
      %v8492 = vld [vmem:[%s8471 + $0xc8] sm:$0xff]
      %v8493 = vld [vmem:[%s8471 + $0xd0] sm:$0xff]
      %v8494 = vld [vmem:[%s8471 + $0xd8] sm:$0xff]
      %v8495 = vld [vmem:[%s8471 + $0xe0] sm:$0xff]
      %v8496 = vld [vmem:[%s8471 + $0xf0] sm:$0xff]
      %v8497 = vld [vmem:[%s8471 + $0xf8] sm:$0xff]
      %v8498 = vld [vmem:[%s8471 + $0x100] sm:$0xff]
      %v8499 = vld [vmem:[%s8471 + $0x108] sm:$0xff]
      %v8500 = vld [vmem:[%s8471 + $0x118] sm:$0xff]
      %v8501 = vld [vmem:[%s8471 + $0x120] sm:$0xff]
      %v8502 = vld [vmem:[%s8471 + $0x128] sm:$0xff]
      %v8503 = vld [vmem:[%s8471 + $0x130] sm:$0xff]
      %v8504 = vld [vmem:[%s8471 + $0x140] sm:$0xff]
      %v8505 = vld [vmem:[%s8471 + $0x148] sm:$0xff]
      %v8506 = vld [vmem:[%s8471 + $0x150] sm:$0xff]
      %v8507 = vld [vmem:[%s8471 + $0x158] sm:$0xff]
      %v8508 = vld [vmem:[%s8471 + $0x168] sm:$0xff]
      %v8509 = vld [vmem:[%s8471 + $0x170] sm:$0xff]
      %v8510 = vld [vmem:[%s8471 + $0x178] sm:$0xff]
      %v8511 = vld [vmem:[%s8471 + $0x180] sm:$0xff]
      %v8512 = vld [vmem:[%s8471 + $0x190] sm:$0xff]
      %v8513 = vld [vmem:[%s8471 + $0x198] sm:$0xff]
      %v8514 = vld [vmem:[%s8471 + $0x1a0] sm:$0xff]
      %v8515 = vld [vmem:[%s8471 + $0x1a8] sm:$0xff]
      %v8516 = vld [vmem:[%s8471 + $0x1b8] sm:$0xff]
      %v8517 = vld [vmem:[%s8471 + $0x1c0] sm:$0xff]
      %v8518 = vld [vmem:[%s8471 + $0x1c8] sm:$0xff]
      %v8519 = vld [vmem:[%s8471 + $0x1d0] sm:$0xff]
      %v8520 = vld [vmem:[%s8471 + $0x1e0] sm:$0xff]
      %v8521 = vld [vmem:[%s8471 + $0x1e8] sm:$0xff]
      %v8522 = vld [vmem:[%s8471 + $0x1f0] sm:$0xff]
      %v8523 = vld [vmem:[%s8471 + $0x1f8] sm:$0xff]
      %v8524 = vld [vmem:[%s8471 + $0x208] sm:$0xff]
      %v8525 = vld [vmem:[%s8471 + $0x210] sm:$0xff]
      %v8526 = vld [vmem:[%s8471 + $0x218] sm:$0xff]
      %v8527 = vld [vmem:[%s8471 + $0x220] sm:$0xff]
      %v8528 = vld [vmem:[%s8471 + $0x230] sm:$0xff]
      %v8529 = vld [vmem:[%s8471 + $0x238] sm:$0xff]
      %v8530 = vld [vmem:[%s8471 + $0x240] sm:$0xff]
      %v8531 = vld [vmem:[%s8471 + $0x248] sm:$0xff]
      %v8532 = vld [vmem:[%s8471 + $0x258] sm:$0xff]
      %v8533 = vld [vmem:[%s8471 + $0x260] sm:$0xff]
      %v8534 = vld [vmem:[%s8471 + $0x268] sm:$0xff]
      %v8535 = vld [vmem:[%s8471 + $0x270] sm:$0xff]
      %v8536 = vld [vmem:[%s8471 + $0x280] sm:$0xff]
      %v8537 = vld [vmem:[%s8471 + $0x288] sm:$0xff]
      %v8538 = vld [vmem:[%s8471 + $0x290] sm:$0xff]
      %v8539 = vld [vmem:[%s8471 + $0x298] sm:$0xff]
      %v8540 = vld [vmem:[%s8471 + $0x2a8] sm:$0xff]
      %v8541 = vld [vmem:[%s8471 + $0x2b0] sm:$0xff]
      %v8542 = vld [vmem:[%s8471 + $0x2b8] sm:$0xff]
      %v8543 = vld [vmem:[%s8471 + $0x2c0] sm:$0xff]
      %v8544 = vld [vmem:[%s8471 + $0x2d0] sm:$0xff]
      %v8545 = vld [vmem:[%s8471 + $0x2d8] sm:$0xff]
      %v8546 = vld [vmem:[%s8471 + $0x2e0] sm:$0xff]
      %v8547 = vld [vmem:[%s8471 + $0x2e8] sm:$0xff]
      %v8548 = vld [vmem:[%s8471 + $0x2f8] sm:$0xff]
      %v8549 = vld [vmem:[%s8471 + $0x300] sm:$0xff]
      %v8550 = vld [vmem:[%s8471 + $0x308] sm:$0xff]
      %v8551 = vld [vmem:[%s8471 + $0x310] sm:$0xff]
      %v8552 = vld [vmem:[%s8471 + $0x320] sm:$0xff]
      %v8553 = vld [vmem:[%s8471 + $0x328] sm:$0xff]
      %v8554 = vld [vmem:[%s8471 + $0x330] sm:$0xff]
      %v8555 = vld [vmem:[%s8471 + $0x338] sm:$0xff]
      %v8556 = vld [vmem:[%s8471 + $0x348] sm:$0xff]
      %v8557 = vld [vmem:[%s8471 + $0x350] sm:$0xff]
      %v8558 = vld [vmem:[%s8471 + $0x358] sm:$0xff]
      %v8559 = vld [vmem:[%s8471 + $0x360] sm:$0xff]
      %v8560 = vld [vmem:[%s8471 + $0x370] sm:$0xff]
      %v8561 = vld [vmem:[%s8471 + $0x378] sm:$0xff]
      %v8562 = vld [vmem:[%s8471 + $0x380] sm:$0xff]
      %v8563 = vld [vmem:[%s8471 + $0x388] sm:$0xff]
      %v8564 = vld [vmem:[%s8471 + $0x398] sm:$0xff]
      %v8565 = vld [vmem:[%s8471 + $0x3a0] sm:$0xff]
      %v8566 = vld [vmem:[%s8471 + $0x3a8] sm:$0xff]
      %v8567 = vld [vmem:[%s8471 + $0x3b0] sm:$0xff]
      %v8568 = vld [vmem:[%s8471 + $0x3c0] sm:$0xff]
      %v8569 = vld [vmem:[%s8471 + $0x3c8] sm:$0xff]
      %v8570 = vld [vmem:[%s8471 + $0x3d0] sm:$0xff]
      %v8571 = vld [vmem:[%s8471 + $0x3d8] sm:$0xff]
      %v8572 = vld [vmem:[%s8471 + $0x3e8] sm:$0xff]
      %v8573 = vld [vmem:[%s8471 + $0x3f0] sm:$0xff]
      %v8574 = vld [vmem:[%s8471 + $0x3f8] sm:$0xff]
      %v8575 = vld [vmem:[%s8471 + $0x400] sm:$0xff]
      %v8576 = vld [vmem:[%s8471 + $0x410] sm:$0xff]
      %v8577 = vld [vmem:[%s8471 + $0x418] sm:$0xff]
      %v8578 = vld [vmem:[%s8471 + $0x420] sm:$0xff]
      %v8579 = vld [vmem:[%s8471 + $0x428] sm:$0xff]
      %v8580 = vld [vmem:[%s8471 + $0x438] sm:$0xff]
      %v8581 = vld [vmem:[%s8471 + $0x440] sm:$0xff]
      %v8582 = vld [vmem:[%s8471 + $0x448] sm:$0xff]
      %v8583 = vld [vmem:[%s8471 + $0x450] sm:$0xff]
      %v8584 = vld [vmem:[%s8471 + $0x460] sm:$0xff]
      %v8585 = vld [vmem:[%s8471 + $0x468] sm:$0xff]
      %v8586 = vld [vmem:[%s8471 + $0x470] sm:$0xff]
      %v8587 = vld [vmem:[%s8471 + $0x478] sm:$0xff]
      %v8588 = vld [vmem:[%s8471 + $0x488] sm:$0xff]
      %v8589 = vld [vmem:[%s8471 + $0x490] sm:$0xff]
      %v8590 = vld [vmem:[%s8471 + $0x498] sm:$0xff]
      %v8591 = vld [vmem:[%s8471 + $0x4a0] sm:$0xff]
      %v8592 = vld [vmem:[%s8471 + $0x4b0] sm:$0xff]
      %v8593 = vld [vmem:[%s8471 + $0x4b8] sm:$0xff]
      %v8594 = vld [vmem:[%s8471 + $0x4c0] sm:$0xff]
      %v8595 = vld [vmem:[%s8471 + $0x4c8] sm:$0xff]
      %v8596 = vld [vmem:[%s8471 + $0x4d8] sm:$0xff]
      %v8597 = vld [vmem:[%s8471 + $0x4e0] sm:$0xff]
      %v8598 = vld [vmem:[%s8471 + $0x4e8] sm:$0xff]
      %v8599 = vld [vmem:[%s8471 + $0x4f0] sm:$0xff]
      %s8600 = scalar_lea.vmem %s1, 24
      %v8601 = vld [vmem:[%s8600] sm:$0x7]
      %v8603 = vsel %vm326, %v8472, 0
      %v8606 = vsel %vm326, %v8473, 0
      %v8609 = vsel %vm326, %v8474, 0
      %v8612 = vsel %vm326, %v8475, 0
      %v8615 = vsel %vm326, %v8476, 0
      %v8618 = vsel %vm326, %v8477, 0
      %v8621 = vsel %vm326, %v8478, 0
      %v8624 = vsel %vm326, %v8479, 0
      %v8627 = vsel %vm326, %v8480, 0
      %v8630 = vsel %vm326, %v8481, 0
      %v8633 = vsel %vm326, %v8482, 0
      %v8636 = vsel %vm326, %v8483, 0
      %v8639 = vsel %vm326, %v8484, 0
      %v8642 = vsel %vm326, %v8485, 0
      %v8645 = vsel %vm326, %v8486, 0
      %v8648 = vsel %vm326, %v8487, 0
      %v8651 = vsel %vm326, %v8488, 0
      %v8654 = vsel %vm326, %v8489, 0
      %v8657 = vsel %vm326, %v8490, 0
      %v8660 = vsel %vm326, %v8491, 0
      %v8663 = vsel %vm326, %v8492, 0
      %v8666 = vsel %vm326, %v8493, 0
      %v8669 = vsel %vm326, %v8494, 0
      %v8672 = vsel %vm326, %v8495, 0
      %v8675 = vsel %vm326, %v8496, 0
      %v8678 = vsel %vm326, %v8497, 0
      %v8681 = vsel %vm326, %v8498, 0
      %v8684 = vsel %vm326, %v8499, 0
      %v8687 = vsel %vm326, %v8500, 0
      %v8690 = vsel %vm326, %v8501, 0
      %v8693 = vsel %vm326, %v8502, 0
      %v8696 = vsel %vm326, %v8503, 0
      %v8699 = vsel %vm326, %v8504, 0
      %v8702 = vsel %vm326, %v8505, 0
      %v8705 = vsel %vm326, %v8506, 0
      %v8708 = vsel %vm326, %v8507, 0
      %v8711 = vsel %vm326, %v8508, 0
      %v8714 = vsel %vm326, %v8509, 0
      %v8717 = vsel %vm326, %v8510, 0
      %v8720 = vsel %vm326, %v8511, 0
      %v8723 = vsel %vm326, %v8512, 0
      %v8726 = vsel %vm326, %v8513, 0
      %v8729 = vsel %vm326, %v8514, 0
      %v8732 = vsel %vm326, %v8515, 0
      %v8735 = vsel %vm326, %v8516, 0
      %v8738 = vsel %vm326, %v8517, 0
      %v8741 = vsel %vm326, %v8518, 0
      %v8744 = vsel %vm326, %v8519, 0
      %v8747 = vsel %vm326, %v8520, 0
      %v8750 = vsel %vm326, %v8521, 0
      %v8753 = vsel %vm326, %v8522, 0
      %v8756 = vsel %vm326, %v8523, 0
      %v8759 = vsel %vm326, %v8524, 0
      %v8762 = vsel %vm326, %v8525, 0
      %v8765 = vsel %vm326, %v8526, 0
      %v8768 = vsel %vm326, %v8527, 0
      %v8771 = vsel %vm326, %v8528, 0
      %v8774 = vsel %vm326, %v8529, 0
      %v8777 = vsel %vm326, %v8530, 0
      %v8780 = vsel %vm326, %v8531, 0
      %v8783 = vsel %vm326, %v8532, 0
      %v8786 = vsel %vm326, %v8533, 0
      %v8789 = vsel %vm326, %v8534, 0
      %v8792 = vsel %vm326, %v8535, 0
      %v8795 = vsel %vm326, %v8536, 0
      %v8798 = vsel %vm326, %v8537, 0
      %v8801 = vsel %vm326, %v8538, 0
      %v8804 = vsel %vm326, %v8539, 0
      %v8807 = vsel %vm326, %v8540, 0
      %v8810 = vsel %vm326, %v8541, 0
      %v8813 = vsel %vm326, %v8542, 0
      %v8816 = vsel %vm326, %v8543, 0
      %v8819 = vsel %vm326, %v8544, 0
      %v8822 = vsel %vm326, %v8545, 0
      %v8825 = vsel %vm326, %v8546, 0
      %v8828 = vsel %vm326, %v8547, 0
      %v8831 = vsel %vm326, %v8548, 0
      %v8834 = vsel %vm326, %v8549, 0
      %v8837 = vsel %vm326, %v8550, 0
      %v8840 = vsel %vm326, %v8551, 0
      %v8843 = vsel %vm326, %v8552, 0
      %v8846 = vsel %vm326, %v8553, 0
      %v8849 = vsel %vm326, %v8554, 0
      %v8852 = vsel %vm326, %v8555, 0
      %v8855 = vsel %vm326, %v8556, 0
      %v8858 = vsel %vm326, %v8557, 0
      %v8861 = vsel %vm326, %v8558, 0
      %v8864 = vsel %vm326, %v8559, 0
      %v8867 = vsel %vm326, %v8560, 0
      %v8870 = vsel %vm326, %v8561, 0
      %v8873 = vsel %vm326, %v8562, 0
      %v8876 = vsel %vm326, %v8563, 0
      %v8879 = vsel %vm326, %v8564, 0
      %v8882 = vsel %vm326, %v8565, 0
      %v8885 = vsel %vm326, %v8566, 0
      %v8888 = vsel %vm326, %v8567, 0
      %v8891 = vsel %vm326, %v8568, 0
      %v8894 = vsel %vm326, %v8569, 0
      %v8897 = vsel %vm326, %v8570, 0
      %v8900 = vsel %vm326, %v8571, 0
      %v8903 = vsel %vm326, %v8572, 0
      %v8906 = vsel %vm326, %v8573, 0
      %v8909 = vsel %vm326, %v8574, 0
      %v8912 = vsel %vm326, %v8575, 0
      %v8915 = vsel %vm326, %v8576, 0
      %v8918 = vsel %vm326, %v8577, 0
      %v8921 = vsel %vm326, %v8578, 0
      %v8924 = vsel %vm326, %v8579, 0
      %v8927 = vsel %vm326, %v8580, 0
      %v8930 = vsel %vm326, %v8581, 0
      %v8933 = vsel %vm326, %v8582, 0
      %v8936 = vsel %vm326, %v8583, 0
      %v8939 = vsel %vm326, %v8584, 0
      %v8942 = vsel %vm326, %v8585, 0
      %v8945 = vsel %vm326, %v8586, 0
      %v8948 = vsel %vm326, %v8587, 0
      %v8951 = vsel %vm326, %v8588, 0
      %v8954 = vsel %vm326, %v8589, 0
      %v8957 = vsel %vm326, %v8590, 0
      %v8960 = vsel %vm326, %v8591, 0
      %v8963 = vsel %vm326, %v8592, 0
      %v8966 = vsel %vm326, %v8593, 0
      %v8969 = vsel %vm326, %v8594, 0
      %v8972 = vsel %vm326, %v8595, 0
      %v8975 = vsel %vm326, %v8596, 0
      %v8978 = vsel %vm326, %v8597, 0
      %v8981 = vsel %vm326, %v8598, 0
      %v8984 = vsel %vm326, %v8599, 0
      %v8987 = vsel %vm1270, %v8601, 0
      %8989 = vmatprep.subr.mxu0 0.0
      %8990 = vmatpush1.msra.mxu0 %v8987
      %8991 = vmatprep.subr.mxu0 0.0
      %8992 = vmatpush1.msra.mxu0 0.0
      %8993 = vmatprep.subr.mxu0 0.0
      %8994 = vmatpush1.msra.mxu0 0.0
      %8995 = vmatprep.subr.mxu0 0.0
      %8996 = vmatpush1.msra.mxu0 0.0
      %8997 = vmatprep.subr.mxu0 0.0
      %8998 = vmatpush1.msra.mxu0 0.0
      %8999 = vmatprep.subr.mxu0 0.0
      %9000 = vmatpush1.msra.mxu0 0.0
      %9001 = vmatprep.subr.mxu0 0.0
      %9002 = vmatpush1.msra.mxu0 0.0
      %9003 = vmatprep.subr.mxu0 0.0
      %9004 = vmatpush1.msra.mxu0 0.0
      %9005 = vmatprep.subr.mxu0 0.0
      %9006 = vmatpush1.msra.mxu0 0.0
      %9007 = vmatprep.subr.mxu0 0.0
      %9008 = vmatpush1.msra.mxu0 0.0
      %9009 = vmatprep.subr.mxu0 0.0
      %9010 = vmatpush1.msra.mxu0 0.0
      %9011 = vmatprep.subr.mxu0 0.0
      %9012 = vmatpush1.msra.mxu0 0.0
      %9013 = vmatprep.subr.mxu0 0.0
      %9014 = vmatpush1.msra.mxu0 0.0
      %9015 = vmatprep.subr.mxu0 0.0
      %9016 = vmatpush1.msra.mxu0 0.0
      %9017 = vmatprep.subr.mxu0 0.0
      %9018 = vmatpush1.msra.mxu0 0.0
      %9019 = vmatprep.subr.mxu0 0.0
      %9020 = vmatpush1.msra.mxu0 0.0
      %9021 = vmatprep.subr.mxu0 0.0
      %9022 = vmatpush1.msra.mxu0 0.0
      %9023 = vmatprep.subr.mxu0 0.0
      %9024 = vmatpush1.msra.mxu0 0.0
      %9025 = vmatprep.subr.mxu0 0.0
      %9026 = vmatpush1.msra.mxu0 0.0
      %9027 = vmatprep.subr.mxu0 0.0
      %9028 = vmatpush1.msra.mxu0 0.0
      %9029 = vmatprep.subr.mxu0 0.0
      %9030 = vmatpush1.msra.mxu0 0.0
      %9031 = vmatprep.subr.mxu0 0.0
      %9032 = vmatpush1.msra.mxu0 0.0
      %9033 = vmatprep.subr.mxu0 0.0
      %9034 = vmatpush1.msra.mxu0 0.0
      %9035 = vmatprep.subr.mxu0 0.0
      %9036 = vmatpush1.msra.mxu0 0.0
      %9037 = vmatprep.subr.mxu0 0.0
      %9038 = vmatpush1.msra.mxu0 0.0
      %9039 = vmatprep.subr.mxu0 0.0
      %9040 = vmatpush1.msra.mxu0 0.0
      %9041 = vmatprep.subr.mxu0 0.0
      %9042 = vmatpush1.msra.mxu0 0.0
      %9043 = vmatprep.subr.mxu0 0.0
      %9044 = vmatpush1.msra.mxu0 0.0
      %9045 = vmatprep.subr.mxu0 0.0
      %9046 = vmatpush1.msra.mxu0 0.0
      %9047 = vmatprep.subr.mxu0 0.0
      %9048 = vmatpush1.msra.mxu0 0.0
      %9049 = vmatprep.subr.mxu0 0.0
      %9050 = vmatpush1.msra.mxu0 0.0
      %9051 = vmatprep.subr.mxu0 0.0
      %9052 = vmatpush1.msra.mxu0 0.0
      %9053 = vmatprep.mubr.f32.mxu0 0.0
      %9054 = vmatmul.mubr.f32.gmra.mrb[0].mxu0 %v8603
      %v9055 = vpop.f32.mrb[0].mxu0
      %v9056 = vadd.f32 0.0, %v9055
      %v9057 = vpop.f32.mrb[0].mxu0
      %9058 = vmatprep.mubr.f32.mxu0 0.0
      %9059 = vmatmul.mubr.f32.gmra.mrb[0].mxu0 %v8606
      %v9060 = vpop.f32.mrb[0].mxu0
      %v9061 = vadd.f32 0.0, %v9060
      %v9062 = vpop.f32.mrb[0].mxu0
      %9063 = vmatprep.mubr.f32.mxu0 0.0
      %9064 = vmatmul.mubr.f32.gmra.mrb[0].mxu0 %v8609
      %v9065 = vpop.f32.mrb[0].mxu0
      %v9066 = vadd.f32 0.0, %v9065
      %v9067 = vpop.f32.mrb[0].mxu0
      %9068 = vmatprep.mubr.f32.mxu0 0.0
      %9069 = vmatmul.mubr.f32.gmra.mrb[0].mxu0 %v8612
      %v9070 = vpop.f32.mrb[0].mxu0
      %v9071 = vadd.f32 0.0, %v9070
      %v9072 = vpop.f32.mrb[0].mxu0
      %9073 = vmatprep.mubr.f32.mxu0 0.0
      %9074 = vmatmul.mubr.f32.gmra.mrb[0].mxu0 %v8615
      %v9075 = vpop.f32.mrb[0].mxu0
      %v9076 = vadd.f32 0.0, %v9075
      %v9077 = vpop.f32.mrb[0].mxu0
      %9078 = vmatprep.mubr.f32.mxu0 0.0
      %9079 = vmatmul.mubr.f32.gmra.mrb[0].mxu0 %v8618
      %v9080 = vpop.f32.mrb[0].mxu0
      %v9081 = vadd.f32 0.0, %v9080
      %v9082 = vpop.f32.mrb[0].mxu0
      %9083 = vmatprep.mubr.f32.mxu0 0.0
      %9084 = vmatmul.mubr.f32.gmra.mrb[0].mxu0 %v8621
      %v9085 = vpop.f32.mrb[0].mxu0
      %v9086 = vadd.f32 0.0, %v9085
      %v9087 = vpop.f32.mrb[0].mxu0
      %9088 = vmatprep.mubr.f32.mxu0 0.0
      %9089 = vmatmul.mubr.f32.gmra.mrb[0].mxu0 %v8624
      %v9090 = vpop.f32.mrb[0].mxu0
      %v9091 = vadd.f32 0.0, %v9090
      %v9092 = vpop.f32.mrb[0].mxu0
      %9093 = vmatprep.mubr.f32.mxu0 0.0
      %9094 = vmatmul.mubr.f32.gmra.mrb[0].mxu0 %v8627
      %v9095 = vpop.f32.mrb[0].mxu0
      %v9096 = vadd.f32 0.0, %v9095
      %v9097 = vpop.f32.mrb[0].mxu0
      %9098 = vmatprep.mubr.f32.mxu0 0.0
      %9099 = vmatmul.mubr.f32.gmra.mrb[0].mxu0 %v8630
      %v9100 = vpop.f32.mrb[0].mxu0
      %v9101 = vadd.f32 0.0, %v9100
      %v9102 = vpop.f32.mrb[0].mxu0
      %9103 = vmatprep.mubr.f32.mxu0 0.0
      %9104 = vmatmul.mubr.f32.gmra.mrb[0].mxu0 %v8633
      %v9105 = vpop.f32.mrb[0].mxu0
      %v9106 = vadd.f32 0.0, %v9105
      %v9107 = vpop.f32.mrb[0].mxu0
      %9108 = vmatprep.mubr.f32.mxu0 0.0
      %9109 = vmatmul.mubr.f32.gmra.mrb[0].mxu0 %v8636
      %v9110 = vpop.f32.mrb[0].mxu0
      %v9111 = vadd.f32 0.0, %v9110
      %v9112 = vpop.f32.mrb[0].mxu0
      %9113 = vmatprep.mubr.f32.mxu0 0.0
      %9114 = vmatmul.mubr.f32.gmra.mrb[0].mxu0 %v8639
      %v9115 = vpop.f32.mrb[0].mxu0
      %v9116 = vadd.f32 0.0, %v9115
      %v9117 = vpop.f32.mrb[0].mxu0
      %9118 = vmatprep.mubr.f32.mxu0 0.0
      %9119 = vmatmul.mubr.f32.gmra.mrb[0].mxu0 %v8642
      %v9120 = vpop.f32.mrb[0].mxu0
      %v9121 = vadd.f32 0.0, %v9120
      %v9122 = vpop.f32.mrb[0].mxu0
      %9123 = vmatprep.mubr.f32.mxu0 0.0
      %9124 = vmatmul.mubr.f32.gmra.mrb[0].mxu0 %v8645
      %v9125 = vpop.f32.mrb[0].mxu0
      %v9126 = vadd.f32 0.0, %v9125
      %v9127 = vpop.f32.mrb[0].mxu0
      %9128 = vmatprep.mubr.f32.mxu0 0.0
      %9129 = vmatmul.mubr.f32.gmra.mrb[0].mxu0 %v8648
      %v9130 = vpop.f32.mrb[0].mxu0
      %v9131 = vadd.f32 0.0, %v9130
      %v9132 = vpop.f32.mrb[0].mxu0
      %9133 = vmatprep.mubr.f32.mxu0 0.0
      %9134 = vmatmul.mubr.f32.gmra.mrb[0].mxu0 %v8651
      %v9135 = vpop.f32.mrb[0].mxu0
      %v9136 = vadd.f32 0.0, %v9135
      %v9137 = vpop.f32.mrb[0].mxu0
      %9138 = vmatprep.mubr.f32.mxu0 0.0
      %9139 = vmatmul.mubr.f32.gmra.mrb[0].mxu0 %v8654
      %v9140 = vpop.f32.mrb[0].mxu0
      %v9141 = vadd.f32 0.0, %v9140
      %v9142 = vpop.f32.mrb[0].mxu0
      %9143 = vmatprep.mubr.f32.mxu0 0.0
      %9144 = vmatmul.mubr.f32.gmra.mrb[0].mxu0 %v8657
      %v9145 = vpop.f32.mrb[0].mxu0
      %v9146 = vadd.f32 0.0, %v9145
      %v9147 = vpop.f32.mrb[0].mxu0
      %9148 = vmatprep.mubr.f32.mxu0 0.0
      %9149 = vmatmul.mubr.f32.gmra.mrb[0].mxu0 %v8660
      %v9150 = vpop.f32.mrb[0].mxu0
      %v9151 = vadd.f32 0.0, %v9150
      %v9152 = vpop.f32.mrb[0].mxu0
      %9153 = vmatprep.mubr.f32.mxu0 0.0
      %9154 = vmatmul.mubr.f32.gmra.mrb[0].mxu0 %v8663
      %v9155 = vpop.f32.mrb[0].mxu0
      %v9156 = vadd.f32 0.0, %v9155
      %v9157 = vpop.f32.mrb[0].mxu0
      %9158 = vmatprep.mubr.f32.mxu0 0.0
      %9159 = vmatmul.mubr.f32.gmra.mrb[0].mxu0 %v8666
      %v9160 = vpop.f32.mrb[0].mxu0
      %v9161 = vadd.f32 0.0, %v9160
      %v9162 = vpop.f32.mrb[0].mxu0
      %9163 = vmatprep.mubr.f32.mxu0 0.0
      %9164 = vmatmul.mubr.f32.gmra.mrb[0].mxu0 %v8669
      %v9165 = vpop.f32.mrb[0].mxu0
      %v9166 = vadd.f32 0.0, %v9165
      %v9167 = vpop.f32.mrb[0].mxu0
      %9168 = vmatprep.mubr.f32.mxu0 0.0
      %9169 = vmatmul.mubr.f32.gmra.mrb[0].mxu0 %v8672
      %v9170 = vpop.f32.mrb[0].mxu0
      %v9171 = vadd.f32 0.0, %v9170
      %v9172 = vpop.f32.mrb[0].mxu0
      %9173 = vmatprep.mubr.f32.mxu0 0.0
      %9174 = vmatmul.mubr.f32.gmra.mrb[0].mxu0 %v8675
      %v9175 = vpop.f32.mrb[0].mxu0
      %v9176 = vadd.f32 0.0, %v9175
      %v9177 = vpop.f32.mrb[0].mxu0
      %9178 = vmatprep.mubr.f32.mxu0 0.0
      %9179 = vmatmul.mubr.f32.gmra.mrb[0].mxu0 %v8678
      %v9180 = vpop.f32.mrb[0].mxu0
      %v9181 = vadd.f32 0.0, %v9180
      %v9182 = vpop.f32.mrb[0].mxu0
      %9183 = vmatprep.mubr.f32.mxu0 0.0
      %9184 = vmatmul.mubr.f32.gmra.mrb[0].mxu0 %v8681
      %v9185 = vpop.f32.mrb[0].mxu0
      %v9186 = vadd.f32 0.0, %v9185
      %v9187 = vpop.f32.mrb[0].mxu0
      %9188 = vmatprep.mubr.f32.mxu0 0.0
      %9189 = vmatmul.mubr.f32.gmra.mrb[0].mxu0 %v8684
      %v9190 = vpop.f32.mrb[0].mxu0
      %v9191 = vadd.f32 0.0, %v9190
      %v9192 = vpop.f32.mrb[0].mxu0
      %9193 = vmatprep.mubr.f32.mxu0 0.0
      %9194 = vmatmul.mubr.f32.gmra.mrb[0].mxu0 %v8687
      %v9195 = vpop.f32.mrb[0].mxu0
      %v9196 = vadd.f32 0.0, %v9195
      %v9197 = vpop.f32.mrb[0].mxu0
      %9198 = vmatprep.mubr.f32.mxu0 0.0
      %9199 = vmatmul.mubr.f32.gmra.mrb[0].mxu0 %v8690
      %v9200 = vpop.f32.mrb[0].mxu0
      %v9201 = vadd.f32 0.0, %v9200
      %v9202 = vpop.f32.mrb[0].mxu0
      %9203 = vmatprep.mubr.f32.mxu0 0.0
      %9204 = vmatmul.mubr.f32.gmra.mrb[0].mxu0 %v8693
      %v9205 = vpop.f32.mrb[0].mxu0
      %v9206 = vadd.f32 0.0, %v9205
      %v9207 = vpop.f32.mrb[0].mxu0
      %9208 = vmatprep.mubr.f32.mxu0 0.0
      %9209 = vmatmul.mubr.f32.gmra.mrb[0].mxu0 %v8696
      %v9210 = vpop.f32.mrb[0].mxu0
      %v9211 = vadd.f32 0.0, %v9210
      %v9212 = vpop.f32.mrb[0].mxu0
      %9213 = vmatprep.mubr.f32.mxu0 0.0
      %9214 = vmatmul.mubr.f32.gmra.mrb[0].mxu0 %v8699
      %v9215 = vpop.f32.mrb[0].mxu0
      %v9216 = vadd.f32 0.0, %v9215
      %v9217 = vpop.f32.mrb[0].mxu0
      %9218 = vmatprep.mubr.f32.mxu0 0.0
      %9219 = vmatmul.mubr.f32.gmra.mrb[0].mxu0 %v8702
      %v9220 = vpop.f32.mrb[0].mxu0
      %v9221 = vadd.f32 0.0, %v9220
      %v9222 = vpop.f32.mrb[0].mxu0
      %9223 = vmatprep.mubr.f32.mxu0 0.0
      %9224 = vmatmul.mubr.f32.gmra.mrb[0].mxu0 %v8705
      %v9225 = vpop.f32.mrb[0].mxu0
      %v9226 = vadd.f32 0.0, %v9225
      %v9227 = vpop.f32.mrb[0].mxu0
      %9228 = vmatprep.mubr.f32.mxu0 0.0
      %9229 = vmatmul.mubr.f32.gmra.mrb[0].mxu0 %v8708
      %v9230 = vpop.f32.mrb[0].mxu0
      %v9231 = vadd.f32 0.0, %v9230
      %v9232 = vpop.f32.mrb[0].mxu0
      %9233 = vmatprep.mubr.f32.mxu0 0.0
      %9234 = vmatmul.mubr.f32.gmra.mrb[0].mxu0 %v8711
      %v9235 = vpop.f32.mrb[0].mxu0
      %v9236 = vadd.f32 0.0, %v9235
      %v9237 = vpop.f32.mrb[0].mxu0
      %9238 = vmatprep.mubr.f32.mxu0 0.0
      %9239 = vmatmul.mubr.f32.gmra.mrb[0].mxu0 %v8714
      %v9240 = vpop.f32.mrb[0].mxu0
      %v9241 = vadd.f32 0.0, %v9240
      %v9242 = vpop.f32.mrb[0].mxu0
      %9243 = vmatprep.mubr.f32.mxu0 0.0
      %9244 = vmatmul.mubr.f32.gmra.mrb[0].mxu0 %v8717
      %v9245 = vpop.f32.mrb[0].mxu0
      %v9246 = vadd.f32 0.0, %v9245
      %v9247 = vpop.f32.mrb[0].mxu0
      %9248 = vmatprep.mubr.f32.mxu0 0.0
      %9249 = vmatmul.mubr.f32.gmra.mrb[0].mxu0 %v8720
      %v9250 = vpop.f32.mrb[0].mxu0
      %v9251 = vadd.f32 0.0, %v9250
      %v9252 = vpop.f32.mrb[0].mxu0
      %9253 = vmatprep.mubr.f32.mxu0 0.0
      %9254 = vmatmul.mubr.f32.gmra.mrb[0].mxu0 %v8723
      %v9255 = vpop.f32.mrb[0].mxu0
      %v9256 = vadd.f32 0.0, %v9255
      %v9257 = vpop.f32.mrb[0].mxu0
      %9258 = vmatprep.mubr.f32.mxu0 0.0
      %9259 = vmatmul.mubr.f32.gmra.mrb[0].mxu0 %v8726
      %v9260 = vpop.f32.mrb[0].mxu0
      %v9261 = vadd.f32 0.0, %v9260
      %v9262 = vpop.f32.mrb[0].mxu0
      %9263 = vmatprep.mubr.f32.mxu0 0.0
      %9264 = vmatmul.mubr.f32.gmra.mrb[0].mxu0 %v8729
      %v9265 = vpop.f32.mrb[0].mxu0
      %v9266 = vadd.f32 0.0, %v9265
      %v9267 = vpop.f32.mrb[0].mxu0
      %9268 = vmatprep.mubr.f32.mxu0 0.0
      %9269 = vmatmul.mubr.f32.gmra.mrb[0].mxu0 %v8732
      %v9270 = vpop.f32.mrb[0].mxu0
      %v9271 = vadd.f32 0.0, %v9270
      %v9272 = vpop.f32.mrb[0].mxu0
      %9273 = vmatprep.mubr.f32.mxu0 0.0
      %9274 = vmatmul.mubr.f32.gmra.mrb[0].mxu0 %v8735
      %v9275 = vpop.f32.mrb[0].mxu0
      %v9276 = vadd.f32 0.0, %v9275
      %v9277 = vpop.f32.mrb[0].mxu0
      %9278 = vmatprep.mubr.f32.mxu0 0.0
      %9279 = vmatmul.mubr.f32.gmra.mrb[0].mxu0 %v8738
      %v9280 = vpop.f32.mrb[0].mxu0
      %v9281 = vadd.f32 0.0, %v9280
      %v9282 = vpop.f32.mrb[0].mxu0
      %9283 = vmatprep.mubr.f32.mxu0 0.0
      %9284 = vmatmul.mubr.f32.gmra.mrb[0].mxu0 %v8741
      %v9285 = vpop.f32.mrb[0].mxu0
      %v9286 = vadd.f32 0.0, %v9285
      %v9287 = vpop.f32.mrb[0].mxu0
      %9288 = vmatprep.mubr.f32.mxu0 0.0
      %9289 = vmatmul.mubr.f32.gmra.mrb[0].mxu0 %v8744
      %v9290 = vpop.f32.mrb[0].mxu0
      %v9291 = vadd.f32 0.0, %v9290
      %v9292 = vpop.f32.mrb[0].mxu0
      %9293 = vmatprep.mubr.f32.mxu0 0.0
      %9294 = vmatmul.mubr.f32.gmra.mrb[0].mxu0 %v8747
      %v9295 = vpop.f32.mrb[0].mxu0
      %v9296 = vadd.f32 0.0, %v9295
      %v9297 = vpop.f32.mrb[0].mxu0
      %9298 = vmatprep.mubr.f32.mxu0 0.0
      %9299 = vmatmul.mubr.f32.gmra.mrb[0].mxu0 %v8750
      %v9300 = vpop.f32.mrb[0].mxu0
      %v9301 = vadd.f32 0.0, %v9300
      %v9302 = vpop.f32.mrb[0].mxu0
      %9303 = vmatprep.mubr.f32.mxu0 0.0
      %9304 = vmatmul.mubr.f32.gmra.mrb[0].mxu0 %v8753
      %v9305 = vpop.f32.mrb[0].mxu0
      %v9306 = vadd.f32 0.0, %v9305
      %v9307 = vpop.f32.mrb[0].mxu0
      %9308 = vmatprep.mubr.f32.mxu0 0.0
      %9309 = vmatmul.mubr.f32.gmra.mrb[0].mxu0 %v8756
      %v9310 = vpop.f32.mrb[0].mxu0
      %v9311 = vadd.f32 0.0, %v9310
      %v9312 = vpop.f32.mrb[0].mxu0
      %9313 = vmatprep.mubr.f32.mxu0 0.0
      %9314 = vmatmul.mubr.f32.gmra.mrb[0].mxu0 %v8759
      %v9315 = vpop.f32.mrb[0].mxu0
      %v9316 = vadd.f32 0.0, %v9315
      %v9317 = vpop.f32.mrb[0].mxu0
      %9318 = vmatprep.mubr.f32.mxu0 0.0
      %9319 = vmatmul.mubr.f32.gmra.mrb[0].mxu0 %v8762
      %v9320 = vpop.f32.mrb[0].mxu0
      %v9321 = vadd.f32 0.0, %v9320
      %v9322 = vpop.f32.mrb[0].mxu0
      %9323 = vmatprep.mubr.f32.mxu0 0.0
      %9324 = vmatmul.mubr.f32.gmra.mrb[0].mxu0 %v8765
      %v9325 = vpop.f32.mrb[0].mxu0
      %v9326 = vadd.f32 0.0, %v9325
      %v9327 = vpop.f32.mrb[0].mxu0
      %9328 = vmatprep.mubr.f32.mxu0 0.0
      %9329 = vmatmul.mubr.f32.gmra.mrb[0].mxu0 %v8768
      %v9330 = vpop.f32.mrb[0].mxu0
      %v9331 = vadd.f32 0.0, %v9330
      %v9332 = vpop.f32.mrb[0].mxu0
      %9333 = vmatprep.mubr.f32.mxu0 0.0
      %9334 = vmatmul.mubr.f32.gmra.mrb[0].mxu0 %v8771
      %v9335 = vpop.f32.mrb[0].mxu0
      %v9336 = vadd.f32 0.0, %v9335
      %v9337 = vpop.f32.mrb[0].mxu0
      %9338 = vmatprep.mubr.f32.mxu0 0.0
      %9339 = vmatmul.mubr.f32.gmra.mrb[0].mxu0 %v8774
      %v9340 = vpop.f32.mrb[0].mxu0
      %v9341 = vadd.f32 0.0, %v9340
      %v9342 = vpop.f32.mrb[0].mxu0
      %9343 = vmatprep.mubr.f32.mxu0 0.0
      %9344 = vmatmul.mubr.f32.gmra.mrb[0].mxu0 %v8777
      %v9345 = vpop.f32.mrb[0].mxu0
      %v9346 = vadd.f32 0.0, %v9345
      %v9347 = vpop.f32.mrb[0].mxu0
      %9348 = vmatprep.mubr.f32.mxu0 0.0
      %9349 = vmatmul.mubr.f32.gmra.mrb[0].mxu0 %v8780
      %v9350 = vpop.f32.mrb[0].mxu0
      %v9351 = vadd.f32 0.0, %v9350
      %v9352 = vpop.f32.mrb[0].mxu0
      %9353 = vmatprep.mubr.f32.mxu0 0.0
      %9354 = vmatmul.mubr.f32.gmra.mrb[0].mxu0 %v8783
      %v9355 = vpop.f32.mrb[0].mxu0
      %v9356 = vadd.f32 0.0, %v9355
      %v9357 = vpop.f32.mrb[0].mxu0
      %9358 = vmatprep.mubr.f32.mxu0 0.0
      %9359 = vmatmul.mubr.f32.gmra.mrb[0].mxu0 %v8786
      %v9360 = vpop.f32.mrb[0].mxu0
      %v9361 = vadd.f32 0.0, %v9360
      %v9362 = vpop.f32.mrb[0].mxu0
      %9363 = vmatprep.mubr.f32.mxu0 0.0
      %9364 = vmatmul.mubr.f32.gmra.mrb[0].mxu0 %v8789
      %v9365 = vpop.f32.mrb[0].mxu0
      %v9366 = vadd.f32 0.0, %v9365
      %v9367 = vpop.f32.mrb[0].mxu0
      %9368 = vmatprep.mubr.f32.mxu0 0.0
      %9369 = vmatmul.mubr.f32.gmra.mrb[0].mxu0 %v8792
      %v9370 = vpop.f32.mrb[0].mxu0
      %v9371 = vadd.f32 0.0, %v9370
      %v9372 = vpop.f32.mrb[0].mxu0
      %9373 = vmatprep.mubr.f32.mxu0 0.0
      %9374 = vmatmul.mubr.f32.gmra.mrb[0].mxu0 %v8795
      %v9375 = vpop.f32.mrb[0].mxu0
      %v9376 = vadd.f32 0.0, %v9375
      %v9377 = vpop.f32.mrb[0].mxu0
      %9378 = vmatprep.mubr.f32.mxu0 0.0
      %9379 = vmatmul.mubr.f32.gmra.mrb[0].mxu0 %v8798
      %v9380 = vpop.f32.mrb[0].mxu0
      %v9381 = vadd.f32 0.0, %v9380
      %v9382 = vpop.f32.mrb[0].mxu0
      %9383 = vmatprep.mubr.f32.mxu0 0.0
      %9384 = vmatmul.mubr.f32.gmra.mrb[0].mxu0 %v8801
      %v9385 = vpop.f32.mrb[0].mxu0
      %v9386 = vadd.f32 0.0, %v9385
      %v9387 = vpop.f32.mrb[0].mxu0
      %9388 = vmatprep.mubr.f32.mxu0 0.0
      %9389 = vmatmul.mubr.f32.gmra.mrb[0].mxu0 %v8804
      %v9390 = vpop.f32.mrb[0].mxu0
      %v9391 = vadd.f32 0.0, %v9390
      %v9392 = vpop.f32.mrb[0].mxu0
      %9393 = vmatprep.mubr.f32.mxu0 0.0
      %9394 = vmatmul.mubr.f32.gmra.mrb[0].mxu0 %v8807
      %v9395 = vpop.f32.mrb[0].mxu0
      %v9396 = vadd.f32 0.0, %v9395
      %v9397 = vpop.f32.mrb[0].mxu0
      %9398 = vmatprep.mubr.f32.mxu0 0.0
      %9399 = vmatmul.mubr.f32.gmra.mrb[0].mxu0 %v8810
      %v9400 = vpop.f32.mrb[0].mxu0
      %v9401 = vadd.f32 0.0, %v9400
      %v9402 = vpop.f32.mrb[0].mxu0
      %9403 = vmatprep.mubr.f32.mxu0 0.0
      %9404 = vmatmul.mubr.f32.gmra.mrb[0].mxu0 %v8813
      %v9405 = vpop.f32.mrb[0].mxu0
      %v9406 = vadd.f32 0.0, %v9405
      %v9407 = vpop.f32.mrb[0].mxu0
      %9408 = vmatprep.mubr.f32.mxu0 0.0
      %9409 = vmatmul.mubr.f32.gmra.mrb[0].mxu0 %v8816
      %v9410 = vpop.f32.mrb[0].mxu0
      %v9411 = vadd.f32 0.0, %v9410
      %v9412 = vpop.f32.mrb[0].mxu0
      %9413 = vmatprep.mubr.f32.mxu0 0.0
      %9414 = vmatmul.mubr.f32.gmra.mrb[0].mxu0 %v8819
      %v9415 = vpop.f32.mrb[0].mxu0
      %v9416 = vadd.f32 0.0, %v9415
      %v9417 = vpop.f32.mrb[0].mxu0
      %9418 = vmatprep.mubr.f32.mxu0 0.0
      %9419 = vmatmul.mubr.f32.gmra.mrb[0].mxu0 %v8822
      %v9420 = vpop.f32.mrb[0].mxu0
      %v9421 = vadd.f32 0.0, %v9420
      %v9422 = vpop.f32.mrb[0].mxu0
      %9423 = vmatprep.mubr.f32.mxu0 0.0
      %9424 = vmatmul.mubr.f32.gmra.mrb[0].mxu0 %v8825
      %v9425 = vpop.f32.mrb[0].mxu0
      %v9426 = vadd.f32 0.0, %v9425
      %v9427 = vpop.f32.mrb[0].mxu0
      %9428 = vmatprep.mubr.f32.mxu0 0.0
      %9429 = vmatmul.mubr.f32.gmra.mrb[0].mxu0 %v8828
      %v9430 = vpop.f32.mrb[0].mxu0
      %v9431 = vadd.f32 0.0, %v9430
      %v9432 = vpop.f32.mrb[0].mxu0
      %9433 = vmatprep.mubr.f32.mxu0 0.0
      %9434 = vmatmul.mubr.f32.gmra.mrb[0].mxu0 %v8831
      %v9435 = vpop.f32.mrb[0].mxu0
      %v9436 = vadd.f32 0.0, %v9435
      %v9437 = vpop.f32.mrb[0].mxu0
      %9438 = vmatprep.mubr.f32.mxu0 0.0
      %9439 = vmatmul.mubr.f32.gmra.mrb[0].mxu0 %v8834
      %v9440 = vpop.f32.mrb[0].mxu0
      %v9441 = vadd.f32 0.0, %v9440
      %v9442 = vpop.f32.mrb[0].mxu0
      %9443 = vmatprep.mubr.f32.mxu0 0.0
      %9444 = vmatmul.mubr.f32.gmra.mrb[0].mxu0 %v8837
      %v9445 = vpop.f32.mrb[0].mxu0
      %v9446 = vadd.f32 0.0, %v9445
      %v9447 = vpop.f32.mrb[0].mxu0
      %9448 = vmatprep.mubr.f32.mxu0 0.0
      %9449 = vmatmul.mubr.f32.gmra.mrb[0].mxu0 %v8840
      %v9450 = vpop.f32.mrb[0].mxu0
      %v9451 = vadd.f32 0.0, %v9450
      %v9452 = vpop.f32.mrb[0].mxu0
      %9453 = vmatprep.mubr.f32.mxu0 0.0
      %9454 = vmatmul.mubr.f32.gmra.mrb[0].mxu0 %v8843
      %v9455 = vpop.f32.mrb[0].mxu0
      %v9456 = vadd.f32 0.0, %v9455
      %v9457 = vpop.f32.mrb[0].mxu0
      %9458 = vmatprep.mubr.f32.mxu0 0.0
      %9459 = vmatmul.mubr.f32.gmra.mrb[0].mxu0 %v8846
      %v9460 = vpop.f32.mrb[0].mxu0
      %v9461 = vadd.f32 0.0, %v9460
      %v9462 = vpop.f32.mrb[0].mxu0
      %9463 = vmatprep.mubr.f32.mxu0 0.0
      %9464 = vmatmul.mubr.f32.gmra.mrb[0].mxu0 %v8849
      %v9465 = vpop.f32.mrb[0].mxu0
      %v9466 = vadd.f32 0.0, %v9465
      %v9467 = vpop.f32.mrb[0].mxu0
      %9468 = vmatprep.mubr.f32.mxu0 0.0
      %9469 = vmatmul.mubr.f32.gmra.mrb[0].mxu0 %v8852
      %v9470 = vpop.f32.mrb[0].mxu0
      %v9471 = vadd.f32 0.0, %v9470
      %v9472 = vpop.f32.mrb[0].mxu0
      %9473 = vmatprep.mubr.f32.mxu0 0.0
      %9474 = vmatmul.mubr.f32.gmra.mrb[0].mxu0 %v8855
      %v9475 = vpop.f32.mrb[0].mxu0
      %v9476 = vadd.f32 0.0, %v9475
      %v9477 = vpop.f32.mrb[0].mxu0
      %9478 = vmatprep.mubr.f32.mxu0 0.0
      %9479 = vmatmul.mubr.f32.gmra.mrb[0].mxu0 %v8858
      %v9480 = vpop.f32.mrb[0].mxu0
      %v9481 = vadd.f32 0.0, %v9480
      %v9482 = vpop.f32.mrb[0].mxu0
      %9483 = vmatprep.mubr.f32.mxu0 0.0
      %9484 = vmatmul.mubr.f32.gmra.mrb[0].mxu0 %v8861
      %v9485 = vpop.f32.mrb[0].mxu0
      %v9486 = vadd.f32 0.0, %v9485
      %v9487 = vpop.f32.mrb[0].mxu0
      %9488 = vmatprep.mubr.f32.mxu0 0.0
      %9489 = vmatmul.mubr.f32.gmra.mrb[0].mxu0 %v8864
      %v9490 = vpop.f32.mrb[0].mxu0
      %v9491 = vadd.f32 0.0, %v9490
      %v9492 = vpop.f32.mrb[0].mxu0
      %9493 = vmatprep.mubr.f32.mxu0 0.0
      %9494 = vmatmul.mubr.f32.gmra.mrb[0].mxu0 %v8867
      %v9495 = vpop.f32.mrb[0].mxu0
      %v9496 = vadd.f32 0.0, %v9495
      %v9497 = vpop.f32.mrb[0].mxu0
      %9498 = vmatprep.mubr.f32.mxu0 0.0
      %9499 = vmatmul.mubr.f32.gmra.mrb[0].mxu0 %v8870
      %v9500 = vpop.f32.mrb[0].mxu0
      %v9501 = vadd.f32 0.0, %v9500
      %v9502 = vpop.f32.mrb[0].mxu0
      %9503 = vmatprep.mubr.f32.mxu0 0.0
      %9504 = vmatmul.mubr.f32.gmra.mrb[0].mxu0 %v8873
      %v9505 = vpop.f32.mrb[0].mxu0
      %v9506 = vadd.f32 0.0, %v9505
      %v9507 = vpop.f32.mrb[0].mxu0
      %9508 = vmatprep.mubr.f32.mxu0 0.0
      %9509 = vmatmul.mubr.f32.gmra.mrb[0].mxu0 %v8876
      %v9510 = vpop.f32.mrb[0].mxu0
      %v9511 = vadd.f32 0.0, %v9510
      %v9512 = vpop.f32.mrb[0].mxu0
      %9513 = vmatprep.mubr.f32.mxu0 0.0
      %9514 = vmatmul.mubr.f32.gmra.mrb[0].mxu0 %v8879
      %v9515 = vpop.f32.mrb[0].mxu0
      %v9516 = vadd.f32 0.0, %v9515
      %v9517 = vpop.f32.mrb[0].mxu0
      %9518 = vmatprep.mubr.f32.mxu0 0.0
      %9519 = vmatmul.mubr.f32.gmra.mrb[0].mxu0 %v8882
      %v9520 = vpop.f32.mrb[0].mxu0
      %v9521 = vadd.f32 0.0, %v9520
      %v9522 = vpop.f32.mrb[0].mxu0
      %9523 = vmatprep.mubr.f32.mxu0 0.0
      %9524 = vmatmul.mubr.f32.gmra.mrb[0].mxu0 %v8885
      %v9525 = vpop.f32.mrb[0].mxu0
      %v9526 = vadd.f32 0.0, %v9525
      %v9527 = vpop.f32.mrb[0].mxu0
      %9528 = vmatprep.mubr.f32.mxu0 0.0
      %9529 = vmatmul.mubr.f32.gmra.mrb[0].mxu0 %v8888
      %v9530 = vpop.f32.mrb[0].mxu0
      %v9531 = vadd.f32 0.0, %v9530
      %v9532 = vpop.f32.mrb[0].mxu0
      %9533 = vmatprep.mubr.f32.mxu0 0.0
      %9534 = vmatmul.mubr.f32.gmra.mrb[0].mxu0 %v8891
      %v9535 = vpop.f32.mrb[0].mxu0
      %v9536 = vadd.f32 0.0, %v9535
      %v9537 = vpop.f32.mrb[0].mxu0
      %9538 = vmatprep.mubr.f32.mxu0 0.0
      %9539 = vmatmul.mubr.f32.gmra.mrb[0].mxu0 %v8894
      %v9540 = vpop.f32.mrb[0].mxu0
      %v9541 = vadd.f32 0.0, %v9540
      %v9542 = vpop.f32.mrb[0].mxu0
      %9543 = vmatprep.mubr.f32.mxu0 0.0
      %9544 = vmatmul.mubr.f32.gmra.mrb[0].mxu0 %v8897
      %v9545 = vpop.f32.mrb[0].mxu0
      %v9546 = vadd.f32 0.0, %v9545
      %v9547 = vpop.f32.mrb[0].mxu0
      %9548 = vmatprep.mubr.f32.mxu0 0.0
      %9549 = vmatmul.mubr.f32.gmra.mrb[0].mxu0 %v8900
      %v9550 = vpop.f32.mrb[0].mxu0
      %v9551 = vadd.f32 0.0, %v9550
      %v9552 = vpop.f32.mrb[0].mxu0
      %9553 = vmatprep.mubr.f32.mxu0 0.0
      %9554 = vmatmul.mubr.f32.gmra.mrb[0].mxu0 %v8903
      %v9555 = vpop.f32.mrb[0].mxu0
      %v9556 = vadd.f32 0.0, %v9555
      %v9557 = vpop.f32.mrb[0].mxu0
      %9558 = vmatprep.mubr.f32.mxu0 0.0
      %9559 = vmatmul.mubr.f32.gmra.mrb[0].mxu0 %v8906
      %v9560 = vpop.f32.mrb[0].mxu0
      %v9561 = vadd.f32 0.0, %v9560
      %v9562 = vpop.f32.mrb[0].mxu0
      %9563 = vmatprep.mubr.f32.mxu0 0.0
      %9564 = vmatmul.mubr.f32.gmra.mrb[0].mxu0 %v8909
      %v9565 = vpop.f32.mrb[0].mxu0
      %v9566 = vadd.f32 0.0, %v9565
      %v9567 = vpop.f32.mrb[0].mxu0
      %9568 = vmatprep.mubr.f32.mxu0 0.0
      %9569 = vmatmul.mubr.f32.gmra.mrb[0].mxu0 %v8912
      %v9570 = vpop.f32.mrb[0].mxu0
      %v9571 = vadd.f32 0.0, %v9570
      %v9572 = vpop.f32.mrb[0].mxu0
      %9573 = vmatprep.mubr.f32.mxu0 0.0
      %9574 = vmatmul.mubr.f32.gmra.mrb[0].mxu0 %v8915
      %v9575 = vpop.f32.mrb[0].mxu0
      %v9576 = vadd.f32 0.0, %v9575
      %v9577 = vpop.f32.mrb[0].mxu0
      %9578 = vmatprep.mubr.f32.mxu0 0.0
      %9579 = vmatmul.mubr.f32.gmra.mrb[0].mxu0 %v8918
      %v9580 = vpop.f32.mrb[0].mxu0
      %v9581 = vadd.f32 0.0, %v9580
      %v9582 = vpop.f32.mrb[0].mxu0
      %9583 = vmatprep.mubr.f32.mxu0 0.0
      %9584 = vmatmul.mubr.f32.gmra.mrb[0].mxu0 %v8921
      %v9585 = vpop.f32.mrb[0].mxu0
      %v9586 = vadd.f32 0.0, %v9585
      %v9587 = vpop.f32.mrb[0].mxu0
      %9588 = vmatprep.mubr.f32.mxu0 0.0
      %9589 = vmatmul.mubr.f32.gmra.mrb[0].mxu0 %v8924
      %v9590 = vpop.f32.mrb[0].mxu0
      %v9591 = vadd.f32 0.0, %v9590
      %v9592 = vpop.f32.mrb[0].mxu0
      %9593 = vmatprep.mubr.f32.mxu0 0.0
      %9594 = vmatmul.mubr.f32.gmra.mrb[0].mxu0 %v8927
      %v9595 = vpop.f32.mrb[0].mxu0
      %v9596 = vadd.f32 0.0, %v9595
      %v9597 = vpop.f32.mrb[0].mxu0
      %9598 = vmatprep.mubr.f32.mxu0 0.0
      %9599 = vmatmul.mubr.f32.gmra.mrb[0].mxu0 %v8930
      %v9600 = vpop.f32.mrb[0].mxu0
      %v9601 = vadd.f32 0.0, %v9600
      %v9602 = vpop.f32.mrb[0].mxu0
      %9603 = vmatprep.mubr.f32.mxu0 0.0
      %9604 = vmatmul.mubr.f32.gmra.mrb[0].mxu0 %v8933
      %v9605 = vpop.f32.mrb[0].mxu0
      %v9606 = vadd.f32 0.0, %v9605
      %v9607 = vpop.f32.mrb[0].mxu0
      %9608 = vmatprep.mubr.f32.mxu0 0.0
      %9609 = vmatmul.mubr.f32.gmra.mrb[0].mxu0 %v8936
      %v9610 = vpop.f32.mrb[0].mxu0
      %v9611 = vadd.f32 0.0, %v9610
      %v9612 = vpop.f32.mrb[0].mxu0
      %9613 = vmatprep.mubr.f32.mxu0 0.0
      %9614 = vmatmul.mubr.f32.gmra.mrb[0].mxu0 %v8939
      %v9615 = vpop.f32.mrb[0].mxu0
      %v9616 = vadd.f32 0.0, %v9615
      %v9617 = vpop.f32.mrb[0].mxu0
      %9618 = vmatprep.mubr.f32.mxu0 0.0
      %9619 = vmatmul.mubr.f32.gmra.mrb[0].mxu0 %v8942
      %v9620 = vpop.f32.mrb[0].mxu0
      %v9621 = vadd.f32 0.0, %v9620
      %v9622 = vpop.f32.mrb[0].mxu0
      %9623 = vmatprep.mubr.f32.mxu0 0.0
      %9624 = vmatmul.mubr.f32.gmra.mrb[0].mxu0 %v8945
      %v9625 = vpop.f32.mrb[0].mxu0
      %v9626 = vadd.f32 0.0, %v9625
      %v9627 = vpop.f32.mrb[0].mxu0
      %9628 = vmatprep.mubr.f32.mxu0 0.0
      %9629 = vmatmul.mubr.f32.gmra.mrb[0].mxu0 %v8948
      %v9630 = vpop.f32.mrb[0].mxu0
      %v9631 = vadd.f32 0.0, %v9630
      %v9632 = vpop.f32.mrb[0].mxu0
      %9633 = vmatprep.mubr.f32.mxu0 0.0
      %9634 = vmatmul.mubr.f32.gmra.mrb[0].mxu0 %v8951
      %v9635 = vpop.f32.mrb[0].mxu0
      %v9636 = vadd.f32 0.0, %v9635
      %v9637 = vpop.f32.mrb[0].mxu0
      %9638 = vmatprep.mubr.f32.mxu0 0.0
      %9639 = vmatmul.mubr.f32.gmra.mrb[0].mxu0 %v8954
      %v9640 = vpop.f32.mrb[0].mxu0
      %v9641 = vadd.f32 0.0, %v9640
      %v9642 = vpop.f32.mrb[0].mxu0
      %9643 = vmatprep.mubr.f32.mxu0 0.0
      %9644 = vmatmul.mubr.f32.gmra.mrb[0].mxu0 %v8957
      %v9645 = vpop.f32.mrb[0].mxu0
      %v9646 = vadd.f32 0.0, %v9645
      %v9647 = vpop.f32.mrb[0].mxu0
      %9648 = vmatprep.mubr.f32.mxu0 0.0
      %9649 = vmatmul.mubr.f32.gmra.mrb[0].mxu0 %v8960
      %v9650 = vpop.f32.mrb[0].mxu0
      %v9651 = vadd.f32 0.0, %v9650
      %v9652 = vpop.f32.mrb[0].mxu0
      %9653 = vmatprep.mubr.f32.mxu0 0.0
      %9654 = vmatmul.mubr.f32.gmra.mrb[0].mxu0 %v8963
      %v9655 = vpop.f32.mrb[0].mxu0
      %v9656 = vadd.f32 0.0, %v9655
      %v9657 = vpop.f32.mrb[0].mxu0
      %9658 = vmatprep.mubr.f32.mxu0 0.0
      %9659 = vmatmul.mubr.f32.gmra.mrb[0].mxu0 %v8966
      %v9660 = vpop.f32.mrb[0].mxu0
      %v9661 = vadd.f32 0.0, %v9660
      %v9662 = vpop.f32.mrb[0].mxu0
      %9663 = vmatprep.mubr.f32.mxu0 0.0
      %9664 = vmatmul.mubr.f32.gmra.mrb[0].mxu0 %v8969
      %v9665 = vpop.f32.mrb[0].mxu0
      %v9666 = vadd.f32 0.0, %v9665
      %v9667 = vpop.f32.mrb[0].mxu0
      %9668 = vmatprep.mubr.f32.mxu0 0.0
      %9669 = vmatmul.mubr.f32.gmra.mrb[0].mxu0 %v8972
      %v9670 = vpop.f32.mrb[0].mxu0
      %v9671 = vadd.f32 0.0, %v9670
      %v9672 = vpop.f32.mrb[0].mxu0
      %9673 = vmatprep.mubr.f32.mxu0 0.0
      %9674 = vmatmul.mubr.f32.gmra.mrb[0].mxu0 %v8975
      %v9675 = vpop.f32.mrb[0].mxu0
      %v9676 = vadd.f32 0.0, %v9675
      %v9677 = vpop.f32.mrb[0].mxu0
      %9678 = vmatprep.mubr.f32.mxu0 0.0
      %9679 = vmatmul.mubr.f32.gmra.mrb[0].mxu0 %v8978
      %v9680 = vpop.f32.mrb[0].mxu0
      %v9681 = vadd.f32 0.0, %v9680
      %v9682 = vpop.f32.mrb[0].mxu0
      %9683 = vmatprep.mubr.f32.mxu0 0.0
      %9684 = vmatmul.mubr.f32.gmra.mrb[0].mxu0 %v8981
      %v9685 = vpop.f32.mrb[0].mxu0
      %v9686 = vadd.f32 0.0, %v9685
      %v9687 = vpop.f32.mrb[0].mxu0
      %9688 = vmatprep.mubr.f32.mxu0 0.0
      %9689 = vmatmul.mubr.f32.gmra.mrb[0].mxu0 %v8984
      %v9690 = vpop.f32.mrb[0].mxu0
      %v9691 = vadd.f32 0.0, %v9690
      %v9692 = vpop.f32.mrb[0].mxu0
      %9693 = vdwg.mxu0
      %v9694 = vadd.f32 %v8343, %v9056
      %v9695 = vadd.f32 %v8344, %v9061
      %v9696 = vadd.f32 %v8345, %v9066
      %v9697 = vadd.f32 %v8346, %v9071
      %v9698 = vadd.f32 %v8347, %v9076
      %v9699 = vadd.f32 %v8348, %v9081
      %v9700 = vadd.f32 %v8349, %v9086
      %v9701 = vadd.f32 %v8350, %v9091
      %v9702 = vadd.f32 %v8351, %v9096
      %v9703 = vadd.f32 %v8352, %v9101
      %v9704 = vadd.f32 %v8353, %v9106
      %v9705 = vadd.f32 %v8354, %v9111
      %v9706 = vadd.f32 %v8355, %v9116
      %v9707 = vadd.f32 %v8356, %v9121
      %v9708 = vadd.f32 %v8357, %v9126
      %v9709 = vadd.f32 %v8358, %v9131
      %v9710 = vadd.f32 %v8359, %v9136
      %v9711 = vadd.f32 %v8360, %v9141
      %v9712 = vadd.f32 %v8361, %v9146
      %v9713 = vadd.f32 %v8362, %v9151
      %v9714 = vadd.f32 %v8363, %v9156
      %v9715 = vadd.f32 %v8364, %v9161
      %v9716 = vadd.f32 %v8365, %v9166
      %v9717 = vadd.f32 %v8366, %v9171
      %v9718 = vadd.f32 %v8367, %v9176
      %v9719 = vadd.f32 %v8368, %v9181
      %v9720 = vadd.f32 %v8369, %v9186
      %v9721 = vadd.f32 %v8370, %v9191
      %v9722 = vadd.f32 %v8371, %v9196
      %v9723 = vadd.f32 %v8372, %v9201
      %v9724 = vadd.f32 %v8373, %v9206
      %v9725 = vadd.f32 %v8374, %v9211
      %v9726 = vadd.f32 %v8375, %v9216
      %v9727 = vadd.f32 %v8376, %v9221
      %v9728 = vadd.f32 %v8377, %v9226
      %v9729 = vadd.f32 %v8378, %v9231
      %v9730 = vadd.f32 %v8379, %v9236
      %v9731 = vadd.f32 %v8380, %v9241
      %v9732 = vadd.f32 %v8381, %v9246
      %v9733 = vadd.f32 %v8382, %v9251
      %v9734 = vadd.f32 %v8383, %v9256
      %v9735 = vadd.f32 %v8384, %v9261
      %v9736 = vadd.f32 %v8385, %v9266
      %v9737 = vadd.f32 %v8386, %v9271
      %v9738 = vadd.f32 %v8387, %v9276
      %v9739 = vadd.f32 %v8388, %v9281
      %v9740 = vadd.f32 %v8389, %v9286
      %v9741 = vadd.f32 %v8390, %v9291
      %v9742 = vadd.f32 %v8391, %v9296
      %v9743 = vadd.f32 %v8392, %v9301
      %v9744 = vadd.f32 %v8393, %v9306
      %v9745 = vadd.f32 %v8394, %v9311
      %v9746 = vadd.f32 %v8395, %v9316
      %v9747 = vadd.f32 %v8396, %v9321
      %v9748 = vadd.f32 %v8397, %v9326
      %v9749 = vadd.f32 %v8398, %v9331
      %v9750 = vadd.f32 %v8399, %v9336
      %v9751 = vadd.f32 %v8400, %v9341
      %v9752 = vadd.f32 %v8401, %v9346
      %v9753 = vadd.f32 %v8402, %v9351
      %v9754 = vadd.f32 %v8403, %v9356
      %v9755 = vadd.f32 %v8404, %v9361
      %v9756 = vadd.f32 %v8405, %v9366
      %v9757 = vadd.f32 %v8406, %v9371
      %v9758 = vadd.f32 %v8407, %v9376
      %v9759 = vadd.f32 %v8408, %v9381
      %v9760 = vadd.f32 %v8409, %v9386
      %v9761 = vadd.f32 %v8410, %v9391
      %v9762 = vadd.f32 %v8411, %v9396
      %v9763 = vadd.f32 %v8412, %v9401
      %v9764 = vadd.f32 %v8413, %v9406
      %v9765 = vadd.f32 %v8414, %v9411
      %v9766 = vadd.f32 %v8415, %v9416
      %v9767 = vadd.f32 %v8416, %v9421
      %v9768 = vadd.f32 %v8417, %v9426
      %v9769 = vadd.f32 %v8418, %v9431
      %v9770 = vadd.f32 %v8419, %v9436
      %v9771 = vadd.f32 %v8420, %v9441
      %v9772 = vadd.f32 %v8421, %v9446
      %v9773 = vadd.f32 %v8422, %v9451
      %v9774 = vadd.f32 %v8423, %v9456
      %v9775 = vadd.f32 %v8424, %v9461
      %v9776 = vadd.f32 %v8425, %v9466
      %v9777 = vadd.f32 %v8426, %v9471
      %v9778 = vadd.f32 %v8427, %v9476
      %v9779 = vadd.f32 %v8428, %v9481
      %v9780 = vadd.f32 %v8429, %v9486
      %v9781 = vadd.f32 %v8430, %v9491
      %v9782 = vadd.f32 %v8431, %v9496
      %v9783 = vadd.f32 %v8432, %v9501
      %v9784 = vadd.f32 %v8433, %v9506
      %v9785 = vadd.f32 %v8434, %v9511
      %v9786 = vadd.f32 %v8435, %v9516
      %v9787 = vadd.f32 %v8436, %v9521
      %v9788 = vadd.f32 %v8437, %v9526
      %v9789 = vadd.f32 %v8438, %v9531
      %v9790 = vadd.f32 %v8439, %v9536
      %v9791 = vadd.f32 %v8440, %v9541
      %v9792 = vadd.f32 %v8441, %v9546
      %v9793 = vadd.f32 %v8442, %v9551
      %v9794 = vadd.f32 %v8443, %v9556
      %v9795 = vadd.f32 %v8444, %v9561
      %v9796 = vadd.f32 %v8445, %v9566
      %v9797 = vadd.f32 %v8446, %v9571
      %v9798 = vadd.f32 %v8447, %v9576
      %v9799 = vadd.f32 %v8448, %v9581
      %v9800 = vadd.f32 %v8449, %v9586
      %v9801 = vadd.f32 %v8450, %v9591
      %v9802 = vadd.f32 %v8451, %v9596
      %v9803 = vadd.f32 %v8452, %v9601
      %v9804 = vadd.f32 %v8453, %v9606
      %v9805 = vadd.f32 %v8454, %v9611
      %v9806 = vadd.f32 %v8455, %v9616
      %v9807 = vadd.f32 %v8456, %v9621
      %v9808 = vadd.f32 %v8457, %v9626
      %v9809 = vadd.f32 %v8458, %v9631
      %v9810 = vadd.f32 %v8459, %v9636
      %v9811 = vadd.f32 %v8460, %v9641
      %v9812 = vadd.f32 %v8461, %v9646
      %v9813 = vadd.f32 %v8462, %v9651
      %v9814 = vadd.f32 %v8463, %v9656
      %v9815 = vadd.f32 %v8464, %v9661
      %v9816 = vadd.f32 %v8465, %v9666
      %v9817 = vadd.f32 %v8466, %v9671
      %v9818 = vadd.f32 %v8467, %v9676
      %v9819 = vadd.f32 %v8468, %v9681
      %v9820 = vadd.f32 %v8469, %v9686
      %v9821 = vadd.f32 %v8470, %v9691
      %v9822 = vld [vmem:[%s8471 + $0x1] sm:$0xff]
      %v9823 = vld [vmem:[%s8471 + $0x9] sm:$0xff]
      %v9824 = vld [vmem:[%s8471 + $0x11] sm:$0xff]
      %v9825 = vld [vmem:[%s8471 + $0x19] sm:$0xff]
      %v9826 = vld [vmem:[%s8471 + $0x29] sm:$0xff]
      %v9827 = vld [vmem:[%s8471 + $0x31] sm:$0xff]
      %v9828 = vld [vmem:[%s8471 + $0x39] sm:$0xff]
      %v9829 = vld [vmem:[%s8471 + $0x41] sm:$0xff]
      %v9830 = vld [vmem:[%s8471 + $0x51] sm:$0xff]
      %v9831 = vld [vmem:[%s8471 + $0x59] sm:$0xff]
      %v9832 = vld [vmem:[%s8471 + $0x61] sm:$0xff]
      %v9833 = vld [vmem:[%s8471 + $0x69] sm:$0xff]
      %v9834 = vld [vmem:[%s8471 + $0x79] sm:$0xff]
      %v9835 = vld [vmem:[%s8471 + $0x81] sm:$0xff]
      %v9836 = vld [vmem:[%s8471 + $0x89] sm:$0xff]
      %v9837 = vld [vmem:[%s8471 + $0x91] sm:$0xff]
      %v9838 = vld [vmem:[%s8471 + $0xa1] sm:$0xff]
      %v9839 = vld [vmem:[%s8471 + $0xa9] sm:$0xff]
      %v9840 = vld [vmem:[%s8471 + $0xb1] sm:$0xff]
      %v9841 = vld [vmem:[%s8471 + $0xb9] sm:$0xff]
      %v9842 = vld [vmem:[%s8471 + $0xc9] sm:$0xff]
      %v9843 = vld [vmem:[%s8471 + $0xd1] sm:$0xff]
      %v9844 = vld [vmem:[%s8471 + $0xd9] sm:$0xff]
      %v9845 = vld [vmem:[%s8471 + $0xe1] sm:$0xff]
      %v9846 = vld [vmem:[%s8471 + $0xf1] sm:$0xff]
      %v9847 = vld [vmem:[%s8471 + $0xf9] sm:$0xff]
      %v9848 = vld [vmem:[%s8471 + $0x101] sm:$0xff]
      %v9849 = vld [vmem:[%s8471 + $0x109] sm:$0xff]
      %v9850 = vld [vmem:[%s8471 + $0x119] sm:$0xff]
      %v9851 = vld [vmem:[%s8471 + $0x121] sm:$0xff]
      %v9852 = vld [vmem:[%s8471 + $0x129] sm:$0xff]
      %v9853 = vld [vmem:[%s8471 + $0x131] sm:$0xff]
      %v9854 = vld [vmem:[%s8471 + $0x141] sm:$0xff]
      %v9855 = vld [vmem:[%s8471 + $0x149] sm:$0xff]
      %v9856 = vld [vmem:[%s8471 + $0x151] sm:$0xff]
      %v9857 = vld [vmem:[%s8471 + $0x159] sm:$0xff]
      %v9858 = vld [vmem:[%s8471 + $0x169] sm:$0xff]
      %v9859 = vld [vmem:[%s8471 + $0x171] sm:$0xff]
      %v9860 = vld [vmem:[%s8471 + $0x179] sm:$0xff]
      %v9861 = vld [vmem:[%s8471 + $0x181] sm:$0xff]
      %v9862 = vld [vmem:[%s8471 + $0x191] sm:$0xff]
      %v9863 = vld [vmem:[%s8471 + $0x199] sm:$0xff]
      %v9864 = vld [vmem:[%s8471 + $0x1a1] sm:$0xff]
      %v9865 = vld [vmem:[%s8471 + $0x1a9] sm:$0xff]
      %v9866 = vld [vmem:[%s8471 + $0x1b9] sm:$0xff]
      %v9867 = vld [vmem:[%s8471 + $0x1c1] sm:$0xff]
      %v9868 = vld [vmem:[%s8471 + $0x1c9] sm:$0xff]
      %v9869 = vld [vmem:[%s8471 + $0x1d1] sm:$0xff]
      %v9870 = vld [vmem:[%s8471 + $0x1e1] sm:$0xff]
      %v9871 = vld [vmem:[%s8471 + $0x1e9] sm:$0xff]
      %v9872 = vld [vmem:[%s8471 + $0x1f1] sm:$0xff]
      %v9873 = vld [vmem:[%s8471 + $0x1f9] sm:$0xff]
      %v9874 = vld [vmem:[%s8471 + $0x209] sm:$0xff]
      %v9875 = vld [vmem:[%s8471 + $0x211] sm:$0xff]
      %v9876 = vld [vmem:[%s8471 + $0x219] sm:$0xff]
      %v9877 = vld [vmem:[%s8471 + $0x221] sm:$0xff]
      %v9878 = vld [vmem:[%s8471 + $0x231] sm:$0xff]
      %v9879 = vld [vmem:[%s8471 + $0x239] sm:$0xff]
      %v9880 = vld [vmem:[%s8471 + $0x241] sm:$0xff]
      %v9881 = vld [vmem:[%s8471 + $0x249] sm:$0xff]
      %v9882 = vld [vmem:[%s8471 + $0x259] sm:$0xff]
      %v9883 = vld [vmem:[%s8471 + $0x261] sm:$0xff]
      %v9884 = vld [vmem:[%s8471 + $0x269] sm:$0xff]
      %v9885 = vld [vmem:[%s8471 + $0x271] sm:$0xff]
      %v9886 = vld [vmem:[%s8471 + $0x281] sm:$0xff]
      %v9887 = vld [vmem:[%s8471 + $0x289] sm:$0xff]
      %v9888 = vld [vmem:[%s8471 + $0x291] sm:$0xff]
      %v9889 = vld [vmem:[%s8471 + $0x299] sm:$0xff]
      %v9890 = vld [vmem:[%s8471 + $0x2a9] sm:$0xff]
      %v9891 = vld [vmem:[%s8471 + $0x2b1] sm:$0xff]
      %v9892 = vld [vmem:[%s8471 + $0x2b9] sm:$0xff]
      %v9893 = vld [vmem:[%s8471 + $0x2c1] sm:$0xff]
      %v9894 = vld [vmem:[%s8471 + $0x2d1] sm:$0xff]
      %v9895 = vld [vmem:[%s8471 + $0x2d9] sm:$0xff]
      %v9896 = vld [vmem:[%s8471 + $0x2e1] sm:$0xff]
      %v9897 = vld [vmem:[%s8471 + $0x2e9] sm:$0xff]
      %v9898 = vld [vmem:[%s8471 + $0x2f9] sm:$0xff]
      %v9899 = vld [vmem:[%s8471 + $0x301] sm:$0xff]
      %v9900 = vld [vmem:[%s8471 + $0x309] sm:$0xff]
      %v9901 = vld [vmem:[%s8471 + $0x311] sm:$0xff]
      %v9902 = vld [vmem:[%s8471 + $0x321] sm:$0xff]
      %v9903 = vld [vmem:[%s8471 + $0x329] sm:$0xff]
      %v9904 = vld [vmem:[%s8471 + $0x331] sm:$0xff]
      %v9905 = vld [vmem:[%s8471 + $0x339] sm:$0xff]
      %v9906 = vld [vmem:[%s8471 + $0x349] sm:$0xff]
      %v9907 = vld [vmem:[%s8471 + $0x351] sm:$0xff]
      %v9908 = vld [vmem:[%s8471 + $0x359] sm:$0xff]
      %v9909 = vld [vmem:[%s8471 + $0x361] sm:$0xff]
      %v9910 = vld [vmem:[%s8471 + $0x371] sm:$0xff]
      %v9911 = vld [vmem:[%s8471 + $0x379] sm:$0xff]
      %v9912 = vld [vmem:[%s8471 + $0x381] sm:$0xff]
      %v9913 = vld [vmem:[%s8471 + $0x389] sm:$0xff]
      %v9914 = vld [vmem:[%s8471 + $0x399] sm:$0xff]
      %v9915 = vld [vmem:[%s8471 + $0x3a1] sm:$0xff]
      %v9916 = vld [vmem:[%s8471 + $0x3a9] sm:$0xff]
      %v9917 = vld [vmem:[%s8471 + $0x3b1] sm:$0xff]
      %v9918 = vld [vmem:[%s8471 + $0x3c1] sm:$0xff]
      %v9919 = vld [vmem:[%s8471 + $0x3c9] sm:$0xff]
      %v9920 = vld [vmem:[%s8471 + $0x3d1] sm:$0xff]
      %v9921 = vld [vmem:[%s8471 + $0x3d9] sm:$0xff]
      %v9922 = vld [vmem:[%s8471 + $0x3e9] sm:$0xff]
      %v9923 = vld [vmem:[%s8471 + $0x3f1] sm:$0xff]
      %v9924 = vld [vmem:[%s8471 + $0x3f9] sm:$0xff]
      %v9925 = vld [vmem:[%s8471 + $0x401] sm:$0xff]
      %v9926 = vld [vmem:[%s8471 + $0x411] sm:$0xff]
      %v9927 = vld [vmem:[%s8471 + $0x419] sm:$0xff]
      %v9928 = vld [vmem:[%s8471 + $0x421] sm:$0xff]
      %v9929 = vld [vmem:[%s8471 + $0x429] sm:$0xff]
      %v9930 = vld [vmem:[%s8471 + $0x439] sm:$0xff]
      %v9931 = vld [vmem:[%s8471 + $0x441] sm:$0xff]
      %v9932 = vld [vmem:[%s8471 + $0x449] sm:$0xff]
      %v9933 = vld [vmem:[%s8471 + $0x451] sm:$0xff]
      %v9934 = vld [vmem:[%s8471 + $0x461] sm:$0xff]
      %v9935 = vld [vmem:[%s8471 + $0x469] sm:$0xff]
      %v9936 = vld [vmem:[%s8471 + $0x471] sm:$0xff]
      %v9937 = vld [vmem:[%s8471 + $0x479] sm:$0xff]
      %v9938 = vld [vmem:[%s8471 + $0x489] sm:$0xff]
      %v9939 = vld [vmem:[%s8471 + $0x491] sm:$0xff]
      %v9940 = vld [vmem:[%s8471 + $0x499] sm:$0xff]
      %v9941 = vld [vmem:[%s8471 + $0x4a1] sm:$0xff]
      %v9942 = vld [vmem:[%s8471 + $0x4b1] sm:$0xff]
      %v9943 = vld [vmem:[%s8471 + $0x4b9] sm:$0xff]
      %v9944 = vld [vmem:[%s8471 + $0x4c1] sm:$0xff]
      %v9945 = vld [vmem:[%s8471 + $0x4c9] sm:$0xff]
      %v9946 = vld [vmem:[%s8471 + $0x4d9] sm:$0xff]
      %v9947 = vld [vmem:[%s8471 + $0x4e1] sm:$0xff]
      %v9948 = vld [vmem:[%s8471 + $0x4e9] sm:$0xff]
      %v9949 = vld [vmem:[%s8471 + $0x4f1] sm:$0xff]
      %s9950 = scalar_lea.vmem %s1, 28
      %v9951 = vld [vmem:[%s9950] sm:$0x7]
      %v9953 = vsel %vm326, %v9822, 0
      %v9956 = vsel %vm326, %v9823, 0
      %v9959 = vsel %vm326, %v9824, 0
      %v9962 = vsel %vm326, %v9825, 0
      %v9965 = vsel %vm326, %v9826, 0
      %v9968 = vsel %vm326, %v9827, 0
      %v9971 = vsel %vm326, %v9828, 0
      %v9974 = vsel %vm326, %v9829, 0
      %v9977 = vsel %vm326, %v9830, 0
      %v9980 = vsel %vm326, %v9831, 0
      %v9983 = vsel %vm326, %v9832, 0
      %v9986 = vsel %vm326, %v9833, 0
      %v9989 = vsel %vm326, %v9834, 0
      %v9992 = vsel %vm326, %v9835, 0
      %v9995 = vsel %vm326, %v9836, 0
      %v9998 = vsel %vm326, %v9837, 0
      %v10001 = vsel %vm326, %v9838, 0
      %v10004 = vsel %vm326, %v9839, 0
      %v10007 = vsel %vm326, %v9840, 0
      %v10010 = vsel %vm326, %v9841, 0
      %v10013 = vsel %vm326, %v9842, 0
      %v10016 = vsel %vm326, %v9843, 0
      %v10019 = vsel %vm326, %v9844, 0
      %v10022 = vsel %vm326, %v9845, 0
      %v10025 = vsel %vm326, %v9846, 0
      %v10028 = vsel %vm326, %v9847, 0
      %v10031 = vsel %vm326, %v9848, 0
      %v10034 = vsel %vm326, %v9849, 0
      %v10037 = vsel %vm326, %v9850, 0
      %v10040 = vsel %vm326, %v9851, 0
      %v10043 = vsel %vm326, %v9852, 0
      %v10046 = vsel %vm326, %v9853, 0
      %v10049 = vsel %vm326, %v9854, 0
      %v10052 = vsel %vm326, %v9855, 0
      %v10055 = vsel %vm326, %v9856, 0
      %v10058 = vsel %vm326, %v9857, 0
      %v10061 = vsel %vm326, %v9858, 0
      %v10064 = vsel %vm326, %v9859, 0
      %v10067 = vsel %vm326, %v9860, 0
      %v10070 = vsel %vm326, %v9861, 0
      %v10073 = vsel %vm326, %v9862, 0
      %v10076 = vsel %vm326, %v9863, 0
      %v10079 = vsel %vm326, %v9864, 0
      %v10082 = vsel %vm326, %v9865, 0
      %v10085 = vsel %vm326, %v9866, 0
      %v10088 = vsel %vm326, %v9867, 0
      %v10091 = vsel %vm326, %v9868, 0
      %v10094 = vsel %vm326, %v9869, 0
      %v10097 = vsel %vm326, %v9870, 0
      %v10100 = vsel %vm326, %v9871, 0
      %v10103 = vsel %vm326, %v9872, 0
      %v10106 = vsel %vm326, %v9873, 0
      %v10109 = vsel %vm326, %v9874, 0
      %v10112 = vsel %vm326, %v9875, 0
      %v10115 = vsel %vm326, %v9876, 0
      %v10118 = vsel %vm326, %v9877, 0
      %v10121 = vsel %vm326, %v9878, 0
      %v10124 = vsel %vm326, %v9879, 0
      %v10127 = vsel %vm326, %v9880, 0
      %v10130 = vsel %vm326, %v9881, 0
      %v10133 = vsel %vm326, %v9882, 0
      %v10136 = vsel %vm326, %v9883, 0
      %v10139 = vsel %vm326, %v9884, 0
      %v10142 = vsel %vm326, %v9885, 0
      %v10145 = vsel %vm326, %v9886, 0
      %v10148 = vsel %vm326, %v9887, 0
      %v10151 = vsel %vm326, %v9888, 0
      %v10154 = vsel %vm326, %v9889, 0
      %v10157 = vsel %vm326, %v9890, 0
      %v10160 = vsel %vm326, %v9891, 0
      %v10163 = vsel %vm326, %v9892, 0
      %v10166 = vsel %vm326, %v9893, 0
      %v10169 = vsel %vm326, %v9894, 0
      %v10172 = vsel %vm326, %v9895, 0
      %v10175 = vsel %vm326, %v9896, 0
      %v10178 = vsel %vm326, %v9897, 0
      %v10181 = vsel %vm326, %v9898, 0
      %v10184 = vsel %vm326, %v9899, 0
      %v10187 = vsel %vm326, %v9900, 0
      %v10190 = vsel %vm326, %v9901, 0
      %v10193 = vsel %vm326, %v9902, 0
      %v10196 = vsel %vm326, %v9903, 0
      %v10199 = vsel %vm326, %v9904, 0
      %v10202 = vsel %vm326, %v9905, 0
      %v10205 = vsel %vm326, %v9906, 0
      %v10208 = vsel %vm326, %v9907, 0
      %v10211 = vsel %vm326, %v9908, 0
      %v10214 = vsel %vm326, %v9909, 0
      %v10217 = vsel %vm326, %v9910, 0
      %v10220 = vsel %vm326, %v9911, 0
      %v10223 = vsel %vm326, %v9912, 0
      %v10226 = vsel %vm326, %v9913, 0
      %v10229 = vsel %vm326, %v9914, 0
      %v10232 = vsel %vm326, %v9915, 0
      %v10235 = vsel %vm326, %v9916, 0
      %v10238 = vsel %vm326, %v9917, 0
      %v10241 = vsel %vm326, %v9918, 0
      %v10244 = vsel %vm326, %v9919, 0
      %v10247 = vsel %vm326, %v9920, 0
      %v10250 = vsel %vm326, %v9921, 0
      %v10253 = vsel %vm326, %v9922, 0
      %v10256 = vsel %vm326, %v9923, 0
      %v10259 = vsel %vm326, %v9924, 0
      %v10262 = vsel %vm326, %v9925, 0
      %v10265 = vsel %vm326, %v9926, 0
      %v10268 = vsel %vm326, %v9927, 0
      %v10271 = vsel %vm326, %v9928, 0
      %v10274 = vsel %vm326, %v9929, 0
      %v10277 = vsel %vm326, %v9930, 0
      %v10280 = vsel %vm326, %v9931, 0
      %v10283 = vsel %vm326, %v9932, 0
      %v10286 = vsel %vm326, %v9933, 0
      %v10289 = vsel %vm326, %v9934, 0
      %v10292 = vsel %vm326, %v9935, 0
      %v10295 = vsel %vm326, %v9936, 0
      %v10298 = vsel %vm326, %v9937, 0
      %v10301 = vsel %vm326, %v9938, 0
      %v10304 = vsel %vm326, %v9939, 0
      %v10307 = vsel %vm326, %v9940, 0
      %v10310 = vsel %vm326, %v9941, 0
      %v10313 = vsel %vm326, %v9942, 0
      %v10316 = vsel %vm326, %v9943, 0
      %v10319 = vsel %vm326, %v9944, 0
      %v10322 = vsel %vm326, %v9945, 0
      %v10325 = vsel %vm326, %v9946, 0
      %v10328 = vsel %vm326, %v9947, 0
      %v10331 = vsel %vm326, %v9948, 0
      %v10334 = vsel %vm326, %v9949, 0
      %v10337 = vsel %vm1270, %v9951, 0
      %10339 = vmatprep.subr.mxu0 0.0
      %10340 = vmatpush1.msra.mxu0 %v10337
      %10341 = vmatprep.subr.mxu0 0.0
      %10342 = vmatpush1.msra.mxu0 0.0
      %10343 = vmatprep.subr.mxu0 0.0
      %10344 = vmatpush1.msra.mxu0 0.0
      %10345 = vmatprep.subr.mxu0 0.0
      %10346 = vmatpush1.msra.mxu0 0.0
      %10347 = vmatprep.subr.mxu0 0.0
      %10348 = vmatpush1.msra.mxu0 0.0
      %10349 = vmatprep.subr.mxu0 0.0
      %10350 = vmatpush1.msra.mxu0 0.0
      %10351 = vmatprep.subr.mxu0 0.0
      %10352 = vmatpush1.msra.mxu0 0.0
      %10353 = vmatprep.subr.mxu0 0.0
      %10354 = vmatpush1.msra.mxu0 0.0
      %10355 = vmatprep.subr.mxu0 0.0
      %10356 = vmatpush1.msra.mxu0 0.0
      %10357 = vmatprep.subr.mxu0 0.0
      %10358 = vmatpush1.msra.mxu0 0.0
      %10359 = vmatprep.subr.mxu0 0.0
      %10360 = vmatpush1.msra.mxu0 0.0
      %10361 = vmatprep.subr.mxu0 0.0
      %10362 = vmatpush1.msra.mxu0 0.0
      %10363 = vmatprep.subr.mxu0 0.0
      %10364 = vmatpush1.msra.mxu0 0.0
      %10365 = vmatprep.subr.mxu0 0.0
      %10366 = vmatpush1.msra.mxu0 0.0
      %10367 = vmatprep.subr.mxu0 0.0
      %10368 = vmatpush1.msra.mxu0 0.0
      %10369 = vmatprep.subr.mxu0 0.0
      %10370 = vmatpush1.msra.mxu0 0.0
      %10371 = vmatprep.subr.mxu0 0.0
      %10372 = vmatpush1.msra.mxu0 0.0
      %10373 = vmatprep.subr.mxu0 0.0
      %10374 = vmatpush1.msra.mxu0 0.0
      %10375 = vmatprep.subr.mxu0 0.0
      %10376 = vmatpush1.msra.mxu0 0.0
      %10377 = vmatprep.subr.mxu0 0.0
      %10378 = vmatpush1.msra.mxu0 0.0
      %10379 = vmatprep.subr.mxu0 0.0
      %10380 = vmatpush1.msra.mxu0 0.0
      %10381 = vmatprep.subr.mxu0 0.0
      %10382 = vmatpush1.msra.mxu0 0.0
      %10383 = vmatprep.subr.mxu0 0.0
      %10384 = vmatpush1.msra.mxu0 0.0
      %10385 = vmatprep.subr.mxu0 0.0
      %10386 = vmatpush1.msra.mxu0 0.0
      %10387 = vmatprep.subr.mxu0 0.0
      %10388 = vmatpush1.msra.mxu0 0.0
      %10389 = vmatprep.subr.mxu0 0.0
      %10390 = vmatpush1.msra.mxu0 0.0
      %10391 = vmatprep.subr.mxu0 0.0
      %10392 = vmatpush1.msra.mxu0 0.0
      %10393 = vmatprep.subr.mxu0 0.0
      %10394 = vmatpush1.msra.mxu0 0.0
      %10395 = vmatprep.subr.mxu0 0.0
      %10396 = vmatpush1.msra.mxu0 0.0
      %10397 = vmatprep.subr.mxu0 0.0
      %10398 = vmatpush1.msra.mxu0 0.0
      %10399 = vmatprep.subr.mxu0 0.0
      %10400 = vmatpush1.msra.mxu0 0.0
      %10401 = vmatprep.subr.mxu0 0.0
      %10402 = vmatpush1.msra.mxu0 0.0
      %10403 = vmatprep.mubr.f32.mxu0 0.0
      %10404 = vmatmul.mubr.f32.gmra.mrb[0].mxu0 %v9953
      %v10405 = vpop.f32.mrb[0].mxu0
      %v10406 = vadd.f32 0.0, %v10405
      %v10407 = vpop.f32.mrb[0].mxu0
      %10408 = vmatprep.mubr.f32.mxu0 0.0
      %10409 = vmatmul.mubr.f32.gmra.mrb[0].mxu0 %v9956
      %v10410 = vpop.f32.mrb[0].mxu0
      %v10411 = vadd.f32 0.0, %v10410
      %v10412 = vpop.f32.mrb[0].mxu0
      %10413 = vmatprep.mubr.f32.mxu0 0.0
      %10414 = vmatmul.mubr.f32.gmra.mrb[0].mxu0 %v9959
      %v10415 = vpop.f32.mrb[0].mxu0
      %v10416 = vadd.f32 0.0, %v10415
      %v10417 = vpop.f32.mrb[0].mxu0
      %10418 = vmatprep.mubr.f32.mxu0 0.0
      %10419 = vmatmul.mubr.f32.gmra.mrb[0].mxu0 %v9962
      %v10420 = vpop.f32.mrb[0].mxu0
      %v10421 = vadd.f32 0.0, %v10420
      %v10422 = vpop.f32.mrb[0].mxu0
      %10423 = vmatprep.mubr.f32.mxu0 0.0
      %10424 = vmatmul.mubr.f32.gmra.mrb[0].mxu0 %v9965
      %v10425 = vpop.f32.mrb[0].mxu0
      %v10426 = vadd.f32 0.0, %v10425
      %v10427 = vpop.f32.mrb[0].mxu0
      %10428 = vmatprep.mubr.f32.mxu0 0.0
      %10429 = vmatmul.mubr.f32.gmra.mrb[0].mxu0 %v9968
      %v10430 = vpop.f32.mrb[0].mxu0
      %v10431 = vadd.f32 0.0, %v10430
      %v10432 = vpop.f32.mrb[0].mxu0
      %10433 = vmatprep.mubr.f32.mxu0 0.0
      %10434 = vmatmul.mubr.f32.gmra.mrb[0].mxu0 %v9971
      %v10435 = vpop.f32.mrb[0].mxu0
      %v10436 = vadd.f32 0.0, %v10435
      %v10437 = vpop.f32.mrb[0].mxu0
      %10438 = vmatprep.mubr.f32.mxu0 0.0
      %10439 = vmatmul.mubr.f32.gmra.mrb[0].mxu0 %v9974
      %v10440 = vpop.f32.mrb[0].mxu0
      %v10441 = vadd.f32 0.0, %v10440
      %v10442 = vpop.f32.mrb[0].mxu0
      %10443 = vmatprep.mubr.f32.mxu0 0.0
      %10444 = vmatmul.mubr.f32.gmra.mrb[0].mxu0 %v9977
      %v10445 = vpop.f32.mrb[0].mxu0
      %v10446 = vadd.f32 0.0, %v10445
      %v10447 = vpop.f32.mrb[0].mxu0
      %10448 = vmatprep.mubr.f32.mxu0 0.0
      %10449 = vmatmul.mubr.f32.gmra.mrb[0].mxu0 %v9980
      %v10450 = vpop.f32.mrb[0].mxu0
      %v10451 = vadd.f32 0.0, %v10450
      %v10452 = vpop.f32.mrb[0].mxu0
      %10453 = vmatprep.mubr.f32.mxu0 0.0
      %10454 = vmatmul.mubr.f32.gmra.mrb[0].mxu0 %v9983
      %v10455 = vpop.f32.mrb[0].mxu0
      %v10456 = vadd.f32 0.0, %v10455
      %v10457 = vpop.f32.mrb[0].mxu0
      %10458 = vmatprep.mubr.f32.mxu0 0.0
      %10459 = vmatmul.mubr.f32.gmra.mrb[0].mxu0 %v9986
      %v10460 = vpop.f32.mrb[0].mxu0
      %v10461 = vadd.f32 0.0, %v10460
      %v10462 = vpop.f32.mrb[0].mxu0
      %10463 = vmatprep.mubr.f32.mxu0 0.0
      %10464 = vmatmul.mubr.f32.gmra.mrb[0].mxu0 %v9989
      %v10465 = vpop.f32.mrb[0].mxu0
      %v10466 = vadd.f32 0.0, %v10465
      %v10467 = vpop.f32.mrb[0].mxu0
      %10468 = vmatprep.mubr.f32.mxu0 0.0
      %10469 = vmatmul.mubr.f32.gmra.mrb[0].mxu0 %v9992
      %v10470 = vpop.f32.mrb[0].mxu0
      %v10471 = vadd.f32 0.0, %v10470
      %v10472 = vpop.f32.mrb[0].mxu0
      %10473 = vmatprep.mubr.f32.mxu0 0.0
      %10474 = vmatmul.mubr.f32.gmra.mrb[0].mxu0 %v9995
      %v10475 = vpop.f32.mrb[0].mxu0
      %v10476 = vadd.f32 0.0, %v10475
      %v10477 = vpop.f32.mrb[0].mxu0
      %10478 = vmatprep.mubr.f32.mxu0 0.0
      %10479 = vmatmul.mubr.f32.gmra.mrb[0].mxu0 %v9998
      %v10480 = vpop.f32.mrb[0].mxu0
      %v10481 = vadd.f32 0.0, %v10480
      %v10482 = vpop.f32.mrb[0].mxu0
      %10483 = vmatprep.mubr.f32.mxu0 0.0
      %10484 = vmatmul.mubr.f32.gmra.mrb[0].mxu0 %v10001
      %v10485 = vpop.f32.mrb[0].mxu0
      %v10486 = vadd.f32 0.0, %v10485
      %v10487 = vpop.f32.mrb[0].mxu0
      %10488 = vmatprep.mubr.f32.mxu0 0.0
      %10489 = vmatmul.mubr.f32.gmra.mrb[0].mxu0 %v10004
      %v10490 = vpop.f32.mrb[0].mxu0
      %v10491 = vadd.f32 0.0, %v10490
      %v10492 = vpop.f32.mrb[0].mxu0
      %10493 = vmatprep.mubr.f32.mxu0 0.0
      %10494 = vmatmul.mubr.f32.gmra.mrb[0].mxu0 %v10007
      %v10495 = vpop.f32.mrb[0].mxu0
      %v10496 = vadd.f32 0.0, %v10495
      %v10497 = vpop.f32.mrb[0].mxu0
      %10498 = vmatprep.mubr.f32.mxu0 0.0
      %10499 = vmatmul.mubr.f32.gmra.mrb[0].mxu0 %v10010
      %v10500 = vpop.f32.mrb[0].mxu0
      %v10501 = vadd.f32 0.0, %v10500
      %v10502 = vpop.f32.mrb[0].mxu0
      %10503 = vmatprep.mubr.f32.mxu0 0.0
      %10504 = vmatmul.mubr.f32.gmra.mrb[0].mxu0 %v10013
      %v10505 = vpop.f32.mrb[0].mxu0
      %v10506 = vadd.f32 0.0, %v10505
      %v10507 = vpop.f32.mrb[0].mxu0
      %10508 = vmatprep.mubr.f32.mxu0 0.0
      %10509 = vmatmul.mubr.f32.gmra.mrb[0].mxu0 %v10016
      %v10510 = vpop.f32.mrb[0].mxu0
      %v10511 = vadd.f32 0.0, %v10510
      %v10512 = vpop.f32.mrb[0].mxu0
      %10513 = vmatprep.mubr.f32.mxu0 0.0
      %10514 = vmatmul.mubr.f32.gmra.mrb[0].mxu0 %v10019
      %v10515 = vpop.f32.mrb[0].mxu0
      %v10516 = vadd.f32 0.0, %v10515
      %v10517 = vpop.f32.mrb[0].mxu0
      %10518 = vmatprep.mubr.f32.mxu0 0.0
      %10519 = vmatmul.mubr.f32.gmra.mrb[0].mxu0 %v10022
      %v10520 = vpop.f32.mrb[0].mxu0
      %v10521 = vadd.f32 0.0, %v10520
      %v10522 = vpop.f32.mrb[0].mxu0
      %10523 = vmatprep.mubr.f32.mxu0 0.0
      %10524 = vmatmul.mubr.f32.gmra.mrb[0].mxu0 %v10025
      %v10525 = vpop.f32.mrb[0].mxu0
      %v10526 = vadd.f32 0.0, %v10525
      %v10527 = vpop.f32.mrb[0].mxu0
      %10528 = vmatprep.mubr.f32.mxu0 0.0
      %10529 = vmatmul.mubr.f32.gmra.mrb[0].mxu0 %v10028
      %v10530 = vpop.f32.mrb[0].mxu0
      %v10531 = vadd.f32 0.0, %v10530
      %v10532 = vpop.f32.mrb[0].mxu0
      %10533 = vmatprep.mubr.f32.mxu0 0.0
      %10534 = vmatmul.mubr.f32.gmra.mrb[0].mxu0 %v10031
      %v10535 = vpop.f32.mrb[0].mxu0
      %v10536 = vadd.f32 0.0, %v10535
      %v10537 = vpop.f32.mrb[0].mxu0
      %10538 = vmatprep.mubr.f32.mxu0 0.0
      %10539 = vmatmul.mubr.f32.gmra.mrb[0].mxu0 %v10034
      %v10540 = vpop.f32.mrb[0].mxu0
      %v10541 = vadd.f32 0.0, %v10540
      %v10542 = vpop.f32.mrb[0].mxu0
      %10543 = vmatprep.mubr.f32.mxu0 0.0
      %10544 = vmatmul.mubr.f32.gmra.mrb[0].mxu0 %v10037
      %v10545 = vpop.f32.mrb[0].mxu0
      %v10546 = vadd.f32 0.0, %v10545
      %v10547 = vpop.f32.mrb[0].mxu0
      %10548 = vmatprep.mubr.f32.mxu0 0.0
      %10549 = vmatmul.mubr.f32.gmra.mrb[0].mxu0 %v10040
      %v10550 = vpop.f32.mrb[0].mxu0
      %v10551 = vadd.f32 0.0, %v10550
      %v10552 = vpop.f32.mrb[0].mxu0
      %10553 = vmatprep.mubr.f32.mxu0 0.0
      %10554 = vmatmul.mubr.f32.gmra.mrb[0].mxu0 %v10043
      %v10555 = vpop.f32.mrb[0].mxu0
      %v10556 = vadd.f32 0.0, %v10555
      %v10557 = vpop.f32.mrb[0].mxu0
      %10558 = vmatprep.mubr.f32.mxu0 0.0
      %10559 = vmatmul.mubr.f32.gmra.mrb[0].mxu0 %v10046
      %v10560 = vpop.f32.mrb[0].mxu0
      %v10561 = vadd.f32 0.0, %v10560
      %v10562 = vpop.f32.mrb[0].mxu0
      %10563 = vmatprep.mubr.f32.mxu0 0.0
      %10564 = vmatmul.mubr.f32.gmra.mrb[0].mxu0 %v10049
      %v10565 = vpop.f32.mrb[0].mxu0
      %v10566 = vadd.f32 0.0, %v10565
      %v10567 = vpop.f32.mrb[0].mxu0
      %10568 = vmatprep.mubr.f32.mxu0 0.0
      %10569 = vmatmul.mubr.f32.gmra.mrb[0].mxu0 %v10052
      %v10570 = vpop.f32.mrb[0].mxu0
      %v10571 = vadd.f32 0.0, %v10570
      %v10572 = vpop.f32.mrb[0].mxu0
      %10573 = vmatprep.mubr.f32.mxu0 0.0
      %10574 = vmatmul.mubr.f32.gmra.mrb[0].mxu0 %v10055
      %v10575 = vpop.f32.mrb[0].mxu0
      %v10576 = vadd.f32 0.0, %v10575
      %v10577 = vpop.f32.mrb[0].mxu0
      %10578 = vmatprep.mubr.f32.mxu0 0.0
      %10579 = vmatmul.mubr.f32.gmra.mrb[0].mxu0 %v10058
      %v10580 = vpop.f32.mrb[0].mxu0
      %v10581 = vadd.f32 0.0, %v10580
      %v10582 = vpop.f32.mrb[0].mxu0
      %10583 = vmatprep.mubr.f32.mxu0 0.0
      %10584 = vmatmul.mubr.f32.gmra.mrb[0].mxu0 %v10061
      %v10585 = vpop.f32.mrb[0].mxu0
      %v10586 = vadd.f32 0.0, %v10585
      %v10587 = vpop.f32.mrb[0].mxu0
      %10588 = vmatprep.mubr.f32.mxu0 0.0
      %10589 = vmatmul.mubr.f32.gmra.mrb[0].mxu0 %v10064
      %v10590 = vpop.f32.mrb[0].mxu0
      %v10591 = vadd.f32 0.0, %v10590
      %v10592 = vpop.f32.mrb[0].mxu0
      %10593 = vmatprep.mubr.f32.mxu0 0.0
      %10594 = vmatmul.mubr.f32.gmra.mrb[0].mxu0 %v10067
      %v10595 = vpop.f32.mrb[0].mxu0
      %v10596 = vadd.f32 0.0, %v10595
      %v10597 = vpop.f32.mrb[0].mxu0
      %10598 = vmatprep.mubr.f32.mxu0 0.0
      %10599 = vmatmul.mubr.f32.gmra.mrb[0].mxu0 %v10070
      %v10600 = vpop.f32.mrb[0].mxu0
      %v10601 = vadd.f32 0.0, %v10600
      %v10602 = vpop.f32.mrb[0].mxu0
      %10603 = vmatprep.mubr.f32.mxu0 0.0
      %10604 = vmatmul.mubr.f32.gmra.mrb[0].mxu0 %v10073
      %v10605 = vpop.f32.mrb[0].mxu0
      %v10606 = vadd.f32 0.0, %v10605
      %v10607 = vpop.f32.mrb[0].mxu0
      %10608 = vmatprep.mubr.f32.mxu0 0.0
      %10609 = vmatmul.mubr.f32.gmra.mrb[0].mxu0 %v10076
      %v10610 = vpop.f32.mrb[0].mxu0
      %v10611 = vadd.f32 0.0, %v10610
      %v10612 = vpop.f32.mrb[0].mxu0
      %10613 = vmatprep.mubr.f32.mxu0 0.0
      %10614 = vmatmul.mubr.f32.gmra.mrb[0].mxu0 %v10079
      %v10615 = vpop.f32.mrb[0].mxu0
      %v10616 = vadd.f32 0.0, %v10615
      %v10617 = vpop.f32.mrb[0].mxu0
      %10618 = vmatprep.mubr.f32.mxu0 0.0
      %10619 = vmatmul.mubr.f32.gmra.mrb[0].mxu0 %v10082
      %v10620 = vpop.f32.mrb[0].mxu0
      %v10621 = vadd.f32 0.0, %v10620
      %v10622 = vpop.f32.mrb[0].mxu0
      %10623 = vmatprep.mubr.f32.mxu0 0.0
      %10624 = vmatmul.mubr.f32.gmra.mrb[0].mxu0 %v10085
      %v10625 = vpop.f32.mrb[0].mxu0
      %v10626 = vadd.f32 0.0, %v10625
      %v10627 = vpop.f32.mrb[0].mxu0
      %10628 = vmatprep.mubr.f32.mxu0 0.0
      %10629 = vmatmul.mubr.f32.gmra.mrb[0].mxu0 %v10088
      %v10630 = vpop.f32.mrb[0].mxu0
      %v10631 = vadd.f32 0.0, %v10630
      %v10632 = vpop.f32.mrb[0].mxu0
      %10633 = vmatprep.mubr.f32.mxu0 0.0
      %10634 = vmatmul.mubr.f32.gmra.mrb[0].mxu0 %v10091
      %v10635 = vpop.f32.mrb[0].mxu0
      %v10636 = vadd.f32 0.0, %v10635
      %v10637 = vpop.f32.mrb[0].mxu0
      %10638 = vmatprep.mubr.f32.mxu0 0.0
      %10639 = vmatmul.mubr.f32.gmra.mrb[0].mxu0 %v10094
      %v10640 = vpop.f32.mrb[0].mxu0
      %v10641 = vadd.f32 0.0, %v10640
      %v10642 = vpop.f32.mrb[0].mxu0
      %10643 = vmatprep.mubr.f32.mxu0 0.0
      %10644 = vmatmul.mubr.f32.gmra.mrb[0].mxu0 %v10097
      %v10645 = vpop.f32.mrb[0].mxu0
      %v10646 = vadd.f32 0.0, %v10645
      %v10647 = vpop.f32.mrb[0].mxu0
      %10648 = vmatprep.mubr.f32.mxu0 0.0
      %10649 = vmatmul.mubr.f32.gmra.mrb[0].mxu0 %v10100
      %v10650 = vpop.f32.mrb[0].mxu0
      %v10651 = vadd.f32 0.0, %v10650
      %v10652 = vpop.f32.mrb[0].mxu0
      %10653 = vmatprep.mubr.f32.mxu0 0.0
      %10654 = vmatmul.mubr.f32.gmra.mrb[0].mxu0 %v10103
      %v10655 = vpop.f32.mrb[0].mxu0
      %v10656 = vadd.f32 0.0, %v10655
      %v10657 = vpop.f32.mrb[0].mxu0
      %10658 = vmatprep.mubr.f32.mxu0 0.0
      %10659 = vmatmul.mubr.f32.gmra.mrb[0].mxu0 %v10106
      %v10660 = vpop.f32.mrb[0].mxu0
      %v10661 = vadd.f32 0.0, %v10660
      %v10662 = vpop.f32.mrb[0].mxu0
      %10663 = vmatprep.mubr.f32.mxu0 0.0
      %10664 = vmatmul.mubr.f32.gmra.mrb[0].mxu0 %v10109
      %v10665 = vpop.f32.mrb[0].mxu0
      %v10666 = vadd.f32 0.0, %v10665
      %v10667 = vpop.f32.mrb[0].mxu0
      %10668 = vmatprep.mubr.f32.mxu0 0.0
      %10669 = vmatmul.mubr.f32.gmra.mrb[0].mxu0 %v10112
      %v10670 = vpop.f32.mrb[0].mxu0
      %v10671 = vadd.f32 0.0, %v10670
      %v10672 = vpop.f32.mrb[0].mxu0
      %10673 = vmatprep.mubr.f32.mxu0 0.0
      %10674 = vmatmul.mubr.f32.gmra.mrb[0].mxu0 %v10115
      %v10675 = vpop.f32.mrb[0].mxu0
      %v10676 = vadd.f32 0.0, %v10675
      %v10677 = vpop.f32.mrb[0].mxu0
      %10678 = vmatprep.mubr.f32.mxu0 0.0
      %10679 = vmatmul.mubr.f32.gmra.mrb[0].mxu0 %v10118
      %v10680 = vpop.f32.mrb[0].mxu0
      %v10681 = vadd.f32 0.0, %v10680
      %v10682 = vpop.f32.mrb[0].mxu0
      %10683 = vmatprep.mubr.f32.mxu0 0.0
      %10684 = vmatmul.mubr.f32.gmra.mrb[0].mxu0 %v10121
      %v10685 = vpop.f32.mrb[0].mxu0
      %v10686 = vadd.f32 0.0, %v10685
      %v10687 = vpop.f32.mrb[0].mxu0
      %10688 = vmatprep.mubr.f32.mxu0 0.0
      %10689 = vmatmul.mubr.f32.gmra.mrb[0].mxu0 %v10124
      %v10690 = vpop.f32.mrb[0].mxu0
      %v10691 = vadd.f32 0.0, %v10690
      %v10692 = vpop.f32.mrb[0].mxu0
      %10693 = vmatprep.mubr.f32.mxu0 0.0
      %10694 = vmatmul.mubr.f32.gmra.mrb[0].mxu0 %v10127
      %v10695 = vpop.f32.mrb[0].mxu0
      %v10696 = vadd.f32 0.0, %v10695
      %v10697 = vpop.f32.mrb[0].mxu0
      %10698 = vmatprep.mubr.f32.mxu0 0.0
      %10699 = vmatmul.mubr.f32.gmra.mrb[0].mxu0 %v10130
      %v10700 = vpop.f32.mrb[0].mxu0
      %v10701 = vadd.f32 0.0, %v10700
      %v10702 = vpop.f32.mrb[0].mxu0
      %10703 = vmatprep.mubr.f32.mxu0 0.0
      %10704 = vmatmul.mubr.f32.gmra.mrb[0].mxu0 %v10133
      %v10705 = vpop.f32.mrb[0].mxu0
      %v10706 = vadd.f32 0.0, %v10705
      %v10707 = vpop.f32.mrb[0].mxu0
      %10708 = vmatprep.mubr.f32.mxu0 0.0
      %10709 = vmatmul.mubr.f32.gmra.mrb[0].mxu0 %v10136
      %v10710 = vpop.f32.mrb[0].mxu0
      %v10711 = vadd.f32 0.0, %v10710
      %v10712 = vpop.f32.mrb[0].mxu0
      %10713 = vmatprep.mubr.f32.mxu0 0.0
      %10714 = vmatmul.mubr.f32.gmra.mrb[0].mxu0 %v10139
      %v10715 = vpop.f32.mrb[0].mxu0
      %v10716 = vadd.f32 0.0, %v10715
      %v10717 = vpop.f32.mrb[0].mxu0
      %10718 = vmatprep.mubr.f32.mxu0 0.0
      %10719 = vmatmul.mubr.f32.gmra.mrb[0].mxu0 %v10142
      %v10720 = vpop.f32.mrb[0].mxu0
      %v10721 = vadd.f32 0.0, %v10720
      %v10722 = vpop.f32.mrb[0].mxu0
      %10723 = vmatprep.mubr.f32.mxu0 0.0
      %10724 = vmatmul.mubr.f32.gmra.mrb[0].mxu0 %v10145
      %v10725 = vpop.f32.mrb[0].mxu0
      %v10726 = vadd.f32 0.0, %v10725
      %v10727 = vpop.f32.mrb[0].mxu0
      %10728 = vmatprep.mubr.f32.mxu0 0.0
      %10729 = vmatmul.mubr.f32.gmra.mrb[0].mxu0 %v10148
      %v10730 = vpop.f32.mrb[0].mxu0
      %v10731 = vadd.f32 0.0, %v10730
      %v10732 = vpop.f32.mrb[0].mxu0
      %10733 = vmatprep.mubr.f32.mxu0 0.0
      %10734 = vmatmul.mubr.f32.gmra.mrb[0].mxu0 %v10151
      %v10735 = vpop.f32.mrb[0].mxu0
      %v10736 = vadd.f32 0.0, %v10735
      %v10737 = vpop.f32.mrb[0].mxu0
      %10738 = vmatprep.mubr.f32.mxu0 0.0
      %10739 = vmatmul.mubr.f32.gmra.mrb[0].mxu0 %v10154
      %v10740 = vpop.f32.mrb[0].mxu0
      %v10741 = vadd.f32 0.0, %v10740
      %v10742 = vpop.f32.mrb[0].mxu0
      %10743 = vmatprep.mubr.f32.mxu0 0.0
      %10744 = vmatmul.mubr.f32.gmra.mrb[0].mxu0 %v10157
      %v10745 = vpop.f32.mrb[0].mxu0
      %v10746 = vadd.f32 0.0, %v10745
      %v10747 = vpop.f32.mrb[0].mxu0
      %10748 = vmatprep.mubr.f32.mxu0 0.0
      %10749 = vmatmul.mubr.f32.gmra.mrb[0].mxu0 %v10160
      %v10750 = vpop.f32.mrb[0].mxu0
      %v10751 = vadd.f32 0.0, %v10750
      %v10752 = vpop.f32.mrb[0].mxu0
      %10753 = vmatprep.mubr.f32.mxu0 0.0
      %10754 = vmatmul.mubr.f32.gmra.mrb[0].mxu0 %v10163
      %v10755 = vpop.f32.mrb[0].mxu0
      %v10756 = vadd.f32 0.0, %v10755
      %v10757 = vpop.f32.mrb[0].mxu0
      %10758 = vmatprep.mubr.f32.mxu0 0.0
      %10759 = vmatmul.mubr.f32.gmra.mrb[0].mxu0 %v10166
      %v10760 = vpop.f32.mrb[0].mxu0
      %v10761 = vadd.f32 0.0, %v10760
      %v10762 = vpop.f32.mrb[0].mxu0
      %10763 = vmatprep.mubr.f32.mxu0 0.0
      %10764 = vmatmul.mubr.f32.gmra.mrb[0].mxu0 %v10169
      %v10765 = vpop.f32.mrb[0].mxu0
      %v10766 = vadd.f32 0.0, %v10765
      %v10767 = vpop.f32.mrb[0].mxu0
      %10768 = vmatprep.mubr.f32.mxu0 0.0
      %10769 = vmatmul.mubr.f32.gmra.mrb[0].mxu0 %v10172
      %v10770 = vpop.f32.mrb[0].mxu0
      %v10771 = vadd.f32 0.0, %v10770
      %v10772 = vpop.f32.mrb[0].mxu0
      %10773 = vmatprep.mubr.f32.mxu0 0.0
      %10774 = vmatmul.mubr.f32.gmra.mrb[0].mxu0 %v10175
      %v10775 = vpop.f32.mrb[0].mxu0
      %v10776 = vadd.f32 0.0, %v10775
      %v10777 = vpop.f32.mrb[0].mxu0
      %10778 = vmatprep.mubr.f32.mxu0 0.0
      %10779 = vmatmul.mubr.f32.gmra.mrb[0].mxu0 %v10178
      %v10780 = vpop.f32.mrb[0].mxu0
      %v10781 = vadd.f32 0.0, %v10780
      %v10782 = vpop.f32.mrb[0].mxu0
      %10783 = vmatprep.mubr.f32.mxu0 0.0
      %10784 = vmatmul.mubr.f32.gmra.mrb[0].mxu0 %v10181
      %v10785 = vpop.f32.mrb[0].mxu0
      %v10786 = vadd.f32 0.0, %v10785
      %v10787 = vpop.f32.mrb[0].mxu0
      %10788 = vmatprep.mubr.f32.mxu0 0.0
      %10789 = vmatmul.mubr.f32.gmra.mrb[0].mxu0 %v10184
      %v10790 = vpop.f32.mrb[0].mxu0
      %v10791 = vadd.f32 0.0, %v10790
      %v10792 = vpop.f32.mrb[0].mxu0
      %10793 = vmatprep.mubr.f32.mxu0 0.0
      %10794 = vmatmul.mubr.f32.gmra.mrb[0].mxu0 %v10187
      %v10795 = vpop.f32.mrb[0].mxu0
      %v10796 = vadd.f32 0.0, %v10795
      %v10797 = vpop.f32.mrb[0].mxu0
      %10798 = vmatprep.mubr.f32.mxu0 0.0
      %10799 = vmatmul.mubr.f32.gmra.mrb[0].mxu0 %v10190
      %v10800 = vpop.f32.mrb[0].mxu0
      %v10801 = vadd.f32 0.0, %v10800
      %v10802 = vpop.f32.mrb[0].mxu0
      %10803 = vmatprep.mubr.f32.mxu0 0.0
      %10804 = vmatmul.mubr.f32.gmra.mrb[0].mxu0 %v10193
      %v10805 = vpop.f32.mrb[0].mxu0
      %v10806 = vadd.f32 0.0, %v10805
      %v10807 = vpop.f32.mrb[0].mxu0
      %10808 = vmatprep.mubr.f32.mxu0 0.0
      %10809 = vmatmul.mubr.f32.gmra.mrb[0].mxu0 %v10196
      %v10810 = vpop.f32.mrb[0].mxu0
      %v10811 = vadd.f32 0.0, %v10810
      %v10812 = vpop.f32.mrb[0].mxu0
      %10813 = vmatprep.mubr.f32.mxu0 0.0
      %10814 = vmatmul.mubr.f32.gmra.mrb[0].mxu0 %v10199
      %v10815 = vpop.f32.mrb[0].mxu0
      %v10816 = vadd.f32 0.0, %v10815
      %v10817 = vpop.f32.mrb[0].mxu0
      %10818 = vmatprep.mubr.f32.mxu0 0.0
      %10819 = vmatmul.mubr.f32.gmra.mrb[0].mxu0 %v10202
      %v10820 = vpop.f32.mrb[0].mxu0
      %v10821 = vadd.f32 0.0, %v10820
      %v10822 = vpop.f32.mrb[0].mxu0
      %10823 = vmatprep.mubr.f32.mxu0 0.0
      %10824 = vmatmul.mubr.f32.gmra.mrb[0].mxu0 %v10205
      %v10825 = vpop.f32.mrb[0].mxu0
      %v10826 = vadd.f32 0.0, %v10825
      %v10827 = vpop.f32.mrb[0].mxu0
      %10828 = vmatprep.mubr.f32.mxu0 0.0
      %10829 = vmatmul.mubr.f32.gmra.mrb[0].mxu0 %v10208
      %v10830 = vpop.f32.mrb[0].mxu0
      %v10831 = vadd.f32 0.0, %v10830
      %v10832 = vpop.f32.mrb[0].mxu0
      %10833 = vmatprep.mubr.f32.mxu0 0.0
      %10834 = vmatmul.mubr.f32.gmra.mrb[0].mxu0 %v10211
      %v10835 = vpop.f32.mrb[0].mxu0
      %v10836 = vadd.f32 0.0, %v10835
      %v10837 = vpop.f32.mrb[0].mxu0
      %10838 = vmatprep.mubr.f32.mxu0 0.0
      %10839 = vmatmul.mubr.f32.gmra.mrb[0].mxu0 %v10214
      %v10840 = vpop.f32.mrb[0].mxu0
      %v10841 = vadd.f32 0.0, %v10840
      %v10842 = vpop.f32.mrb[0].mxu0
      %10843 = vmatprep.mubr.f32.mxu0 0.0
      %10844 = vmatmul.mubr.f32.gmra.mrb[0].mxu0 %v10217
      %v10845 = vpop.f32.mrb[0].mxu0
      %v10846 = vadd.f32 0.0, %v10845
      %v10847 = vpop.f32.mrb[0].mxu0
      %10848 = vmatprep.mubr.f32.mxu0 0.0
      %10849 = vmatmul.mubr.f32.gmra.mrb[0].mxu0 %v10220
      %v10850 = vpop.f32.mrb[0].mxu0
      %v10851 = vadd.f32 0.0, %v10850
      %v10852 = vpop.f32.mrb[0].mxu0
      %10853 = vmatprep.mubr.f32.mxu0 0.0
      %10854 = vmatmul.mubr.f32.gmra.mrb[0].mxu0 %v10223
      %v10855 = vpop.f32.mrb[0].mxu0
      %v10856 = vadd.f32 0.0, %v10855
      %v10857 = vpop.f32.mrb[0].mxu0
      %10858 = vmatprep.mubr.f32.mxu0 0.0
      %10859 = vmatmul.mubr.f32.gmra.mrb[0].mxu0 %v10226
      %v10860 = vpop.f32.mrb[0].mxu0
      %v10861 = vadd.f32 0.0, %v10860
      %v10862 = vpop.f32.mrb[0].mxu0
      %10863 = vmatprep.mubr.f32.mxu0 0.0
      %10864 = vmatmul.mubr.f32.gmra.mrb[0].mxu0 %v10229
      %v10865 = vpop.f32.mrb[0].mxu0
      %v10866 = vadd.f32 0.0, %v10865
      %v10867 = vpop.f32.mrb[0].mxu0
      %10868 = vmatprep.mubr.f32.mxu0 0.0
      %10869 = vmatmul.mubr.f32.gmra.mrb[0].mxu0 %v10232
      %v10870 = vpop.f32.mrb[0].mxu0
      %v10871 = vadd.f32 0.0, %v10870
      %v10872 = vpop.f32.mrb[0].mxu0
      %10873 = vmatprep.mubr.f32.mxu0 0.0
      %10874 = vmatmul.mubr.f32.gmra.mrb[0].mxu0 %v10235
      %v10875 = vpop.f32.mrb[0].mxu0
      %v10876 = vadd.f32 0.0, %v10875
      %v10877 = vpop.f32.mrb[0].mxu0
      %10878 = vmatprep.mubr.f32.mxu0 0.0
      %10879 = vmatmul.mubr.f32.gmra.mrb[0].mxu0 %v10238
      %v10880 = vpop.f32.mrb[0].mxu0
      %v10881 = vadd.f32 0.0, %v10880
      %v10882 = vpop.f32.mrb[0].mxu0
      %10883 = vmatprep.mubr.f32.mxu0 0.0
      %10884 = vmatmul.mubr.f32.gmra.mrb[0].mxu0 %v10241
      %v10885 = vpop.f32.mrb[0].mxu0
      %v10886 = vadd.f32 0.0, %v10885
      %v10887 = vpop.f32.mrb[0].mxu0
      %10888 = vmatprep.mubr.f32.mxu0 0.0
      %10889 = vmatmul.mubr.f32.gmra.mrb[0].mxu0 %v10244
      %v10890 = vpop.f32.mrb[0].mxu0
      %v10891 = vadd.f32 0.0, %v10890
      %v10892 = vpop.f32.mrb[0].mxu0
      %10893 = vmatprep.mubr.f32.mxu0 0.0
      %10894 = vmatmul.mubr.f32.gmra.mrb[0].mxu0 %v10247
      %v10895 = vpop.f32.mrb[0].mxu0
      %v10896 = vadd.f32 0.0, %v10895
      %v10897 = vpop.f32.mrb[0].mxu0
      %10898 = vmatprep.mubr.f32.mxu0 0.0
      %10899 = vmatmul.mubr.f32.gmra.mrb[0].mxu0 %v10250
      %v10900 = vpop.f32.mrb[0].mxu0
      %v10901 = vadd.f32 0.0, %v10900
      %v10902 = vpop.f32.mrb[0].mxu0
      %10903 = vmatprep.mubr.f32.mxu0 0.0
      %10904 = vmatmul.mubr.f32.gmra.mrb[0].mxu0 %v10253
      %v10905 = vpop.f32.mrb[0].mxu0
      %v10906 = vadd.f32 0.0, %v10905
      %v10907 = vpop.f32.mrb[0].mxu0
      %10908 = vmatprep.mubr.f32.mxu0 0.0
      %10909 = vmatmul.mubr.f32.gmra.mrb[0].mxu0 %v10256
      %v10910 = vpop.f32.mrb[0].mxu0
      %v10911 = vadd.f32 0.0, %v10910
      %v10912 = vpop.f32.mrb[0].mxu0
      %10913 = vmatprep.mubr.f32.mxu0 0.0
      %10914 = vmatmul.mubr.f32.gmra.mrb[0].mxu0 %v10259
      %v10915 = vpop.f32.mrb[0].mxu0
      %v10916 = vadd.f32 0.0, %v10915
      %v10917 = vpop.f32.mrb[0].mxu0
      %10918 = vmatprep.mubr.f32.mxu0 0.0
      %10919 = vmatmul.mubr.f32.gmra.mrb[0].mxu0 %v10262
      %v10920 = vpop.f32.mrb[0].mxu0
      %v10921 = vadd.f32 0.0, %v10920
      %v10922 = vpop.f32.mrb[0].mxu0
      %10923 = vmatprep.mubr.f32.mxu0 0.0
      %10924 = vmatmul.mubr.f32.gmra.mrb[0].mxu0 %v10265
      %v10925 = vpop.f32.mrb[0].mxu0
      %v10926 = vadd.f32 0.0, %v10925
      %v10927 = vpop.f32.mrb[0].mxu0
      %10928 = vmatprep.mubr.f32.mxu0 0.0
      %10929 = vmatmul.mubr.f32.gmra.mrb[0].mxu0 %v10268
      %v10930 = vpop.f32.mrb[0].mxu0
      %v10931 = vadd.f32 0.0, %v10930
      %v10932 = vpop.f32.mrb[0].mxu0
      %10933 = vmatprep.mubr.f32.mxu0 0.0
      %10934 = vmatmul.mubr.f32.gmra.mrb[0].mxu0 %v10271
      %v10935 = vpop.f32.mrb[0].mxu0
      %v10936 = vadd.f32 0.0, %v10935
      %v10937 = vpop.f32.mrb[0].mxu0
      %10938 = vmatprep.mubr.f32.mxu0 0.0
      %10939 = vmatmul.mubr.f32.gmra.mrb[0].mxu0 %v10274
      %v10940 = vpop.f32.mrb[0].mxu0
      %v10941 = vadd.f32 0.0, %v10940
      %v10942 = vpop.f32.mrb[0].mxu0
      %10943 = vmatprep.mubr.f32.mxu0 0.0
      %10944 = vmatmul.mubr.f32.gmra.mrb[0].mxu0 %v10277
      %v10945 = vpop.f32.mrb[0].mxu0
      %v10946 = vadd.f32 0.0, %v10945
      %v10947 = vpop.f32.mrb[0].mxu0
      %10948 = vmatprep.mubr.f32.mxu0 0.0
      %10949 = vmatmul.mubr.f32.gmra.mrb[0].mxu0 %v10280
      %v10950 = vpop.f32.mrb[0].mxu0
      %v10951 = vadd.f32 0.0, %v10950
      %v10952 = vpop.f32.mrb[0].mxu0
      %10953 = vmatprep.mubr.f32.mxu0 0.0
      %10954 = vmatmul.mubr.f32.gmra.mrb[0].mxu0 %v10283
      %v10955 = vpop.f32.mrb[0].mxu0
      %v10956 = vadd.f32 0.0, %v10955
      %v10957 = vpop.f32.mrb[0].mxu0
      %10958 = vmatprep.mubr.f32.mxu0 0.0
      %10959 = vmatmul.mubr.f32.gmra.mrb[0].mxu0 %v10286
      %v10960 = vpop.f32.mrb[0].mxu0
      %v10961 = vadd.f32 0.0, %v10960
      %v10962 = vpop.f32.mrb[0].mxu0
      %10963 = vmatprep.mubr.f32.mxu0 0.0
      %10964 = vmatmul.mubr.f32.gmra.mrb[0].mxu0 %v10289
      %v10965 = vpop.f32.mrb[0].mxu0
      %v10966 = vadd.f32 0.0, %v10965
      %v10967 = vpop.f32.mrb[0].mxu0
      %10968 = vmatprep.mubr.f32.mxu0 0.0
      %10969 = vmatmul.mubr.f32.gmra.mrb[0].mxu0 %v10292
      %v10970 = vpop.f32.mrb[0].mxu0
      %v10971 = vadd.f32 0.0, %v10970
      %v10972 = vpop.f32.mrb[0].mxu0
      %10973 = vmatprep.mubr.f32.mxu0 0.0
      %10974 = vmatmul.mubr.f32.gmra.mrb[0].mxu0 %v10295
      %v10975 = vpop.f32.mrb[0].mxu0
      %v10976 = vadd.f32 0.0, %v10975
      %v10977 = vpop.f32.mrb[0].mxu0
      %10978 = vmatprep.mubr.f32.mxu0 0.0
      %10979 = vmatmul.mubr.f32.gmra.mrb[0].mxu0 %v10298
      %v10980 = vpop.f32.mrb[0].mxu0
      %v10981 = vadd.f32 0.0, %v10980
      %v10982 = vpop.f32.mrb[0].mxu0
      %10983 = vmatprep.mubr.f32.mxu0 0.0
      %10984 = vmatmul.mubr.f32.gmra.mrb[0].mxu0 %v10301
      %v10985 = vpop.f32.mrb[0].mxu0
      %v10986 = vadd.f32 0.0, %v10985
      %v10987 = vpop.f32.mrb[0].mxu0
      %10988 = vmatprep.mubr.f32.mxu0 0.0
      %10989 = vmatmul.mubr.f32.gmra.mrb[0].mxu0 %v10304
      %v10990 = vpop.f32.mrb[0].mxu0
      %v10991 = vadd.f32 0.0, %v10990
      %v10992 = vpop.f32.mrb[0].mxu0
      %10993 = vmatprep.mubr.f32.mxu0 0.0
      %10994 = vmatmul.mubr.f32.gmra.mrb[0].mxu0 %v10307
      %v10995 = vpop.f32.mrb[0].mxu0
      %v10996 = vadd.f32 0.0, %v10995
      %v10997 = vpop.f32.mrb[0].mxu0
      %10998 = vmatprep.mubr.f32.mxu0 0.0
      %10999 = vmatmul.mubr.f32.gmra.mrb[0].mxu0 %v10310
      %v11000 = vpop.f32.mrb[0].mxu0
      %v11001 = vadd.f32 0.0, %v11000
      %v11002 = vpop.f32.mrb[0].mxu0
      %11003 = vmatprep.mubr.f32.mxu0 0.0
      %11004 = vmatmul.mubr.f32.gmra.mrb[0].mxu0 %v10313
      %v11005 = vpop.f32.mrb[0].mxu0
      %v11006 = vadd.f32 0.0, %v11005
      %v11007 = vpop.f32.mrb[0].mxu0
      %11008 = vmatprep.mubr.f32.mxu0 0.0
      %11009 = vmatmul.mubr.f32.gmra.mrb[0].mxu0 %v10316
      %v11010 = vpop.f32.mrb[0].mxu0
      %v11011 = vadd.f32 0.0, %v11010
      %v11012 = vpop.f32.mrb[0].mxu0
      %11013 = vmatprep.mubr.f32.mxu0 0.0
      %11014 = vmatmul.mubr.f32.gmra.mrb[0].mxu0 %v10319
      %v11015 = vpop.f32.mrb[0].mxu0
      %v11016 = vadd.f32 0.0, %v11015
      %v11017 = vpop.f32.mrb[0].mxu0
      %11018 = vmatprep.mubr.f32.mxu0 0.0
      %11019 = vmatmul.mubr.f32.gmra.mrb[0].mxu0 %v10322
      %v11020 = vpop.f32.mrb[0].mxu0
      %v11021 = vadd.f32 0.0, %v11020
      %v11022 = vpop.f32.mrb[0].mxu0
      %11023 = vmatprep.mubr.f32.mxu0 0.0
      %11024 = vmatmul.mubr.f32.gmra.mrb[0].mxu0 %v10325
      %v11025 = vpop.f32.mrb[0].mxu0
      %v11026 = vadd.f32 0.0, %v11025
      %v11027 = vpop.f32.mrb[0].mxu0
      %11028 = vmatprep.mubr.f32.mxu0 0.0
      %11029 = vmatmul.mubr.f32.gmra.mrb[0].mxu0 %v10328
      %v11030 = vpop.f32.mrb[0].mxu0
      %v11031 = vadd.f32 0.0, %v11030
      %v11032 = vpop.f32.mrb[0].mxu0
      %11033 = vmatprep.mubr.f32.mxu0 0.0
      %11034 = vmatmul.mubr.f32.gmra.mrb[0].mxu0 %v10331
      %v11035 = vpop.f32.mrb[0].mxu0
      %v11036 = vadd.f32 0.0, %v11035
      %v11037 = vpop.f32.mrb[0].mxu0
      %11038 = vmatprep.mubr.f32.mxu0 0.0
      %11039 = vmatmul.mubr.f32.gmra.mrb[0].mxu0 %v10334
      %v11040 = vpop.f32.mrb[0].mxu0
      %v11041 = vadd.f32 0.0, %v11040
      %v11042 = vpop.f32.mrb[0].mxu0
      %11043 = vdwg.mxu0
      %v11044 = vadd.f32 %v9694, %v10406
      %v11045 = vadd.f32 %v9695, %v10411
      %v11046 = vadd.f32 %v9696, %v10416
      %v11047 = vadd.f32 %v9697, %v10421
      %v11048 = vadd.f32 %v9698, %v10426
      %v11049 = vadd.f32 %v9699, %v10431
      %v11050 = vadd.f32 %v9700, %v10436
      %v11051 = vadd.f32 %v9701, %v10441
      %v11052 = vadd.f32 %v9702, %v10446
      %v11053 = vadd.f32 %v9703, %v10451
      %v11054 = vadd.f32 %v9704, %v10456
      %v11055 = vadd.f32 %v9705, %v10461
      %v11056 = vadd.f32 %v9706, %v10466
      %v11057 = vadd.f32 %v9707, %v10471
      %v11058 = vadd.f32 %v9708, %v10476
      %v11059 = vadd.f32 %v9709, %v10481
      %v11060 = vadd.f32 %v9710, %v10486
      %v11061 = vadd.f32 %v9711, %v10491
      %v11062 = vadd.f32 %v9712, %v10496
      %v11063 = vadd.f32 %v9713, %v10501
      %v11064 = vadd.f32 %v9714, %v10506
      %v11065 = vadd.f32 %v9715, %v10511
      %v11066 = vadd.f32 %v9716, %v10516
      %v11067 = vadd.f32 %v9717, %v10521
      %v11068 = vadd.f32 %v9718, %v10526
      %v11069 = vadd.f32 %v9719, %v10531
      %v11070 = vadd.f32 %v9720, %v10536
      %v11071 = vadd.f32 %v9721, %v10541
      %v11072 = vadd.f32 %v9722, %v10546
      %v11073 = vadd.f32 %v9723, %v10551
      %v11074 = vadd.f32 %v9724, %v10556
      %v11075 = vadd.f32 %v9725, %v10561
      %v11076 = vadd.f32 %v9726, %v10566
      %v11077 = vadd.f32 %v9727, %v10571
      %v11078 = vadd.f32 %v9728, %v10576
      %v11079 = vadd.f32 %v9729, %v10581
      %v11080 = vadd.f32 %v9730, %v10586
      %v11081 = vadd.f32 %v9731, %v10591
      %v11082 = vadd.f32 %v9732, %v10596
      %v11083 = vadd.f32 %v9733, %v10601
      %v11084 = vadd.f32 %v9734, %v10606
      %v11085 = vadd.f32 %v9735, %v10611
      %v11086 = vadd.f32 %v9736, %v10616
      %v11087 = vadd.f32 %v9737, %v10621
      %v11088 = vadd.f32 %v9738, %v10626
      %v11089 = vadd.f32 %v9739, %v10631
      %v11090 = vadd.f32 %v9740, %v10636
      %v11091 = vadd.f32 %v9741, %v10641
      %v11092 = vadd.f32 %v9742, %v10646
      %v11093 = vadd.f32 %v9743, %v10651
      %v11094 = vadd.f32 %v9744, %v10656
      %v11095 = vadd.f32 %v9745, %v10661
      %v11096 = vadd.f32 %v9746, %v10666
      %v11097 = vadd.f32 %v9747, %v10671
      %v11098 = vadd.f32 %v9748, %v10676
      %v11099 = vadd.f32 %v9749, %v10681
      %v11100 = vadd.f32 %v9750, %v10686
      %v11101 = vadd.f32 %v9751, %v10691
      %v11102 = vadd.f32 %v9752, %v10696
      %v11103 = vadd.f32 %v9753, %v10701
      %v11104 = vadd.f32 %v9754, %v10706
      %v11105 = vadd.f32 %v9755, %v10711
      %v11106 = vadd.f32 %v9756, %v10716
      %v11107 = vadd.f32 %v9757, %v10721
      %v11108 = vadd.f32 %v9758, %v10726
      %v11109 = vadd.f32 %v9759, %v10731
      %v11110 = vadd.f32 %v9760, %v10736
      %v11111 = vadd.f32 %v9761, %v10741
      %v11112 = vadd.f32 %v9762, %v10746
      %v11113 = vadd.f32 %v9763, %v10751
      %v11114 = vadd.f32 %v9764, %v10756
      %v11115 = vadd.f32 %v9765, %v10761
      %v11116 = vadd.f32 %v9766, %v10766
      %v11117 = vadd.f32 %v9767, %v10771
      %v11118 = vadd.f32 %v9768, %v10776
      %v11119 = vadd.f32 %v9769, %v10781
      %v11120 = vadd.f32 %v9770, %v10786
      %v11121 = vadd.f32 %v9771, %v10791
      %v11122 = vadd.f32 %v9772, %v10796
      %v11123 = vadd.f32 %v9773, %v10801
      %v11124 = vadd.f32 %v9774, %v10806
      %v11125 = vadd.f32 %v9775, %v10811
      %v11126 = vadd.f32 %v9776, %v10816
      %v11127 = vadd.f32 %v9777, %v10821
      %v11128 = vadd.f32 %v9778, %v10826
      %v11129 = vadd.f32 %v9779, %v10831
      %v11130 = vadd.f32 %v9780, %v10836
      %v11131 = vadd.f32 %v9781, %v10841
      %v11132 = vadd.f32 %v9782, %v10846
      %v11133 = vadd.f32 %v9783, %v10851
      %v11134 = vadd.f32 %v9784, %v10856
      %v11135 = vadd.f32 %v9785, %v10861
      %v11136 = vadd.f32 %v9786, %v10866
      %v11137 = vadd.f32 %v9787, %v10871
      %v11138 = vadd.f32 %v9788, %v10876
      %v11139 = vadd.f32 %v9789, %v10881
      %v11140 = vadd.f32 %v9790, %v10886
      %v11141 = vadd.f32 %v9791, %v10891
      %v11142 = vadd.f32 %v9792, %v10896
      %v11143 = vadd.f32 %v9793, %v10901
      %v11144 = vadd.f32 %v9794, %v10906
      %v11145 = vadd.f32 %v9795, %v10911
      %v11146 = vadd.f32 %v9796, %v10916
      %v11147 = vadd.f32 %v9797, %v10921
      %v11148 = vadd.f32 %v9798, %v10926
      %v11149 = vadd.f32 %v9799, %v10931
      %v11150 = vadd.f32 %v9800, %v10936
      %v11151 = vadd.f32 %v9801, %v10941
      %v11152 = vadd.f32 %v9802, %v10946
      %v11153 = vadd.f32 %v9803, %v10951
      %v11154 = vadd.f32 %v9804, %v10956
      %v11155 = vadd.f32 %v9805, %v10961
      %v11156 = vadd.f32 %v9806, %v10966
      %v11157 = vadd.f32 %v9807, %v10971
      %v11158 = vadd.f32 %v9808, %v10976
      %v11159 = vadd.f32 %v9809, %v10981
      %v11160 = vadd.f32 %v9810, %v10986
      %v11161 = vadd.f32 %v9811, %v10991
      %v11162 = vadd.f32 %v9812, %v10996
      %v11163 = vadd.f32 %v9813, %v11001
      %v11164 = vadd.f32 %v9814, %v11006
      %v11165 = vadd.f32 %v9815, %v11011
      %v11166 = vadd.f32 %v9816, %v11016
      %v11167 = vadd.f32 %v9817, %v11021
      %v11168 = vadd.f32 %v9818, %v11026
      %v11169 = vadd.f32 %v9819, %v11031
      %v11170 = vadd.f32 %v9820, %v11036
      %v11171 = vadd.f32 %v9821, %v11041
      %v11172 = vld [vmem:[%s8471 + $0x2] sm:$0xff]
      %v11173 = vld [vmem:[%s8471 + $0xa] sm:$0xff]
      %v11174 = vld [vmem:[%s8471 + $0x12] sm:$0xff]
      %v11175 = vld [vmem:[%s8471 + $0x1a] sm:$0xff]
      %v11176 = vld [vmem:[%s8471 + $0x2a] sm:$0xff]
      %v11177 = vld [vmem:[%s8471 + $0x32] sm:$0xff]
      %v11178 = vld [vmem:[%s8471 + $0x3a] sm:$0xff]
      %v11179 = vld [vmem:[%s8471 + $0x42] sm:$0xff]
      %v11180 = vld [vmem:[%s8471 + $0x52] sm:$0xff]
      %v11181 = vld [vmem:[%s8471 + $0x5a] sm:$0xff]
      %v11182 = vld [vmem:[%s8471 + $0x62] sm:$0xff]
      %v11183 = vld [vmem:[%s8471 + $0x6a] sm:$0xff]
      %v11184 = vld [vmem:[%s8471 + $0x7a] sm:$0xff]
      %v11185 = vld [vmem:[%s8471 + $0x82] sm:$0xff]
      %v11186 = vld [vmem:[%s8471 + $0x8a] sm:$0xff]
      %v11187 = vld [vmem:[%s8471 + $0x92] sm:$0xff]
      %v11188 = vld [vmem:[%s8471 + $0xa2] sm:$0xff]
      %v11189 = vld [vmem:[%s8471 + $0xaa] sm:$0xff]
      %v11190 = vld [vmem:[%s8471 + $0xb2] sm:$0xff]
      %v11191 = vld [vmem:[%s8471 + $0xba] sm:$0xff]
      %v11192 = vld [vmem:[%s8471 + $0xca] sm:$0xff]
      %v11193 = vld [vmem:[%s8471 + $0xd2] sm:$0xff]
      %v11194 = vld [vmem:[%s8471 + $0xda] sm:$0xff]
      %v11195 = vld [vmem:[%s8471 + $0xe2] sm:$0xff]
      %v11196 = vld [vmem:[%s8471 + $0xf2] sm:$0xff]
      %v11197 = vld [vmem:[%s8471 + $0xfa] sm:$0xff]
      %v11198 = vld [vmem:[%s8471 + $0x102] sm:$0xff]
      %v11199 = vld [vmem:[%s8471 + $0x10a] sm:$0xff]
      %v11200 = vld [vmem:[%s8471 + $0x11a] sm:$0xff]
      %v11201 = vld [vmem:[%s8471 + $0x122] sm:$0xff]
      %v11202 = vld [vmem:[%s8471 + $0x12a] sm:$0xff]
      %v11203 = vld [vmem:[%s8471 + $0x132] sm:$0xff]
      %v11204 = vld [vmem:[%s8471 + $0x142] sm:$0xff]
      %v11205 = vld [vmem:[%s8471 + $0x14a] sm:$0xff]
      %v11206 = vld [vmem:[%s8471 + $0x152] sm:$0xff]
      %v11207 = vld [vmem:[%s8471 + $0x15a] sm:$0xff]
      %v11208 = vld [vmem:[%s8471 + $0x16a] sm:$0xff]
      %v11209 = vld [vmem:[%s8471 + $0x172] sm:$0xff]
      %v11210 = vld [vmem:[%s8471 + $0x17a] sm:$0xff]
      %v11211 = vld [vmem:[%s8471 + $0x182] sm:$0xff]
      %v11212 = vld [vmem:[%s8471 + $0x192] sm:$0xff]
      %v11213 = vld [vmem:[%s8471 + $0x19a] sm:$0xff]
      %v11214 = vld [vmem:[%s8471 + $0x1a2] sm:$0xff]
      %v11215 = vld [vmem:[%s8471 + $0x1aa] sm:$0xff]
      %v11216 = vld [vmem:[%s8471 + $0x1ba] sm:$0xff]
      %v11217 = vld [vmem:[%s8471 + $0x1c2] sm:$0xff]
      %v11218 = vld [vmem:[%s8471 + $0x1ca] sm:$0xff]
      %v11219 = vld [vmem:[%s8471 + $0x1d2] sm:$0xff]
      %v11220 = vld [vmem:[%s8471 + $0x1e2] sm:$0xff]
      %v11221 = vld [vmem:[%s8471 + $0x1ea] sm:$0xff]
      %v11222 = vld [vmem:[%s8471 + $0x1f2] sm:$0xff]
      %v11223 = vld [vmem:[%s8471 + $0x1fa] sm:$0xff]
      %v11224 = vld [vmem:[%s8471 + $0x20a] sm:$0xff]
      %v11225 = vld [vmem:[%s8471 + $0x212] sm:$0xff]
      %v11226 = vld [vmem:[%s8471 + $0x21a] sm:$0xff]
      %v11227 = vld [vmem:[%s8471 + $0x222] sm:$0xff]
      %v11228 = vld [vmem:[%s8471 + $0x232] sm:$0xff]
      %v11229 = vld [vmem:[%s8471 + $0x23a] sm:$0xff]
      %v11230 = vld [vmem:[%s8471 + $0x242] sm:$0xff]
      %v11231 = vld [vmem:[%s8471 + $0x24a] sm:$0xff]
      %v11232 = vld [vmem:[%s8471 + $0x25a] sm:$0xff]
      %v11233 = vld [vmem:[%s8471 + $0x262] sm:$0xff]
      %v11234 = vld [vmem:[%s8471 + $0x26a] sm:$0xff]
      %v11235 = vld [vmem:[%s8471 + $0x272] sm:$0xff]
      %v11236 = vld [vmem:[%s8471 + $0x282] sm:$0xff]
      %v11237 = vld [vmem:[%s8471 + $0x28a] sm:$0xff]
      %v11238 = vld [vmem:[%s8471 + $0x292] sm:$0xff]
      %v11239 = vld [vmem:[%s8471 + $0x29a] sm:$0xff]
      %v11240 = vld [vmem:[%s8471 + $0x2aa] sm:$0xff]
      %v11241 = vld [vmem:[%s8471 + $0x2b2] sm:$0xff]
      %v11242 = vld [vmem:[%s8471 + $0x2ba] sm:$0xff]
      %v11243 = vld [vmem:[%s8471 + $0x2c2] sm:$0xff]
      %v11244 = vld [vmem:[%s8471 + $0x2d2] sm:$0xff]
      %v11245 = vld [vmem:[%s8471 + $0x2da] sm:$0xff]
      %v11246 = vld [vmem:[%s8471 + $0x2e2] sm:$0xff]
      %v11247 = vld [vmem:[%s8471 + $0x2ea] sm:$0xff]
      %v11248 = vld [vmem:[%s8471 + $0x2fa] sm:$0xff]
      %v11249 = vld [vmem:[%s8471 + $0x302] sm:$0xff]
      %v11250 = vld [vmem:[%s8471 + $0x30a] sm:$0xff]
      %v11251 = vld [vmem:[%s8471 + $0x312] sm:$0xff]
      %v11252 = vld [vmem:[%s8471 + $0x322] sm:$0xff]
      %v11253 = vld [vmem:[%s8471 + $0x32a] sm:$0xff]
      %v11254 = vld [vmem:[%s8471 + $0x332] sm:$0xff]
      %v11255 = vld [vmem:[%s8471 + $0x33a] sm:$0xff]
      %v11256 = vld [vmem:[%s8471 + $0x34a] sm:$0xff]
      %v11257 = vld [vmem:[%s8471 + $0x352] sm:$0xff]
      %v11258 = vld [vmem:[%s8471 + $0x35a] sm:$0xff]
      %v11259 = vld [vmem:[%s8471 + $0x362] sm:$0xff]
      %v11260 = vld [vmem:[%s8471 + $0x372] sm:$0xff]
      %v11261 = vld [vmem:[%s8471 + $0x37a] sm:$0xff]
      %v11262 = vld [vmem:[%s8471 + $0x382] sm:$0xff]
      %v11263 = vld [vmem:[%s8471 + $0x38a] sm:$0xff]
      %v11264 = vld [vmem:[%s8471 + $0x39a] sm:$0xff]
      %v11265 = vld [vmem:[%s8471 + $0x3a2] sm:$0xff]
      %v11266 = vld [vmem:[%s8471 + $0x3aa] sm:$0xff]
      %v11267 = vld [vmem:[%s8471 + $0x3b2] sm:$0xff]
      %v11268 = vld [vmem:[%s8471 + $0x3c2] sm:$0xff]
      %v11269 = vld [vmem:[%s8471 + $0x3ca] sm:$0xff]
      %v11270 = vld [vmem:[%s8471 + $0x3d2] sm:$0xff]
      %v11271 = vld [vmem:[%s8471 + $0x3da] sm:$0xff]
      %v11272 = vld [vmem:[%s8471 + $0x3ea] sm:$0xff]
      %v11273 = vld [vmem:[%s8471 + $0x3f2] sm:$0xff]
      %v11274 = vld [vmem:[%s8471 + $0x3fa] sm:$0xff]
      %v11275 = vld [vmem:[%s8471 + $0x402] sm:$0xff]
      %v11276 = vld [vmem:[%s8471 + $0x412] sm:$0xff]
      %v11277 = vld [vmem:[%s8471 + $0x41a] sm:$0xff]
      %v11278 = vld [vmem:[%s8471 + $0x422] sm:$0xff]
      %v11279 = vld [vmem:[%s8471 + $0x42a] sm:$0xff]
      %v11280 = vld [vmem:[%s8471 + $0x43a] sm:$0xff]
      %v11281 = vld [vmem:[%s8471 + $0x442] sm:$0xff]
      %v11282 = vld [vmem:[%s8471 + $0x44a] sm:$0xff]
      %v11283 = vld [vmem:[%s8471 + $0x452] sm:$0xff]
      %v11284 = vld [vmem:[%s8471 + $0x462] sm:$0xff]
      %v11285 = vld [vmem:[%s8471 + $0x46a] sm:$0xff]
      %v11286 = vld [vmem:[%s8471 + $0x472] sm:$0xff]
      %v11287 = vld [vmem:[%s8471 + $0x47a] sm:$0xff]
      %v11288 = vld [vmem:[%s8471 + $0x48a] sm:$0xff]
      %v11289 = vld [vmem:[%s8471 + $0x492] sm:$0xff]
      %v11290 = vld [vmem:[%s8471 + $0x49a] sm:$0xff]
      %v11291 = vld [vmem:[%s8471 + $0x4a2] sm:$0xff]
      %v11292 = vld [vmem:[%s8471 + $0x4b2] sm:$0xff]
      %v11293 = vld [vmem:[%s8471 + $0x4ba] sm:$0xff]
      %v11294 = vld [vmem:[%s8471 + $0x4c2] sm:$0xff]
      %v11295 = vld [vmem:[%s8471 + $0x4ca] sm:$0xff]
      %v11296 = vld [vmem:[%s8471 + $0x4da] sm:$0xff]
      %v11297 = vld [vmem:[%s8471 + $0x4e2] sm:$0xff]
      %v11298 = vld [vmem:[%s8471 + $0x4ea] sm:$0xff]
      %v11299 = vld [vmem:[%s8471 + $0x4f2] sm:$0xff]
      %s11300 = scalar_lea.vmem %s1, 32
      %v11301 = vld [vmem:[%s11300] sm:$0x7]
      %v11303 = vsel %vm326, %v11172, 0
      %v11306 = vsel %vm326, %v11173, 0
      %v11309 = vsel %vm326, %v11174, 0
      %v11312 = vsel %vm326, %v11175, 0
      %v11315 = vsel %vm326, %v11176, 0
      %v11318 = vsel %vm326, %v11177, 0
      %v11321 = vsel %vm326, %v11178, 0
      %v11324 = vsel %vm326, %v11179, 0
      %v11327 = vsel %vm326, %v11180, 0
      %v11330 = vsel %vm326, %v11181, 0
      %v11333 = vsel %vm326, %v11182, 0
      %v11336 = vsel %vm326, %v11183, 0
      %v11339 = vsel %vm326, %v11184, 0
      %v11342 = vsel %vm326, %v11185, 0
      %v11345 = vsel %vm326, %v11186, 0
      %v11348 = vsel %vm326, %v11187, 0
      %v11351 = vsel %vm326, %v11188, 0
      %v11354 = vsel %vm326, %v11189, 0
      %v11357 = vsel %vm326, %v11190, 0
      %v11360 = vsel %vm326, %v11191, 0
      %v11363 = vsel %vm326, %v11192, 0
      %v11366 = vsel %vm326, %v11193, 0
      %v11369 = vsel %vm326, %v11194, 0
      %v11372 = vsel %vm326, %v11195, 0
      %v11375 = vsel %vm326, %v11196, 0
      %v11378 = vsel %vm326, %v11197, 0
      %v11381 = vsel %vm326, %v11198, 0
      %v11384 = vsel %vm326, %v11199, 0
      %v11387 = vsel %vm326, %v11200, 0
      %v11390 = vsel %vm326, %v11201, 0
      %v11393 = vsel %vm326, %v11202, 0
      %v11396 = vsel %vm326, %v11203, 0
      %v11399 = vsel %vm326, %v11204, 0
      %v11402 = vsel %vm326, %v11205, 0
      %v11405 = vsel %vm326, %v11206, 0
      %v11408 = vsel %vm326, %v11207, 0
      %v11411 = vsel %vm326, %v11208, 0
      %v11414 = vsel %vm326, %v11209, 0
      %v11417 = vsel %vm326, %v11210, 0
      %v11420 = vsel %vm326, %v11211, 0
      %v11423 = vsel %vm326, %v11212, 0
      %v11426 = vsel %vm326, %v11213, 0
      %v11429 = vsel %vm326, %v11214, 0
      %v11432 = vsel %vm326, %v11215, 0
      %v11435 = vsel %vm326, %v11216, 0
      %v11438 = vsel %vm326, %v11217, 0
      %v11441 = vsel %vm326, %v11218, 0
      %v11444 = vsel %vm326, %v11219, 0
      %v11447 = vsel %vm326, %v11220, 0
      %v11450 = vsel %vm326, %v11221, 0
      %v11453 = vsel %vm326, %v11222, 0
      %v11456 = vsel %vm326, %v11223, 0
      %v11459 = vsel %vm326, %v11224, 0
      %v11462 = vsel %vm326, %v11225, 0
      %v11465 = vsel %vm326, %v11226, 0
      %v11468 = vsel %vm326, %v11227, 0
      %v11471 = vsel %vm326, %v11228, 0
      %v11474 = vsel %vm326, %v11229, 0
      %v11477 = vsel %vm326, %v11230, 0
      %v11480 = vsel %vm326, %v11231, 0
      %v11483 = vsel %vm326, %v11232, 0
      %v11486 = vsel %vm326, %v11233, 0
      %v11489 = vsel %vm326, %v11234, 0
      %v11492 = vsel %vm326, %v11235, 0
      %v11495 = vsel %vm326, %v11236, 0
      %v11498 = vsel %vm326, %v11237, 0
      %v11501 = vsel %vm326, %v11238, 0
      %v11504 = vsel %vm326, %v11239, 0
      %v11507 = vsel %vm326, %v11240, 0
      %v11510 = vsel %vm326, %v11241, 0
      %v11513 = vsel %vm326, %v11242, 0
      %v11516 = vsel %vm326, %v11243, 0
      %v11519 = vsel %vm326, %v11244, 0
      %v11522 = vsel %vm326, %v11245, 0
      %v11525 = vsel %vm326, %v11246, 0
      %v11528 = vsel %vm326, %v11247, 0
      %v11531 = vsel %vm326, %v11248, 0
      %v11534 = vsel %vm326, %v11249, 0
      %v11537 = vsel %vm326, %v11250, 0
      %v11540 = vsel %vm326, %v11251, 0
      %v11543 = vsel %vm326, %v11252, 0
      %v11546 = vsel %vm326, %v11253, 0
      %v11549 = vsel %vm326, %v11254, 0
      %v11552 = vsel %vm326, %v11255, 0
      %v11555 = vsel %vm326, %v11256, 0
      %v11558 = vsel %vm326, %v11257, 0
      %v11561 = vsel %vm326, %v11258, 0
      %v11564 = vsel %vm326, %v11259, 0
      %v11567 = vsel %vm326, %v11260, 0
      %v11570 = vsel %vm326, %v11261, 0
      %v11573 = vsel %vm326, %v11262, 0
      %v11576 = vsel %vm326, %v11263, 0
      %v11579 = vsel %vm326, %v11264, 0
      %v11582 = vsel %vm326, %v11265, 0
      %v11585 = vsel %vm326, %v11266, 0
      %v11588 = vsel %vm326, %v11267, 0
      %v11591 = vsel %vm326, %v11268, 0
      %v11594 = vsel %vm326, %v11269, 0
      %v11597 = vsel %vm326, %v11270, 0
      %v11600 = vsel %vm326, %v11271, 0
      %v11603 = vsel %vm326, %v11272, 0
      %v11606 = vsel %vm326, %v11273, 0
      %v11609 = vsel %vm326, %v11274, 0
      %v11612 = vsel %vm326, %v11275, 0
      %v11615 = vsel %vm326, %v11276, 0
      %v11618 = vsel %vm326, %v11277, 0
      %v11621 = vsel %vm326, %v11278, 0
      %v11624 = vsel %vm326, %v11279, 0
      %v11627 = vsel %vm326, %v11280, 0
      %v11630 = vsel %vm326, %v11281, 0
      %v11633 = vsel %vm326, %v11282, 0
      %v11636 = vsel %vm326, %v11283, 0
      %v11639 = vsel %vm326, %v11284, 0
      %v11642 = vsel %vm326, %v11285, 0
      %v11645 = vsel %vm326, %v11286, 0
      %v11648 = vsel %vm326, %v11287, 0
      %v11651 = vsel %vm326, %v11288, 0
      %v11654 = vsel %vm326, %v11289, 0
      %v11657 = vsel %vm326, %v11290, 0
      %v11660 = vsel %vm326, %v11291, 0
      %v11663 = vsel %vm326, %v11292, 0
      %v11666 = vsel %vm326, %v11293, 0
      %v11669 = vsel %vm326, %v11294, 0
      %v11672 = vsel %vm326, %v11295, 0
      %v11675 = vsel %vm326, %v11296, 0
      %v11678 = vsel %vm326, %v11297, 0
      %v11681 = vsel %vm326, %v11298, 0
      %v11684 = vsel %vm326, %v11299, 0
      %v11687 = vsel %vm1270, %v11301, 0
      %11689 = vmatprep.subr.mxu0 0.0
      %11690 = vmatpush1.msra.mxu0 %v11687
      %11691 = vmatprep.subr.mxu0 0.0
      %11692 = vmatpush1.msra.mxu0 0.0
      %11693 = vmatprep.subr.mxu0 0.0
      %11694 = vmatpush1.msra.mxu0 0.0
      %11695 = vmatprep.subr.mxu0 0.0
      %11696 = vmatpush1.msra.mxu0 0.0
      %11697 = vmatprep.subr.mxu0 0.0
      %11698 = vmatpush1.msra.mxu0 0.0
      %11699 = vmatprep.subr.mxu0 0.0
      %11700 = vmatpush1.msra.mxu0 0.0
      %11701 = vmatprep.subr.mxu0 0.0
      %11702 = vmatpush1.msra.mxu0 0.0
      %11703 = vmatprep.subr.mxu0 0.0
      %11704 = vmatpush1.msra.mxu0 0.0
      %11705 = vmatprep.subr.mxu0 0.0
      %11706 = vmatpush1.msra.mxu0 0.0
      %11707 = vmatprep.subr.mxu0 0.0
      %11708 = vmatpush1.msra.mxu0 0.0
      %11709 = vmatprep.subr.mxu0 0.0
      %11710 = vmatpush1.msra.mxu0 0.0
      %11711 = vmatprep.subr.mxu0 0.0
      %11712 = vmatpush1.msra.mxu0 0.0
      %11713 = vmatprep.subr.mxu0 0.0
      %11714 = vmatpush1.msra.mxu0 0.0
      %11715 = vmatprep.subr.mxu0 0.0
      %11716 = vmatpush1.msra.mxu0 0.0
      %11717 = vmatprep.subr.mxu0 0.0
      %11718 = vmatpush1.msra.mxu0 0.0
      %11719 = vmatprep.subr.mxu0 0.0
      %11720 = vmatpush1.msra.mxu0 0.0
      %11721 = vmatprep.subr.mxu0 0.0
      %11722 = vmatpush1.msra.mxu0 0.0
      %11723 = vmatprep.subr.mxu0 0.0
      %11724 = vmatpush1.msra.mxu0 0.0
      %11725 = vmatprep.subr.mxu0 0.0
      %11726 = vmatpush1.msra.mxu0 0.0
      %11727 = vmatprep.subr.mxu0 0.0
      %11728 = vmatpush1.msra.mxu0 0.0
      %11729 = vmatprep.subr.mxu0 0.0
      %11730 = vmatpush1.msra.mxu0 0.0
      %11731 = vmatprep.subr.mxu0 0.0
      %11732 = vmatpush1.msra.mxu0 0.0
      %11733 = vmatprep.subr.mxu0 0.0
      %11734 = vmatpush1.msra.mxu0 0.0
      %11735 = vmatprep.subr.mxu0 0.0
      %11736 = vmatpush1.msra.mxu0 0.0
      %11737 = vmatprep.subr.mxu0 0.0
      %11738 = vmatpush1.msra.mxu0 0.0
      %11739 = vmatprep.subr.mxu0 0.0
      %11740 = vmatpush1.msra.mxu0 0.0
      %11741 = vmatprep.subr.mxu0 0.0
      %11742 = vmatpush1.msra.mxu0 0.0
      %11743 = vmatprep.subr.mxu0 0.0
      %11744 = vmatpush1.msra.mxu0 0.0
      %11745 = vmatprep.subr.mxu0 0.0
      %11746 = vmatpush1.msra.mxu0 0.0
      %11747 = vmatprep.subr.mxu0 0.0
      %11748 = vmatpush1.msra.mxu0 0.0
      %11749 = vmatprep.subr.mxu0 0.0
      %11750 = vmatpush1.msra.mxu0 0.0
      %11751 = vmatprep.subr.mxu0 0.0
      %11752 = vmatpush1.msra.mxu0 0.0
      %11753 = vmatprep.mubr.f32.mxu0 0.0
      %11754 = vmatmul.mubr.f32.gmra.mrb[0].mxu0 %v11303
      %v11755 = vpop.f32.mrb[0].mxu0
      %v11756 = vadd.f32 0.0, %v11755
      %v11757 = vpop.f32.mrb[0].mxu0
      %11758 = vmatprep.mubr.f32.mxu0 0.0
      %11759 = vmatmul.mubr.f32.gmra.mrb[0].mxu0 %v11306
      %v11760 = vpop.f32.mrb[0].mxu0
      %v11761 = vadd.f32 0.0, %v11760
      %v11762 = vpop.f32.mrb[0].mxu0
      %11763 = vmatprep.mubr.f32.mxu0 0.0
      %11764 = vmatmul.mubr.f32.gmra.mrb[0].mxu0 %v11309
      %v11765 = vpop.f32.mrb[0].mxu0
      %v11766 = vadd.f32 0.0, %v11765
      %v11767 = vpop.f32.mrb[0].mxu0
      %11768 = vmatprep.mubr.f32.mxu0 0.0
      %11769 = vmatmul.mubr.f32.gmra.mrb[0].mxu0 %v11312
      %v11770 = vpop.f32.mrb[0].mxu0
      %v11771 = vadd.f32 0.0, %v11770
      %v11772 = vpop.f32.mrb[0].mxu0
      %11773 = vmatprep.mubr.f32.mxu0 0.0
      %11774 = vmatmul.mubr.f32.gmra.mrb[0].mxu0 %v11315
      %v11775 = vpop.f32.mrb[0].mxu0
      %v11776 = vadd.f32 0.0, %v11775
      %v11777 = vpop.f32.mrb[0].mxu0
      %11778 = vmatprep.mubr.f32.mxu0 0.0
      %11779 = vmatmul.mubr.f32.gmra.mrb[0].mxu0 %v11318
      %v11780 = vpop.f32.mrb[0].mxu0
      %v11781 = vadd.f32 0.0, %v11780
      %v11782 = vpop.f32.mrb[0].mxu0
      %11783 = vmatprep.mubr.f32.mxu0 0.0
      %11784 = vmatmul.mubr.f32.gmra.mrb[0].mxu0 %v11321
      %v11785 = vpop.f32.mrb[0].mxu0
      %v11786 = vadd.f32 0.0, %v11785
      %v11787 = vpop.f32.mrb[0].mxu0
      %11788 = vmatprep.mubr.f32.mxu0 0.0
      %11789 = vmatmul.mubr.f32.gmra.mrb[0].mxu0 %v11324
      %v11790 = vpop.f32.mrb[0].mxu0
      %v11791 = vadd.f32 0.0, %v11790
      %v11792 = vpop.f32.mrb[0].mxu0
      %11793 = vmatprep.mubr.f32.mxu0 0.0
      %11794 = vmatmul.mubr.f32.gmra.mrb[0].mxu0 %v11327
      %v11795 = vpop.f32.mrb[0].mxu0
      %v11796 = vadd.f32 0.0, %v11795
      %v11797 = vpop.f32.mrb[0].mxu0
      %11798 = vmatprep.mubr.f32.mxu0 0.0
      %11799 = vmatmul.mubr.f32.gmra.mrb[0].mxu0 %v11330
      %v11800 = vpop.f32.mrb[0].mxu0
      %v11801 = vadd.f32 0.0, %v11800
      %v11802 = vpop.f32.mrb[0].mxu0
      %11803 = vmatprep.mubr.f32.mxu0 0.0
      %11804 = vmatmul.mubr.f32.gmra.mrb[0].mxu0 %v11333
      %v11805 = vpop.f32.mrb[0].mxu0
      %v11806 = vadd.f32 0.0, %v11805
      %v11807 = vpop.f32.mrb[0].mxu0
      %11808 = vmatprep.mubr.f32.mxu0 0.0
      %11809 = vmatmul.mubr.f32.gmra.mrb[0].mxu0 %v11336
      %v11810 = vpop.f32.mrb[0].mxu0
      %v11811 = vadd.f32 0.0, %v11810
      %v11812 = vpop.f32.mrb[0].mxu0
      %11813 = vmatprep.mubr.f32.mxu0 0.0
      %11814 = vmatmul.mubr.f32.gmra.mrb[0].mxu0 %v11339
      %v11815 = vpop.f32.mrb[0].mxu0
      %v11816 = vadd.f32 0.0, %v11815
      %v11817 = vpop.f32.mrb[0].mxu0
      %11818 = vmatprep.mubr.f32.mxu0 0.0
      %11819 = vmatmul.mubr.f32.gmra.mrb[0].mxu0 %v11342
      %v11820 = vpop.f32.mrb[0].mxu0
      %v11821 = vadd.f32 0.0, %v11820
      %v11822 = vpop.f32.mrb[0].mxu0
      %11823 = vmatprep.mubr.f32.mxu0 0.0
      %11824 = vmatmul.mubr.f32.gmra.mrb[0].mxu0 %v11345
      %v11825 = vpop.f32.mrb[0].mxu0
      %v11826 = vadd.f32 0.0, %v11825
      %v11827 = vpop.f32.mrb[0].mxu0
      %11828 = vmatprep.mubr.f32.mxu0 0.0
      %11829 = vmatmul.mubr.f32.gmra.mrb[0].mxu0 %v11348
      %v11830 = vpop.f32.mrb[0].mxu0
      %v11831 = vadd.f32 0.0, %v11830
      %v11832 = vpop.f32.mrb[0].mxu0
      %11833 = vmatprep.mubr.f32.mxu0 0.0
      %11834 = vmatmul.mubr.f32.gmra.mrb[0].mxu0 %v11351
      %v11835 = vpop.f32.mrb[0].mxu0
      %v11836 = vadd.f32 0.0, %v11835
      %v11837 = vpop.f32.mrb[0].mxu0
      %11838 = vmatprep.mubr.f32.mxu0 0.0
      %11839 = vmatmul.mubr.f32.gmra.mrb[0].mxu0 %v11354
      %v11840 = vpop.f32.mrb[0].mxu0
      %v11841 = vadd.f32 0.0, %v11840
      %v11842 = vpop.f32.mrb[0].mxu0
      %11843 = vmatprep.mubr.f32.mxu0 0.0
      %11844 = vmatmul.mubr.f32.gmra.mrb[0].mxu0 %v11357
      %v11845 = vpop.f32.mrb[0].mxu0
      %v11846 = vadd.f32 0.0, %v11845
      %v11847 = vpop.f32.mrb[0].mxu0
      %11848 = vmatprep.mubr.f32.mxu0 0.0
      %11849 = vmatmul.mubr.f32.gmra.mrb[0].mxu0 %v11360
      %v11850 = vpop.f32.mrb[0].mxu0
      %v11851 = vadd.f32 0.0, %v11850
      %v11852 = vpop.f32.mrb[0].mxu0
      %11853 = vmatprep.mubr.f32.mxu0 0.0
      %11854 = vmatmul.mubr.f32.gmra.mrb[0].mxu0 %v11363
      %v11855 = vpop.f32.mrb[0].mxu0
      %v11856 = vadd.f32 0.0, %v11855
      %v11857 = vpop.f32.mrb[0].mxu0
      %11858 = vmatprep.mubr.f32.mxu0 0.0
      %11859 = vmatmul.mubr.f32.gmra.mrb[0].mxu0 %v11366
      %v11860 = vpop.f32.mrb[0].mxu0
      %v11861 = vadd.f32 0.0, %v11860
      %v11862 = vpop.f32.mrb[0].mxu0
      %11863 = vmatprep.mubr.f32.mxu0 0.0
      %11864 = vmatmul.mubr.f32.gmra.mrb[0].mxu0 %v11369
      %v11865 = vpop.f32.mrb[0].mxu0
      %v11866 = vadd.f32 0.0, %v11865
      %v11867 = vpop.f32.mrb[0].mxu0
      %11868 = vmatprep.mubr.f32.mxu0 0.0
      %11869 = vmatmul.mubr.f32.gmra.mrb[0].mxu0 %v11372
      %v11870 = vpop.f32.mrb[0].mxu0
      %v11871 = vadd.f32 0.0, %v11870
      %v11872 = vpop.f32.mrb[0].mxu0
      %11873 = vmatprep.mubr.f32.mxu0 0.0
      %11874 = vmatmul.mubr.f32.gmra.mrb[0].mxu0 %v11375
      %v11875 = vpop.f32.mrb[0].mxu0
      %v11876 = vadd.f32 0.0, %v11875
      %v11877 = vpop.f32.mrb[0].mxu0
      %11878 = vmatprep.mubr.f32.mxu0 0.0
      %11879 = vmatmul.mubr.f32.gmra.mrb[0].mxu0 %v11378
      %v11880 = vpop.f32.mrb[0].mxu0
      %v11881 = vadd.f32 0.0, %v11880
      %v11882 = vpop.f32.mrb[0].mxu0
      %11883 = vmatprep.mubr.f32.mxu0 0.0
      %11884 = vmatmul.mubr.f32.gmra.mrb[0].mxu0 %v11381
      %v11885 = vpop.f32.mrb[0].mxu0
      %v11886 = vadd.f32 0.0, %v11885
      %v11887 = vpop.f32.mrb[0].mxu0
      %11888 = vmatprep.mubr.f32.mxu0 0.0
      %11889 = vmatmul.mubr.f32.gmra.mrb[0].mxu0 %v11384
      %v11890 = vpop.f32.mrb[0].mxu0
      %v11891 = vadd.f32 0.0, %v11890
      %v11892 = vpop.f32.mrb[0].mxu0
      %11893 = vmatprep.mubr.f32.mxu0 0.0
      %11894 = vmatmul.mubr.f32.gmra.mrb[0].mxu0 %v11387
      %v11895 = vpop.f32.mrb[0].mxu0
      %v11896 = vadd.f32 0.0, %v11895
      %v11897 = vpop.f32.mrb[0].mxu0
      %11898 = vmatprep.mubr.f32.mxu0 0.0
      %11899 = vmatmul.mubr.f32.gmra.mrb[0].mxu0 %v11390
      %v11900 = vpop.f32.mrb[0].mxu0
      %v11901 = vadd.f32 0.0, %v11900
      %v11902 = vpop.f32.mrb[0].mxu0
      %11903 = vmatprep.mubr.f32.mxu0 0.0
      %11904 = vmatmul.mubr.f32.gmra.mrb[0].mxu0 %v11393
      %v11905 = vpop.f32.mrb[0].mxu0
      %v11906 = vadd.f32 0.0, %v11905
      %v11907 = vpop.f32.mrb[0].mxu0
      %11908 = vmatprep.mubr.f32.mxu0 0.0
      %11909 = vmatmul.mubr.f32.gmra.mrb[0].mxu0 %v11396
      %v11910 = vpop.f32.mrb[0].mxu0
      %v11911 = vadd.f32 0.0, %v11910
      %v11912 = vpop.f32.mrb[0].mxu0
      %11913 = vmatprep.mubr.f32.mxu0 0.0
      %11914 = vmatmul.mubr.f32.gmra.mrb[0].mxu0 %v11399
      %v11915 = vpop.f32.mrb[0].mxu0
      %v11916 = vadd.f32 0.0, %v11915
      %v11917 = vpop.f32.mrb[0].mxu0
      %11918 = vmatprep.mubr.f32.mxu0 0.0
      %11919 = vmatmul.mubr.f32.gmra.mrb[0].mxu0 %v11402
      %v11920 = vpop.f32.mrb[0].mxu0
      %v11921 = vadd.f32 0.0, %v11920
      %v11922 = vpop.f32.mrb[0].mxu0
      %11923 = vmatprep.mubr.f32.mxu0 0.0
      %11924 = vmatmul.mubr.f32.gmra.mrb[0].mxu0 %v11405
      %v11925 = vpop.f32.mrb[0].mxu0
      %v11926 = vadd.f32 0.0, %v11925
      %v11927 = vpop.f32.mrb[0].mxu0
      %11928 = vmatprep.mubr.f32.mxu0 0.0
      %11929 = vmatmul.mubr.f32.gmra.mrb[0].mxu0 %v11408
      %v11930 = vpop.f32.mrb[0].mxu0
      %v11931 = vadd.f32 0.0, %v11930
      %v11932 = vpop.f32.mrb[0].mxu0
      %11933 = vmatprep.mubr.f32.mxu0 0.0
      %11934 = vmatmul.mubr.f32.gmra.mrb[0].mxu0 %v11411
      %v11935 = vpop.f32.mrb[0].mxu0
      %v11936 = vadd.f32 0.0, %v11935
      %v11937 = vpop.f32.mrb[0].mxu0
      %11938 = vmatprep.mubr.f32.mxu0 0.0
      %11939 = vmatmul.mubr.f32.gmra.mrb[0].mxu0 %v11414
      %v11940 = vpop.f32.mrb[0].mxu0
      %v11941 = vadd.f32 0.0, %v11940
      %v11942 = vpop.f32.mrb[0].mxu0
      %11943 = vmatprep.mubr.f32.mxu0 0.0
      %11944 = vmatmul.mubr.f32.gmra.mrb[0].mxu0 %v11417
      %v11945 = vpop.f32.mrb[0].mxu0
      %v11946 = vadd.f32 0.0, %v11945
      %v11947 = vpop.f32.mrb[0].mxu0
      %11948 = vmatprep.mubr.f32.mxu0 0.0
      %11949 = vmatmul.mubr.f32.gmra.mrb[0].mxu0 %v11420
      %v11950 = vpop.f32.mrb[0].mxu0
      %v11951 = vadd.f32 0.0, %v11950
      %v11952 = vpop.f32.mrb[0].mxu0
      %11953 = vmatprep.mubr.f32.mxu0 0.0
      %11954 = vmatmul.mubr.f32.gmra.mrb[0].mxu0 %v11423
      %v11955 = vpop.f32.mrb[0].mxu0
      %v11956 = vadd.f32 0.0, %v11955
      %v11957 = vpop.f32.mrb[0].mxu0
      %11958 = vmatprep.mubr.f32.mxu0 0.0
      %11959 = vmatmul.mubr.f32.gmra.mrb[0].mxu0 %v11426
      %v11960 = vpop.f32.mrb[0].mxu0
      %v11961 = vadd.f32 0.0, %v11960
      %v11962 = vpop.f32.mrb[0].mxu0
      %11963 = vmatprep.mubr.f32.mxu0 0.0
      %11964 = vmatmul.mubr.f32.gmra.mrb[0].mxu0 %v11429
      %v11965 = vpop.f32.mrb[0].mxu0
      %v11966 = vadd.f32 0.0, %v11965
      %v11967 = vpop.f32.mrb[0].mxu0
      %11968 = vmatprep.mubr.f32.mxu0 0.0
      %11969 = vmatmul.mubr.f32.gmra.mrb[0].mxu0 %v11432
      %v11970 = vpop.f32.mrb[0].mxu0
      %v11971 = vadd.f32 0.0, %v11970
      %v11972 = vpop.f32.mrb[0].mxu0
      %11973 = vmatprep.mubr.f32.mxu0 0.0
      %11974 = vmatmul.mubr.f32.gmra.mrb[0].mxu0 %v11435
      %v11975 = vpop.f32.mrb[0].mxu0
      %v11976 = vadd.f32 0.0, %v11975
      %v11977 = vpop.f32.mrb[0].mxu0
      %11978 = vmatprep.mubr.f32.mxu0 0.0
      %11979 = vmatmul.mubr.f32.gmra.mrb[0].mxu0 %v11438
      %v11980 = vpop.f32.mrb[0].mxu0
      %v11981 = vadd.f32 0.0, %v11980
      %v11982 = vpop.f32.mrb[0].mxu0
      %11983 = vmatprep.mubr.f32.mxu0 0.0
      %11984 = vmatmul.mubr.f32.gmra.mrb[0].mxu0 %v11441
      %v11985 = vpop.f32.mrb[0].mxu0
      %v11986 = vadd.f32 0.0, %v11985
      %v11987 = vpop.f32.mrb[0].mxu0
      %11988 = vmatprep.mubr.f32.mxu0 0.0
      %11989 = vmatmul.mubr.f32.gmra.mrb[0].mxu0 %v11444
      %v11990 = vpop.f32.mrb[0].mxu0
      %v11991 = vadd.f32 0.0, %v11990
      %v11992 = vpop.f32.mrb[0].mxu0
      %11993 = vmatprep.mubr.f32.mxu0 0.0
      %11994 = vmatmul.mubr.f32.gmra.mrb[0].mxu0 %v11447
      %v11995 = vpop.f32.mrb[0].mxu0
      %v11996 = vadd.f32 0.0, %v11995
      %v11997 = vpop.f32.mrb[0].mxu0
      %11998 = vmatprep.mubr.f32.mxu0 0.0
      %11999 = vmatmul.mubr.f32.gmra.mrb[0].mxu0 %v11450
      %v12000 = vpop.f32.mrb[0].mxu0
      %v12001 = vadd.f32 0.0, %v12000
      %v12002 = vpop.f32.mrb[0].mxu0
      %12003 = vmatprep.mubr.f32.mxu0 0.0
      %12004 = vmatmul.mubr.f32.gmra.mrb[0].mxu0 %v11453
      %v12005 = vpop.f32.mrb[0].mxu0
      %v12006 = vadd.f32 0.0, %v12005
      %v12007 = vpop.f32.mrb[0].mxu0
      %12008 = vmatprep.mubr.f32.mxu0 0.0
      %12009 = vmatmul.mubr.f32.gmra.mrb[0].mxu0 %v11456
      %v12010 = vpop.f32.mrb[0].mxu0
      %v12011 = vadd.f32 0.0, %v12010
      %v12012 = vpop.f32.mrb[0].mxu0
      %12013 = vmatprep.mubr.f32.mxu0 0.0
      %12014 = vmatmul.mubr.f32.gmra.mrb[0].mxu0 %v11459
      %v12015 = vpop.f32.mrb[0].mxu0
      %v12016 = vadd.f32 0.0, %v12015
      %v12017 = vpop.f32.mrb[0].mxu0
      %12018 = vmatprep.mubr.f32.mxu0 0.0
      %12019 = vmatmul.mubr.f32.gmra.mrb[0].mxu0 %v11462
      %v12020 = vpop.f32.mrb[0].mxu0
      %v12021 = vadd.f32 0.0, %v12020
      %v12022 = vpop.f32.mrb[0].mxu0
      %12023 = vmatprep.mubr.f32.mxu0 0.0
      %12024 = vmatmul.mubr.f32.gmra.mrb[0].mxu0 %v11465
      %v12025 = vpop.f32.mrb[0].mxu0
      %v12026 = vadd.f32 0.0, %v12025
      %v12027 = vpop.f32.mrb[0].mxu0
      %12028 = vmatprep.mubr.f32.mxu0 0.0
      %12029 = vmatmul.mubr.f32.gmra.mrb[0].mxu0 %v11468
      %v12030 = vpop.f32.mrb[0].mxu0
      %v12031 = vadd.f32 0.0, %v12030
      %v12032 = vpop.f32.mrb[0].mxu0
      %12033 = vmatprep.mubr.f32.mxu0 0.0
      %12034 = vmatmul.mubr.f32.gmra.mrb[0].mxu0 %v11471
      %v12035 = vpop.f32.mrb[0].mxu0
      %v12036 = vadd.f32 0.0, %v12035
      %v12037 = vpop.f32.mrb[0].mxu0
      %12038 = vmatprep.mubr.f32.mxu0 0.0
      %12039 = vmatmul.mubr.f32.gmra.mrb[0].mxu0 %v11474
      %v12040 = vpop.f32.mrb[0].mxu0
      %v12041 = vadd.f32 0.0, %v12040
      %v12042 = vpop.f32.mrb[0].mxu0
      %12043 = vmatprep.mubr.f32.mxu0 0.0
      %12044 = vmatmul.mubr.f32.gmra.mrb[0].mxu0 %v11477
      %v12045 = vpop.f32.mrb[0].mxu0
      %v12046 = vadd.f32 0.0, %v12045
      %v12047 = vpop.f32.mrb[0].mxu0
      %12048 = vmatprep.mubr.f32.mxu0 0.0
      %12049 = vmatmul.mubr.f32.gmra.mrb[0].mxu0 %v11480
      %v12050 = vpop.f32.mrb[0].mxu0
      %v12051 = vadd.f32 0.0, %v12050
      %v12052 = vpop.f32.mrb[0].mxu0
      %12053 = vmatprep.mubr.f32.mxu0 0.0
      %12054 = vmatmul.mubr.f32.gmra.mrb[0].mxu0 %v11483
      %v12055 = vpop.f32.mrb[0].mxu0
      %v12056 = vadd.f32 0.0, %v12055
      %v12057 = vpop.f32.mrb[0].mxu0
      %12058 = vmatprep.mubr.f32.mxu0 0.0
      %12059 = vmatmul.mubr.f32.gmra.mrb[0].mxu0 %v11486
      %v12060 = vpop.f32.mrb[0].mxu0
      %v12061 = vadd.f32 0.0, %v12060
      %v12062 = vpop.f32.mrb[0].mxu0
      %12063 = vmatprep.mubr.f32.mxu0 0.0
      %12064 = vmatmul.mubr.f32.gmra.mrb[0].mxu0 %v11489
      %v12065 = vpop.f32.mrb[0].mxu0
      %v12066 = vadd.f32 0.0, %v12065
      %v12067 = vpop.f32.mrb[0].mxu0
      %12068 = vmatprep.mubr.f32.mxu0 0.0
      %12069 = vmatmul.mubr.f32.gmra.mrb[0].mxu0 %v11492
      %v12070 = vpop.f32.mrb[0].mxu0
      %v12071 = vadd.f32 0.0, %v12070
      %v12072 = vpop.f32.mrb[0].mxu0
      %12073 = vmatprep.mubr.f32.mxu0 0.0
      %12074 = vmatmul.mubr.f32.gmra.mrb[0].mxu0 %v11495
      %v12075 = vpop.f32.mrb[0].mxu0
      %v12076 = vadd.f32 0.0, %v12075
      %v12077 = vpop.f32.mrb[0].mxu0
      %12078 = vmatprep.mubr.f32.mxu0 0.0
      %12079 = vmatmul.mubr.f32.gmra.mrb[0].mxu0 %v11498
      %v12080 = vpop.f32.mrb[0].mxu0
      %v12081 = vadd.f32 0.0, %v12080
      %v12082 = vpop.f32.mrb[0].mxu0
      %12083 = vmatprep.mubr.f32.mxu0 0.0
      %12084 = vmatmul.mubr.f32.gmra.mrb[0].mxu0 %v11501
      %v12085 = vpop.f32.mrb[0].mxu0
      %v12086 = vadd.f32 0.0, %v12085
      %v12087 = vpop.f32.mrb[0].mxu0
      %12088 = vmatprep.mubr.f32.mxu0 0.0
      %12089 = vmatmul.mubr.f32.gmra.mrb[0].mxu0 %v11504
      %v12090 = vpop.f32.mrb[0].mxu0
      %v12091 = vadd.f32 0.0, %v12090
      %v12092 = vpop.f32.mrb[0].mxu0
      %12093 = vmatprep.mubr.f32.mxu0 0.0
      %12094 = vmatmul.mubr.f32.gmra.mrb[0].mxu0 %v11507
      %v12095 = vpop.f32.mrb[0].mxu0
      %v12096 = vadd.f32 0.0, %v12095
      %v12097 = vpop.f32.mrb[0].mxu0
      %12098 = vmatprep.mubr.f32.mxu0 0.0
      %12099 = vmatmul.mubr.f32.gmra.mrb[0].mxu0 %v11510
      %v12100 = vpop.f32.mrb[0].mxu0
      %v12101 = vadd.f32 0.0, %v12100
      %v12102 = vpop.f32.mrb[0].mxu0
      %12103 = vmatprep.mubr.f32.mxu0 0.0
      %12104 = vmatmul.mubr.f32.gmra.mrb[0].mxu0 %v11513
      %v12105 = vpop.f32.mrb[0].mxu0
      %v12106 = vadd.f32 0.0, %v12105
      %v12107 = vpop.f32.mrb[0].mxu0
      %12108 = vmatprep.mubr.f32.mxu0 0.0
      %12109 = vmatmul.mubr.f32.gmra.mrb[0].mxu0 %v11516
      %v12110 = vpop.f32.mrb[0].mxu0
      %v12111 = vadd.f32 0.0, %v12110
      %v12112 = vpop.f32.mrb[0].mxu0
      %12113 = vmatprep.mubr.f32.mxu0 0.0
      %12114 = vmatmul.mubr.f32.gmra.mrb[0].mxu0 %v11519
      %v12115 = vpop.f32.mrb[0].mxu0
      %v12116 = vadd.f32 0.0, %v12115
      %v12117 = vpop.f32.mrb[0].mxu0
      %12118 = vmatprep.mubr.f32.mxu0 0.0
      %12119 = vmatmul.mubr.f32.gmra.mrb[0].mxu0 %v11522
      %v12120 = vpop.f32.mrb[0].mxu0
      %v12121 = vadd.f32 0.0, %v12120
      %v12122 = vpop.f32.mrb[0].mxu0
      %12123 = vmatprep.mubr.f32.mxu0 0.0
      %12124 = vmatmul.mubr.f32.gmra.mrb[0].mxu0 %v11525
      %v12125 = vpop.f32.mrb[0].mxu0
      %v12126 = vadd.f32 0.0, %v12125
      %v12127 = vpop.f32.mrb[0].mxu0
      %12128 = vmatprep.mubr.f32.mxu0 0.0
      %12129 = vmatmul.mubr.f32.gmra.mrb[0].mxu0 %v11528
      %v12130 = vpop.f32.mrb[0].mxu0
      %v12131 = vadd.f32 0.0, %v12130
      %v12132 = vpop.f32.mrb[0].mxu0
      %12133 = vmatprep.mubr.f32.mxu0 0.0
      %12134 = vmatmul.mubr.f32.gmra.mrb[0].mxu0 %v11531
      %v12135 = vpop.f32.mrb[0].mxu0
      %v12136 = vadd.f32 0.0, %v12135
      %v12137 = vpop.f32.mrb[0].mxu0
      %12138 = vmatprep.mubr.f32.mxu0 0.0
      %12139 = vmatmul.mubr.f32.gmra.mrb[0].mxu0 %v11534
      %v12140 = vpop.f32.mrb[0].mxu0
      %v12141 = vadd.f32 0.0, %v12140
      %v12142 = vpop.f32.mrb[0].mxu0
      %12143 = vmatprep.mubr.f32.mxu0 0.0
      %12144 = vmatmul.mubr.f32.gmra.mrb[0].mxu0 %v11537
      %v12145 = vpop.f32.mrb[0].mxu0
      %v12146 = vadd.f32 0.0, %v12145
      %v12147 = vpop.f32.mrb[0].mxu0
      %12148 = vmatprep.mubr.f32.mxu0 0.0
      %12149 = vmatmul.mubr.f32.gmra.mrb[0].mxu0 %v11540
      %v12150 = vpop.f32.mrb[0].mxu0
      %v12151 = vadd.f32 0.0, %v12150
      %v12152 = vpop.f32.mrb[0].mxu0
      %12153 = vmatprep.mubr.f32.mxu0 0.0
      %12154 = vmatmul.mubr.f32.gmra.mrb[0].mxu0 %v11543
      %v12155 = vpop.f32.mrb[0].mxu0
      %v12156 = vadd.f32 0.0, %v12155
      %v12157 = vpop.f32.mrb[0].mxu0
      %12158 = vmatprep.mubr.f32.mxu0 0.0
      %12159 = vmatmul.mubr.f32.gmra.mrb[0].mxu0 %v11546
      %v12160 = vpop.f32.mrb[0].mxu0
      %v12161 = vadd.f32 0.0, %v12160
      %v12162 = vpop.f32.mrb[0].mxu0
      %12163 = vmatprep.mubr.f32.mxu0 0.0
      %12164 = vmatmul.mubr.f32.gmra.mrb[0].mxu0 %v11549
      %v12165 = vpop.f32.mrb[0].mxu0
      %v12166 = vadd.f32 0.0, %v12165
      %v12167 = vpop.f32.mrb[0].mxu0
      %12168 = vmatprep.mubr.f32.mxu0 0.0
      %12169 = vmatmul.mubr.f32.gmra.mrb[0].mxu0 %v11552
      %v12170 = vpop.f32.mrb[0].mxu0
      %v12171 = vadd.f32 0.0, %v12170
      %v12172 = vpop.f32.mrb[0].mxu0
      %12173 = vmatprep.mubr.f32.mxu0 0.0
      %12174 = vmatmul.mubr.f32.gmra.mrb[0].mxu0 %v11555
      %v12175 = vpop.f32.mrb[0].mxu0
      %v12176 = vadd.f32 0.0, %v12175
      %v12177 = vpop.f32.mrb[0].mxu0
      %12178 = vmatprep.mubr.f32.mxu0 0.0
      %12179 = vmatmul.mubr.f32.gmra.mrb[0].mxu0 %v11558
      %v12180 = vpop.f32.mrb[0].mxu0
      %v12181 = vadd.f32 0.0, %v12180
      %v12182 = vpop.f32.mrb[0].mxu0
      %12183 = vmatprep.mubr.f32.mxu0 0.0
      %12184 = vmatmul.mubr.f32.gmra.mrb[0].mxu0 %v11561
      %v12185 = vpop.f32.mrb[0].mxu0
      %v12186 = vadd.f32 0.0, %v12185
      %v12187 = vpop.f32.mrb[0].mxu0
      %12188 = vmatprep.mubr.f32.mxu0 0.0
      %12189 = vmatmul.mubr.f32.gmra.mrb[0].mxu0 %v11564
      %v12190 = vpop.f32.mrb[0].mxu0
      %v12191 = vadd.f32 0.0, %v12190
      %v12192 = vpop.f32.mrb[0].mxu0
      %12193 = vmatprep.mubr.f32.mxu0 0.0
      %12194 = vmatmul.mubr.f32.gmra.mrb[0].mxu0 %v11567
      %v12195 = vpop.f32.mrb[0].mxu0
      %v12196 = vadd.f32 0.0, %v12195
      %v12197 = vpop.f32.mrb[0].mxu0
      %12198 = vmatprep.mubr.f32.mxu0 0.0
      %12199 = vmatmul.mubr.f32.gmra.mrb[0].mxu0 %v11570
      %v12200 = vpop.f32.mrb[0].mxu0
      %v12201 = vadd.f32 0.0, %v12200
      %v12202 = vpop.f32.mrb[0].mxu0
      %12203 = vmatprep.mubr.f32.mxu0 0.0
      %12204 = vmatmul.mubr.f32.gmra.mrb[0].mxu0 %v11573
      %v12205 = vpop.f32.mrb[0].mxu0
      %v12206 = vadd.f32 0.0, %v12205
      %v12207 = vpop.f32.mrb[0].mxu0
      %12208 = vmatprep.mubr.f32.mxu0 0.0
      %12209 = vmatmul.mubr.f32.gmra.mrb[0].mxu0 %v11576
      %v12210 = vpop.f32.mrb[0].mxu0
      %v12211 = vadd.f32 0.0, %v12210
      %v12212 = vpop.f32.mrb[0].mxu0
      %12213 = vmatprep.mubr.f32.mxu0 0.0
      %12214 = vmatmul.mubr.f32.gmra.mrb[0].mxu0 %v11579
      %v12215 = vpop.f32.mrb[0].mxu0
      %v12216 = vadd.f32 0.0, %v12215
      %v12217 = vpop.f32.mrb[0].mxu0
      %12218 = vmatprep.mubr.f32.mxu0 0.0
      %12219 = vmatmul.mubr.f32.gmra.mrb[0].mxu0 %v11582
      %v12220 = vpop.f32.mrb[0].mxu0
      %v12221 = vadd.f32 0.0, %v12220
      %v12222 = vpop.f32.mrb[0].mxu0
      %12223 = vmatprep.mubr.f32.mxu0 0.0
      %12224 = vmatmul.mubr.f32.gmra.mrb[0].mxu0 %v11585
      %v12225 = vpop.f32.mrb[0].mxu0
      %v12226 = vadd.f32 0.0, %v12225
      %v12227 = vpop.f32.mrb[0].mxu0
      %12228 = vmatprep.mubr.f32.mxu0 0.0
      %12229 = vmatmul.mubr.f32.gmra.mrb[0].mxu0 %v11588
      %v12230 = vpop.f32.mrb[0].mxu0
      %v12231 = vadd.f32 0.0, %v12230
      %v12232 = vpop.f32.mrb[0].mxu0
      %12233 = vmatprep.mubr.f32.mxu0 0.0
      %12234 = vmatmul.mubr.f32.gmra.mrb[0].mxu0 %v11591
      %v12235 = vpop.f32.mrb[0].mxu0
      %v12236 = vadd.f32 0.0, %v12235
      %v12237 = vpop.f32.mrb[0].mxu0
      %12238 = vmatprep.mubr.f32.mxu0 0.0
      %12239 = vmatmul.mubr.f32.gmra.mrb[0].mxu0 %v11594
      %v12240 = vpop.f32.mrb[0].mxu0
      %v12241 = vadd.f32 0.0, %v12240
      %v12242 = vpop.f32.mrb[0].mxu0
      %12243 = vmatprep.mubr.f32.mxu0 0.0
      %12244 = vmatmul.mubr.f32.gmra.mrb[0].mxu0 %v11597
      %v12245 = vpop.f32.mrb[0].mxu0
      %v12246 = vadd.f32 0.0, %v12245
      %v12247 = vpop.f32.mrb[0].mxu0
      %12248 = vmatprep.mubr.f32.mxu0 0.0
      %12249 = vmatmul.mubr.f32.gmra.mrb[0].mxu0 %v11600
      %v12250 = vpop.f32.mrb[0].mxu0
      %v12251 = vadd.f32 0.0, %v12250
      %v12252 = vpop.f32.mrb[0].mxu0
      %12253 = vmatprep.mubr.f32.mxu0 0.0
      %12254 = vmatmul.mubr.f32.gmra.mrb[0].mxu0 %v11603
      %v12255 = vpop.f32.mrb[0].mxu0
      %v12256 = vadd.f32 0.0, %v12255
      %v12257 = vpop.f32.mrb[0].mxu0
      %12258 = vmatprep.mubr.f32.mxu0 0.0
      %12259 = vmatmul.mubr.f32.gmra.mrb[0].mxu0 %v11606
      %v12260 = vpop.f32.mrb[0].mxu0
      %v12261 = vadd.f32 0.0, %v12260
      %v12262 = vpop.f32.mrb[0].mxu0
      %12263 = vmatprep.mubr.f32.mxu0 0.0
      %12264 = vmatmul.mubr.f32.gmra.mrb[0].mxu0 %v11609
      %v12265 = vpop.f32.mrb[0].mxu0
      %v12266 = vadd.f32 0.0, %v12265
      %v12267 = vpop.f32.mrb[0].mxu0
      %12268 = vmatprep.mubr.f32.mxu0 0.0
      %12269 = vmatmul.mubr.f32.gmra.mrb[0].mxu0 %v11612
      %v12270 = vpop.f32.mrb[0].mxu0
      %v12271 = vadd.f32 0.0, %v12270
      %v12272 = vpop.f32.mrb[0].mxu0
      %12273 = vmatprep.mubr.f32.mxu0 0.0
      %12274 = vmatmul.mubr.f32.gmra.mrb[0].mxu0 %v11615
      %v12275 = vpop.f32.mrb[0].mxu0
      %v12276 = vadd.f32 0.0, %v12275
      %v12277 = vpop.f32.mrb[0].mxu0
      %12278 = vmatprep.mubr.f32.mxu0 0.0
      %12279 = vmatmul.mubr.f32.gmra.mrb[0].mxu0 %v11618
      %v12280 = vpop.f32.mrb[0].mxu0
      %v12281 = vadd.f32 0.0, %v12280
      %v12282 = vpop.f32.mrb[0].mxu0
      %12283 = vmatprep.mubr.f32.mxu0 0.0
      %12284 = vmatmul.mubr.f32.gmra.mrb[0].mxu0 %v11621
      %v12285 = vpop.f32.mrb[0].mxu0
      %v12286 = vadd.f32 0.0, %v12285
      %v12287 = vpop.f32.mrb[0].mxu0
      %12288 = vmatprep.mubr.f32.mxu0 0.0
      %12289 = vmatmul.mubr.f32.gmra.mrb[0].mxu0 %v11624
      %v12290 = vpop.f32.mrb[0].mxu0
      %v12291 = vadd.f32 0.0, %v12290
      %v12292 = vpop.f32.mrb[0].mxu0
      %12293 = vmatprep.mubr.f32.mxu0 0.0
      %12294 = vmatmul.mubr.f32.gmra.mrb[0].mxu0 %v11627
      %v12295 = vpop.f32.mrb[0].mxu0
      %v12296 = vadd.f32 0.0, %v12295
      %v12297 = vpop.f32.mrb[0].mxu0
      %12298 = vmatprep.mubr.f32.mxu0 0.0
      %12299 = vmatmul.mubr.f32.gmra.mrb[0].mxu0 %v11630
      %v12300 = vpop.f32.mrb[0].mxu0
      %v12301 = vadd.f32 0.0, %v12300
      %v12302 = vpop.f32.mrb[0].mxu0
      %12303 = vmatprep.mubr.f32.mxu0 0.0
      %12304 = vmatmul.mubr.f32.gmra.mrb[0].mxu0 %v11633
      %v12305 = vpop.f32.mrb[0].mxu0
      %v12306 = vadd.f32 0.0, %v12305
      %v12307 = vpop.f32.mrb[0].mxu0
      %12308 = vmatprep.mubr.f32.mxu0 0.0
      %12309 = vmatmul.mubr.f32.gmra.mrb[0].mxu0 %v11636
      %v12310 = vpop.f32.mrb[0].mxu0
      %v12311 = vadd.f32 0.0, %v12310
      %v12312 = vpop.f32.mrb[0].mxu0
      %12313 = vmatprep.mubr.f32.mxu0 0.0
      %12314 = vmatmul.mubr.f32.gmra.mrb[0].mxu0 %v11639
      %v12315 = vpop.f32.mrb[0].mxu0
      %v12316 = vadd.f32 0.0, %v12315
      %v12317 = vpop.f32.mrb[0].mxu0
      %12318 = vmatprep.mubr.f32.mxu0 0.0
      %12319 = vmatmul.mubr.f32.gmra.mrb[0].mxu0 %v11642
      %v12320 = vpop.f32.mrb[0].mxu0
      %v12321 = vadd.f32 0.0, %v12320
      %v12322 = vpop.f32.mrb[0].mxu0
      %12323 = vmatprep.mubr.f32.mxu0 0.0
      %12324 = vmatmul.mubr.f32.gmra.mrb[0].mxu0 %v11645
      %v12325 = vpop.f32.mrb[0].mxu0
      %v12326 = vadd.f32 0.0, %v12325
      %v12327 = vpop.f32.mrb[0].mxu0
      %12328 = vmatprep.mubr.f32.mxu0 0.0
      %12329 = vmatmul.mubr.f32.gmra.mrb[0].mxu0 %v11648
      %v12330 = vpop.f32.mrb[0].mxu0
      %v12331 = vadd.f32 0.0, %v12330
      %v12332 = vpop.f32.mrb[0].mxu0
      %12333 = vmatprep.mubr.f32.mxu0 0.0
      %12334 = vmatmul.mubr.f32.gmra.mrb[0].mxu0 %v11651
      %v12335 = vpop.f32.mrb[0].mxu0
      %v12336 = vadd.f32 0.0, %v12335
      %v12337 = vpop.f32.mrb[0].mxu0
      %12338 = vmatprep.mubr.f32.mxu0 0.0
      %12339 = vmatmul.mubr.f32.gmra.mrb[0].mxu0 %v11654
      %v12340 = vpop.f32.mrb[0].mxu0
      %v12341 = vadd.f32 0.0, %v12340
      %v12342 = vpop.f32.mrb[0].mxu0
      %12343 = vmatprep.mubr.f32.mxu0 0.0
      %12344 = vmatmul.mubr.f32.gmra.mrb[0].mxu0 %v11657
      %v12345 = vpop.f32.mrb[0].mxu0
      %v12346 = vadd.f32 0.0, %v12345
      %v12347 = vpop.f32.mrb[0].mxu0
      %12348 = vmatprep.mubr.f32.mxu0 0.0
      %12349 = vmatmul.mubr.f32.gmra.mrb[0].mxu0 %v11660
      %v12350 = vpop.f32.mrb[0].mxu0
      %v12351 = vadd.f32 0.0, %v12350
      %v12352 = vpop.f32.mrb[0].mxu0
      %12353 = vmatprep.mubr.f32.mxu0 0.0
      %12354 = vmatmul.mubr.f32.gmra.mrb[0].mxu0 %v11663
      %v12355 = vpop.f32.mrb[0].mxu0
      %v12356 = vadd.f32 0.0, %v12355
      %v12357 = vpop.f32.mrb[0].mxu0
      %12358 = vmatprep.mubr.f32.mxu0 0.0
      %12359 = vmatmul.mubr.f32.gmra.mrb[0].mxu0 %v11666
      %v12360 = vpop.f32.mrb[0].mxu0
      %v12361 = vadd.f32 0.0, %v12360
      %v12362 = vpop.f32.mrb[0].mxu0
      %12363 = vmatprep.mubr.f32.mxu0 0.0
      %12364 = vmatmul.mubr.f32.gmra.mrb[0].mxu0 %v11669
      %v12365 = vpop.f32.mrb[0].mxu0
      %v12366 = vadd.f32 0.0, %v12365
      %v12367 = vpop.f32.mrb[0].mxu0
      %12368 = vmatprep.mubr.f32.mxu0 0.0
      %12369 = vmatmul.mubr.f32.gmra.mrb[0].mxu0 %v11672
      %v12370 = vpop.f32.mrb[0].mxu0
      %v12371 = vadd.f32 0.0, %v12370
      %v12372 = vpop.f32.mrb[0].mxu0
      %12373 = vmatprep.mubr.f32.mxu0 0.0
      %12374 = vmatmul.mubr.f32.gmra.mrb[0].mxu0 %v11675
      %v12375 = vpop.f32.mrb[0].mxu0
      %v12376 = vadd.f32 0.0, %v12375
      %v12377 = vpop.f32.mrb[0].mxu0
      %12378 = vmatprep.mubr.f32.mxu0 0.0
      %12379 = vmatmul.mubr.f32.gmra.mrb[0].mxu0 %v11678
      %v12380 = vpop.f32.mrb[0].mxu0
      %v12381 = vadd.f32 0.0, %v12380
      %v12382 = vpop.f32.mrb[0].mxu0
      %12383 = vmatprep.mubr.f32.mxu0 0.0
      %12384 = vmatmul.mubr.f32.gmra.mrb[0].mxu0 %v11681
      %v12385 = vpop.f32.mrb[0].mxu0
      %v12386 = vadd.f32 0.0, %v12385
      %v12387 = vpop.f32.mrb[0].mxu0
      %12388 = vmatprep.mubr.f32.mxu0 0.0
      %12389 = vmatmul.mubr.f32.gmra.mrb[0].mxu0 %v11684
      %v12390 = vpop.f32.mrb[0].mxu0
      %v12391 = vadd.f32 0.0, %v12390
      %v12392 = vpop.f32.mrb[0].mxu0
      %12393 = vdwg.mxu0
      %v12394 = vadd.f32 %v11044, %v11756
      %v12395 = vadd.f32 %v11045, %v11761
      %v12396 = vadd.f32 %v11046, %v11766
      %v12397 = vadd.f32 %v11047, %v11771
      %v12398 = vadd.f32 %v11048, %v11776
      %v12399 = vadd.f32 %v11049, %v11781
      %v12400 = vadd.f32 %v11050, %v11786
      %v12401 = vadd.f32 %v11051, %v11791
      %v12402 = vadd.f32 %v11052, %v11796
      %v12403 = vadd.f32 %v11053, %v11801
      %v12404 = vadd.f32 %v11054, %v11806
      %v12405 = vadd.f32 %v11055, %v11811
      %v12406 = vadd.f32 %v11056, %v11816
      %v12407 = vadd.f32 %v11057, %v11821
      %v12408 = vadd.f32 %v11058, %v11826
      %v12409 = vadd.f32 %v11059, %v11831
      %v12410 = vadd.f32 %v11060, %v11836
      %v12411 = vadd.f32 %v11061, %v11841
      %v12412 = vadd.f32 %v11062, %v11846
      %v12413 = vadd.f32 %v11063, %v11851
      %v12414 = vadd.f32 %v11064, %v11856
      %v12415 = vadd.f32 %v11065, %v11861
      %v12416 = vadd.f32 %v11066, %v11866
      %v12417 = vadd.f32 %v11067, %v11871
      %v12418 = vadd.f32 %v11068, %v11876
      %v12419 = vadd.f32 %v11069, %v11881
      %v12420 = vadd.f32 %v11070, %v11886
      %v12421 = vadd.f32 %v11071, %v11891
      %v12422 = vadd.f32 %v11072, %v11896
      %v12423 = vadd.f32 %v11073, %v11901
      %v12424 = vadd.f32 %v11074, %v11906
      %v12425 = vadd.f32 %v11075, %v11911
      %v12426 = vadd.f32 %v11076, %v11916
      %v12427 = vadd.f32 %v11077, %v11921
      %v12428 = vadd.f32 %v11078, %v11926
      %v12429 = vadd.f32 %v11079, %v11931
      %v12430 = vadd.f32 %v11080, %v11936
      %v12431 = vadd.f32 %v11081, %v11941
      %v12432 = vadd.f32 %v11082, %v11946
      %v12433 = vadd.f32 %v11083, %v11951
      %v12434 = vadd.f32 %v11084, %v11956
      %v12435 = vadd.f32 %v11085, %v11961
      %v12436 = vadd.f32 %v11086, %v11966
      %v12437 = vadd.f32 %v11087, %v11971
      %v12438 = vadd.f32 %v11088, %v11976
      %v12439 = vadd.f32 %v11089, %v11981
      %v12440 = vadd.f32 %v11090, %v11986
      %v12441 = vadd.f32 %v11091, %v11991
      %v12442 = vadd.f32 %v11092, %v11996
      %v12443 = vadd.f32 %v11093, %v12001
      %v12444 = vadd.f32 %v11094, %v12006
      %v12445 = vadd.f32 %v11095, %v12011
      %v12446 = vadd.f32 %v11096, %v12016
      %v12447 = vadd.f32 %v11097, %v12021
      %v12448 = vadd.f32 %v11098, %v12026
      %v12449 = vadd.f32 %v11099, %v12031
      %v12450 = vadd.f32 %v11100, %v12036
      %v12451 = vadd.f32 %v11101, %v12041
      %v12452 = vadd.f32 %v11102, %v12046
      %v12453 = vadd.f32 %v11103, %v12051
      %v12454 = vadd.f32 %v11104, %v12056
      %v12455 = vadd.f32 %v11105, %v12061
      %v12456 = vadd.f32 %v11106, %v12066
      %v12457 = vadd.f32 %v11107, %v12071
      %v12458 = vadd.f32 %v11108, %v12076
      %v12459 = vadd.f32 %v11109, %v12081
      %v12460 = vadd.f32 %v11110, %v12086
      %v12461 = vadd.f32 %v11111, %v12091
      %v12462 = vadd.f32 %v11112, %v12096
      %v12463 = vadd.f32 %v11113, %v12101
      %v12464 = vadd.f32 %v11114, %v12106
      %v12465 = vadd.f32 %v11115, %v12111
      %v12466 = vadd.f32 %v11116, %v12116
      %v12467 = vadd.f32 %v11117, %v12121
      %v12468 = vadd.f32 %v11118, %v12126
      %v12469 = vadd.f32 %v11119, %v12131
      %v12470 = vadd.f32 %v11120, %v12136
      %v12471 = vadd.f32 %v11121, %v12141
      %v12472 = vadd.f32 %v11122, %v12146
      %v12473 = vadd.f32 %v11123, %v12151
      %v12474 = vadd.f32 %v11124, %v12156
      %v12475 = vadd.f32 %v11125, %v12161
      %v12476 = vadd.f32 %v11126, %v12166
      %v12477 = vadd.f32 %v11127, %v12171
      %v12478 = vadd.f32 %v11128, %v12176
      %v12479 = vadd.f32 %v11129, %v12181
      %v12480 = vadd.f32 %v11130, %v12186
      %v12481 = vadd.f32 %v11131, %v12191
      %v12482 = vadd.f32 %v11132, %v12196
      %v12483 = vadd.f32 %v11133, %v12201
      %v12484 = vadd.f32 %v11134, %v12206
      %v12485 = vadd.f32 %v11135, %v12211
      %v12486 = vadd.f32 %v11136, %v12216
      %v12487 = vadd.f32 %v11137, %v12221
      %v12488 = vadd.f32 %v11138, %v12226
      %v12489 = vadd.f32 %v11139, %v12231
      %v12490 = vadd.f32 %v11140, %v12236
      %v12491 = vadd.f32 %v11141, %v12241
      %v12492 = vadd.f32 %v11142, %v12246
      %v12493 = vadd.f32 %v11143, %v12251
      %v12494 = vadd.f32 %v11144, %v12256
      %v12495 = vadd.f32 %v11145, %v12261
      %v12496 = vadd.f32 %v11146, %v12266
      %v12497 = vadd.f32 %v11147, %v12271
      %v12498 = vadd.f32 %v11148, %v12276
      %v12499 = vadd.f32 %v11149, %v12281
      %v12500 = vadd.f32 %v11150, %v12286
      %v12501 = vadd.f32 %v11151, %v12291
      %v12502 = vadd.f32 %v11152, %v12296
      %v12503 = vadd.f32 %v11153, %v12301
      %v12504 = vadd.f32 %v11154, %v12306
      %v12505 = vadd.f32 %v11155, %v12311
      %v12506 = vadd.f32 %v11156, %v12316
      %v12507 = vadd.f32 %v11157, %v12321
      %v12508 = vadd.f32 %v11158, %v12326
      %v12509 = vadd.f32 %v11159, %v12331
      %v12510 = vadd.f32 %v11160, %v12336
      %v12511 = vadd.f32 %v11161, %v12341
      %v12512 = vadd.f32 %v11162, %v12346
      %v12513 = vadd.f32 %v11163, %v12351
      %v12514 = vadd.f32 %v11164, %v12356
      %v12515 = vadd.f32 %v11165, %v12361
      %v12516 = vadd.f32 %v11166, %v12366
      %v12517 = vadd.f32 %v11167, %v12371
      %v12518 = vadd.f32 %v11168, %v12376
      %v12519 = vadd.f32 %v11169, %v12381
      %v12520 = vadd.f32 %v11170, %v12386
      %v12521 = vadd.f32 %v11171, %v12391
      %v12522 = vld [vmem:[%s2] sm:$0x1]
      %v12524 = vlaneseq
      %v12525 = vshrl.u32 %v12524, 7
      %v12526 = vsub.s32 0, %v12525
      %v12527 = vrot.slane %v12522, %v12526
      %v12529 = vmul.f32 %v12394, %v12527
      %v12530 = vmul.f32 %v12395, %v12527
      %v12531 = vmul.f32 %v12396, %v12527
      %v12532 = vmul.f32 %v12397, %v12527
      %v12533 = vmul.f32 %v12398, %v12527
      %v12534 = vmul.f32 %v12399, %v12527
      %v12535 = vmul.f32 %v12400, %v12527
      %v12536 = vmul.f32 %v12401, %v12527
      %v12537 = vmul.f32 %v12402, %v12527
      %v12538 = vmul.f32 %v12403, %v12527
      %v12539 = vmul.f32 %v12404, %v12527
      %v12540 = vmul.f32 %v12405, %v12527
      %v12541 = vmul.f32 %v12406, %v12527
      %v12542 = vmul.f32 %v12407, %v12527
      %v12543 = vmul.f32 %v12408, %v12527
      %v12544 = vmul.f32 %v12409, %v12527
      %v12545 = vmul.f32 %v12410, %v12527
      %v12546 = vmul.f32 %v12411, %v12527
      %v12547 = vmul.f32 %v12412, %v12527
      %v12548 = vmul.f32 %v12413, %v12527
      %v12549 = vmul.f32 %v12414, %v12527
      %v12550 = vmul.f32 %v12415, %v12527
      %v12551 = vmul.f32 %v12416, %v12527
      %v12552 = vmul.f32 %v12417, %v12527
      %v12553 = vmul.f32 %v12418, %v12527
      %v12554 = vmul.f32 %v12419, %v12527
      %v12555 = vmul.f32 %v12420, %v12527
      %v12556 = vmul.f32 %v12421, %v12527
      %v12557 = vmul.f32 %v12422, %v12527
      %v12558 = vmul.f32 %v12423, %v12527
      %v12559 = vmul.f32 %v12424, %v12527
      %v12560 = vmul.f32 %v12425, %v12527
      %v12561 = vmul.f32 %v12426, %v12527
      %v12562 = vmul.f32 %v12427, %v12527
      %v12563 = vmul.f32 %v12428, %v12527
      %v12564 = vmul.f32 %v12429, %v12527
      %v12565 = vmul.f32 %v12430, %v12527
      %v12566 = vmul.f32 %v12431, %v12527
      %v12567 = vmul.f32 %v12432, %v12527
      %v12568 = vmul.f32 %v12433, %v12527
      %v12569 = vmul.f32 %v12434, %v12527
      %v12570 = vmul.f32 %v12435, %v12527
      %v12571 = vmul.f32 %v12436, %v12527
      %v12572 = vmul.f32 %v12437, %v12527
      %v12573 = vmul.f32 %v12438, %v12527
      %v12574 = vmul.f32 %v12439, %v12527
      %v12575 = vmul.f32 %v12440, %v12527
      %v12576 = vmul.f32 %v12441, %v12527
      %v12577 = vmul.f32 %v12442, %v12527
      %v12578 = vmul.f32 %v12443, %v12527
      %v12579 = vmul.f32 %v12444, %v12527
      %v12580 = vmul.f32 %v12445, %v12527
      %v12581 = vmul.f32 %v12446, %v12527
      %v12582 = vmul.f32 %v12447, %v12527
      %v12583 = vmul.f32 %v12448, %v12527
      %v12584 = vmul.f32 %v12449, %v12527
      %v12585 = vmul.f32 %v12450, %v12527
      %v12586 = vmul.f32 %v12451, %v12527
      %v12587 = vmul.f32 %v12452, %v12527
      %v12588 = vmul.f32 %v12453, %v12527
      %v12589 = vmul.f32 %v12454, %v12527
      %v12590 = vmul.f32 %v12455, %v12527
      %v12591 = vmul.f32 %v12456, %v12527
      %v12592 = vmul.f32 %v12457, %v12527
      %v12593 = vmul.f32 %v12458, %v12527
      %v12594 = vmul.f32 %v12459, %v12527
      %v12595 = vmul.f32 %v12460, %v12527
      %v12596 = vmul.f32 %v12461, %v12527
      %v12597 = vmul.f32 %v12462, %v12527
      %v12598 = vmul.f32 %v12463, %v12527
      %v12599 = vmul.f32 %v12464, %v12527
      %v12600 = vmul.f32 %v12465, %v12527
      %v12601 = vmul.f32 %v12466, %v12527
      %v12602 = vmul.f32 %v12467, %v12527
      %v12603 = vmul.f32 %v12468, %v12527
      %v12604 = vmul.f32 %v12469, %v12527
      %v12605 = vmul.f32 %v12470, %v12527
      %v12606 = vmul.f32 %v12471, %v12527
      %v12607 = vmul.f32 %v12472, %v12527
      %v12608 = vmul.f32 %v12473, %v12527
      %v12609 = vmul.f32 %v12474, %v12527
      %v12610 = vmul.f32 %v12475, %v12527
      %v12611 = vmul.f32 %v12476, %v12527
      %v12612 = vmul.f32 %v12477, %v12527
      %v12613 = vmul.f32 %v12478, %v12527
      %v12614 = vmul.f32 %v12479, %v12527
      %v12615 = vmul.f32 %v12480, %v12527
      %v12616 = vmul.f32 %v12481, %v12527
      %v12617 = vmul.f32 %v12482, %v12527
      %v12618 = vmul.f32 %v12483, %v12527
      %v12619 = vmul.f32 %v12484, %v12527
      %v12620 = vmul.f32 %v12485, %v12527
      %v12621 = vmul.f32 %v12486, %v12527
      %v12622 = vmul.f32 %v12487, %v12527
      %v12623 = vmul.f32 %v12488, %v12527
      %v12624 = vmul.f32 %v12489, %v12527
      %v12625 = vmul.f32 %v12490, %v12527
      %v12626 = vmul.f32 %v12491, %v12527
      %v12627 = vmul.f32 %v12492, %v12527
      %v12628 = vmul.f32 %v12493, %v12527
      %v12629 = vmul.f32 %v12494, %v12527
      %v12630 = vmul.f32 %v12495, %v12527
      %v12631 = vmul.f32 %v12496, %v12527
      %v12632 = vmul.f32 %v12497, %v12527
      %v12633 = vmul.f32 %v12498, %v12527
      %v12634 = vmul.f32 %v12499, %v12527
      %v12635 = vmul.f32 %v12500, %v12527
      %v12636 = vmul.f32 %v12501, %v12527
      %v12637 = vmul.f32 %v12502, %v12527
      %v12638 = vmul.f32 %v12503, %v12527
      %v12639 = vmul.f32 %v12504, %v12527
      %v12640 = vmul.f32 %v12505, %v12527
      %v12641 = vmul.f32 %v12506, %v12527
      %v12642 = vmul.f32 %v12507, %v12527
      %v12643 = vmul.f32 %v12508, %v12527
      %v12644 = vmul.f32 %v12509, %v12527
      %v12645 = vmul.f32 %v12510, %v12527
      %v12646 = vmul.f32 %v12511, %v12527
      %v12647 = vmul.f32 %v12512, %v12527
      %v12648 = vmul.f32 %v12513, %v12527
      %v12649 = vmul.f32 %v12514, %v12527
      %v12650 = vmul.f32 %v12515, %v12527
      %v12651 = vmul.f32 %v12516, %v12527
      %v12652 = vmul.f32 %v12517, %v12527
      %v12653 = vmul.f32 %v12518, %v12527
      %v12654 = vmul.f32 %v12519, %v12527
      %v12655 = vmul.f32 %v12520, %v12527
      %v12656 = vmul.f32 %v12521, %v12527
      %v12657 = vld [vmem:[%s3] sm:$0x1]
      %v12659 = vlaneseq
      %v12660 = vshrl.u32 %v12659, 7
      %v12661 = vsub.s32 0, %v12660
      %v12662 = vrot.slane %v12657, %v12661
      %v12664 = vadd.f32 %v12529, %v12662
      %v12665 = vadd.f32 %v12530, %v12662
      %v12666 = vadd.f32 %v12531, %v12662
      %v12667 = vadd.f32 %v12532, %v12662
      %v12668 = vadd.f32 %v12533, %v12662
      %v12669 = vadd.f32 %v12534, %v12662
      %v12670 = vadd.f32 %v12535, %v12662
      %v12671 = vadd.f32 %v12536, %v12662
      %v12672 = vadd.f32 %v12537, %v12662
      %v12673 = vadd.f32 %v12538, %v12662
      %v12674 = vadd.f32 %v12539, %v12662
      %v12675 = vadd.f32 %v12540, %v12662
      %v12676 = vadd.f32 %v12541, %v12662
      %v12677 = vadd.f32 %v12542, %v12662
      %v12678 = vadd.f32 %v12543, %v12662
      %v12679 = vadd.f32 %v12544, %v12662
      %v12680 = vadd.f32 %v12545, %v12662
      %v12681 = vadd.f32 %v12546, %v12662
      %v12682 = vadd.f32 %v12547, %v12662
      %v12683 = vadd.f32 %v12548, %v12662
      %v12684 = vadd.f32 %v12549, %v12662
      %v12685 = vadd.f32 %v12550, %v12662
      %v12686 = vadd.f32 %v12551, %v12662
      %v12687 = vadd.f32 %v12552, %v12662
      %v12688 = vadd.f32 %v12553, %v12662
      %v12689 = vadd.f32 %v12554, %v12662
      %v12690 = vadd.f32 %v12555, %v12662
      %v12691 = vadd.f32 %v12556, %v12662
      %v12692 = vadd.f32 %v12557, %v12662
      %v12693 = vadd.f32 %v12558, %v12662
      %v12694 = vadd.f32 %v12559, %v12662
      %v12695 = vadd.f32 %v12560, %v12662
      %v12696 = vadd.f32 %v12561, %v12662
      %v12697 = vadd.f32 %v12562, %v12662
      %v12698 = vadd.f32 %v12563, %v12662
      %v12699 = vadd.f32 %v12564, %v12662
      %v12700 = vadd.f32 %v12565, %v12662
      %v12701 = vadd.f32 %v12566, %v12662
      %v12702 = vadd.f32 %v12567, %v12662
      %v12703 = vadd.f32 %v12568, %v12662
      %v12704 = vadd.f32 %v12569, %v12662
      %v12705 = vadd.f32 %v12570, %v12662
      %v12706 = vadd.f32 %v12571, %v12662
      %v12707 = vadd.f32 %v12572, %v12662
      %v12708 = vadd.f32 %v12573, %v12662
      %v12709 = vadd.f32 %v12574, %v12662
      %v12710 = vadd.f32 %v12575, %v12662
      %v12711 = vadd.f32 %v12576, %v12662
      %v12712 = vadd.f32 %v12577, %v12662
      %v12713 = vadd.f32 %v12578, %v12662
      %v12714 = vadd.f32 %v12579, %v12662
      %v12715 = vadd.f32 %v12580, %v12662
      %v12716 = vadd.f32 %v12581, %v12662
      %v12717 = vadd.f32 %v12582, %v12662
      %v12718 = vadd.f32 %v12583, %v12662
      %v12719 = vadd.f32 %v12584, %v12662
      %v12720 = vadd.f32 %v12585, %v12662
      %v12721 = vadd.f32 %v12586, %v12662
      %v12722 = vadd.f32 %v12587, %v12662
      %v12723 = vadd.f32 %v12588, %v12662
      %v12724 = vadd.f32 %v12589, %v12662
      %v12725 = vadd.f32 %v12590, %v12662
      %v12726 = vadd.f32 %v12591, %v12662
      %v12727 = vadd.f32 %v12592, %v12662
      %v12728 = vadd.f32 %v12593, %v12662
      %v12729 = vadd.f32 %v12594, %v12662
      %v12730 = vadd.f32 %v12595, %v12662
      %v12731 = vadd.f32 %v12596, %v12662
      %v12732 = vadd.f32 %v12597, %v12662
      %v12733 = vadd.f32 %v12598, %v12662
      %v12734 = vadd.f32 %v12599, %v12662
      %v12735 = vadd.f32 %v12600, %v12662
      %v12736 = vadd.f32 %v12601, %v12662
      %v12737 = vadd.f32 %v12602, %v12662
      %v12738 = vadd.f32 %v12603, %v12662
      %v12739 = vadd.f32 %v12604, %v12662
      %v12740 = vadd.f32 %v12605, %v12662
      %v12741 = vadd.f32 %v12606, %v12662
      %v12742 = vadd.f32 %v12607, %v12662
      %v12743 = vadd.f32 %v12608, %v12662
      %v12744 = vadd.f32 %v12609, %v12662
      %v12745 = vadd.f32 %v12610, %v12662
      %v12746 = vadd.f32 %v12611, %v12662
      %v12747 = vadd.f32 %v12612, %v12662
      %v12748 = vadd.f32 %v12613, %v12662
      %v12749 = vadd.f32 %v12614, %v12662
      %v12750 = vadd.f32 %v12615, %v12662
      %v12751 = vadd.f32 %v12616, %v12662
      %v12752 = vadd.f32 %v12617, %v12662
      %v12753 = vadd.f32 %v12618, %v12662
      %v12754 = vadd.f32 %v12619, %v12662
      %v12755 = vadd.f32 %v12620, %v12662
      %v12756 = vadd.f32 %v12621, %v12662
      %v12757 = vadd.f32 %v12622, %v12662
      %v12758 = vadd.f32 %v12623, %v12662
      %v12759 = vadd.f32 %v12624, %v12662
      %v12760 = vadd.f32 %v12625, %v12662
      %v12761 = vadd.f32 %v12626, %v12662
      %v12762 = vadd.f32 %v12627, %v12662
      %v12763 = vadd.f32 %v12628, %v12662
      %v12764 = vadd.f32 %v12629, %v12662
      %v12765 = vadd.f32 %v12630, %v12662
      %v12766 = vadd.f32 %v12631, %v12662
      %v12767 = vadd.f32 %v12632, %v12662
      %v12768 = vadd.f32 %v12633, %v12662
      %v12769 = vadd.f32 %v12634, %v12662
      %v12770 = vadd.f32 %v12635, %v12662
      %v12771 = vadd.f32 %v12636, %v12662
      %v12772 = vadd.f32 %v12637, %v12662
      %v12773 = vadd.f32 %v12638, %v12662
      %v12774 = vadd.f32 %v12639, %v12662
      %v12775 = vadd.f32 %v12640, %v12662
      %v12776 = vadd.f32 %v12641, %v12662
      %v12777 = vadd.f32 %v12642, %v12662
      %v12778 = vadd.f32 %v12643, %v12662
      %v12779 = vadd.f32 %v12644, %v12662
      %v12780 = vadd.f32 %v12645, %v12662
      %v12781 = vadd.f32 %v12646, %v12662
      %v12782 = vadd.f32 %v12647, %v12662
      %v12783 = vadd.f32 %v12648, %v12662
      %v12784 = vadd.f32 %v12649, %v12662
      %v12785 = vadd.f32 %v12650, %v12662
      %v12786 = vadd.f32 %v12651, %v12662
      %v12787 = vadd.f32 %v12652, %v12662
      %v12788 = vadd.f32 %v12653, %v12662
      %v12789 = vadd.f32 %v12654, %v12662
      %v12790 = vadd.f32 %v12655, %v12662
      %v12791 = vadd.f32 %v12656, %v12662
      %v12792 = vmax.f32 %v12664, 0.0
      %v12793 = vmax.f32 %v12665, 0.0
      %v12794 = vmax.f32 %v12666, 0.0
      %v12795 = vmax.f32 %v12667, 0.0
      %v12796 = vmax.f32 %v12668, 0.0
      %v12797 = vmax.f32 %v12669, 0.0
      %v12798 = vmax.f32 %v12670, 0.0
      %v12799 = vmax.f32 %v12671, 0.0
      %v12800 = vmax.f32 %v12672, 0.0
      %v12801 = vmax.f32 %v12673, 0.0
      %v12802 = vmax.f32 %v12674, 0.0
      %v12803 = vmax.f32 %v12675, 0.0
      %v12804 = vmax.f32 %v12676, 0.0
      %v12805 = vmax.f32 %v12677, 0.0
      %v12806 = vmax.f32 %v12678, 0.0
      %v12807 = vmax.f32 %v12679, 0.0
      %v12808 = vmax.f32 %v12680, 0.0
      %v12809 = vmax.f32 %v12681, 0.0
      %v12810 = vmax.f32 %v12682, 0.0
      %v12811 = vmax.f32 %v12683, 0.0
      %v12812 = vmax.f32 %v12684, 0.0
      %v12813 = vmax.f32 %v12685, 0.0
      %v12814 = vmax.f32 %v12686, 0.0
      %v12815 = vmax.f32 %v12687, 0.0
      %v12816 = vmax.f32 %v12688, 0.0
      %v12817 = vmax.f32 %v12689, 0.0
      %v12818 = vmax.f32 %v12690, 0.0
      %v12819 = vmax.f32 %v12691, 0.0
      %v12820 = vmax.f32 %v12692, 0.0
      %v12821 = vmax.f32 %v12693, 0.0
      %v12822 = vmax.f32 %v12694, 0.0
      %v12823 = vmax.f32 %v12695, 0.0
      %v12824 = vmax.f32 %v12696, 0.0
      %v12825 = vmax.f32 %v12697, 0.0
      %v12826 = vmax.f32 %v12698, 0.0
      %v12827 = vmax.f32 %v12699, 0.0
      %v12828 = vmax.f32 %v12700, 0.0
      %v12829 = vmax.f32 %v12701, 0.0
      %v12830 = vmax.f32 %v12702, 0.0
      %v12831 = vmax.f32 %v12703, 0.0
      %v12832 = vmax.f32 %v12704, 0.0
      %v12833 = vmax.f32 %v12705, 0.0
      %v12834 = vmax.f32 %v12706, 0.0
      %v12835 = vmax.f32 %v12707, 0.0
      %v12836 = vmax.f32 %v12708, 0.0
      %v12837 = vmax.f32 %v12709, 0.0
      %v12838 = vmax.f32 %v12710, 0.0
      %v12839 = vmax.f32 %v12711, 0.0
      %v12840 = vmax.f32 %v12712, 0.0
      %v12841 = vmax.f32 %v12713, 0.0
      %v12842 = vmax.f32 %v12714, 0.0
      %v12843 = vmax.f32 %v12715, 0.0
      %v12844 = vmax.f32 %v12716, 0.0
      %v12845 = vmax.f32 %v12717, 0.0
      %v12846 = vmax.f32 %v12718, 0.0
      %v12847 = vmax.f32 %v12719, 0.0
      %v12848 = vmax.f32 %v12720, 0.0
      %v12849 = vmax.f32 %v12721, 0.0
      %v12850 = vmax.f32 %v12722, 0.0
      %v12851 = vmax.f32 %v12723, 0.0
      %v12852 = vmax.f32 %v12724, 0.0
      %v12853 = vmax.f32 %v12725, 0.0
      %v12854 = vmax.f32 %v12726, 0.0
      %v12855 = vmax.f32 %v12727, 0.0
      %v12856 = vmax.f32 %v12728, 0.0
      %v12857 = vmax.f32 %v12729, 0.0
      %v12858 = vmax.f32 %v12730, 0.0
      %v12859 = vmax.f32 %v12731, 0.0
      %v12860 = vmax.f32 %v12732, 0.0
      %v12861 = vmax.f32 %v12733, 0.0
      %v12862 = vmax.f32 %v12734, 0.0
      %v12863 = vmax.f32 %v12735, 0.0
      %v12864 = vmax.f32 %v12736, 0.0
      %v12865 = vmax.f32 %v12737, 0.0
      %v12866 = vmax.f32 %v12738, 0.0
      %v12867 = vmax.f32 %v12739, 0.0
      %v12868 = vmax.f32 %v12740, 0.0
      %v12869 = vmax.f32 %v12741, 0.0
      %v12870 = vmax.f32 %v12742, 0.0
      %v12871 = vmax.f32 %v12743, 0.0
      %v12872 = vmax.f32 %v12744, 0.0
      %v12873 = vmax.f32 %v12745, 0.0
      %v12874 = vmax.f32 %v12746, 0.0
      %v12875 = vmax.f32 %v12747, 0.0
      %v12876 = vmax.f32 %v12748, 0.0
      %v12877 = vmax.f32 %v12749, 0.0
      %v12878 = vmax.f32 %v12750, 0.0
      %v12879 = vmax.f32 %v12751, 0.0
      %v12880 = vmax.f32 %v12752, 0.0
      %v12881 = vmax.f32 %v12753, 0.0
      %v12882 = vmax.f32 %v12754, 0.0
      %v12883 = vmax.f32 %v12755, 0.0
      %v12884 = vmax.f32 %v12756, 0.0
      %v12885 = vmax.f32 %v12757, 0.0
      %v12886 = vmax.f32 %v12758, 0.0
      %v12887 = vmax.f32 %v12759, 0.0
      %v12888 = vmax.f32 %v12760, 0.0
      %v12889 = vmax.f32 %v12761, 0.0
      %v12890 = vmax.f32 %v12762, 0.0
      %v12891 = vmax.f32 %v12763, 0.0
      %v12892 = vmax.f32 %v12764, 0.0
      %v12893 = vmax.f32 %v12765, 0.0
      %v12894 = vmax.f32 %v12766, 0.0
      %v12895 = vmax.f32 %v12767, 0.0
      %v12896 = vmax.f32 %v12768, 0.0
      %v12897 = vmax.f32 %v12769, 0.0
      %v12898 = vmax.f32 %v12770, 0.0
      %v12899 = vmax.f32 %v12771, 0.0
      %v12900 = vmax.f32 %v12772, 0.0
      %v12901 = vmax.f32 %v12773, 0.0
      %v12902 = vmax.f32 %v12774, 0.0
      %v12903 = vmax.f32 %v12775, 0.0
      %v12904 = vmax.f32 %v12776, 0.0
      %v12905 = vmax.f32 %v12777, 0.0
      %v12906 = vmax.f32 %v12778, 0.0
      %v12907 = vmax.f32 %v12779, 0.0
      %v12908 = vmax.f32 %v12780, 0.0
      %v12909 = vmax.f32 %v12781, 0.0
      %v12910 = vmax.f32 %v12782, 0.0
      %v12911 = vmax.f32 %v12783, 0.0
      %v12912 = vmax.f32 %v12784, 0.0
      %v12913 = vmax.f32 %v12785, 0.0
      %v12914 = vmax.f32 %v12786, 0.0
      %v12915 = vmax.f32 %v12787, 0.0
      %v12916 = vmax.f32 %v12788, 0.0
      %v12917 = vmax.f32 %v12789, 0.0
      %v12918 = vmax.f32 %v12790, 0.0
      %v12919 = vmax.f32 %v12791, 0.0
      %vm12920 = vcmask 130048
      %12921 = vst.msk [vmem:[%s197] sm:$0xff] %vm12920, %v12792
      %12922 = vst.msk [vmem:[%s197 + $0x8] sm:$0xff] %vm12920, %v12793
      %12923 = vst.msk [vmem:[%s197 + $0x10] sm:$0xff] %vm12920, %v12794
      %12924 = vst.msk [vmem:[%s197 + $0x18] sm:$0xff] %vm12920, %v12795
      %12925 = vst.msk [vmem:[%s197 + $0x20] sm:$0xff] %vm12920, %v12796
      %12926 = vst.msk [vmem:[%s197 + $0x28] sm:$0xff] %vm12920, %v12797
      %12927 = vst.msk [vmem:[%s197 + $0x30] sm:$0xff] %vm12920, %v12798
      %12928 = vst.msk [vmem:[%s197 + $0x38] sm:$0xff] %vm12920, %v12799
      %12929 = vst.msk [vmem:[%s197 + $0x40] sm:$0xff] %vm12920, %v12800
      %12930 = vst.msk [vmem:[%s197 + $0x48] sm:$0xff] %vm12920, %v12801
      %12931 = vst.msk [vmem:[%s197 + $0x50] sm:$0xff] %vm12920, %v12802
      %12932 = vst.msk [vmem:[%s197 + $0x58] sm:$0xff] %vm12920, %v12803
      %12933 = vst.msk [vmem:[%s197 + $0x60] sm:$0xff] %vm12920, %v12804
      %12934 = vst.msk [vmem:[%s197 + $0x68] sm:$0xff] %vm12920, %v12805
      %12935 = vst.msk [vmem:[%s197 + $0x70] sm:$0xff] %vm12920, %v12806
      %12936 = vst.msk [vmem:[%s197 + $0x78] sm:$0xff] %vm12920, %v12807
      %12937 = vst.msk [vmem:[%s197 + $0x80] sm:$0xff] %vm12920, %v12808
      %12938 = vst.msk [vmem:[%s197 + $0x88] sm:$0xff] %vm12920, %v12809
      %12939 = vst.msk [vmem:[%s197 + $0x90] sm:$0xff] %vm12920, %v12810
      %12940 = vst.msk [vmem:[%s197 + $0x98] sm:$0xff] %vm12920, %v12811
      %12941 = vst.msk [vmem:[%s197 + $0xa0] sm:$0xff] %vm12920, %v12812
      %12942 = vst.msk [vmem:[%s197 + $0xa8] sm:$0xff] %vm12920, %v12813
      %12943 = vst.msk [vmem:[%s197 + $0xb0] sm:$0xff] %vm12920, %v12814
      %12944 = vst.msk [vmem:[%s197 + $0xb8] sm:$0xff] %vm12920, %v12815
      %12945 = vst.msk [vmem:[%s197 + $0xc0] sm:$0xff] %vm12920, %v12816
      %12946 = vst.msk [vmem:[%s197 + $0xc8] sm:$0xff] %vm12920, %v12817
      %12947 = vst.msk [vmem:[%s197 + $0xd0] sm:$0xff] %vm12920, %v12818
      %12948 = vst.msk [vmem:[%s197 + $0xd8] sm:$0xff] %vm12920, %v12819
      %12949 = vst.msk [vmem:[%s197 + $0xe0] sm:$0xff] %vm12920, %v12820
      %12950 = vst.msk [vmem:[%s197 + $0xe8] sm:$0xff] %vm12920, %v12821
      %12951 = vst.msk [vmem:[%s197 + $0xf0] sm:$0xff] %vm12920, %v12822
      %12952 = vst.msk [vmem:[%s197 + $0xf8] sm:$0xff] %vm12920, %v12823
      %12953 = vst.msk [vmem:[%s197 + $0x100] sm:$0xff] %vm12920, %v12824
      %12954 = vst.msk [vmem:[%s197 + $0x108] sm:$0xff] %vm12920, %v12825
      %12955 = vst.msk [vmem:[%s197 + $0x110] sm:$0xff] %vm12920, %v12826
      %12956 = vst.msk [vmem:[%s197 + $0x118] sm:$0xff] %vm12920, %v12827
      %12957 = vst.msk [vmem:[%s197 + $0x120] sm:$0xff] %vm12920, %v12828
      %12958 = vst.msk [vmem:[%s197 + $0x128] sm:$0xff] %vm12920, %v12829
      %12959 = vst.msk [vmem:[%s197 + $0x130] sm:$0xff] %vm12920, %v12830
      %12960 = vst.msk [vmem:[%s197 + $0x138] sm:$0xff] %vm12920, %v12831
      %12961 = vst.msk [vmem:[%s197 + $0x140] sm:$0xff] %vm12920, %v12832
      %12962 = vst.msk [vmem:[%s197 + $0x148] sm:$0xff] %vm12920, %v12833
      %12963 = vst.msk [vmem:[%s197 + $0x150] sm:$0xff] %vm12920, %v12834
      %12964 = vst.msk [vmem:[%s197 + $0x158] sm:$0xff] %vm12920, %v12835
      %12965 = vst.msk [vmem:[%s197 + $0x160] sm:$0xff] %vm12920, %v12836
      %12966 = vst.msk [vmem:[%s197 + $0x168] sm:$0xff] %vm12920, %v12837
      %12967 = vst.msk [vmem:[%s197 + $0x170] sm:$0xff] %vm12920, %v12838
      %12968 = vst.msk [vmem:[%s197 + $0x178] sm:$0xff] %vm12920, %v12839
      %12969 = vst.msk [vmem:[%s197 + $0x180] sm:$0xff] %vm12920, %v12840
      %12970 = vst.msk [vmem:[%s197 + $0x188] sm:$0xff] %vm12920, %v12841
      %12971 = vst.msk [vmem:[%s197 + $0x190] sm:$0xff] %vm12920, %v12842
      %12972 = vst.msk [vmem:[%s197 + $0x198] sm:$0xff] %vm12920, %v12843
      %12973 = vst.msk [vmem:[%s197 + $0x1a0] sm:$0xff] %vm12920, %v12844
      %12974 = vst.msk [vmem:[%s197 + $0x1a8] sm:$0xff] %vm12920, %v12845
      %12975 = vst.msk [vmem:[%s197 + $0x1b0] sm:$0xff] %vm12920, %v12846
      %12976 = vst.msk [vmem:[%s197 + $0x1b8] sm:$0xff] %vm12920, %v12847
      %12977 = vst.msk [vmem:[%s197 + $0x1c0] sm:$0xff] %vm12920, %v12848
      %12978 = vst.msk [vmem:[%s197 + $0x1c8] sm:$0xff] %vm12920, %v12849
      %12979 = vst.msk [vmem:[%s197 + $0x1d0] sm:$0xff] %vm12920, %v12850
      %12980 = vst.msk [vmem:[%s197 + $0x1d8] sm:$0xff] %vm12920, %v12851
      %12981 = vst.msk [vmem:[%s197 + $0x1e0] sm:$0xff] %vm12920, %v12852
      %12982 = vst.msk [vmem:[%s197 + $0x1e8] sm:$0xff] %vm12920, %v12853
      %12983 = vst.msk [vmem:[%s197 + $0x1f0] sm:$0xff] %vm12920, %v12854
      %12984 = vst.msk [vmem:[%s197 + $0x1f8] sm:$0xff] %vm12920, %v12855
      %12985 = vst.msk [vmem:[%s197 + $0x200] sm:$0xff] %vm12920, %v12856
      %12986 = vst.msk [vmem:[%s197 + $0x208] sm:$0xff] %vm12920, %v12857
      %12987 = vst.msk [vmem:[%s197 + $0x210] sm:$0xff] %vm12920, %v12858
      %12988 = vst.msk [vmem:[%s197 + $0x218] sm:$0xff] %vm12920, %v12859
      %12989 = vst.msk [vmem:[%s197 + $0x220] sm:$0xff] %vm12920, %v12860
      %12990 = vst.msk [vmem:[%s197 + $0x228] sm:$0xff] %vm12920, %v12861
      %12991 = vst.msk [vmem:[%s197 + $0x230] sm:$0xff] %vm12920, %v12862
      %12992 = vst.msk [vmem:[%s197 + $0x238] sm:$0xff] %vm12920, %v12863
      %12993 = vst.msk [vmem:[%s197 + $0x240] sm:$0xff] %vm12920, %v12864
      %12994 = vst.msk [vmem:[%s197 + $0x248] sm:$0xff] %vm12920, %v12865
      %12995 = vst.msk [vmem:[%s197 + $0x250] sm:$0xff] %vm12920, %v12866
      %12996 = vst.msk [vmem:[%s197 + $0x258] sm:$0xff] %vm12920, %v12867
      %12997 = vst.msk [vmem:[%s197 + $0x260] sm:$0xff] %vm12920, %v12868
      %12998 = vst.msk [vmem:[%s197 + $0x268] sm:$0xff] %vm12920, %v12869
      %12999 = vst.msk [vmem:[%s197 + $0x270] sm:$0xff] %vm12920, %v12870
      %13000 = vst.msk [vmem:[%s197 + $0x278] sm:$0xff] %vm12920, %v12871
      %13001 = vst.msk [vmem:[%s197 + $0x280] sm:$0xff] %vm12920, %v12872
      %13002 = vst.msk [vmem:[%s197 + $0x288] sm:$0xff] %vm12920, %v12873
      %13003 = vst.msk [vmem:[%s197 + $0x290] sm:$0xff] %vm12920, %v12874
      %13004 = vst.msk [vmem:[%s197 + $0x298] sm:$0xff] %vm12920, %v12875
      %13005 = vst.msk [vmem:[%s197 + $0x2a0] sm:$0xff] %vm12920, %v12876
      %13006 = vst.msk [vmem:[%s197 + $0x2a8] sm:$0xff] %vm12920, %v12877
      %13007 = vst.msk [vmem:[%s197 + $0x2b0] sm:$0xff] %vm12920, %v12878
      %13008 = vst.msk [vmem:[%s197 + $0x2b8] sm:$0xff] %vm12920, %v12879
      %13009 = vst.msk [vmem:[%s197 + $0x2c0] sm:$0xff] %vm12920, %v12880
      %13010 = vst.msk [vmem:[%s197 + $0x2c8] sm:$0xff] %vm12920, %v12881
      %13011 = vst.msk [vmem:[%s197 + $0x2d0] sm:$0xff] %vm12920, %v12882
      %13012 = vst.msk [vmem:[%s197 + $0x2d8] sm:$0xff] %vm12920, %v12883
      %13013 = vst.msk [vmem:[%s197 + $0x2e0] sm:$0xff] %vm12920, %v12884
      %13014 = vst.msk [vmem:[%s197 + $0x2e8] sm:$0xff] %vm12920, %v12885
      %13015 = vst.msk [vmem:[%s197 + $0x2f0] sm:$0xff] %vm12920, %v12886
      %13016 = vst.msk [vmem:[%s197 + $0x2f8] sm:$0xff] %vm12920, %v12887
      %13017 = vst.msk [vmem:[%s197 + $0x300] sm:$0xff] %vm12920, %v12888
      %13018 = vst.msk [vmem:[%s197 + $0x308] sm:$0xff] %vm12920, %v12889
      %13019 = vst.msk [vmem:[%s197 + $0x310] sm:$0xff] %vm12920, %v12890
      %13020 = vst.msk [vmem:[%s197 + $0x318] sm:$0xff] %vm12920, %v12891
      %13021 = vst.msk [vmem:[%s197 + $0x320] sm:$0xff] %vm12920, %v12892
      %13022 = vst.msk [vmem:[%s197 + $0x328] sm:$0xff] %vm12920, %v12893
      %13023 = vst.msk [vmem:[%s197 + $0x330] sm:$0xff] %vm12920, %v12894
      %13024 = vst.msk [vmem:[%s197 + $0x338] sm:$0xff] %vm12920, %v12895
      %13025 = vst.msk [vmem:[%s197 + $0x340] sm:$0xff] %vm12920, %v12896
      %13026 = vst.msk [vmem:[%s197 + $0x348] sm:$0xff] %vm12920, %v12897
      %13027 = vst.msk [vmem:[%s197 + $0x350] sm:$0xff] %vm12920, %v12898
      %13028 = vst.msk [vmem:[%s197 + $0x358] sm:$0xff] %vm12920, %v12899
      %13029 = vst.msk [vmem:[%s197 + $0x360] sm:$0xff] %vm12920, %v12900
      %13030 = vst.msk [vmem:[%s197 + $0x368] sm:$0xff] %vm12920, %v12901
      %13031 = vst.msk [vmem:[%s197 + $0x370] sm:$0xff] %vm12920, %v12902
      %13032 = vst.msk [vmem:[%s197 + $0x378] sm:$0xff] %vm12920, %v12903
      %13033 = vst.msk [vmem:[%s197 + $0x380] sm:$0xff] %vm12920, %v12904
      %13034 = vst.msk [vmem:[%s197 + $0x388] sm:$0xff] %vm12920, %v12905
      %13035 = vst.msk [vmem:[%s197 + $0x390] sm:$0xff] %vm12920, %v12906
      %13036 = vst.msk [vmem:[%s197 + $0x398] sm:$0xff] %vm12920, %v12907
      %13037 = vst.msk [vmem:[%s197 + $0x3a0] sm:$0xff] %vm12920, %v12908
      %13038 = vst.msk [vmem:[%s197 + $0x3a8] sm:$0xff] %vm12920, %v12909
      %13039 = vst.msk [vmem:[%s197 + $0x3b0] sm:$0xff] %vm12920, %v12910
      %13040 = vst.msk [vmem:[%s197 + $0x3b8] sm:$0xff] %vm12920, %v12911
      %13041 = vst.msk [vmem:[%s197 + $0x3c0] sm:$0xff] %vm12920, %v12912
      %13042 = vst.msk [vmem:[%s197 + $0x3c8] sm:$0xff] %vm12920, %v12913
      %13043 = vst.msk [vmem:[%s197 + $0x3d0] sm:$0xff] %vm12920, %v12914
      %13044 = vst.msk [vmem:[%s197 + $0x3d8] sm:$0xff] %vm12920, %v12915
      %13045 = vst.msk [vmem:[%s197 + $0x3e0] sm:$0xff] %vm12920, %v12916
      %13046 = vst.msk [vmem:[%s197 + $0x3e8] sm:$0xff] %vm12920, %v12917
      %13047 = vst.msk [vmem:[%s197 + $0x3f0] sm:$0xff] %vm12920, %v12918
      %13048 = vst.msk [vmem:[%s197 + $0x3f8] sm:$0xff] %vm12920, %v12919
      %p13049 = scmp.lt.s32.totalorder %s15, 1
      %s13050 = scalar_select %p13049, %s15, 1
      %s13051 = smul.addr %s13050, 128
      %s13052 = smul.addr %s13051, 8
      %s13053 = scalar_lea.vmem %s4, %s13052
      // Predicated region
      $region37: #{tpu_custom_call.1} parent=35 // pred_check
        %p13054 = pneg %p122
      $region38: #{tpu_custom_call.1} parent=35 // pred_check_branch
        %13056 = sbr.rel (%p13054) target = $region40
      $region39: #{tpu_custom_call.1} parent=35 // pred_region
        _
      $region40: #{tpu_custom_call.1} parent=35 // pred_fallthru
        _
    $region36: #{tpu_custom_call.1} parent=5 // pred_fallthru
      _
    %p13057 = scmp.le.s32.totalorder 2, %s10
    // Predicated region
    $region41: #{tpu_custom_call.1} parent=5 // pred_check
      %p13058 = pneg %p13057
    $region42: #{tpu_custom_call.1} parent=5 // pred_check_branch
      %13060 = sbr.rel (%p13058) target = $region44
    $region43: #{tpu_custom_call.1} parent=5 // pred_region
      %s13061 = ssub.s32 %s10, 2
      // Predicated region
      $region45: #{tpu_custom_call.1} parent=43 // pred_check
        %p13062 = pneg %p128
      $region46: #{tpu_custom_call.1} parent=43 // pred_check_branch
        %13064 = sbr.rel (%p13062) target = $region48
      $region47: #{tpu_custom_call.1} parent=43 // pred_region
        %p13065 = scmp.lt.s32.totalorder %s16, 1
        %s13066 = scalar_select %p13065, %s16, 1
        %s13067 = smul.addr %s13066, 128
        %s13068 = smul.addr %s13067, 8
        %s13069 = scalar_lea.vmem %s4, %s13068
      $region48: #{tpu_custom_call.1} parent=43 // pred_fallthru
        _
    $region44: #{tpu_custom_call.1} parent=5 // pred_fallthru
      _
  $region6: #{tpu_custom_call.1} parent=0 // loop_footer
    %s14 = sadd.s32 1, %s10
  $region7: #{tpu_custom_call.1} parent=0 // loop_footer_branch
    %9 = sbr.rel target = $region3
  $region8: #{tpu_custom_call.1} parent=0 // loop_exit
    _

</llo_original>
